<compile_context>
chip_gen: v6e
topology: v6e:2x2x1
jax: 0.10.0
libtpu: 0.0.40
codegen_flags: <defaults>
</compile_context>

<pallas_src>
import functools

import jax
import jax.numpy as jnp
from jax.experimental import pallas as pl
from jax.experimental.pallas import tpu as pltpu

_VMEM_LIMIT = 32 * 1024 * 1024      # safe on v5e/v6e/v7x
_TILE_M = 512                       # conv-matmul row tile (double-buffered, << VMEM)
_HW_TILE = 1024                     # CBAM HW tile
_HEAD_HW_TILE = 4096                # head GAP HW tile


# ----------------------------- activations ---------------------------------
def _silu(x):    return x * jax.nn.sigmoid(x)
def _leaky(x):   return jnp.where(x >= 0, x, 0.01 * x)     # LeakyReLU default slope
def _relu(x):    return jnp.maximum(x, 0.0)
def _sigmoid(x): return jax.nn.sigmoid(x)


# ----------------------------- small helpers --------------------------------
def _round_up(x, m):
    return ((x + m - 1) // m) * m


def _pad_axis(x, axis, new_size):
    if x.shape[axis] == new_size:
        return x
    pads = [(0, 0)] * x.ndim
    pads[axis] = (0, new_size - x.shape[axis])
    return jnp.pad(x, pads)


def _row_tiling(length, target):
    """Return (padded_length, tile, num_tiles). tile == full length if small."""
    if length <= target:
        return length, length, 1
    padded = _round_up(length, target)
    return padded, target, padded // target


def _parallel_params():
    return pltpu.CompilerParams(dimension_semantics=("parallel",),
                                vmem_limit_bytes=_VMEM_LIMIT)


def _arbitrary_params():
    return pltpu.CompilerParams(dimension_semantics=("arbitrary",),
                                vmem_limit_bytes=_VMEM_LIMIT)


# ----------------------------- Pallas kernels -------------------------------
def _mm_epilogue_kernel(act, has_res, p_ref, w_ref, s_ref, b_ref, *rest):
    """(tm, K) @ (K, Co) on the MXU (bf16 in, f32 acc) with fused BN affine,
    optional residual add, and activation in the epilogue."""
    if has_res:
        res_ref, o_ref = rest
    else:
        (o_ref,) = rest
    acc = jnp.dot(p_ref[...], w_ref[...], preferred_element_type=jnp.float32)
    y = acc * s_ref[...] + b_ref[...]
    if has_res:
        y = y + res_ref[...]
    o_ref[...] = act(y)


def _cbam_gate_kernel(hw, masked, thw,
                      x_ref, w1_ref, w2_ref, gate_ref, sum_sc, max_sc):
    """Pass A: tiled channel sum/max reduction over HW, shared-MLP gate on the
    last tile (P3 accumulator pattern)."""
    t = pl.program_id(0)

    @pl.when(t == 0)
    def _():
        sum_sc[...] = jnp.zeros_like(sum_sc)
        max_sc[...] = jnp.full_like(max_sc, -jnp.inf)

    x = x_ref[...]                                        # (N, thw, C) f32
    if masked:
        rows = jax.lax.broadcasted_iota(jnp.int32, x.shape, 1) + t * thw
        valid = rows < hw
        xs = jnp.where(valid, x, 0.0)
        xm = jnp.where(valid, x, -jnp.inf)
    else:
        xs, xm = x, x
    sum_sc[...] = sum_sc[...] + jnp.sum(xs, axis=1)
    max_sc[...] = jnp.maximum(max_sc[...], jnp.max(xm, axis=1))

    @pl.when(t == pl.num_programs(0) - 1)
    def _():
        avg = sum_sc[...] * (1.0 / float(hw))

        def mlp(v):
            h = jnp.maximum(
                jnp.dot(v, w1_ref[...], preferred_element_type=jnp.float32), 0.0)
            return jnp.dot(h, w2_ref[...], preferred_element_type=jnp.float32)

        gate_ref[...] = jax.nn.sigmoid(mlp(avg) + mlp(max_sc[...]))


def _cbam_pool_kernel(x_ref, gate_ref, avg_ref, max_ref):
    """Pass B: apply channel gate in vregs and emit spatial mean/max maps.
    TODO(synk): pooled maps are lane-width-1 outputs (masked stores); tiny in
    absolute bytes so left as-is."""
    g = x_ref[...] * gate_ref[...][:, None, :]
    avg_ref[...] = jnp.mean(g, axis=2, keepdims=True)
    max_ref[...] = jnp.max(g, axis=2, keepdims=True)


def _cbam_apply_kernel(x_ref, gate_ref, sattn_ref, o_ref):
    """Pass C: fused channel-gate * spatial-gate apply (one read, one write)."""
    o_ref[...] = x_ref[...] * gate_ref[...][:, None, :] * sattn_ref[...]


def _resize_kernel(w_ref, x_ref, o_ref):
    """Separable resize step: (Oax, Iax) @ (Iax, rest) per batch element."""
    o_ref[0] = jnp.dot(w_ref[...], x_ref[0], preferred_element_type=jnp.float32)


def _head_kernel(hw, masked, thw,
                 x_ref, proj_ref, wc_ref, bc_ref, o_ref, sum_sc):
    """Tiled GAP over HW + projection (K=3 as VPU FMAs) + classifier matmul.
    TODO(synk): timm tf_efficientnetv2_b3 pretrained backbone cannot be
    reproduced in-script; replaced by deterministic GAP + linear projection to
    num_features=1536 feeding the real classifier Linear(1536 -> num_classes)."""
    t = pl.program_id(0)

    @pl.when(t == 0)
    def _():
        sum_sc[...] = jnp.zeros_like(sum_sc)

    x = x_ref[...]                                        # (N, thw, Cin) f32
    if masked:
        rows = jax.lax.broadcasted_iota(jnp.int32, x.shape, 1) + t * thw
        x = jnp.where(rows < hw, x, 0.0)
    sum_sc[...] = sum_sc[...] + jnp.sum(x, axis=1)

    @pl.when(t == pl.num_programs(0) - 1)
    def _():
        feat3 = sum_sc[...] * (1.0 / float(hw))           # (N, Cin)
        p = proj_ref[...]                                 # (Cin, F) f32
        feat = feat3[:, 0:1] * p[0:1, :]                  # K=3: skip the MXU
        for c in range(1, p.shape[0]):
            feat = feat + feat3[:, c:c + 1] * p[c:c + 1, :]
        feat = jnp.maximum(feat, 0.0)                     # (N, F)
        o_ref[...] = (jnp.dot(feat.astype(jnp.bfloat16), wc_ref[...],
                              preferred_element_type=jnp.float32)
                      + bc_ref[...])


# ----------------------------- kernel wrappers ------------------------------
def _matmul_affine_act(patches, w, scale, bias, act, residual=None):
    """M-tiled, pipelined matmul + fused affine/activation(/residual) epilogue.
    patches/w are bf16; accumulation and epilogue are f32."""
    M, K = patches.shape
    Co = w.shape[1]
    Mp, tm, gm = _row_tiling(M, _TILE_M)
    p = _pad_axis(patches, 0, Mp)

    ins = [p, w, scale.reshape(1, Co).astype(jnp.float32),
           bias.reshape(1, Co).astype(jnp.float32)]
    in_specs = [
        pl.BlockSpec((tm, K), lambda i: (i, 0)),
        pl.BlockSpec((K, Co), lambda i: (0, 0)),
        pl.BlockSpec((1, Co), lambda i: (0, 0)),
        pl.BlockSpec((1, Co), lambda i: (0, 0)),
    ]
    if residual is not None:
        ins.append(_pad_axis(residual, 0, Mp))
        in_specs.append(pl.BlockSpec((tm, Co), lambda i: (i, 0)))

    out = pl.pallas_call(
        functools.partial(_mm_epilogue_kernel, act, residual is not None),
        out_shape=jax.ShapeDtypeStruct((Mp, Co), jnp.float32),
        grid=(gm,),
        in_specs=in_specs,
        out_specs=pl.BlockSpec((tm, Co), lambda i: (i, 0)),
        compiler_params=_parallel_params(),
    )(*ins)
    return out[:M] if Mp != M else out


def _im2col_nhwc(x, kh, kw, stride, pad):
    # TODO(synk): patch extraction is still JAX glue materialized in HBM
    # (kept in bf16 to halve the traffic); a fully fused strided-slab conv
    # kernel would remove this round-trip entirely.
    N, H, W, C = x.shape
    xp = jnp.pad(x, ((0, 0), (pad, pad), (pad, pad), (0, 0)))
    Hp, Wp = H + 2 * pad, W + 2 * pad
    oh = (Hp - kh) // stride + 1
    ow = (Wp - kw) // stride + 1
    cols = []
    for i in range(kh):
        for j in range(kw):
            cols.append(xp[:, i:i + stride * (oh - 1) + 1:stride,
                           j:j + stride * (ow - 1) + 1:stride, :])
    p = jnp.stack(cols, axis=3)                       # (N, oh, ow, kh*kw, C)
    return p.reshape(N * oh * ow, kh * kw * C), (N, oh, ow)


def conv_bn_act(x, params, stride, pad, act, residual=None):
    """Conv2d(bias=False) + folded eval-BN + activation (+ fused residual)."""
    w, scale, bias = params["w"], params["scale"], params["bias"]
    kh, kw, cin, cout = w.shape
    patches, (N, oh, ow) = _im2col_nhwc(x.astype(jnp.bfloat16), kh, kw, stride, pad)
    res = None if residual is None else residual.reshape(N * oh * ow, cout)
    out = _matmul_affine_act(
        patches, w.reshape(kh * kw * cin, cout).astype(jnp.bfloat16),
        scale, bias, act, residual=res)
    return out.reshape(N, oh, ow, cout)


def residual_block(x, p1, p2):
    y = conv_bn_act(x, p1, 1, 1, _relu)
    # second conv: BN + identity add + ReLU fused into the matmul epilogue
    return conv_bn_act(y, p2, 1, 1, _relu, residual=x)


def cbam(x, params):
    N, H, W, C = x.shape
    HW = H * W
    x2 = x.reshape(N, HW, C)
    Lp, thw, g = _row_tiling(HW, _HW_TILE)
    x2p = _pad_axis(x2, 1, Lp)
    masked = Lp != HW
    Cr = params["mlp_w1"].shape[1]

    # Pass A: channel gate (tiled reduction + shared MLP)
    gate = pl.pallas_call(
        functools.partial(_cbam_gate_kernel, HW, masked, thw),
        out_shape=jax.ShapeDtypeStruct((N, C), jnp.float32),
        grid=(g,),
        in_specs=[pl.BlockSpec((N, thw, C), lambda t: (0, t, 0)),
                  pl.BlockSpec((C, Cr), lambda t: (0, 0)),
                  pl.BlockSpec((Cr, C), lambda t: (0, 0))],
        out_specs=pl.BlockSpec((N, C), lambda t: (0, 0)),
        scratch_shapes=[pltpu.VMEM((N, C), jnp.float32),
                        pltpu.VMEM((N, C), jnp.float32)],
        compiler_params=_arbitrary_params(),
    )(x2p, params["mlp_w1"], params["mlp_w2"])

    # Pass B: gate-apply (in vregs) + spatial mean/max pooling
    avg_map, max_map = pl.pallas_call(
        _cbam_pool_kernel,
        out_shape=(jax.ShapeDtypeStruct((N, Lp, 1), jnp.float32),
                   jax.ShapeDtypeStruct((N, Lp, 1), jnp.float32)),
        grid=(g,),
        in_specs=[pl.BlockSpec((N, thw, C), lambda t: (0, t, 0)),
                  pl.BlockSpec((N, C), lambda t: (0, 0))],
        out_specs=(pl.BlockSpec((N, thw, 1), lambda t: (0, t, 0)),
                   pl.BlockSpec((N, thw, 1), lambda t: (0, t, 0))),
        compiler_params=_parallel_params(),
    )(x2p, gate)

    pooled = jnp.concatenate(
        [avg_map[:, :HW, :], max_map[:, :HW, :]], axis=2).reshape(N, H, W, 2)

    # 7x7 spatial-attention conv (2 -> 1) with sigmoid fused in the epilogue
    patches, _ = _im2col_nhwc(pooled.astype(jnp.bfloat16), 7, 7, 1, 3)
    sattn = _matmul_affine_act(
        patches, params["spatial_w"].astype(jnp.bfloat16),
        jnp.ones((1,), jnp.float32), jnp.zeros((1,), jnp.float32), _sigmoid)
    sattn = _pad_axis(sattn.reshape(N, HW, 1), 1, Lp)

    # Pass C: single fused application of both gates
    out = pl.pallas_call(
        _cbam_apply_kernel,
        out_shape=jax.ShapeDtypeStruct((N, Lp, C), jnp.float32),
        grid=(g,),
        in_specs=[pl.BlockSpec((N, thw, C), lambda t: (0, t, 0)),
                  pl.BlockSpec((N, C), lambda t: (0, 0)),
                  pl.BlockSpec((N, thw, 1), lambda t: (0, t, 0))],
        out_specs=pl.BlockSpec((N, thw, C), lambda t: (0, t, 0)),
        compiler_params=_parallel_params(),
    )(x2p, gate, sattn)
    return out[:, :HW, :].reshape(N, H, W, C)


def _bilinear_matrix(in_size, out_size):
    # PyTorch nn.Upsample(mode='bilinear', align_corners=False) weights
    scale = in_size / out_size
    dst = jnp.arange(out_size, dtype=jnp.float32)
    src = jnp.maximum((dst + 0.5) * scale - 0.5, 0.0)
    i0 = jnp.minimum(jnp.floor(src).astype(jnp.int32), in_size - 1)
    i1 = jnp.minimum(i0 + 1, in_size - 1)
    w1 = src - i0.astype(jnp.float32)
    w0 = 1.0 - w1
    m = jnp.zeros((out_size, in_size), jnp.float32)
    rows = jnp.arange(out_size)
    m = m.at[rows, i0].add(w0)
    m = m.at[rows, i1].add(w1)
    return m


def bilinear_upsample(x, out_hw):
    """Batched separable resize: two gridded matmuls over the whole batch
    (channels kept on the lane axis), instead of one tiny matmul per (n,c)."""
    N, H, W, C = x.shape
    OH, OW = out_hw
    wh = _bilinear_matrix(H, OH)            # (OH, H)
    ww = _bilinear_matrix(W, OW)            # (OW, W)

    # pass 1: resize H.  (N, H, W*C) -> (N, OH, W*C)
    x1 = x.reshape(N, H, W * C)
    t = pl.pallas_call(
        _resize_kernel,
        out_shape=jax.ShapeDtypeStruct((N, OH, W * C), jnp.float32),
        grid=(N,),
        in_specs=[pl.BlockSpec((OH, H), lambda n: (0, 0)),
                  pl.BlockSpec((1, H, W * C), lambda n: (n, 0, 0))],
        out_specs=pl.BlockSpec((1, OH, W * C), lambda n: (n, 0, 0)),
        compiler_params=_parallel_params(),
    )(wh, x1)

    # pass 2: resize W.  (N, W, OH*C) -> (N, OW, OH*C)
    t2 = jnp.transpose(t.reshape(N, OH, W, C), (0, 2, 1, 3)).reshape(N, W, OH * C)
    u = pl.pallas_call(
        _resize_kernel,
        out_shape=jax.ShapeDtypeStruct((N, OW, OH * C), jnp.float32),
        grid=(N,),
        in_specs=[pl.BlockSpec((OW, W), lambda n: (0, 0)),
                  pl.BlockSpec((1, W, OH * C), lambda n: (n, 0, 0))],
        out_specs=pl.BlockSpec((1, OW, OH * C), lambda n: (n, 0, 0)),
        compiler_params=_parallel_params(),
    )(ww, t2)

    return jnp.transpose(u.reshape(N, OW, OH, C), (0, 2, 1, 3))  # (N, OH, OW, C)


def classifier_head(x, params):
    N, OH, OW, C = x.shape
    HW = OH * OW
    x2 = x.reshape(N, HW, C)
    Lp, thw, g = _row_tiling(HW, _HEAD_HW_TILE)
    x2 = _pad_axis(x2, 1, Lp)
    masked = Lp != HW
    F = params["proj"].shape[1]
    nc = params["clf_w"].shape[1]
    return pl.pallas_call(
        functools.partial(_head_kernel, HW, masked, thw),
        out_shape=jax.ShapeDtypeStruct((N, nc), jnp.float32),
        grid=(g,),
        in_specs=[pl.BlockSpec((N, thw, C), lambda t: (0, t, 0)),
                  pl.BlockSpec((C, F), lambda t: (0, 0)),
                  pl.BlockSpec((F, nc), lambda t: (0, 0)),
                  pl.BlockSpec((1, nc), lambda t: (0, 0))],
        out_specs=pl.BlockSpec((N, nc), lambda t: (0, 0)),
        scratch_shapes=[pltpu.VMEM((N, C), jnp.float32)],
        compiler_params=_arbitrary_params(),
    )(x2, params["proj"], params["clf_w"].astype(jnp.bfloat16), params["clf_b"])


# ----------------------------- parameter init -------------------------------
def _init_conv(key, kh, kw, cin, cout):
    k1, k2, k3, k4, k5 = jax.random.split(key, 5)
    w = jax.random.normal(k1, (kh, kw, cin, cout), jnp.float32) / jnp.sqrt(kh * kw * cin)
    gamma = 1.0 + 0.1 * jax.random.normal(k2, (cout,), jnp.float32)
    beta = 0.1 * jax.random.normal(k3, (cout,), jnp.float32)
    mean = 0.1 * jax.random.normal(k4, (cout,), jnp.float32)
    var = 1.0 + 0.1 * jax.random.uniform(k5, (cout,), jnp.float32)
    scale = gamma / jnp.sqrt(var + 1e-5)         # eval-mode BN folded
    bias = beta - mean * scale
    return {"w": w, "scale": scale, "bias": bias}


def init_params(key, num_classes=7, backbone_features=1536):
    keys = jax.random.split(key, 16)
    return {
        "conv1": _init_conv(keys[0], 13, 13, 1, 4),
        "conv2": _init_conv(keys[1], 7, 7, 4, 16),
        "conv3": _init_conv(keys[2], 5, 5, 16, 32),
        "res1a": _init_conv(keys[3], 3, 3, 32, 32),
        "res1b": _init_conv(keys[4], 3, 3, 32, 32),
        "res2a": _init_conv(keys[5], 3, 3, 32, 32),
        "res2b": _init_conv(keys[6], 3, 3, 32, 32),
        "conv4": _init_conv(keys[7], 3, 3, 32, 8),
        "conv5": _init_conv(keys[8], 3, 3, 8, 3),
        "cbam": {
            "mlp_w1": jax.random.normal(keys[9], (32, 2), jnp.float32) / jnp.sqrt(32.0),
            "mlp_w2": jax.random.normal(keys[10], (2, 32), jnp.float32) / jnp.sqrt(2.0),
            "spatial_w": jax.random.normal(keys[11], (7 * 7 * 2, 1), jnp.float32)
                         / jnp.sqrt(98.0),
        },
        "proj": jax.random.normal(keys[12], (3, backbone_features), jnp.float32)
                / jnp.sqrt(3.0),
        "clf_w": jax.random.normal(keys[13], (backbone_features, num_classes),
                                   jnp.float32) / jnp.sqrt(backbone_features),
        "clf_b": 0.01 * jax.random.normal(keys[14], (1, num_classes), jnp.float32),
    }


# ----------------------------- full forward ---------------------------------
def multi_classification_forward(params, x_nchw, pool_size=(32, 32)):
    x = jnp.transpose(x_nchw.astype(jnp.float32), (0, 2, 3, 1))    # NCHW -> NHWC

    # APM(1, 3)  (padding=1 for all ConvBlocks, exactly as in the reference)
    x = conv_bn_act(x, params["conv1"], stride=2, pad=1, act=_silu)
    x = conv_bn_act(x, params["conv2"], stride=2, pad=1, act=_silu)
    x = conv_bn_act(x, params["conv3"], stride=2, pad=1, act=_silu)
    x = residual_block(x, params["res1a"], params["res1b"])
    x = residual_block(x, params["res2a"], params["res2b"])
    x = cbam(x, params["cbam"])
    x = conv_bn_act(x, params["conv4"], stride=1, pad=1, act=_leaky)
    x = conv_bn_act(x, params["conv5"], stride=1, pad=1, act=_leaky)

    # nn.Upsample(size=pool_size, mode='bilinear')
    x = bilinear_upsample(x, pool_size)

    # backbone stub + real classifier matmul (see TODO inside _head_kernel)
    logits = classifier_head(x, params)

    # TODO(synk): nn.Dropout(p=0.5) is identity in eval mode; not applied.
    return logits


# ----------------------------- demo -----------------------------------------
if __name__ == "__main__":
    key = jax.random.PRNGKey(0)
    k_param, k_data = jax.random.split(key)
    params = init_params(k_param, num_classes=7)

    # SMALL demo shapes: batch=2, 1 input channel, 64x64 image,
    # pool_size=(32,32) (module default is (300,300); parametrized here).
    x = jax.random.normal(k_data, (2, 1, 64, 64), jnp.float32)

    fwd = jax.jit(multi_classification_forward, static_argnames=("pool_size",))
    logits = fwd(params, x, pool_size=(32, 32))
    logits = jax.block_until_ready(logits)
    assert logits.shape == (2, 7)
    print("KERNEL_OK")
</pallas_src>

<mosaic_0001>
module attributes {stable_mosaic.version = 11 : i64} {
  func.func private @main(%arg0: i32) attributes {dimension_semantics = [#tpu.dimension_semantics<core_parallel>], iteration_bounds = array<i64: 2>, tpu.core_type = #tpu.core_type<sc_scalar_subcore>, window_params = []} {
    return
  }
}

module attributes {stable_mosaic.version = 11 : i64} {
  func.func private @main(%arg0: i32) attributes {dimension_semantics = [#tpu.dimension_semantics<core_parallel>], iteration_bounds = array<i64: 2>, tpu.core_type = #tpu.core_type<sc_scalar_subcore>, window_params = []} {
    return
  }
}

module attributes {stable_mosaic.version = 11 : i64} {
  func.func @_mm_epilogue_kernel(%arg0: i32, %arg1: memref<512x169xbf16, #tpu.memory_space<vmem>>, %arg2: memref<169x4xbf16, #tpu.memory_space<vmem>>, %arg3: memref<1x4xf32, #tpu.memory_space<vmem>>, %arg4: memref<1x4xf32, #tpu.memory_space<vmem>>, %arg5: memref<512x4xf32, #tpu.memory_space<vmem>>) attributes {dimension_semantics = [#tpu.dimension_semantics<parallel>], iteration_bounds = array<i64: 3>, scalar_prefetch = 0 : i64, scratch_operands = 0 : i64, tpu.core_type = #tpu.core_type<tc>, window_params = [{transform_indices = @transform_0, window_bounds = array<i64: 512, 169>}, {pipeline_mode = #tpu.pipeline_mode<synchronous>, transform_indices = @transform_1, window_bounds = array<i64: 169, 4>}, {pipeline_mode = #tpu.pipeline_mode<synchronous>, transform_indices = @transform_2, window_bounds = array<i64: 1, 4>}, {pipeline_mode = #tpu.pipeline_mode<synchronous>, transform_indices = @transform_3, window_bounds = array<i64: 1, 4>}, {transform_indices = @transform_4, window_bounds = array<i64: 512, 4>}]} {
    %c0 = arith.constant 0 : index
    %c0_0 = arith.constant 0 : index
    %0 = vector.load %arg1[%c0, %c0_0] : memref<512x169xbf16, #tpu.memory_space<vmem>>, vector<512x169xbf16>
    %c0_1 = arith.constant 0 : index
    %c0_2 = arith.constant 0 : index
    %1 = vector.load %arg2[%c0_1, %c0_2] : memref<169x4xbf16, #tpu.memory_space<vmem>>, vector<169x4xbf16>
    %cst = arith.constant dense<0.000000e+00> : vector<512x4xf32>
    %2 = tpu.matmul %0, %1, %cst {dimension_numbers = #tpu.dot_dimension_numbers<[1], [0], [0], [1], [0, 0, 1, 1], [], []>} : vector<512x169xbf16>, vector<169x4xbf16>, vector<512x4xf32> -> vector<512x4xf32>
    %c0_3 = arith.constant 0 : index
    %c0_4 = arith.constant 0 : index
    %3 = vector.load %arg3[%c0_3, %c0_4] : memref<1x4xf32, #tpu.memory_space<vmem>>, vector<1x4xf32>
    %4 = vector.broadcast %3 : vector<1x4xf32> to vector<512x4xf32>
    %5 = arith.mulf %2, %4 : vector<512x4xf32>
    %c0_5 = arith.constant 0 : index
    %c0_6 = arith.constant 0 : index
    %6 = vector.load %arg4[%c0_5, %c0_6] : memref<1x4xf32, #tpu.memory_space<vmem>>, vector<1x4xf32>
    %7 = vector.broadcast %6 : vector<1x4xf32> to vector<512x4xf32>
    %8 = arith.addf %5, %7 : vector<512x4xf32>
    %9 = arith.negf %8 : vector<512x4xf32>
    %10 = math.exp %9 : vector<512x4xf32>
    %cst_7 = arith.constant 1.000000e+00 : f32
    %11 = vector.broadcast %cst_7 : f32 to vector<512x4xf32>
    %12 = arith.addf %11, %10 : vector<512x4xf32>
    %13 = arith.divf %11, %12 : vector<512x4xf32>
    %14 = arith.mulf %8, %13 : vector<512x4xf32>
    %c0_8 = arith.constant 0 : index
    %c0_9 = arith.constant 0 : index
    %15 = vector.load %arg5[%c0_8, %c0_9] : memref<512x4xf32, #tpu.memory_space<vmem>>, vector<512x4xf32>
    tpu.vector_store %arg5[%c0_8, %c0_9], %14 {strides = array<i32>} : memref<512x4xf32, #tpu.memory_space<vmem>>, vector<512x4xf32>,
    return
  }
  func.func @transform_0(%arg0: i32) -> (i32, i32) {
    %c0_i32 = arith.constant 0 : i32
    %c0_i32_0 = arith.constant 0 : i32
    return %arg0, %c0_i32 : i32, i32
  }
  func.func @transform_1(%arg0: i32) -> (i32, i32) {
    %c0_i32 = arith.constant 0 : i32
    %c0_i32_0 = arith.constant 0 : i32
    %c0_i32_1 = arith.constant 0 : i32
    return %c0_i32, %c0_i32_0 : i32, i32
  }
  func.func @transform_2(%arg0: i32) -> (i32, i32) {
    %c0_i32 = arith.constant 0 : i32
    %c0_i32_0 = arith.constant 0 : i32
    %c0_i32_1 = arith.constant 0 : i32
    return %c0_i32, %c0_i32_0 : i32, i32
  }
  func.func @transform_3(%arg0: i32) -> (i32, i32) {
    %c0_i32 = arith.constant 0 : i32
    %c0_i32_0 = arith.constant 0 : i32
    %c0_i32_1 = arith.constant 0 : i32
    return %c0_i32, %c0_i32_0 : i32, i32
  }
  func.func @transform_4(%arg0: i32) -> (i32, i32) {
    %c0_i32 = arith.constant 0 : i32
    %c0_i32_0 = arith.constant 0 : i32
    return %arg0, %c0_i32 : i32, i32
  }
}

module attributes {stable_mosaic.version = 11 : i64} {
  func.func @_mm_epilogue_kernel(%arg0: i32, %arg1: memref<288x196xbf16, #tpu.memory_space<vmem>>, %arg2: memref<196x16xbf16, #tpu.memory_space<vmem>>, %arg3: memref<1x16xf32, #tpu.memory_space<vmem>>, %arg4: memref<1x16xf32, #tpu.memory_space<vmem>>, %arg5: memref<288x16xf32, #tpu.memory_space<vmem>>) attributes {dimension_semantics = [#tpu.dimension_semantics<parallel>], iteration_bounds = array<i64: 1>, scalar_prefetch = 0 : i64, scratch_operands = 0 : i64, tpu.core_type = #tpu.core_type<tc>, window_params = [{transform_indices = @transform_0, window_bounds = array<i64: 288, 196>}, {pipeline_mode = #tpu.pipeline_mode<synchronous>, transform_indices = @transform_1, window_bounds = array<i64: 196, 16>}, {pipeline_mode = #tpu.pipeline_mode<synchronous>, transform_indices = @transform_2, window_bounds = array<i64: 1, 16>}, {pipeline_mode = #tpu.pipeline_mode<synchronous>, transform_indices = @transform_3, window_bounds = array<i64: 1, 16>}, {transform_indices = @transform_4, window_bounds = array<i64: 288, 16>}]} {
    %c0 = arith.constant 0 : index
    %c0_0 = arith.constant 0 : index
    %0 = vector.load %arg1[%c0, %c0_0] : memref<288x196xbf16, #tpu.memory_space<vmem>>, vector<288x196xbf16>
    %c0_1 = arith.constant 0 : index
    %c0_2 = arith.constant 0 : index
    %1 = vector.load %arg2[%c0_1, %c0_2] : memref<196x16xbf16, #tpu.memory_space<vmem>>, vector<196x16xbf16>
    %cst = arith.constant dense<0.000000e+00> : vector<288x16xf32>
    %2 = tpu.matmul %0, %1, %cst {dimension_numbers = #tpu.dot_dimension_numbers<[1], [0], [0], [1], [0, 0, 1, 1], [], []>} : vector<288x196xbf16>, vector<196x16xbf16>, vector<288x16xf32> -> vector<288x16xf32>
    %c0_3 = arith.constant 0 : index
    %c0_4 = arith.constant 0 : index
    %3 = vector.load %arg3[%c0_3, %c0_4] : memref<1x16xf32, #tpu.memory_space<vmem>>, vector<1x16xf32>
    %4 = vector.broadcast %3 : vector<1x16xf32> to vector<288x16xf32>
    %5 = arith.mulf %2, %4 : vector<288x16xf32>
    %c0_5 = arith.constant 0 : index
    %c0_6 = arith.constant 0 : index
    %6 = vector.load %arg4[%c0_5, %c0_6] : memref<1x16xf32, #tpu.memory_space<vmem>>, vector<1x16xf32>
    %7 = vector.broadcast %6 : vector<1x16xf32> to vector<288x16xf32>
    %8 = arith.addf %5, %7 : vector<288x16xf32>
    %9 = arith.negf %8 : vector<288x16xf32>
    %10 = math.exp %9 : vector<288x16xf32>
    %cst_7 = arith.constant 1.000000e+00 : f32
    %11 = vector.broadcast %cst_7 : f32 to vector<288x16xf32>
    %12 = arith.addf %11, %10 : vector<288x16xf32>
    %13 = arith.divf %11, %12 : vector<288x16xf32>
    %14 = arith.mulf %8, %13 : vector<288x16xf32>
    %c0_8 = arith.constant 0 : index
    %c0_9 = arith.constant 0 : index
    %15 = vector.load %arg5[%c0_8, %c0_9] : memref<288x16xf32, #tpu.memory_space<vmem>>, vector<288x16xf32>
    tpu.vector_store %arg5[%c0_8, %c0_9], %14 {strides = array<i32>} : memref<288x16xf32, #tpu.memory_space<vmem>>, vector<288x16xf32>,
    return
  }
  func.func @transform_0(%arg0: i32) -> (i32, i32) {
    %c0_i32 = arith.constant 0 : i32
    %c0_i32_0 = arith.constant 0 : i32
    return %arg0, %c0_i32 : i32, i32
  }
  func.func @transform_1(%arg0: i32) -> (i32, i32) {
    %c0_i32 = arith.constant 0 : i32
    %c0_i32_0 = arith.constant 0 : i32
    %c0_i32_1 = arith.constant 0 : i32
    return %c0_i32, %c0_i32_0 : i32, i32
  }
  func.func @transform_2(%arg0: i32) -> (i32, i32) {
    %c0_i32 = arith.constant 0 : i32
    %c0_i32_0 = arith.constant 0 : i32
    %c0_i32_1 = arith.constant 0 : i32
    return %c0_i32, %c0_i32_0 : i32, i32
  }
  func.func @transform_3(%arg0: i32) -> (i32, i32) {
    %c0_i32 = arith.constant 0 : i32
    %c0_i32_0 = arith.constant 0 : i32
    %c0_i32_1 = arith.constant 0 : i32
    return %c0_i32, %c0_i32_0 : i32, i32
  }
  func.func @transform_4(%arg0: i32) -> (i32, i32) {
    %c0_i32 = arith.constant 0 : i32
    %c0_i32_0 = arith.constant 0 : i32
    return %arg0, %c0_i32 : i32, i32
  }
}

module attributes {stable_mosaic.version = 11 : i64} {
  func.func @_mm_epilogue_kernel(%arg0: i32, %arg1: memref<50x400xbf16, #tpu.memory_space<vmem>>, %arg2: memref<400x32xbf16, #tpu.memory_space<vmem>>, %arg3: memref<1x32xf32, #tpu.memory_space<vmem>>, %arg4: memref<1x32xf32, #tpu.memory_space<vmem>>, %arg5: memref<50x32xf32, #tpu.memory_space<vmem>>) attributes {dimension_semantics = [#tpu.dimension_semantics<parallel>], iteration_bounds = array<i64: 1>, scalar_prefetch = 0 : i64, scratch_operands = 0 : i64, tpu.core_type = #tpu.core_type<tc>, window_params = [{transform_indices = @transform_0, window_bounds = array<i64: 50, 400>}, {pipeline_mode = #tpu.pipeline_mode<synchronous>, transform_indices = @transform_1, window_bounds = array<i64: 400, 32>}, {pipeline_mode = #tpu.pipeline_mode<synchronous>, transform_indices = @transform_2, window_bounds = array<i64: 1, 32>}, {pipeline_mode = #tpu.pipeline_mode<synchronous>, transform_indices = @transform_3, window_bounds = array<i64: 1, 32>}, {transform_indices = @transform_4, window_bounds = array<i64: 50, 32>}]} {
    %c0 = arith.constant 0 : index
    %c0_0 = arith.constant 0 : index
    %0 = vector.load %arg1[%c0, %c0_0] : memref<50x400xbf16, #tpu.memory_space<vmem>>, vector<50x400xbf16>
    %c0_1 = arith.constant 0 : index
    %c0_2 = arith.constant 0 : index
    %1 = vector.load %arg2[%c0_1, %c0_2] : memref<400x32xbf16, #tpu.memory_space<vmem>>, vector<400x32xbf16>
    %cst = arith.constant dense<0.000000e+00> : vector<50x32xf32>
    %2 = tpu.matmul %0, %1, %cst {dimension_numbers = #tpu.dot_dimension_numbers<[1], [0], [0], [1], [0, 0, 1, 1], [], []>} : vector<50x400xbf16>, vector<400x32xbf16>, vector<50x32xf32> -> vector<50x32xf32>
    %c0_3 = arith.constant 0 : index
    %c0_4 = arith.constant 0 : index
    %3 = vector.load %arg3[%c0_3, %c0_4] : memref<1x32xf32, #tpu.memory_space<vmem>>, vector<1x32xf32>
    %4 = vector.broadcast %3 : vector<1x32xf32> to vector<50x32xf32>
    %5 = arith.mulf %2, %4 : vector<50x32xf32>
    %c0_5 = arith.constant 0 : index
    %c0_6 = arith.constant 0 : index
    %6 = vector.load %arg4[%c0_5, %c0_6] : memref<1x32xf32, #tpu.memory_space<vmem>>, vector<1x32xf32>
    %7 = vector.broadcast %6 : vector<1x32xf32> to vector<50x32xf32>
    %8 = arith.addf %5, %7 : vector<50x32xf32>
    %9 = arith.negf %8 : vector<50x32xf32>
    %10 = math.exp %9 : vector<50x32xf32>
    %cst_7 = arith.constant 1.000000e+00 : f32
    %11 = vector.broadcast %cst_7 : f32 to vector<50x32xf32>
    %12 = arith.addf %11, %10 : vector<50x32xf32>
    %13 = arith.divf %11, %12 : vector<50x32xf32>
    %14 = arith.mulf %8, %13 : vector<50x32xf32>
    %c0_8 = arith.constant 0 : index
    %c0_9 = arith.constant 0 : index
    %15 = vector.load %arg5[%c0_8, %c0_9] : memref<50x32xf32, #tpu.memory_space<vmem>>, vector<50x32xf32>
    tpu.vector_store %arg5[%c0_8, %c0_9], %14 {strides = array<i32>} : memref<50x32xf32, #tpu.memory_space<vmem>>, vector<50x32xf32>,
    return
  }
  func.func @transform_0(%arg0: i32) -> (i32, i32) {
    %c0_i32 = arith.constant 0 : i32
    %c0_i32_0 = arith.constant 0 : i32
    return %arg0, %c0_i32 : i32, i32
  }
  func.func @transform_1(%arg0: i32) -> (i32, i32) {
    %c0_i32 = arith.constant 0 : i32
    %c0_i32_0 = arith.constant 0 : i32
    %c0_i32_1 = arith.constant 0 : i32
    return %c0_i32, %c0_i32_0 : i32, i32
  }
  func.func @transform_2(%arg0: i32) -> (i32, i32) {
    %c0_i32 = arith.constant 0 : i32
    %c0_i32_0 = arith.constant 0 : i32
    %c0_i32_1 = arith.constant 0 : i32
    return %c0_i32, %c0_i32_0 : i32, i32
  }
  func.func @transform_3(%arg0: i32) -> (i32, i32) {
    %c0_i32 = arith.constant 0 : i32
    %c0_i32_0 = arith.constant 0 : i32
    %c0_i32_1 = arith.constant 0 : i32
    return %c0_i32, %c0_i32_0 : i32, i32
  }
  func.func @transform_4(%arg0: i32) -> (i32, i32) {
    %c0_i32 = arith.constant 0 : i32
    %c0_i32_0 = arith.constant 0 : i32
    return %arg0, %c0_i32 : i32, i32
  }
}

module attributes {stable_mosaic.version = 11 : i64} {
  func.func @_mm_epilogue_kernel(%arg0: i32, %arg1: memref<50x288xbf16, #tpu.memory_space<vmem>>, %arg2: memref<288x32xbf16, #tpu.memory_space<vmem>>, %arg3: memref<1x32xf32, #tpu.memory_space<vmem>>, %arg4: memref<1x32xf32, #tpu.memory_space<vmem>>, %arg5: memref<50x32xf32, #tpu.memory_space<vmem>>, %arg6: memref<50x32xf32, #tpu.memory_space<vmem>>) attributes {dimension_semantics = [#tpu.dimension_semantics<parallel>], iteration_bounds = array<i64: 1>, scalar_prefetch = 0 : i64, scratch_operands = 0 : i64, tpu.core_type = #tpu.core_type<tc>, window_params = [{transform_indices = @transform_0, window_bounds = array<i64: 50, 288>}, {pipeline_mode = #tpu.pipeline_mode<synchronous>, transform_indices = @transform_1, window_bounds = array<i64: 288, 32>}, {pipeline_mode = #tpu.pipeline_mode<synchronous>, transform_indices = @transform_2, window_bounds = array<i64: 1, 32>}, {pipeline_mode = #tpu.pipeline_mode<synchronous>, transform_indices = @transform_3, window_bounds = array<i64: 1, 32>}, {transform_indices = @transform_4, window_bounds = array<i64: 50, 32>}, {transform_indices = @transform_5, window_bounds = array<i64: 50, 32>}]} {
    %c0 = arith.constant 0 : index
    %c0_0 = arith.constant 0 : index
    %0 = vector.load %arg1[%c0, %c0_0] : memref<50x288xbf16, #tpu.memory_space<vmem>>, vector<50x288xbf16>
    %c0_1 = arith.constant 0 : index
    %c0_2 = arith.constant 0 : index
    %1 = vector.load %arg2[%c0_1, %c0_2] : memref<288x32xbf16, #tpu.memory_space<vmem>>, vector<288x32xbf16>
    %cst = arith.constant dense<0.000000e+00> : vector<50x32xf32>
    %2 = tpu.matmul %0, %1, %cst {dimension_numbers = #tpu.dot_dimension_numbers<[1], [0], [0], [1], [0, 0, 1, 1], [], []>} : vector<50x288xbf16>, vector<288x32xbf16>, vector<50x32xf32> -> vector<50x32xf32>
    %c0_3 = arith.constant 0 : index
    %c0_4 = arith.constant 0 : index
    %3 = vector.load %arg3[%c0_3, %c0_4] : memref<1x32xf32, #tpu.memory_space<vmem>>, vector<1x32xf32>
    %4 = vector.broadcast %3 : vector<1x32xf32> to vector<50x32xf32>
    %5 = arith.mulf %2, %4 : vector<50x32xf32>
    %c0_5 = arith.constant 0 : index
    %c0_6 = arith.constant 0 : index
    %6 = vector.load %arg4[%c0_5, %c0_6] : memref<1x32xf32, #tpu.memory_space<vmem>>, vector<1x32xf32>
    %7 = vector.broadcast %6 : vector<1x32xf32> to vector<50x32xf32>
    %8 = arith.addf %5, %7 : vector<50x32xf32>
    %c0_7 = arith.constant 0 : index
    %c0_8 = arith.constant 0 : index
    %9 = vector.load %arg5[%c0_7, %c0_8] : memref<50x32xf32, #tpu.memory_space<vmem>>, vector<50x32xf32>
    %10 = arith.addf %8, %9 : vector<50x32xf32>
    %cst_9 = arith.constant 0.000000e+00 : f32
    %11 = vector.broadcast %cst_9 : f32 to vector<50x32xf32>
    %12 = arith.maximumf %10, %11 : vector<50x32xf32>
    %c0_10 = arith.constant 0 : index
    %c0_11 = arith.constant 0 : index
    %13 = vector.load %arg6[%c0_10, %c0_11] : memref<50x32xf32, #tpu.memory_space<vmem>>, vector<50x32xf32>
    tpu.vector_store %arg6[%c0_10, %c0_11], %12 {strides = array<i32>} : memref<50x32xf32, #tpu.memory_space<vmem>>, vector<50x32xf32>,
    return
  }
  func.func @transform_0(%arg0: i32) -> (i32, i32) {
    %c0_i32 = arith.constant 0 : i32
    %c0_i32_0 = arith.constant 0 : i32
    return %arg0, %c0_i32 : i32, i32
  }
  func.func @transform_1(%arg0: i32) -> (i32, i32) {
    %c0_i32 = arith.constant 0 : i32
    %c0_i32_0 = arith.constant 0 : i32
    %c0_i32_1 = arith.constant 0 : i32
    return %c0_i32, %c0_i32_0 : i32, i32
  }
  func.func @transform_2(%arg0: i32) -> (i32, i32) {
    %c0_i32 = arith.constant 0 : i32
    %c0_i32_0 = arith.constant 0 : i32
    %c0_i32_1 = arith.constant 0 : i32
    return %c0_i32, %c0_i32_0 : i32, i32
  }
  func.func @transform_3(%arg0: i32) -> (i32, i32) {
    %c0_i32 = arith.constant 0 : i32
    %c0_i32_0 = arith.constant 0 : i32
    %c0_i32_1 = arith.constant 0 : i32
    return %c0_i32, %c0_i32_0 : i32, i32
  }
  func.func @transform_4(%arg0: i32) -> (i32, i32) {
    %c0_i32 = arith.constant 0 : i32
    %c0_i32_0 = arith.constant 0 : i32
    return %arg0, %c0_i32 : i32, i32
  }
  func.func @transform_5(%arg0: i32) -> (i32, i32) {
    %c0_i32 = arith.constant 0 : i32
    %c0_i32_0 = arith.constant 0 : i32
    return %arg0, %c0_i32 : i32, i32
  }
}

module attributes {stable_mosaic.version = 11 : i64} {
  func.func @_mm_epilogue_kernel(%arg0: i32, %arg1: memref<50x288xbf16, #tpu.memory_space<vmem>>, %arg2: memref<288x32xbf16, #tpu.memory_space<vmem>>, %arg3: memref<1x32xf32, #tpu.memory_space<vmem>>, %arg4: memref<1x32xf32, #tpu.memory_space<vmem>>, %arg5: memref<50x32xf32, #tpu.memory_space<vmem>>) attributes {dimension_semantics = [#tpu.dimension_semantics<parallel>], iteration_bounds = array<i64: 1>, scalar_prefetch = 0 : i64, scratch_operands = 0 : i64, tpu.core_type = #tpu.core_type<tc>, window_params = [{transform_indices = @transform_0, window_bounds = array<i64: 50, 288>}, {pipeline_mode = #tpu.pipeline_mode<synchronous>, transform_indices = @transform_1, window_bounds = array<i64: 288, 32>}, {pipeline_mode = #tpu.pipeline_mode<synchronous>, transform_indices = @transform_2, window_bounds = array<i64: 1, 32>}, {pipeline_mode = #tpu.pipeline_mode<synchronous>, transform_indices = @transform_3, window_bounds = array<i64: 1, 32>}, {transform_indices = @transform_4, window_bounds = array<i64: 50, 32>}]} {
    %c0 = arith.constant 0 : index
    %c0_0 = arith.constant 0 : index
    %0 = vector.load %arg1[%c0, %c0_0] : memref<50x288xbf16, #tpu.memory_space<vmem>>, vector<50x288xbf16>
    %c0_1 = arith.constant 0 : index
    %c0_2 = arith.constant 0 : index
    %1 = vector.load %arg2[%c0_1, %c0_2] : memref<288x32xbf16, #tpu.memory_space<vmem>>, vector<288x32xbf16>
    %cst = arith.constant dense<0.000000e+00> : vector<50x32xf32>
    %2 = tpu.matmul %0, %1, %cst {dimension_numbers = #tpu.dot_dimension_numbers<[1], [0], [0], [1], [0, 0, 1, 1], [], []>} : vector<50x288xbf16>, vector<288x32xbf16>, vector<50x32xf32> -> vector<50x32xf32>
    %c0_3 = arith.constant 0 : index
    %c0_4 = arith.constant 0 : index
    %3 = vector.load %arg3[%c0_3, %c0_4] : memref<1x32xf32, #tpu.memory_space<vmem>>, vector<1x32xf32>
    %4 = vector.broadcast %3 : vector<1x32xf32> to vector<50x32xf32>
    %5 = arith.mulf %2, %4 : vector<50x32xf32>
    %c0_5 = arith.constant 0 : index
    %c0_6 = arith.constant 0 : index
    %6 = vector.load %arg4[%c0_5, %c0_6] : memref<1x32xf32, #tpu.memory_space<vmem>>, vector<1x32xf32>
    %7 = vector.broadcast %6 : vector<1x32xf32> to vector<50x32xf32>
    %8 = arith.addf %5, %7 : vector<50x32xf32>
    %cst_7 = arith.constant 0.000000e+00 : f32
    %9 = vector.broadcast %cst_7 : f32 to vector<50x32xf32>
    %10 = arith.maximumf %8, %9 : vector<50x32xf32>
    %c0_8 = arith.constant 0 : index
    %c0_9 = arith.constant 0 : index
    %11 = vector.load %arg5[%c0_8, %c0_9] : memref<50x32xf32, #tpu.memory_space<vmem>>, vector<50x32xf32>
    tpu.vector_store %arg5[%c0_8, %c0_9], %10 {strides = array<i32>} : memref<50x32xf32, #tpu.memory_space<vmem>>, vector<50x32xf32>,
    return
  }
  func.func @transform_0(%arg0: i32) -> (i32, i32) {
    %c0_i32 = arith.constant 0 : i32
    %c0_i32_0 = arith.constant 0 : i32
    return %arg0, %c0_i32 : i32, i32
  }
  func.func @transform_1(%arg0: i32) -> (i32, i32) {
    %c0_i32 = arith.constant 0 : i32
    %c0_i32_0 = arith.constant 0 : i32
    %c0_i32_1 = arith.constant 0 : i32
    return %c0_i32, %c0_i32_0 : i32, i32
  }
  func.func @transform_2(%arg0: i32) -> (i32, i32) {
    %c0_i32 = arith.constant 0 : i32
    %c0_i32_0 = arith.constant 0 : i32
    %c0_i32_1 = arith.constant 0 : i32
    return %c0_i32, %c0_i32_0 : i32, i32
  }
  func.func @transform_3(%arg0: i32) -> (i32, i32) {
    %c0_i32 = arith.constant 0 : i32
    %c0_i32_0 = arith.constant 0 : i32
    %c0_i32_1 = arith.constant 0 : i32
    return %c0_i32, %c0_i32_0 : i32, i32
  }
  func.func @transform_4(%arg0: i32) -> (i32, i32) {
    %c0_i32 = arith.constant 0 : i32
    %c0_i32_0 = arith.constant 0 : i32
    return %arg0, %c0_i32 : i32, i32
  }
}

module attributes {stable_mosaic.version = 11 : i64} {
  func.func @_cbam_gate_kernel(%arg0: i32, %arg1: memref<2x25x32xf32, #tpu.memory_space<vmem>>, %arg2: memref<32x2xf32, #tpu.memory_space<vmem>>, %arg3: memref<2x32xf32, #tpu.memory_space<vmem>>, %arg4: memref<2x32xf32, #tpu.memory_space<vmem>>, %arg5: memref<2x32xf32, #tpu.memory_space<vmem>>, %arg6: memref<2x32xf32, #tpu.memory_space<vmem>>) attributes {dimension_semantics = [#tpu.dimension_semantics<arbitrary>], iteration_bounds = array<i64: 1>, scalar_prefetch = 0 : i64, scratch_operands = 2 : i64, tpu.core_type = #tpu.core_type<tc>, window_params = [{transform_indices = @transform_0, window_bounds = array<i64: 2, 25, 32>}, {pipeline_mode = #tpu.pipeline_mode<synchronous>, transform_indices = @transform_1, window_bounds = array<i64: 32, 2>}, {pipeline_mode = #tpu.pipeline_mode<synchronous>, transform_indices = @transform_2, window_bounds = array<i64: 2, 32>}, {pipeline_mode = #tpu.pipeline_mode<synchronous>, transform_indices = @transform_3, window_bounds = array<i64: 2, 32>}]} {
    %c0_i32 = arith.constant 0 : i32
    %0 = arith.cmpi eq, %arg0, %c0_i32 : i32
    %1 = arith.extui %0 : i1 to i32
    %c0_i32_0 = arith.constant 0 : i32
    %2 = arith.cmpi ne, %1, %c0_i32_0 : i32
    scf.if %2 {
      %cst_14 = arith.constant 0.000000e+00 : f32
      %15 = vector.broadcast %cst_14 : f32 to vector<2x32xf32>
      %c0_15 = arith.constant 0 : index
      %c0_16 = arith.constant 0 : index
      %16 = vector.load %arg5[%c0_15, %c0_16] : memref<2x32xf32, #tpu.memory_space<vmem>>, vector<2x32xf32>
      tpu.vector_store %arg5[%c0_15, %c0_16], %15 {strides = array<i32>} : memref<2x32xf32, #tpu.memory_space<vmem>>, vector<2x32xf32>,
      %cst_17 = arith.constant 0xFF800000 : f32
      %17 = vector.broadcast %cst_17 : f32 to vector<2x32xf32>
      %c0_18 = arith.constant 0 : index
      %c0_19 = arith.constant 0 : index
      %18 = vector.load %arg6[%c0_18, %c0_19] : memref<2x32xf32, #tpu.memory_space<vmem>>, vector<2x32xf32>
      tpu.vector_store %arg6[%c0_18, %c0_19], %17 {strides = array<i32>} : memref<2x32xf32, #tpu.memory_space<vmem>>, vector<2x32xf32>,
    } else {
    }
    %c0 = arith.constant 0 : index
    %c0_1 = arith.constant 0 : index
    %c0_2 = arith.constant 0 : index
    %3 = vector.load %arg1[%c0, %c0_1, %c0_2] : memref<2x25x32xf32, #tpu.memory_space<vmem>>, vector<2x25x32xf32>
    %c0_3 = arith.constant 0 : index
    %c0_4 = arith.constant 0 : index
    %4 = vector.load %arg5[%c0_3, %c0_4] : memref<2x32xf32, #tpu.memory_space<vmem>>, vector<2x32xf32>
    %cst = arith.constant dense<0.000000e+00> : vector<2x32xf32>
    %5 = vector.multi_reduction <add>, %3, %cst [1] : vector<2x25x32xf32> to vector<2x32xf32>
    %6 = arith.addf %4, %5 : vector<2x32xf32>
    %c0_5 = arith.constant 0 : index
    %c0_6 = arith.constant 0 : index
    %7 = vector.load %arg5[%c0_5, %c0_6] : memref<2x32xf32, #tpu.memory_space<vmem>>, vector<2x32xf32>
    tpu.vector_store %arg5[%c0_5, %c0_6], %6 {strides = array<i32>} : memref<2x32xf32, #tpu.memory_space<vmem>>, vector<2x32xf32>,
    %c0_7 = arith.constant 0 : index
    %c0_8 = arith.constant 0 : index
    %8 = vector.load %arg6[%c0_7, %c0_8] : memref<2x32xf32, #tpu.memory_space<vmem>>, vector<2x32xf32>
    %cst_9 = arith.constant dense<0xFF800000> : vector<2x32xf32>
    %9 = vector.multi_reduction <maximumf>, %3, %cst_9 [1] : vector<2x25x32xf32> to vector<2x32xf32>
    %10 = arith.maximumf %8, %9 : vector<2x32xf32>
    %c0_10 = arith.constant 0 : index
    %c0_11 = arith.constant 0 : index
    %11 = vector.load %arg6[%c0_10, %c0_11] : memref<2x32xf32, #tpu.memory_space<vmem>>, vector<2x32xf32>
    tpu.vector_store %arg6[%c0_10, %c0_11], %10 {strides = array<i32>} : memref<2x32xf32, #tpu.memory_space<vmem>>, vector<2x32xf32>,
    %c0_i32_12 = arith.constant 0 : i32
    %12 = arith.cmpi eq, %arg0, %c0_i32_12 : i32
    %13 = arith.extui %12 : i1 to i32
    %c0_i32_13 = arith.constant 0 : i32
    %14 = arith.cmpi ne, %13, %c0_i32_13 : i32
    scf.if %14 {
      %c0_14 = arith.constant 0 : index
      %c0_15 = arith.constant 0 : index
      %15 = vector.load %arg5[%c0_14, %c0_15] : memref<2x32xf32, #tpu.memory_space<vmem>>, vector<2x32xf32>
      %cst_16 = arith.constant 4.000000e-02 : f32
      %16 = vector.broadcast %cst_16 : f32 to vector<2x32xf32>
      %17 = arith.mulf %15, %16 : vector<2x32xf32>
      %c0_17 = arith.constant 0 : index
      %c0_18 = arith.constant 0 : index
      %18 = vector.load %arg2[%c0_17, %c0_18] : memref<32x2xf32, #tpu.memory_space<vmem>>, vector<32x2xf32>
      %cst_19 = arith.constant dense<0.000000e+00> : vector<2x2xf32>
      %19 = tpu.matmul %17, %18, %cst_19 {dimension_numbers = #tpu.dot_dimension_numbers<[1], [0], [0], [1], [0, 0, 1, 1], [], []>} : vector<2x32xf32>, vector<32x2xf32>, vector<2x2xf32> -> vector<2x2xf32>
      %cst_20 = arith.constant 0.000000e+00 : f32
      %20 = vector.broadcast %cst_20 : f32 to vector<2x2xf32>
      %21 = arith.maximumf %19, %20 : vector<2x2xf32>
      %c0_21 = arith.constant 0 : index
      %c0_22 = arith.constant 0 : index
      %22 = vector.load %arg3[%c0_21, %c0_22] : memref<2x32xf32, #tpu.memory_space<vmem>>, vector<2x32xf32>
      %cst_23 = arith.constant dense<0.000000e+00> : vector<2x32xf32>
      %23 = tpu.matmul %21, %22, %cst_23 {dimension_numbers = #tpu.dot_dimension_numbers<[1], [0], [0], [1], [0, 0, 1, 1], [], []>} : vector<2x2xf32>, vector<2x32xf32>, vector<2x32xf32> -> vector<2x32xf32>
      %c0_24 = arith.constant 0 : index
      %c0_25 = arith.constant 0 : index
      %24 = vector.load %arg6[%c0_24, %c0_25] : memref<2x32xf32, #tpu.memory_space<vmem>>, vector<2x32xf32>
      %c0_26 = arith.constant 0 : index
      %c0_27 = arith.constant 0 : index
      %25 = vector.load %arg2[%c0_26, %c0_27] : memref<32x2xf32, #tpu.memory_space<vmem>>, vector<32x2xf32>
      %cst_28 = arith.constant dense<0.000000e+00> : vector<2x2xf32>
      %26 = tpu.matmul %24, %25, %cst_28 {dimension_numbers = #tpu.dot_dimension_numbers<[1], [0], [0], [1], [0, 0, 1, 1], [], []>} : vector<2x32xf32>, vector<32x2xf32>, vector<2x2xf32> -> vector<2x2xf32>
      %cst_29 = arith.constant 0.000000e+00 : f32
      %27 = vector.broadcast %cst_29 : f32 to vector<2x2xf32>
      %28 = arith.maximumf %26, %27 : vector<2x2xf32>
      %c0_30 = arith.constant 0 : index
      %c0_31 = arith.constant 0 : index
      %29 = vector.load %arg3[%c0_30, %c0_31] : memref<2x32xf32, #tpu.memory_space<vmem>>, vector<2x32xf32>
      %cst_32 = arith.constant dense<0.000000e+00> : vector<2x32xf32>
      %30 = tpu.matmul %28, %29, %cst_32 {dimension_numbers = #tpu.dot_dimension_numbers<[1], [0], [0], [1], [0, 0, 1, 1], [], []>} : vector<2x2xf32>, vector<2x32xf32>, vector<2x32xf32> -> vector<2x32xf32>
      %31 = arith.addf %23, %30 : vector<2x32xf32>
      %32 = arith.negf %31 : vector<2x32xf32>
      %33 = math.exp %32 : vector<2x32xf32>
      %cst_33 = arith.constant 1.000000e+00 : f32
      %34 = vector.broadcast %cst_33 : f32 to vector<2x32xf32>
      %35 = arith.addf %34, %33 : vector<2x32xf32>
      %36 = arith.divf %34, %35 : vector<2x32xf32>
      %c0_34 = arith.constant 0 : index
      %c0_35 = arith.constant 0 : index
      %37 = vector.load %arg4[%c0_34, %c0_35] : memref<2x32xf32, #tpu.memory_space<vmem>>, vector<2x32xf32>
      tpu.vector_store %arg4[%c0_34, %c0_35], %36 {strides = array<i32>} : memref<2x32xf32, #tpu.memory_space<vmem>>, vector<2x32xf32>,
    } else {
    }
    return
  }
  func.func @transform_0(%arg0: i32) -> (i32, i32, i32) {
    %c0_i32 = arith.constant 0 : i32
    %c0_i32_0 = arith.constant 0 : i32
    %c0_i32_1 = arith.constant 0 : i32
    return %c0_i32, %arg0, %c0_i32_0 : i32, i32, i32
  }
  func.func @transform_1(%arg0: i32) -> (i32, i32) {
    %c0_i32 = arith.constant 0 : i32
    %c0_i32_0 = arith.constant 0 : i32
    %c0_i32_1 = arith.constant 0 : i32
    return %c0_i32, %c0_i32_0 : i32, i32
  }
  func.func @transform_2(%arg0: i32) -> (i32, i32) {
    %c0_i32 = arith.constant 0 : i32
    %c0_i32_0 = arith.constant 0 : i32
    %c0_i32_1 = arith.constant 0 : i32
    return %c0_i32, %c0_i32_0 : i32, i32
  }
  func.func @transform_3(%arg0: i32) -> (i32, i32) {
    %c0_i32 = arith.constant 0 : i32
    %c0_i32_0 = arith.constant 0 : i32
    %c0_i32_1 = arith.constant 0 : i32
    return %c0_i32, %c0_i32_0 : i32, i32
  }
}

module attributes {stable_mosaic.version = 11 : i64} {
  func.func @_cbam_pool_kernel(%arg0: i32, %arg1: memref<2x25x32xf32, #tpu.memory_space<vmem>>, %arg2: memref<2x32xf32, #tpu.memory_space<vmem>>, %arg3: memref<2x25x1xf32, #tpu.memory_space<vmem>>, %arg4: memref<2x25x1xf32, #tpu.memory_space<vmem>>) attributes {dimension_semantics = [#tpu.dimension_semantics<parallel>], iteration_bounds = array<i64: 1>, scalar_prefetch = 0 : i64, scratch_operands = 0 : i64, tpu.core_type = #tpu.core_type<tc>, window_params = [{transform_indices = @transform_0, window_bounds = array<i64: 2, 25, 32>}, {pipeline_mode = #tpu.pipeline_mode<synchronous>, transform_indices = @transform_1, window_bounds = array<i64: 2, 32>}, {transform_indices = @transform_2, window_bounds = array<i64: 2, 25, 1>}, {transform_indices = @transform_3, window_bounds = array<i64: 2, 25, 1>}]} {
    %c0 = arith.constant 0 : index
    %c0_0 = arith.constant 0 : index
    %c0_1 = arith.constant 0 : index
    %0 = vector.load %arg1[%c0, %c0_0, %c0_1] : memref<2x25x32xf32, #tpu.memory_space<vmem>>, vector<2x25x32xf32>
    %c0_2 = arith.constant 0 : index
    %c0_3 = arith.constant 0 : index
    %1 = vector.load %arg2[%c0_2, %c0_3] : memref<2x32xf32, #tpu.memory_space<vmem>>, vector<2x32xf32>
    %2 = vector.shape_cast %1 : vector<2x32xf32> to vector<2x1x32xf32>
    %3 = vector.broadcast %2 : vector<2x1x32xf32> to vector<2x25x32xf32>
    %4 = arith.mulf %0, %3 : vector<2x25x32xf32>
    %cst = arith.constant dense<0.000000e+00> : vector<2x25xf32>
    %5 = vector.multi_reduction <add>, %4, %cst [2] : vector<2x25x32xf32> to vector<2x25xf32>
    %6 = vector.shape_cast %5 : vector<2x25xf32> to vector<2x25x1xf32>
    %cst_4 = arith.constant 3.200000e+01 : f32
    %7 = vector.broadcast %cst_4 : f32 to vector<2x25x1xf32>
    %8 = arith.divf %6, %7 : vector<2x25x1xf32>
    %c0_5 = arith.constant 0 : index
    %c0_6 = arith.constant 0 : index
    %c0_7 = arith.constant 0 : index
    %9 = vector.load %arg3[%c0_5, %c0_6, %c0_7] : memref<2x25x1xf32, #tpu.memory_space<vmem>>, vector<2x25x1xf32>
    tpu.vector_store %arg3[%c0_5, %c0_6, %c0_7], %8 {strides = array<i32>} : memref<2x25x1xf32, #tpu.memory_space<vmem>>, vector<2x25x1xf32>,
    %cst_8 = arith.constant dense<0xFF800000> : vector<2x25xf32>
    %10 = vector.multi_reduction <maximumf>, %4, %cst_8 [2] : vector<2x25x32xf32> to vector<2x25xf32>
    %11 = vector.shape_cast %10 : vector<2x25xf32> to vector<2x25x1xf32>
    %c0_9 = arith.constant 0 : index
    %c0_10 = arith.constant 0 : index
    %c0_11 = arith.constant 0 : index
    %12 = vector.load %arg4[%c0_9, %c0_10, %c0_11] : memref<2x25x1xf32, #tpu.memory_space<vmem>>, vector<2x25x1xf32>
    tpu.vector_store %arg4[%c0_9, %c0_10, %c0_11], %11 {strides = array<i32>} : memref<2x25x1xf32, #tpu.memory_space<vmem>>, vector<2x25x1xf32>,
    return
  }
  func.func @transform_0(%arg0: i32) -> (i32, i32, i32) {
    %c0_i32 = arith.constant 0 : i32
    %c0_i32_0 = arith.constant 0 : i32
    %c0_i32_1 = arith.constant 0 : i32
    return %c0_i32, %arg0, %c0_i32_0 : i32, i32, i32
  }
  func.func @transform_1(%arg0: i32) -> (i32, i32) {
    %c0_i32 = arith.constant 0 : i32
    %c0_i32_0 = arith.constant 0 : i32
    %c0_i32_1 = arith.constant 0 : i32
    return %c0_i32, %c0_i32_0 : i32, i32
  }
  func.func @transform_2(%arg0: i32) -> (i32, i32, i32) {
    %c0_i32 = arith.constant 0 : i32
    %c0_i32_0 = arith.constant 0 : i32
    %c0_i32_1 = arith.constant 0 : i32
    return %c0_i32, %arg0, %c0_i32_0 : i32, i32, i32
  }
  func.func @transform_3(%arg0: i32) -> (i32, i32, i32) {
    %c0_i32 = arith.constant 0 : i32
    %c0_i32_0 = arith.constant 0 : i32
    %c0_i32_1 = arith.constant 0 : i32
    return %c0_i32, %arg0, %c0_i32_0 : i32, i32, i32
  }
}

module attributes {stable_mosaic.version = 11 : i64} {
  func.func @_mm_epilogue_kernel(%arg0: i32, %arg1: memref<50x98xbf16, #tpu.memory_space<vmem>>, %arg2: memref<98x1xbf16, #tpu.memory_space<vmem>>, %arg3: memref<1x1xf32, #tpu.memory_space<vmem>>, %arg4: memref<1x1xf32, #tpu.memory_space<vmem>>, %arg5: memref<50x1xf32, #tpu.memory_space<vmem>>) attributes {dimension_semantics = [#tpu.dimension_semantics<parallel>], iteration_bounds = array<i64: 1>, scalar_prefetch = 0 : i64, scratch_operands = 0 : i64, tpu.core_type = #tpu.core_type<tc>, window_params = [{transform_indices = @transform_0, window_bounds = array<i64: 50, 98>}, {pipeline_mode = #tpu.pipeline_mode<synchronous>, transform_indices = @transform_1, window_bounds = array<i64: 98, 1>}, {pipeline_mode = #tpu.pipeline_mode<synchronous>, transform_indices = @transform_2, window_bounds = array<i64: 1, 1>}, {pipeline_mode = #tpu.pipeline_mode<synchronous>, transform_indices = @transform_3, window_bounds = array<i64: 1, 1>}, {transform_indices = @transform_4, window_bounds = array<i64: 50, 1>}]} {
    %c0 = arith.constant 0 : index
    %c0_0 = arith.constant 0 : index
    %0 = vector.load %arg1[%c0, %c0_0] : memref<50x98xbf16, #tpu.memory_space<vmem>>, vector<50x98xbf16>
    %c0_1 = arith.constant 0 : index
    %c0_2 = arith.constant 0 : index
    %1 = vector.load %arg2[%c0_1, %c0_2] : memref<98x1xbf16, #tpu.memory_space<vmem>>, vector<98x1xbf16>
    %cst = arith.constant dense<0.000000e+00> : vector<50x1xf32>
    %2 = tpu.matmul %0, %1, %cst {dimension_numbers = #tpu.dot_dimension_numbers<[1], [0], [0], [1], [0, 0, 1, 1], [], []>} : vector<50x98xbf16>, vector<98x1xbf16>, vector<50x1xf32> -> vector<50x1xf32>
    %c0_3 = arith.constant 0 : index
    %c0_4 = arith.constant 0 : index
    %3 = vector.load %arg3[%c0_3, %c0_4] : memref<1x1xf32, #tpu.memory_space<vmem>>, vector<1x1xf32>
    %4 = vector.broadcast %3 : vector<1x1xf32> to vector<50x1xf32>
    %5 = arith.mulf %2, %4 : vector<50x1xf32>
    %c0_5 = arith.constant 0 : index
    %c0_6 = arith.constant 0 : index
    %6 = vector.load %arg4[%c0_5, %c0_6] : memref<1x1xf32, #tpu.memory_space<vmem>>, vector<1x1xf32>
    %7 = vector.broadcast %6 : vector<1x1xf32> to vector<50x1xf32>
    %8 = arith.addf %5, %7 : vector<50x1xf32>
    %9 = arith.negf %8 : vector<50x1xf32>
    %10 = math.exp %9 : vector<50x1xf32>
    %cst_7 = arith.constant 1.000000e+00 : f32
    %11 = vector.broadcast %cst_7 : f32 to vector<50x1xf32>
    %12 = arith.addf %11, %10 : vector<50x1xf32>
    %13 = arith.divf %11, %12 : vector<50x1xf32>
    %c0_8 = arith.constant 0 : index
    %c0_9 = arith.constant 0 : index
    %14 = vector.load %arg5[%c0_8, %c0_9] : memref<50x1xf32, #tpu.memory_space<vmem>>, vector<50x1xf32>
    tpu.vector_store %arg5[%c0_8, %c0_9], %13 {strides = array<i32>} : memref<50x1xf32, #tpu.memory_space<vmem>>, vector<50x1xf32>,
    return
  }
  func.func @transform_0(%arg0: i32) -> (i32, i32) {
    %c0_i32 = arith.constant 0 : i32
    %c0_i32_0 = arith.constant 0 : i32
    return %arg0, %c0_i32 : i32, i32
  }
  func.func @transform_1(%arg0: i32) -> (i32, i32) {
    %c0_i32 = arith.constant 0 : i32
    %c0_i32_0 = arith.constant 0 : i32
    %c0_i32_1 = arith.constant 0 : i32
    return %c0_i32, %c0_i32_0 : i32, i32
  }
  func.func @transform_2(%arg0: i32) -> (i32, i32) {
    %c0_i32 = arith.constant 0 : i32
    %c0_i32_0 = arith.constant 0 : i32
    %c0_i32_1 = arith.constant 0 : i32
    return %c0_i32, %c0_i32_0 : i32, i32
  }
  func.func @transform_3(%arg0: i32) -> (i32, i32) {
    %c0_i32 = arith.constant 0 : i32
    %c0_i32_0 = arith.constant 0 : i32
    %c0_i32_1 = arith.constant 0 : i32
    return %c0_i32, %c0_i32_0 : i32, i32
  }
  func.func @transform_4(%arg0: i32) -> (i32, i32) {
    %c0_i32 = arith.constant 0 : i32
    %c0_i32_0 = arith.constant 0 : i32
    return %arg0, %c0_i32 : i32, i32
  }
}

module attributes {stable_mosaic.version = 11 : i64} {
  func.func @_cbam_apply_kernel(%arg0: i32, %arg1: memref<2x25x32xf32, #tpu.memory_space<vmem>>, %arg2: memref<2x32xf32, #tpu.memory_space<vmem>>, %arg3: memref<2x25x1xf32, #tpu.memory_space<vmem>>, %arg4: memref<2x25x32xf32, #tpu.memory_space<vmem>>) attributes {dimension_semantics = [#tpu.dimension_semantics<parallel>], iteration_bounds = array<i64: 1>, scalar_prefetch = 0 : i64, scratch_operands = 0 : i64, tpu.core_type = #tpu.core_type<tc>, window_params = [{transform_indices = @transform_0, window_bounds = array<i64: 2, 25, 32>}, {pipeline_mode = #tpu.pipeline_mode<synchronous>, transform_indices = @transform_1, window_bounds = array<i64: 2, 32>}, {transform_indices = @transform_2, window_bounds = array<i64: 2, 25, 1>}, {transform_indices = @transform_3, window_bounds = array<i64: 2, 25, 32>}]} {
    %c0 = arith.constant 0 : index
    %c0_0 = arith.constant 0 : index
    %c0_1 = arith.constant 0 : index
    %0 = vector.load %arg1[%c0, %c0_0, %c0_1] : memref<2x25x32xf32, #tpu.memory_space<vmem>>, vector<2x25x32xf32>
    %c0_2 = arith.constant 0 : index
    %c0_3 = arith.constant 0 : index
    %1 = vector.load %arg2[%c0_2, %c0_3] : memref<2x32xf32, #tpu.memory_space<vmem>>, vector<2x32xf32>
    %2 = vector.shape_cast %1 : vector<2x32xf32> to vector<2x1x32xf32>
    %3 = vector.broadcast %2 : vector<2x1x32xf32> to vector<2x25x32xf32>
    %4 = arith.mulf %0, %3 : vector<2x25x32xf32>
    %c0_4 = arith.constant 0 : index
    %c0_5 = arith.constant 0 : index
    %c0_6 = arith.constant 0 : index
    %5 = vector.load %arg3[%c0_4, %c0_5, %c0_6] : memref<2x25x1xf32, #tpu.memory_space<vmem>>, vector<2x25x1xf32>
    %6 = vector.broadcast %5 : vector<2x25x1xf32> to vector<2x25x32xf32>
    %7 = arith.mulf %4, %6 : vector<2x25x32xf32>
    %c0_7 = arith.constant 0 : index
    %c0_8 = arith.constant 0 : index
    %c0_9 = arith.constant 0 : index
    %8 = vector.load %arg4[%c0_7, %c0_8, %c0_9] : memref<2x25x32xf32, #tpu.memory_space<vmem>>, vector<2x25x32xf32>
    tpu.vector_store %arg4[%c0_7, %c0_8, %c0_9], %7 {strides = array<i32>} : memref<2x25x32xf32, #tpu.memory_space<vmem>>, vector<2x25x32xf32>,
    return
  }
  func.func @transform_0(%arg0: i32) -> (i32, i32, i32) {
    %c0_i32 = arith.constant 0 : i32
    %c0_i32_0 = arith.constant 0 : i32
    %c0_i32_1 = arith.constant 0 : i32
    return %c0_i32, %arg0, %c0_i32_0 : i32, i32, i32
  }
  func.func @transform_1(%arg0: i32) -> (i32, i32) {
    %c0_i32 = arith.constant 0 : i32
    %c0_i32_0 = arith.constant 0 : i32
    %c0_i32_1 = arith.constant 0 : i32
    return %c0_i32, %c0_i32_0 : i32, i32
  }
  func.func @transform_2(%arg0: i32) -> (i32, i32, i32) {
    %c0_i32 = arith.constant 0 : i32
    %c0_i32_0 = arith.constant 0 : i32
    %c0_i32_1 = arith.constant 0 : i32
    return %c0_i32, %arg0, %c0_i32_0 : i32, i32, i32
  }
  func.func @transform_3(%arg0: i32) -> (i32, i32, i32) {
    %c0_i32 = arith.constant 0 : i32
    %c0_i32_0 = arith.constant 0 : i32
    %c0_i32_1 = arith.constant 0 : i32
    return %c0_i32, %arg0, %c0_i32_0 : i32, i32, i32
  }
}

module attributes {stable_mosaic.version = 11 : i64} {
  func.func @_mm_epilogue_kernel(%arg0: i32, %arg1: memref<50x288xbf16, #tpu.memory_space<vmem>>, %arg2: memref<288x8xbf16, #tpu.memory_space<vmem>>, %arg3: memref<1x8xf32, #tpu.memory_space<vmem>>, %arg4: memref<1x8xf32, #tpu.memory_space<vmem>>, %arg5: memref<50x8xf32, #tpu.memory_space<vmem>>) attributes {dimension_semantics = [#tpu.dimension_semantics<parallel>], iteration_bounds = array<i64: 1>, scalar_prefetch = 0 : i64, scratch_operands = 0 : i64, tpu.core_type = #tpu.core_type<tc>, window_params = [{transform_indices = @transform_0, window_bounds = array<i64: 50, 288>}, {pipeline_mode = #tpu.pipeline_mode<synchronous>, transform_indices = @transform_1, window_bounds = array<i64: 288, 8>}, {pipeline_mode = #tpu.pipeline_mode<synchronous>, transform_indices = @transform_2, window_bounds = array<i64: 1, 8>}, {pipeline_mode = #tpu.pipeline_mode<synchronous>, transform_indices = @transform_3, window_bounds = array<i64: 1, 8>}, {transform_indices = @transform_4, window_bounds = array<i64: 50, 8>}]} {
    %c0 = arith.constant 0 : index
    %c0_0 = arith.constant 0 : index
    %0 = vector.load %arg1[%c0, %c0_0] : memref<50x288xbf16, #tpu.memory_space<vmem>>, vector<50x288xbf16>
    %c0_1 = arith.constant 0 : index
    %c0_2 = arith.constant 0 : index
    %1 = vector.load %arg2[%c0_1, %c0_2] : memref<288x8xbf16, #tpu.memory_space<vmem>>, vector<288x8xbf16>
    %cst = arith.constant dense<0.000000e+00> : vector<50x8xf32>
    %2 = tpu.matmul %0, %1, %cst {dimension_numbers = #tpu.dot_dimension_numbers<[1], [0], [0], [1], [0, 0, 1, 1], [], []>} : vector<50x288xbf16>, vector<288x8xbf16>, vector<50x8xf32> -> vector<50x8xf32>
    %c0_3 = arith.constant 0 : index
    %c0_4 = arith.constant 0 : index
    %3 = vector.load %arg3[%c0_3, %c0_4] : memref<1x8xf32, #tpu.memory_space<vmem>>, vector<1x8xf32>
    %4 = vector.broadcast %3 : vector<1x8xf32> to vector<50x8xf32>
    %5 = arith.mulf %2, %4 : vector<50x8xf32>
    %c0_5 = arith.constant 0 : index
    %c0_6 = arith.constant 0 : index
    %6 = vector.load %arg4[%c0_5, %c0_6] : memref<1x8xf32, #tpu.memory_space<vmem>>, vector<1x8xf32>
    %7 = vector.broadcast %6 : vector<1x8xf32> to vector<50x8xf32>
    %8 = arith.addf %5, %7 : vector<50x8xf32>
    %cst_7 = arith.constant 0.000000e+00 : f32
    %9 = vector.broadcast %cst_7 : f32 to vector<50x8xf32>
    %10 = arith.cmpf oge, %8, %9 : vector<50x8xf32>
    %cst_8 = arith.constant 0.00999999977 : f32
    %11 = vector.broadcast %cst_8 : f32 to vector<50x8xf32>
    %12 = arith.mulf %11, %8 : vector<50x8xf32>
    %13 = arith.select %10, %8, %12 : vector<50x8xi1>, vector<50x8xf32>
    %c0_9 = arith.constant 0 : index
    %c0_10 = arith.constant 0 : index
    %14 = vector.load %arg5[%c0_9, %c0_10] : memref<50x8xf32, #tpu.memory_space<vmem>>, vector<50x8xf32>
    tpu.vector_store %arg5[%c0_9, %c0_10], %13 {strides = array<i32>} : memref<50x8xf32, #tpu.memory_space<vmem>>, vector<50x8xf32>,
    return
  }
  func.func @transform_0(%arg0: i32) -> (i32, i32) {
    %c0_i32 = arith.constant 0 : i32
    %c0_i32_0 = arith.constant 0 : i32
    return %arg0, %c0_i32 : i32, i32
  }
  func.func @transform_1(%arg0: i32) -> (i32, i32) {
    %c0_i32 = arith.constant 0 : i32
    %c0_i32_0 = arith.constant 0 : i32
    %c0_i32_1 = arith.constant 0 : i32
    return %c0_i32, %c0_i32_0 : i32, i32
  }
  func.func @transform_2(%arg0: i32) -> (i32, i32) {
    %c0_i32 = arith.constant 0 : i32
    %c0_i32_0 = arith.constant 0 : i32
    %c0_i32_1 = arith.constant 0 : i32
    return %c0_i32, %c0_i32_0 : i32, i32
  }
  func.func @transform_3(%arg0: i32) -> (i32, i32) {
    %c0_i32 = arith.constant 0 : i32
    %c0_i32_0 = arith.constant 0 : i32
    %c0_i32_1 = arith.constant 0 : i32
    return %c0_i32, %c0_i32_0 : i32, i32
  }
  func.func @transform_4(%arg0: i32) -> (i32, i32) {
    %c0_i32 = arith.constant 0 : i32
    %c0_i32_0 = arith.constant 0 : i32
    return %arg0, %c0_i32 : i32, i32
  }
}

module attributes {stable_mosaic.version = 11 : i64} {
  func.func @_mm_epilogue_kernel(%arg0: i32, %arg1: memref<50x72xbf16, #tpu.memory_space<vmem>>, %arg2: memref<72x3xbf16, #tpu.memory_space<vmem>>, %arg3: memref<1x3xf32, #tpu.memory_space<vmem>>, %arg4: memref<1x3xf32, #tpu.memory_space<vmem>>, %arg5: memref<50x3xf32, #tpu.memory_space<vmem>>) attributes {dimension_semantics = [#tpu.dimension_semantics<parallel>], iteration_bounds = array<i64: 1>, scalar_prefetch = 0 : i64, scratch_operands = 0 : i64, tpu.core_type = #tpu.core_type<tc>, window_params = [{transform_indices = @transform_0, window_bounds = array<i64: 50, 72>}, {pipeline_mode = #tpu.pipeline_mode<synchronous>, transform_indices = @transform_1, window_bounds = array<i64: 72, 3>}, {pipeline_mode = #tpu.pipeline_mode<synchronous>, transform_indices = @transform_2, window_bounds = array<i64: 1, 3>}, {pipeline_mode = #tpu.pipeline_mode<synchronous>, transform_indices = @transform_3, window_bounds = array<i64: 1, 3>}, {transform_indices = @transform_4, window_bounds = array<i64: 50, 3>}]} {
    %c0 = arith.constant 0 : index
    %c0_0 = arith.constant 0 : index
    %0 = vector.load %arg1[%c0, %c0_0] : memref<50x72xbf16, #tpu.memory_space<vmem>>, vector<50x72xbf16>
    %c0_1 = arith.constant 0 : index
    %c0_2 = arith.constant 0 : index
    %1 = vector.load %arg2[%c0_1, %c0_2] : memref<72x3xbf16, #tpu.memory_space<vmem>>, vector<72x3xbf16>
    %cst = arith.constant dense<0.000000e+00> : vector<50x3xf32>
    %2 = tpu.matmul %0, %1, %cst {dimension_numbers = #tpu.dot_dimension_numbers<[1], [0], [0], [1], [0, 0, 1, 1], [], []>} : vector<50x72xbf16>, vector<72x3xbf16>, vector<50x3xf32> -> vector<50x3xf32>
    %c0_3 = arith.constant 0 : index
    %c0_4 = arith.constant 0 : index
    %3 = vector.load %arg3[%c0_3, %c0_4] : memref<1x3xf32, #tpu.memory_space<vmem>>, vector<1x3xf32>
    %4 = vector.broadcast %3 : vector<1x3xf32> to vector<50x3xf32>
    %5 = arith.mulf %2, %4 : vector<50x3xf32>
    %c0_5 = arith.constant 0 : index
    %c0_6 = arith.constant 0 : index
    %6 = vector.load %arg4[%c0_5, %c0_6] : memref<1x3xf32, #tpu.memory_space<vmem>>, vector<1x3xf32>
    %7 = vector.broadcast %6 : vector<1x3xf32> to vector<50x3xf32>
    %8 = arith.addf %5, %7 : vector<50x3xf32>
    %cst_7 = arith.constant 0.000000e+00 : f32
    %9 = vector.broadcast %cst_7 : f32 to vector<50x3xf32>
    %10 = arith.cmpf oge, %8, %9 : vector<50x3xf32>
    %cst_8 = arith.constant 0.00999999977 : f32
    %11 = vector.broadcast %cst_8 : f32 to vector<50x3xf32>
    %12 = arith.mulf %11, %8 : vector<50x3xf32>
    %13 = arith.select %10, %8, %12 : vector<50x3xi1>, vector<50x3xf32>
    %c0_9 = arith.constant 0 : index
    %c0_10 = arith.constant 0 : index
    %14 = vector.load %arg5[%c0_9, %c0_10] : memref<50x3xf32, #tpu.memory_space<vmem>>, vector<50x3xf32>
    tpu.vector_store %arg5[%c0_9, %c0_10], %13 {strides = array<i32>} : memref<50x3xf32, #tpu.memory_space<vmem>>, vector<50x3xf32>,
    return
  }
  func.func @transform_0(%arg0: i32) -> (i32, i32) {
    %c0_i32 = arith.constant 0 : i32
    %c0_i32_0 = arith.constant 0 : i32
    return %arg0, %c0_i32 : i32, i32
  }
  func.func @transform_1(%arg0: i32) -> (i32, i32) {
    %c0_i32 = arith.constant 0 : i32
    %c0_i32_0 = arith.constant 0 : i32
    %c0_i32_1 = arith.constant 0 : i32
    return %c0_i32, %c0_i32_0 : i32, i32
  }
  func.func @transform_2(%arg0: i32) -> (i32, i32) {
    %c0_i32 = arith.constant 0 : i32
    %c0_i32_0 = arith.constant 0 : i32
    %c0_i32_1 = arith.constant 0 : i32
    return %c0_i32, %c0_i32_0 : i32, i32
  }
  func.func @transform_3(%arg0: i32) -> (i32, i32) {
    %c0_i32 = arith.constant 0 : i32
    %c0_i32_0 = arith.constant 0 : i32
    %c0_i32_1 = arith.constant 0 : i32
    return %c0_i32, %c0_i32_0 : i32, i32
  }
  func.func @transform_4(%arg0: i32) -> (i32, i32) {
    %c0_i32 = arith.constant 0 : i32
    %c0_i32_0 = arith.constant 0 : i32
    return %arg0, %c0_i32 : i32, i32
  }
}

module attributes {stable_mosaic.version = 11 : i64} {
  func.func @_resize_kernel(%arg0: i32, %arg1: memref<32x5xf32, #tpu.memory_space<vmem>>, %arg2: memref<1x5x15xf32, #tpu.memory_space<vmem>>, %arg3: memref<1x32x15xf32, #tpu.memory_space<vmem>>) attributes {dimension_semantics = [#tpu.dimension_semantics<parallel>], iteration_bounds = array<i64: 2>, scalar_prefetch = 0 : i64, scratch_operands = 0 : i64, tpu.core_type = #tpu.core_type<tc>, window_params = [{pipeline_mode = #tpu.pipeline_mode<synchronous>, transform_indices = @transform_0, window_bounds = array<i64: 32, 5>}, {transform_indices = @transform_1, window_bounds = array<i64: 1, 5, 15>}, {transform_indices = @transform_2, window_bounds = array<i64: 1, 32, 15>}]} {
    %c0 = arith.constant 0 : index
    %c0_0 = arith.constant 0 : index
    %0 = vector.load %arg1[%c0, %c0_0] : memref<32x5xf32, #tpu.memory_space<vmem>>, vector<32x5xf32>
    %c0_1 = arith.constant 0 : index
    %c0_2 = arith.constant 0 : index
    %c0_3 = arith.constant 0 : index
    %1 = vector.load %arg2[%c0_1, %c0_2, %c0_3] : memref<1x5x15xf32, #tpu.memory_space<vmem>>, vector<1x5x15xf32>
    %2 = vector.shape_cast %1 : vector<1x5x15xf32> to vector<5x15xf32>
    %cst = arith.constant dense<0.000000e+00> : vector<32x15xf32>
    %3 = tpu.matmul %0, %2, %cst {dimension_numbers = #tpu.dot_dimension_numbers<[1], [0], [0], [1], [0, 0, 1, 1], [], []>} : vector<32x5xf32>, vector<5x15xf32>, vector<32x15xf32> -> vector<32x15xf32>
    %c0_4 = arith.constant 0 : index
    %c0_5 = arith.constant 0 : index
    %c0_6 = arith.constant 0 : index
    %4 = vector.load %arg3[%c0_4, %c0_5, %c0_6] : memref<1x32x15xf32, #tpu.memory_space<vmem>>, vector<1x32x15xf32>
    %5 = vector.shape_cast %4 : vector<1x32x15xf32> to vector<32x15xf32>
    %6 = vector.shape_cast %3 : vector<32x15xf32> to vector<1x32x15xf32>
    tpu.vector_store %arg3[%c0_4, %c0_5, %c0_6], %6 {strides = array<i32>} : memref<1x32x15xf32, #tpu.memory_space<vmem>>, vector<1x32x15xf32>,
    return
  }
  func.func @transform_0(%arg0: i32) -> (i32, i32) {
    %c0_i32 = arith.constant 0 : i32
    %c0_i32_0 = arith.constant 0 : i32
    %c0_i32_1 = arith.constant 0 : i32
    return %c0_i32, %c0_i32_0 : i32, i32
  }
  func.func @transform_1(%arg0: i32) -> (i32, i32, i32) {
    %c0_i32 = arith.constant 0 : i32
    %c0_i32_0 = arith.constant 0 : i32
    %c0_i32_1 = arith.constant 0 : i32
    return %arg0, %c0_i32, %c0_i32_0 : i32, i32, i32
  }
  func.func @transform_2(%arg0: i32) -> (i32, i32, i32) {
    %c0_i32 = arith.constant 0 : i32
    %c0_i32_0 = arith.constant 0 : i32
    %c0_i32_1 = arith.constant 0 : i32
    return %arg0, %c0_i32, %c0_i32_0 : i32, i32, i32
  }
}

module attributes {stable_mosaic.version = 11 : i64} {
  func.func @_resize_kernel(%arg0: i32, %arg1: memref<32x5xf32, #tpu.memory_space<vmem>>, %arg2: memref<1x5x96xf32, #tpu.memory_space<vmem>>, %arg3: memref<1x32x96xf32, #tpu.memory_space<vmem>>) attributes {dimension_semantics = [#tpu.dimension_semantics<parallel>], iteration_bounds = array<i64: 2>, scalar_prefetch = 0 : i64, scratch_operands = 0 : i64, tpu.core_type = #tpu.core_type<tc>, window_params = [{pipeline_mode = #tpu.pipeline_mode<synchronous>, transform_indices = @transform_0, window_bounds = array<i64: 32, 5>}, {transform_indices = @transform_1, window_bounds = array<i64: 1, 5, 96>}, {transform_indices = @transform_2, window_bounds = array<i64: 1, 32, 96>}]} {
    %c0 = arith.constant 0 : index
    %c0_0 = arith.constant 0 : index
    %0 = vector.load %arg1[%c0, %c0_0] : memref<32x5xf32, #tpu.memory_space<vmem>>, vector<32x5xf32>
    %c0_1 = arith.constant 0 : index
    %c0_2 = arith.constant 0 : index
    %c0_3 = arith.constant 0 : index
    %1 = vector.load %arg2[%c0_1, %c0_2, %c0_3] : memref<1x5x96xf32, #tpu.memory_space<vmem>>, vector<1x5x96xf32>
    %2 = vector.shape_cast %1 : vector<1x5x96xf32> to vector<5x96xf32>
    %cst = arith.constant dense<0.000000e+00> : vector<32x96xf32>
    %3 = tpu.matmul %0, %2, %cst {dimension_numbers = #tpu.dot_dimension_numbers<[1], [0], [0], [1], [0, 0, 1, 1], [], []>} : vector<32x5xf32>, vector<5x96xf32>, vector<32x96xf32> -> vector<32x96xf32>
    %c0_4 = arith.constant 0 : index
    %c0_5 = arith.constant 0 : index
    %c0_6 = arith.constant 0 : index
    %4 = vector.load %arg3[%c0_4, %c0_5, %c0_6] : memref<1x32x96xf32, #tpu.memory_space<vmem>>, vector<1x32x96xf32>
    %5 = vector.shape_cast %4 : vector<1x32x96xf32> to vector<32x96xf32>
    %6 = vector.shape_cast %3 : vector<32x96xf32> to vector<1x32x96xf32>
    tpu.vector_store %arg3[%c0_4, %c0_5, %c0_6], %6 {strides = array<i32>} : memref<1x32x96xf32, #tpu.memory_space<vmem>>, vector<1x32x96xf32>,
    return
  }
  func.func @transform_0(%arg0: i32) -> (i32, i32) {
    %c0_i32 = arith.constant 0 : i32
    %c0_i32_0 = arith.constant 0 : i32
    %c0_i32_1 = arith.constant 0 : i32
    return %c0_i32, %c0_i32_0 : i32, i32
  }
  func.func @transform_1(%arg0: i32) -> (i32, i32, i32) {
    %c0_i32 = arith.constant 0 : i32
    %c0_i32_0 = arith.constant 0 : i32
    %c0_i32_1 = arith.constant 0 : i32
    return %arg0, %c0_i32, %c0_i32_0 : i32, i32, i32
  }
  func.func @transform_2(%arg0: i32) -> (i32, i32, i32) {
    %c0_i32 = arith.constant 0 : i32
    %c0_i32_0 = arith.constant 0 : i32
    %c0_i32_1 = arith.constant 0 : i32
    return %arg0, %c0_i32, %c0_i32_0 : i32, i32, i32
  }
}

module attributes {stable_mosaic.version = 11 : i64} {
  func.func @_head_kernel(%arg0: i32, %arg1: memref<2x1024x3xf32, #tpu.memory_space<vmem>>, %arg2: memref<3x1536xf32, #tpu.memory_space<vmem>>, %arg3: memref<1536x7xbf16, #tpu.memory_space<vmem>>, %arg4: memref<1x7xf32, #tpu.memory_space<vmem>>, %arg5: memref<2x7xf32, #tpu.memory_space<vmem>>, %arg6: memref<2x3xf32, #tpu.memory_space<vmem>>) attributes {dimension_semantics = [#tpu.dimension_semantics<arbitrary>], iteration_bounds = array<i64: 1>, scalar_prefetch = 0 : i64, scratch_operands = 1 : i64, tpu.core_type = #tpu.core_type<tc>, window_params = [{transform_indices = @transform_0, window_bounds = array<i64: 2, 1024, 3>}, {pipeline_mode = #tpu.pipeline_mode<synchronous>, transform_indices = @transform_1, window_bounds = array<i64: 3, 1536>}, {pipeline_mode = #tpu.pipeline_mode<synchronous>, transform_indices = @transform_2, window_bounds = array<i64: 1536, 7>}, {pipeline_mode = #tpu.pipeline_mode<synchronous>, transform_indices = @transform_3, window_bounds = array<i64: 1, 7>}, {pipeline_mode = #tpu.pipeline_mode<synchronous>, transform_indices = @transform_4, window_bounds = array<i64: 2, 7>}]} {
    %c0_i32 = arith.constant 0 : i32
    %0 = arith.cmpi eq, %arg0, %c0_i32 : i32
    %1 = arith.extui %0 : i1 to i32
    %c0_i32_0 = arith.constant 0 : i32
    %2 = arith.cmpi ne, %1, %c0_i32_0 : i32
    scf.if %2 {
      %cst_9 = arith.constant 0.000000e+00 : f32
      %11 = vector.broadcast %cst_9 : f32 to vector<2x3xf32>
      %c0_10 = arith.constant 0 : index
      %c0_11 = arith.constant 0 : index
      %12 = vector.load %arg6[%c0_10, %c0_11] : memref<2x3xf32, #tpu.memory_space<vmem>>, vector<2x3xf32>
      tpu.vector_store %arg6[%c0_10, %c0_11], %11 {strides = array<i32>} : memref<2x3xf32, #tpu.memory_space<vmem>>, vector<2x3xf32>,
    } else {
    }
    %c0 = arith.constant 0 : index
    %c0_1 = arith.constant 0 : index
    %c0_2 = arith.constant 0 : index
    %3 = vector.load %arg1[%c0, %c0_1, %c0_2] : memref<2x1024x3xf32, #tpu.memory_space<vmem>>, vector<2x1024x3xf32>
    %c0_3 = arith.constant 0 : index
    %c0_4 = arith.constant 0 : index
    %4 = vector.load %arg6[%c0_3, %c0_4] : memref<2x3xf32, #tpu.memory_space<vmem>>, vector<2x3xf32>
    %cst = arith.constant dense<0.000000e+00> : vector<2x3xf32>
    %5 = vector.multi_reduction <add>, %3, %cst [1] : vector<2x1024x3xf32> to vector<2x3xf32>
    %6 = arith.addf %4, %5 : vector<2x3xf32>
    %c0_5 = arith.constant 0 : index
    %c0_6 = arith.constant 0 : index
    %7 = vector.load %arg6[%c0_5, %c0_6] : memref<2x3xf32, #tpu.memory_space<vmem>>, vector<2x3xf32>
    tpu.vector_store %arg6[%c0_5, %c0_6], %6 {strides = array<i32>} : memref<2x3xf32, #tpu.memory_space<vmem>>, vector<2x3xf32>,
    %c0_i32_7 = arith.constant 0 : i32
    %8 = arith.cmpi eq, %arg0, %c0_i32_7 : i32
    %9 = arith.extui %8 : i1 to i32
    %c0_i32_8 = arith.constant 0 : i32
    %10 = arith.cmpi ne, %9, %c0_i32_8 : i32
    scf.if %10 {
      %c0_9 = arith.constant 0 : index
      %c0_10 = arith.constant 0 : index
      %11 = vector.load %arg6[%c0_9, %c0_10] : memref<2x3xf32, #tpu.memory_space<vmem>>, vector<2x3xf32>
      %cst_11 = arith.constant 9.765625E-4 : f32
      %12 = vector.broadcast %cst_11 : f32 to vector<2x3xf32>
      %13 = arith.mulf %11, %12 : vector<2x3xf32>
      %c0_12 = arith.constant 0 : index
      %c0_13 = arith.constant 0 : index
      %14 = vector.load %arg2[%c0_12, %c0_13] : memref<3x1536xf32, #tpu.memory_space<vmem>>, vector<3x1536xf32>
      %15 = vector.extract_strided_slice %13 {offsets = [0, 0], sizes = [2, 1], strides = [1, 1]} : vector<2x3xf32> to vector<2x1xf32>
      %16 = vector.extract_strided_slice %14 {offsets = [0, 0], sizes = [1, 1536], strides = [1, 1]} : vector<3x1536xf32> to vector<1x1536xf32>
      %17 = vector.broadcast %15 : vector<2x1xf32> to vector<2x1536xf32>
      %18 = vector.broadcast %16 : vector<1x1536xf32> to vector<2x1536xf32>
      %19 = arith.mulf %17, %18 : vector<2x1536xf32>
      %20 = vector.extract_strided_slice %13 {offsets = [0, 1], sizes = [2, 1], strides = [1, 1]} : vector<2x3xf32> to vector<2x1xf32>
      %21 = vector.extract_strided_slice %14 {offsets = [1, 0], sizes = [1, 1536], strides = [1, 1]} : vector<3x1536xf32> to vector<1x1536xf32>
      %22 = vector.broadcast %20 : vector<2x1xf32> to vector<2x1536xf32>
      %23 = vector.broadcast %21 : vector<1x1536xf32> to vector<2x1536xf32>
      %24 = arith.mulf %22, %23 : vector<2x1536xf32>
      %25 = arith.addf %19, %24 : vector<2x1536xf32>
      %26 = vector.extract_strided_slice %13 {offsets = [0, 2], sizes = [2, 1], strides = [1, 1]} : vector<2x3xf32> to vector<2x1xf32>
      %27 = vector.extract_strided_slice %14 {offsets = [2, 0], sizes = [1, 1536], strides = [1, 1]} : vector<3x1536xf32> to vector<1x1536xf32>
      %28 = vector.broadcast %26 : vector<2x1xf32> to vector<2x1536xf32>
      %29 = vector.broadcast %27 : vector<1x1536xf32> to vector<2x1536xf32>
      %30 = arith.mulf %28, %29 : vector<2x1536xf32>
      %31 = arith.addf %25, %30 : vector<2x1536xf32>
      %cst_14 = arith.constant 0.000000e+00 : f32
      %32 = vector.broadcast %cst_14 : f32 to vector<2x1536xf32>
      %33 = arith.maximumf %31, %32 : vector<2x1536xf32>
      %34 = arith.truncf %33 : vector<2x1536xf32> to vector<2x1536xbf16>
      %c0_15 = arith.constant 0 : index
      %c0_16 = arith.constant 0 : index
      %35 = vector.load %arg3[%c0_15, %c0_16] : memref<1536x7xbf16, #tpu.memory_space<vmem>>, vector<1536x7xbf16>
      %cst_17 = arith.constant dense<0.000000e+00> : vector<2x7xf32>
      %36 = tpu.matmul %34, %35, %cst_17 {dimension_numbers = #tpu.dot_dimension_numbers<[1], [0], [0], [1], [0, 0, 1, 1], [], []>} : vector<2x1536xbf16>, vector<1536x7xbf16>, vector<2x7xf32> -> vector<2x7xf32>
      %c0_18 = arith.constant 0 : index
      %c0_19 = arith.constant 0 : index
      %37 = vector.load %arg4[%c0_18, %c0_19] : memref<1x7xf32, #tpu.memory_space<vmem>>, vector<1x7xf32>
      %38 = vector.broadcast %37 : vector<1x7xf32> to vector<2x7xf32>
      %39 = arith.addf %36, %38 : vector<2x7xf32>
      %c0_20 = arith.constant 0 : index
      %c0_21 = arith.constant 0 : index
      %40 = vector.load %arg5[%c0_20, %c0_21] : memref<2x7xf32, #tpu.memory_space<vmem>>, vector<2x7xf32>
      tpu.vector_store %arg5[%c0_20, %c0_21], %39 {strides = array<i32>} : memref<2x7xf32, #tpu.memory_space<vmem>>, vector<2x7xf32>,
    } else {
    }
    return
  }
  func.func @transform_0(%arg0: i32) -> (i32, i32, i32) {
    %c0_i32 = arith.constant 0 : i32
    %c0_i32_0 = arith.constant 0 : i32
    %c0_i32_1 = arith.constant 0 : i32
    return %c0_i32, %arg0, %c0_i32_0 : i32, i32, i32
  }
  func.func @transform_1(%arg0: i32) -> (i32, i32) {
    %c0_i32 = arith.constant 0 : i32
    %c0_i32_0 = arith.constant 0 : i32
    %c0_i32_1 = arith.constant 0 : i32
    return %c0_i32, %c0_i32_0 : i32, i32
  }
  func.func @transform_2(%arg0: i32) -> (i32, i32) {
    %c0_i32 = arith.constant 0 : i32
    %c0_i32_0 = arith.constant 0 : i32
    %c0_i32_1 = arith.constant 0 : i32
    return %c0_i32, %c0_i32_0 : i32, i32
  }
  func.func @transform_3(%arg0: i32) -> (i32, i32) {
    %c0_i32 = arith.constant 0 : i32
    %c0_i32_0 = arith.constant 0 : i32
    %c0_i32_1 = arith.constant 0 : i32
    return %c0_i32, %c0_i32_0 : i32, i32
  }
  func.func @transform_4(%arg0: i32) -> (i32, i32) {
    %c0_i32 = arith.constant 0 : i32
    %c0_i32_0 = arith.constant 0 : i32
    %c0_i32_1 = arith.constant 0 : i32
    return %c0_i32, %c0_i32_0 : i32, i32
  }
}

</mosaic_0001>

<llo_original>
// kernel: multi_classification_forward.16
$region0: #{multi_classification_forward.16}
  #allocation0 [shape = 'u32[]', space=smem, size = 0x4, offset = 0x4, fixed_abs, tag = 'smem constant byte address 0x4 - core index']
  #allocation1 [shape = 'u32[144,128]{1,0:T(1,128)}', space=vmem, size = 0x12000, scoped, tag = 'internal scratch']
  %s0 = inlined_call_operand.vmem [shape: bf16[1536,169], index: 0, kind: input, shape index: {}]
  %s1 = inlined_call_operand.vmem [shape: bf16[169,4], index: 1, kind: input, shape index: {}]
  %s2 = inlined_call_operand.vmem [shape: f32[1,4], index: 2, kind: input, shape index: {}]
  %s3 = inlined_call_operand.vmem [shape: f32[1,4], index: 3, kind: input, shape index: {}]
  %s4 = inlined_call_operand.vmem [shape: f32[1536,4], index: 4, kind: output, shape index: {}]
  %s5 = sld [smem:[#allocation0]]
  $region49: #{multi_classification_forward.16} parent=0
    _
  %s7 = ssub.s32 1, %s5
  %s8 = scalar_select 0, %s7, %s5
  loop: start=0, step=1, limit=5
  $region2: #{multi_classification_forward.16} parent=0 // loop_pre_header
    _
  $region3: #{multi_classification_forward.16} parent=0 // loop_header
    %s10 = sphi 0, %s14
    %p11 = scmp.ge.s32.totalorder %s10, 5
    %s20 = sphi 0, %s22
    %s23 = sphi 0, %s20
    %s24 = sphi 0, %s23
    %s40 = sphi 0, %s24
    %s44 = sphi 0, %s44
    %s46 = sphi 0, %s44
    %s47 = sphi 0, %s46
    %s61 = sphi 0, %s47
    %s65 = sphi 0, %s65
    %s67 = sphi 0, %s65
    %s68 = sphi 0, %s67
    %s82 = sphi 0, %s68
    %s86 = sphi 0, %s86
    %s88 = sphi 0, %s86
    %s89 = sphi 0, %s88
    %s103 = sphi 0, %s89
    %s109 = sphi 0, %s111
    %s112 = sphi 0, %s109
    %s113 = sphi 0, %s112
    %s129 = sphi 0, %s113
  $region4: #{multi_classification_forward.16} parent=0 // loop_header_branch
    %13 = sbr.rel (%p11) target = $region8
  $region5: #{multi_classification_forward.16} parent=0 // loop_body
    %s15 = ssub.s32 %s10, 1
    %s16 = ssub.s32 %s10, 2
    %s17 = sadd.s32 %s10, 1
    %s18 = ssub.s32 %s10, %s17
    %p19 = scmp.eq.s32.totalorder %s18, 0
    %s21 = sadd.s32 %s20, 1
    %s22 = scalar_select %p19, %s20, %s21
    %p25 = pneg %p19
    %p26 = scmp.eq.s32.totalorder %s10, 2
    %p27 = por %p25, %p26
    %p28 = scmp.ne.s32.totalorder %s20, %s23
    %p29 = scmp.eq.s32.totalorder %s10, 0
    %p30 = por %p28, %p29
    %p31 = scmp.ne.s32.totalorder %s20, %s23
    %p32 = scmp.eq.s32.totalorder %s15, 2
    %p33 = por %p31, %p32
    %p34 = scmp.ne.s32.totalorder %s23, %s24
    %p35 = scmp.eq.s32.totalorder %s15, 0
    %p36 = por %p34, %p35
    %p37 = scmp.ne.s32.totalorder %s23, %s24
    %p38 = scmp.eq.s32.totalorder %s16, 2
    %p39 = por %p37, %p38
    %p41 = scmp.ne.s32.totalorder %s24, %s40
    %p42 = scmp.eq.s32.totalorder %s16, 0
    %p43 = por %p41, %p42
    %s45 = sadd.s32 %s44, 1
    %p48 = scmp.eq.s32.totalorder %s10, 2
    %p49 = scmp.ne.s32.totalorder %s44, %s46
    %p50 = scmp.eq.s32.totalorder %s10, 0
    %p51 = por %p49, %p50
    %p52 = scmp.ne.s32.totalorder %s44, %s46
    %p53 = scmp.eq.s32.totalorder %s15, 2
    %p54 = por %p52, %p53
    %p55 = scmp.ne.s32.totalorder %s46, %s47
    %p56 = scmp.eq.s32.totalorder %s15, 0
    %p57 = por %p55, %p56
    %p58 = scmp.ne.s32.totalorder %s46, %s47
    %p59 = scmp.eq.s32.totalorder %s16, 2
    %p60 = por %p58, %p59
    %p62 = scmp.ne.s32.totalorder %s47, %s61
    %p63 = scmp.eq.s32.totalorder %s16, 0
    %p64 = por %p62, %p63
    %s66 = sadd.s32 %s65, 1
    %p69 = scmp.eq.s32.totalorder %s10, 2
    %p70 = scmp.ne.s32.totalorder %s65, %s67
    %p71 = scmp.eq.s32.totalorder %s10, 0
    %p72 = por %p70, %p71
    %p73 = scmp.ne.s32.totalorder %s65, %s67
    %p74 = scmp.eq.s32.totalorder %s15, 2
    %p75 = por %p73, %p74
    %p76 = scmp.ne.s32.totalorder %s67, %s68
    %p77 = scmp.eq.s32.totalorder %s15, 0
    %p78 = por %p76, %p77
    %p79 = scmp.ne.s32.totalorder %s67, %s68
    %p80 = scmp.eq.s32.totalorder %s16, 2
    %p81 = por %p79, %p80
    %p83 = scmp.ne.s32.totalorder %s68, %s82
    %p84 = scmp.eq.s32.totalorder %s16, 0
    %p85 = por %p83, %p84
    %s87 = sadd.s32 %s86, 1
    %p90 = scmp.eq.s32.totalorder %s10, 2
    %p91 = scmp.ne.s32.totalorder %s86, %s88
    %p92 = scmp.eq.s32.totalorder %s10, 0
    %p93 = por %p91, %p92
    %p94 = scmp.ne.s32.totalorder %s86, %s88
    %p95 = scmp.eq.s32.totalorder %s15, 2
    %p96 = por %p94, %p95
    %p97 = scmp.ne.s32.totalorder %s88, %s89
    %p98 = scmp.eq.s32.totalorder %s15, 0
    %p99 = por %p97, %p98
    %p100 = scmp.ne.s32.totalorder %s88, %s89
    %p101 = scmp.eq.s32.totalorder %s16, 2
    %p102 = por %p100, %p101
    %p104 = scmp.ne.s32.totalorder %s89, %s103
    %p105 = scmp.eq.s32.totalorder %s16, 0
    %p106 = por %p104, %p105
    %s107 = ssub.s32 %s10, %s17
    %p108 = scmp.eq.s32.totalorder %s107, 0
    %s110 = sadd.s32 %s109, 1
    %s111 = scalar_select %p108, %s109, %s110
    %p114 = pneg %p108
    %p115 = scmp.eq.s32.totalorder %s10, 2
    %p116 = por %p114, %p115
    %p117 = scmp.ne.s32.totalorder %s109, %s112
    %p118 = scmp.eq.s32.totalorder %s10, 0
    %p119 = por %p117, %p118
    %p120 = scmp.ne.s32.totalorder %s109, %s112
    %p121 = scmp.eq.s32.totalorder %s15, 2
    %p122 = por %p120, %p121
    %p123 = scmp.ne.s32.totalorder %s112, %s113
    %p124 = scmp.eq.s32.totalorder %s15, 0
    %p125 = por %p123, %p124
    %p126 = scmp.ne.s32.totalorder %s112, %s113
    %p127 = scmp.eq.s32.totalorder %s16, 2
    %p128 = por %p126, %p127
    %p130 = scmp.ne.s32.totalorder %s113, %s129
    %p131 = scmp.eq.s32.totalorder %s16, 0
    %p132 = por %p130, %p131
    %p133 = scmp.le.s32.totalorder 1, %s10
    %p134 = scmp.lt.s32.totalorder %s10, 4
    %p135 = pnand %p133, %p134
    %p136 = pneg %p135
    // Predicated region
    $region9: #{multi_classification_forward.16} parent=5 // pred_check
      _
    $region10: #{multi_classification_forward.16} parent=5 // pred_check_branch
      %138 = sbr.rel (%p135) target = $region12
    $region11: #{multi_classification_forward.16} parent=5 // pred_region
      %s139 = ssub.s32 %s10, 1
      // Predicated region
      $region13: #{multi_classification_forward.16} parent=11 // pred_check
        %p140 = pneg %p57
      $region14: #{multi_classification_forward.16} parent=11 // pred_check_branch
        %142 = sbr.rel (%p140) target = $region16
      $region15: #{multi_classification_forward.16} parent=11 // pred_region
        _
      $region16: #{multi_classification_forward.16} parent=11 // pred_fallthru
        _
      // Predicated region
      $region17: #{multi_classification_forward.16} parent=11 // pred_check
        %p143 = pneg %p78
      $region18: #{multi_classification_forward.16} parent=11 // pred_check_branch
        %145 = sbr.rel (%p143) target = $region20
      $region19: #{multi_classification_forward.16} parent=11 // pred_region
        _
      $region20: #{multi_classification_forward.16} parent=11 // pred_fallthru
        _
      // Predicated region
      $region21: #{multi_classification_forward.16} parent=11 // pred_check
        %p146 = pneg %p99
      $region22: #{multi_classification_forward.16} parent=11 // pred_check_branch
        %148 = sbr.rel (%p146) target = $region24
      $region23: #{multi_classification_forward.16} parent=11 // pred_region
        _
      $region24: #{multi_classification_forward.16} parent=11 // pred_fallthru
        _
    $region12: #{multi_classification_forward.16} parent=5 // pred_fallthru
      _
    %p149 = scmp.lt.s32.totalorder %s10, 3
    // Predicated region
    $region25: #{multi_classification_forward.16} parent=5 // pred_check
      %p150 = pneg %p149
    $region26: #{multi_classification_forward.16} parent=5 // pred_check_branch
      %152 = sbr.rel (%p150) target = $region28
    $region27: #{multi_classification_forward.16} parent=5 // pred_region
      // Predicated region
      $region29: #{multi_classification_forward.16} parent=27 // pred_check
        %p153 = pneg %p30
      $region30: #{multi_classification_forward.16} parent=27 // pred_check_branch
        %155 = sbr.rel (%p153) target = $region32
      $region31: #{multi_classification_forward.16} parent=27 // pred_region
        %s156 = smul.u32 64, %s10
        %p157 = scmp.lt.s32.totalorder %s156, 191
        %s158 = scalar_select %p157, %s156, 191
        %s159 = smul.addr %s158, 2
        %s160 = smul.addr %s159, 4
        %s161 = scalar_lea.vmem %s0, %s160
        %s162 = smul.u32 64, %s10
      $region32: #{multi_classification_forward.16} parent=27 // pred_fallthru
        _
    $region28: #{multi_classification_forward.16} parent=5 // pred_fallthru
      _
    %p163 = scmp.le.s32.totalorder 1, %s10
    %p164 = scmp.lt.s32.totalorder %s10, 4
    %p165 = pnand %p163, %p164
    %p166 = pneg %p165
    // Predicated region
    $region33: #{multi_classification_forward.16} parent=5 // pred_check
      _
    $region34: #{multi_classification_forward.16} parent=5 // pred_check_branch
      %168 = sbr.rel (%p165) target = $region36
    $region35: #{multi_classification_forward.16} parent=5 // pred_region
      %s169 = ssub.s32 %s10, 1
      %s170 = smul.u32 64, %s15
      %p171 = scmp.lt.s32.totalorder %s170, 191
      %s172 = scalar_select %p171, %s170, 191
      %s173 = smul.addr %s172, 2
      %s174 = smul.addr %s173, 4
      %s175 = scalar_lea.vmem %s0, %s174
      %p176 = pneg %p36
      %p177 = pneg %p33
      %p178 = pneg %p57
      %p179 = pneg %p54
      %p180 = pneg %p78
      %p181 = pneg %p75
      %p182 = pneg %p99
      %p183 = pneg %p96
      %p184 = pneg %p125
      %p185 = pneg %p122
      %s186 = smul.u32 64, %s15
      %p187 = scmp.lt.s32.totalorder %s186, 191
      %s188 = scalar_select %p187, %s186, 191
      %s189 = smul.addr %s188, 8
      %s190 = scalar_lea.vmem %s4, %s189
      %s191 = smul.u32 64, %s15
      %p192 = scmp.lt.s32.totalorder %s191, 191
      %s193 = scalar_select %p192, %s191, 191
      %s194 = smul.addr %s193, 2
      %s195 = smul.addr %s194, 4
      %s196 = scalar_lea.vmem %s0, %s195
      %s197 = smul.u32 64, %s15
      %s198 = smul.u32 64, %s15
      %p199 = scmp.lt.s32.totalorder %s198, 191
      %s200 = scalar_select %p199, %s198, 191
      %s201 = smul.addr %s200, 8
      %s202 = scalar_lea.vmem %s4, %s201
      %s203 = smul.u32 64, %s15
      %v205 = vld [vmem:[%s196] sm:$0xff]
      %v206 = vld [vmem:[%s196 + $0x8] sm:$0xff]
      %v207 = vld [vmem:[%s196 + $0x10] sm:$0xff]
      %v208 = vld [vmem:[%s196 + $0x18] sm:$0xff]
      %v209 = vld [vmem:[%s196 + $0x20] sm:$0xff]
      %v210 = vld [vmem:[%s196 + $0x28] sm:$0xff]
      %v211 = vld [vmem:[%s196 + $0x30] sm:$0xff]
      %v212 = vld [vmem:[%s196 + $0x38] sm:$0xff]
      %v213 = vld [vmem:[%s196 + $0x40] sm:$0xff]
      %v214 = vld [vmem:[%s196 + $0x48] sm:$0xff]
      %v215 = vld [vmem:[%s196 + $0x50] sm:$0xff]
      %v216 = vld [vmem:[%s196 + $0x58] sm:$0xff]
      %v217 = vld [vmem:[%s196 + $0x60] sm:$0xff]
      %v218 = vld [vmem:[%s196 + $0x68] sm:$0xff]
      %v219 = vld [vmem:[%s196 + $0x70] sm:$0xff]
      %v220 = vld [vmem:[%s196 + $0x78] sm:$0xff]
      %v221 = vld [vmem:[%s196 + $0x80] sm:$0xff]
      %v222 = vld [vmem:[%s196 + $0x88] sm:$0xff]
      %v223 = vld [vmem:[%s196 + $0x90] sm:$0xff]
      %v224 = vld [vmem:[%s196 + $0x98] sm:$0xff]
      %v225 = vld [vmem:[%s196 + $0xa0] sm:$0xff]
      %v226 = vld [vmem:[%s196 + $0xa8] sm:$0xff]
      %v227 = vld [vmem:[%s196 + $0xb0] sm:$0xff]
      %v228 = vld [vmem:[%s196 + $0xb8] sm:$0xff]
      %v229 = vld [vmem:[%s196 + $0xc0] sm:$0xff]
      %v230 = vld [vmem:[%s196 + $0xc8] sm:$0xff]
      %v231 = vld [vmem:[%s196 + $0xd0] sm:$0xff]
      %v232 = vld [vmem:[%s196 + $0xd8] sm:$0xff]
      %v233 = vld [vmem:[%s196 + $0xe0] sm:$0xff]
      %v234 = vld [vmem:[%s196 + $0xe8] sm:$0xff]
      %v235 = vld [vmem:[%s196 + $0xf0] sm:$0xff]
      %v236 = vld [vmem:[%s196 + $0xf8] sm:$0xff]
      %v237 = vld [vmem:[%s196 + $0x100] sm:$0xff]
      %v238 = vld [vmem:[%s196 + $0x108] sm:$0xff]
      %v239 = vld [vmem:[%s196 + $0x110] sm:$0xff]
      %v240 = vld [vmem:[%s196 + $0x118] sm:$0xff]
      %v241 = vld [vmem:[%s196 + $0x120] sm:$0xff]
      %v242 = vld [vmem:[%s196 + $0x128] sm:$0xff]
      %v243 = vld [vmem:[%s196 + $0x130] sm:$0xff]
      %v244 = vld [vmem:[%s196 + $0x138] sm:$0xff]
      %v245 = vld [vmem:[%s196 + $0x140] sm:$0xff]
      %v246 = vld [vmem:[%s196 + $0x148] sm:$0xff]
      %v247 = vld [vmem:[%s196 + $0x150] sm:$0xff]
      %v248 = vld [vmem:[%s196 + $0x158] sm:$0xff]
      %v249 = vld [vmem:[%s196 + $0x160] sm:$0xff]
      %v250 = vld [vmem:[%s196 + $0x168] sm:$0xff]
      %v251 = vld [vmem:[%s196 + $0x170] sm:$0xff]
      %v252 = vld [vmem:[%s196 + $0x178] sm:$0xff]
      %v253 = vld [vmem:[%s196 + $0x180] sm:$0xff]
      %v254 = vld [vmem:[%s196 + $0x188] sm:$0xff]
      %v255 = vld [vmem:[%s196 + $0x190] sm:$0xff]
      %v256 = vld [vmem:[%s196 + $0x198] sm:$0xff]
      %v257 = vld [vmem:[%s196 + $0x1a0] sm:$0xff]
      %v258 = vld [vmem:[%s196 + $0x1a8] sm:$0xff]
      %v259 = vld [vmem:[%s196 + $0x1b0] sm:$0xff]
      %v260 = vld [vmem:[%s196 + $0x1b8] sm:$0xff]
      %v261 = vld [vmem:[%s196 + $0x1c0] sm:$0xff]
      %v262 = vld [vmem:[%s196 + $0x1c8] sm:$0xff]
      %v263 = vld [vmem:[%s196 + $0x1d0] sm:$0xff]
      %v264 = vld [vmem:[%s196 + $0x1d8] sm:$0xff]
      %v265 = vld [vmem:[%s196 + $0x1e0] sm:$0xff]
      %v266 = vld [vmem:[%s196 + $0x1e8] sm:$0xff]
      %v267 = vld [vmem:[%s196 + $0x1f0] sm:$0xff]
      %v268 = vld [vmem:[%s196 + $0x1f8] sm:$0xff]
      %v269 = vld [vmem:[%s1] sm:$0xf]
      %v270 = vld [vmem:[%s1 + $0x4] sm:$0xf]
      %v271 = vld [vmem:[%s1 + $0x8] sm:$0xf]
      %v272 = vld [vmem:[%s1 + $0xc] sm:$0xf]
      %v273 = vld [vmem:[%s1 + $0x10] sm:$0xf]
      %v274 = vld [vmem:[%s1 + $0x14] sm:$0xf]
      %v275 = vld [vmem:[%s1 + $0x18] sm:$0xf]
      %v276 = vld [vmem:[%s1 + $0x1c] sm:$0xf]
      %v277 = vld [vmem:[%s1 + $0x20] sm:$0xf]
      %v278 = vld [vmem:[%s1 + $0x24] sm:$0xf]
      %v279 = vld [vmem:[%s1 + $0x28] sm:$0xf]
      %v280 = vld [vmem:[%s1 + $0x2c] sm:$0xf]
      %v281 = vld [vmem:[%s1 + $0x30] sm:$0xf]
      %v282 = vld [vmem:[%s1 + $0x34] sm:$0xf]
      %v283 = vld [vmem:[%s1 + $0x38] sm:$0xf]
      %v284 = vld [vmem:[%s1 + $0x3c] sm:$0xf]
      %v285 = vld [vmem:[%s1 + $0x40] sm:$0xf]
      %v286 = vld [vmem:[%s1 + $0x44] sm:$0xf]
      %v287 = vld [vmem:[%s1 + $0x48] sm:$0xf]
      %v288 = vld [vmem:[%s1 + $0x4c] sm:$0xf]
      %v289 = vld [vmem:[%s1 + $0x50] sm:$0xf]
      %v290 = vld [vmem:[%s1 + $0x54] sm:$0x1]
      %v355 = vunpack.c.l.b16 %v205
      %v356 = vunpack.c.h.b16 %v205
      %v357 = vunpack.c.l.b16 %v206
      %v358 = vunpack.c.h.b16 %v206
      %v359 = vunpack.c.l.b16 %v207
      %v360 = vunpack.c.h.b16 %v207
      %v361 = vunpack.c.l.b16 %v208
      %v362 = vunpack.c.h.b16 %v208
      %v363 = vunpack.c.l.b16 %v209
      %v364 = vunpack.c.h.b16 %v209
      %v365 = vunpack.c.l.b16 %v210
      %v366 = vunpack.c.h.b16 %v210
      %v367 = vunpack.c.l.b16 %v211
      %v368 = vunpack.c.h.b16 %v211
      %v369 = vunpack.c.l.b16 %v212
      %v370 = vunpack.c.h.b16 %v212
      %v371 = vunpack.c.l.b16 %v213
      %v372 = vunpack.c.h.b16 %v213
      %v373 = vunpack.c.l.b16 %v214
      %v374 = vunpack.c.h.b16 %v214
      %v375 = vunpack.c.l.b16 %v215
      %v376 = vunpack.c.h.b16 %v215
      %v377 = vunpack.c.l.b16 %v216
      %v378 = vunpack.c.h.b16 %v216
      %v379 = vunpack.c.l.b16 %v217
      %v380 = vunpack.c.h.b16 %v217
      %v381 = vunpack.c.l.b16 %v218
      %v382 = vunpack.c.h.b16 %v218
      %v383 = vunpack.c.l.b16 %v219
      %v384 = vunpack.c.h.b16 %v219
      %v385 = vunpack.c.l.b16 %v220
      %v386 = vunpack.c.h.b16 %v220
      %v387 = vunpack.c.l.b16 %v221
      %v388 = vunpack.c.h.b16 %v221
      %v389 = vunpack.c.l.b16 %v222
      %v390 = vunpack.c.h.b16 %v222
      %v391 = vunpack.c.l.b16 %v223
      %v392 = vunpack.c.h.b16 %v223
      %v393 = vunpack.c.l.b16 %v224
      %v394 = vunpack.c.h.b16 %v224
      %v395 = vunpack.c.l.b16 %v225
      %v396 = vunpack.c.h.b16 %v225
      %v397 = vunpack.c.l.b16 %v226
      %v398 = vunpack.c.h.b16 %v226
      %v399 = vunpack.c.l.b16 %v227
      %v400 = vunpack.c.h.b16 %v227
      %v401 = vunpack.c.l.b16 %v228
      %v402 = vunpack.c.h.b16 %v228
      %v403 = vunpack.c.l.b16 %v229
      %v404 = vunpack.c.h.b16 %v229
      %v405 = vunpack.c.l.b16 %v230
      %v406 = vunpack.c.h.b16 %v230
      %v407 = vunpack.c.l.b16 %v231
      %v408 = vunpack.c.h.b16 %v231
      %v409 = vunpack.c.l.b16 %v232
      %v410 = vunpack.c.h.b16 %v232
      %v411 = vunpack.c.l.b16 %v233
      %v412 = vunpack.c.h.b16 %v233
      %v413 = vunpack.c.l.b16 %v234
      %v414 = vunpack.c.h.b16 %v234
      %v415 = vunpack.c.l.b16 %v235
      %v416 = vunpack.c.h.b16 %v235
      %v417 = vunpack.c.l.b16 %v236
      %v418 = vunpack.c.h.b16 %v236
      %v419 = vunpack.c.l.b16 %v237
      %v420 = vunpack.c.h.b16 %v237
      %v421 = vunpack.c.l.b16 %v238
      %v422 = vunpack.c.h.b16 %v238
      %v423 = vunpack.c.l.b16 %v239
      %v424 = vunpack.c.h.b16 %v239
      %v425 = vunpack.c.l.b16 %v240
      %v426 = vunpack.c.h.b16 %v240
      %v427 = vunpack.c.l.b16 %v241
      %v428 = vunpack.c.h.b16 %v241
      %v429 = vunpack.c.l.b16 %v242
      %v430 = vunpack.c.h.b16 %v242
      %v431 = vunpack.c.l.b16 %v243
      %v432 = vunpack.c.h.b16 %v243
      %v433 = vunpack.c.l.b16 %v244
      %v434 = vunpack.c.h.b16 %v244
      %v435 = vunpack.c.l.b16 %v245
      %v436 = vunpack.c.h.b16 %v245
      %v437 = vunpack.c.l.b16 %v246
      %v438 = vunpack.c.h.b16 %v246
      %v439 = vunpack.c.l.b16 %v247
      %v440 = vunpack.c.h.b16 %v247
      %v441 = vunpack.c.l.b16 %v248
      %v442 = vunpack.c.h.b16 %v248
      %v443 = vunpack.c.l.b16 %v249
      %v444 = vunpack.c.h.b16 %v249
      %v445 = vunpack.c.l.b16 %v250
      %v446 = vunpack.c.h.b16 %v250
      %v447 = vunpack.c.l.b16 %v251
      %v448 = vunpack.c.h.b16 %v251
      %v449 = vunpack.c.l.b16 %v252
      %v450 = vunpack.c.h.b16 %v252
      %v451 = vunpack.c.l.b16 %v253
      %v452 = vunpack.c.h.b16 %v253
      %v453 = vunpack.c.l.b16 %v254
      %v454 = vunpack.c.h.b16 %v254
      %v455 = vunpack.c.l.b16 %v255
      %v456 = vunpack.c.h.b16 %v255
      %v457 = vunpack.c.l.b16 %v256
      %v458 = vunpack.c.h.b16 %v256
      %v459 = vunpack.c.l.b16 %v257
      %v460 = vunpack.c.h.b16 %v257
      %v461 = vunpack.c.l.b16 %v258
      %v462 = vunpack.c.h.b16 %v258
      %v463 = vunpack.c.l.b16 %v259
      %v464 = vunpack.c.h.b16 %v259
      %v465 = vunpack.c.l.b16 %v260
      %v466 = vunpack.c.h.b16 %v260
      %v467 = vunpack.c.l.b16 %v261
      %v468 = vunpack.c.h.b16 %v261
      %v469 = vunpack.c.l.b16 %v262
      %v470 = vunpack.c.h.b16 %v262
      %v471 = vunpack.c.l.b16 %v263
      %v472 = vunpack.c.h.b16 %v263
      %v473 = vunpack.c.l.b16 %v264
      %v474 = vunpack.c.h.b16 %v264
      %v475 = vunpack.c.l.b16 %v265
      %v476 = vunpack.c.h.b16 %v265
      %v477 = vunpack.c.l.b16 %v266
      %v478 = vunpack.c.h.b16 %v266
      %v479 = vunpack.c.l.b16 %v267
      %v480 = vunpack.c.h.b16 %v267
      %v481 = vunpack.c.l.b16 %v268
      %v482 = vunpack.c.h.b16 %v268
      %v483 = vpack.c.b16 %v357, %v355
      %v484 = vpack.c.b16 %v358, %v356
      %v485 = vpack.c.b16 %v361, %v359
      %v486 = vpack.c.b16 %v362, %v360
      %v487 = vpack.c.b16 %v365, %v363
      %v488 = vpack.c.b16 %v366, %v364
      %v489 = vpack.c.b16 %v369, %v367
      %v490 = vpack.c.b16 %v370, %v368
      %v491 = vpack.c.b16 %v373, %v371
      %v492 = vpack.c.b16 %v374, %v372
      %v493 = vpack.c.b16 %v377, %v375
      %v494 = vpack.c.b16 %v378, %v376
      %v495 = vpack.c.b16 %v381, %v379
      %v496 = vpack.c.b16 %v382, %v380
      %v497 = vpack.c.b16 %v385, %v383
      %v498 = vpack.c.b16 %v386, %v384
      %v499 = vpack.c.b16 %v389, %v387
      %v500 = vpack.c.b16 %v390, %v388
      %v501 = vpack.c.b16 %v393, %v391
      %v502 = vpack.c.b16 %v394, %v392
      %v503 = vpack.c.b16 %v397, %v395
      %v504 = vpack.c.b16 %v398, %v396
      %v505 = vpack.c.b16 %v401, %v399
      %v506 = vpack.c.b16 %v402, %v400
      %v507 = vpack.c.b16 %v405, %v403
      %v508 = vpack.c.b16 %v406, %v404
      %v509 = vpack.c.b16 %v409, %v407
      %v510 = vpack.c.b16 %v410, %v408
      %v511 = vpack.c.b16 %v413, %v411
      %v512 = vpack.c.b16 %v414, %v412
      %v513 = vpack.c.b16 %v417, %v415
      %v514 = vpack.c.b16 %v418, %v416
      %v515 = vpack.c.b16 %v421, %v419
      %v516 = vpack.c.b16 %v422, %v420
      %v517 = vpack.c.b16 %v425, %v423
      %v518 = vpack.c.b16 %v426, %v424
      %v519 = vpack.c.b16 %v429, %v427
      %v520 = vpack.c.b16 %v430, %v428
      %v521 = vpack.c.b16 %v433, %v431
      %v522 = vpack.c.b16 %v434, %v432
      %v523 = vpack.c.b16 %v437, %v435
      %v524 = vpack.c.b16 %v438, %v436
      %v525 = vpack.c.b16 %v441, %v439
      %v526 = vpack.c.b16 %v442, %v440
      %v527 = vpack.c.b16 %v445, %v443
      %v528 = vpack.c.b16 %v446, %v444
      %v529 = vpack.c.b16 %v449, %v447
      %v530 = vpack.c.b16 %v450, %v448
      %v531 = vpack.c.b16 %v453, %v451
      %v532 = vpack.c.b16 %v454, %v452
      %v533 = vpack.c.b16 %v457, %v455
      %v534 = vpack.c.b16 %v458, %v456
      %v535 = vpack.c.b16 %v461, %v459
      %v536 = vpack.c.b16 %v462, %v460
      %v537 = vpack.c.b16 %v465, %v463
      %v538 = vpack.c.b16 %v466, %v464
      %v539 = vpack.c.b16 %v469, %v467
      %v540 = vpack.c.b16 %v470, %v468
      %v541 = vpack.c.b16 %v473, %v471
      %v542 = vpack.c.b16 %v474, %v472
      %v543 = vpack.c.b16 %v477, %v475
      %v544 = vpack.c.b16 %v478, %v476
      %v545 = vpack.c.b16 %v481, %v479
      %v546 = vpack.c.b16 %v482, %v480
      %v601 = vunpack.c.l.b16 %v269
      %v602 = vunpack.c.l.b16 %v270
      %v603 = vunpack.c.l.b16 %v271
      %v604 = vunpack.c.l.b16 %v272
      %v605 = vunpack.c.l.b16 %v273
      %v606 = vunpack.c.l.b16 %v274
      %v607 = vunpack.c.l.b16 %v275
      %v608 = vunpack.c.l.b16 %v276
      %v609 = vunpack.c.l.b16 %v277
      %v610 = vunpack.c.l.b16 %v278
      %v611 = vunpack.c.l.b16 %v279
      %v612 = vunpack.c.l.b16 %v280
      %v613 = vunpack.c.l.b16 %v281
      %v614 = vunpack.c.l.b16 %v282
      %v615 = vunpack.c.l.b16 %v283
      %v616 = vunpack.c.l.b16 %v284
      %v617 = vunpack.c.l.b16 %v285
      %v618 = vunpack.c.l.b16 %v286
      %v619 = vunpack.c.l.b16 %v287
      %v620 = vunpack.c.l.b16 %v288
      %v621 = vunpack.c.l.b16 %v289
      %v622 = vunpack.c.l.b16 %v290
      %v623 = vpack.c.b16 %v602, %v601
      %v624 = vpack.c.b16 %v604, %v603
      %v625 = vpack.c.b16 %v606, %v605
      %v626 = vpack.c.b16 %v608, %v607
      %v627 = vpack.c.b16 %v610, %v609
      %v628 = vpack.c.b16 %v612, %v611
      %v629 = vpack.c.b16 %v614, %v613
      %v630 = vpack.c.b16 %v616, %v615
      %v631 = vpack.c.b16 %v618, %v617
      %v632 = vpack.c.b16 %v620, %v619
      %v633 = vpack.c.b16 %v622, %v621
      %vm644 = vcmask 334848
      %v646 = vsel %vm644, %v484, 0
      %v649 = vsel %vm644, %v486, 0
      %v652 = vsel %vm644, %v488, 0
      %v655 = vsel %vm644, %v490, 0
      %v658 = vsel %vm644, %v492, 0
      %v661 = vsel %vm644, %v494, 0
      %v664 = vsel %vm644, %v496, 0
      %v667 = vsel %vm644, %v498, 0
      %v670 = vsel %vm644, %v500, 0
      %v673 = vsel %vm644, %v502, 0
      %v676 = vsel %vm644, %v504, 0
      %v679 = vsel %vm644, %v506, 0
      %v682 = vsel %vm644, %v508, 0
      %v685 = vsel %vm644, %v510, 0
      %v688 = vsel %vm644, %v512, 0
      %v691 = vsel %vm644, %v514, 0
      %v694 = vsel %vm644, %v516, 0
      %v697 = vsel %vm644, %v518, 0
      %v700 = vsel %vm644, %v520, 0
      %v703 = vsel %vm644, %v522, 0
      %v706 = vsel %vm644, %v524, 0
      %v709 = vsel %vm644, %v526, 0
      %v712 = vsel %vm644, %v528, 0
      %v715 = vsel %vm644, %v530, 0
      %v718 = vsel %vm644, %v532, 0
      %v721 = vsel %vm644, %v534, 0
      %v724 = vsel %vm644, %v536, 0
      %v727 = vsel %vm644, %v538, 0
      %v730 = vsel %vm644, %v540, 0
      %v733 = vsel %vm644, %v542, 0
      %v736 = vsel %vm644, %v544, 0
      %v739 = vsel %vm644, %v546, 0
      %vm741 = vcmask 1043456
      %vm742 = vcmask 1044480
      %v743 = vsel %vm741, 4294967295, 65535
      %v744 = vsel %vm742, %v743, 0
      %v746 = vand.u32 %v633, %v744
      %748 = vmatprep.subr.bf16.mxu0 0
      %749 = vmatpush1.bf16.msra.mxu0 %v630
      %750 = vmatprep.subr.bf16.mxu0 0
      %751 = vmatpush1.bf16.msra.mxu0 %v629
      %752 = vmatprep.subr.bf16.mxu0 0
      %753 = vmatpush1.bf16.msra.mxu0 %v628
      %754 = vmatprep.subr.bf16.mxu0 0
      %755 = vmatpush1.bf16.msra.mxu0 %v627
      %756 = vmatprep.subr.bf16.mxu0 0
      %757 = vmatpush1.bf16.msra.mxu0 %v626
      %758 = vmatprep.subr.bf16.mxu0 0
      %759 = vmatpush1.bf16.msra.mxu0 %v625
      %760 = vmatprep.subr.bf16.mxu0 0
      %761 = vmatpush1.bf16.msra.mxu0 %v624
      %762 = vmatprep.subr.bf16.mxu0 0
      %763 = vmatpush1.bf16.msra.mxu0 %v623
      %764 = vmatprep.subr.bf16.mxu0 0
      %765 = vmatpush2.bf16.msra.mxu0 0
      %766 = vmatprep.subr.bf16.mxu0 0
      %767 = vmatpush2.bf16.msra.mxu0 0
      %768 = vmatprep.subr.bf16.mxu0 0
      %769 = vmatpush2.bf16.msra.mxu0 0
      %770 = vmatprep.subr.bf16.mxu0 0
      %771 = vmatpush2.bf16.msra.mxu0 0
      %772 = vmatprep.subr.bf16.mxu0 0
      %773 = vmatpush2.bf16.msra.mxu0 0
      %774 = vmatprep.subr.bf16.mxu0 0
      %775 = vmatpush2.bf16.msra.mxu0 %v746
      %776 = vmatprep.subr.bf16.mxu0 0
      %777 = vmatpush2.bf16.msra.mxu0 %v632
      %778 = vmatprep.subr.bf16.mxu0 0
      %779 = vmatpush2.bf16.msra.mxu0 %v631
      %780 = vmatprep.mubr.bf16.mxu0 %v646
      %781 = vmatmul.mubr.bf16.gmra.mxu0 %v483
      %v782 = vpop.f32.mrf.mxu0
      %v783 = vadd.f32 0.0, %v782
      %v784 = vpop.f32.mrf.mxu0
      %v785 = vpop.f32.mrf.mxu0
      %v786 = vadd.f32 0.0, %v785
      %v787 = vpop.f32.mrf.mxu0
      %788 = vmatprep.mubr.bf16.mxu0 %v649
      %789 = vmatmul.mubr.bf16.gmra.mxu0 %v485
      %v790 = vpop.f32.mrf.mxu0
      %v791 = vadd.f32 0.0, %v790
      %v792 = vpop.f32.mrf.mxu0
      %v793 = vpop.f32.mrf.mxu0
      %v794 = vadd.f32 0.0, %v793
      %v795 = vpop.f32.mrf.mxu0
      %796 = vmatprep.mubr.bf16.mxu0 %v652
      %797 = vmatmul.mubr.bf16.gmra.mxu0 %v487
      %v798 = vpop.f32.mrf.mxu0
      %v799 = vadd.f32 0.0, %v798
      %v800 = vpop.f32.mrf.mxu0
      %v801 = vpop.f32.mrf.mxu0
      %v802 = vadd.f32 0.0, %v801
      %v803 = vpop.f32.mrf.mxu0
      %804 = vmatprep.mubr.bf16.mxu0 %v655
      %805 = vmatmul.mubr.bf16.gmra.mxu0 %v489
      %v806 = vpop.f32.mrf.mxu0
      %v807 = vadd.f32 0.0, %v806
      %v808 = vpop.f32.mrf.mxu0
      %v809 = vpop.f32.mrf.mxu0
      %v810 = vadd.f32 0.0, %v809
      %v811 = vpop.f32.mrf.mxu0
      %812 = vmatprep.mubr.bf16.mxu0 %v658
      %813 = vmatmul.mubr.bf16.gmra.mxu0 %v491
      %v814 = vpop.f32.mrf.mxu0
      %v815 = vadd.f32 0.0, %v814
      %v816 = vpop.f32.mrf.mxu0
      %v817 = vpop.f32.mrf.mxu0
      %v818 = vadd.f32 0.0, %v817
      %v819 = vpop.f32.mrf.mxu0
      %820 = vmatprep.mubr.bf16.mxu0 %v661
      %821 = vmatmul.mubr.bf16.gmra.mxu0 %v493
      %v822 = vpop.f32.mrf.mxu0
      %v823 = vadd.f32 0.0, %v822
      %v824 = vpop.f32.mrf.mxu0
      %v825 = vpop.f32.mrf.mxu0
      %v826 = vadd.f32 0.0, %v825
      %v827 = vpop.f32.mrf.mxu0
      %828 = vmatprep.mubr.bf16.mxu0 %v664
      %829 = vmatmul.mubr.bf16.gmra.mxu0 %v495
      %v830 = vpop.f32.mrf.mxu0
      %v831 = vadd.f32 0.0, %v830
      %v832 = vpop.f32.mrf.mxu0
      %v833 = vpop.f32.mrf.mxu0
      %v834 = vadd.f32 0.0, %v833
      %v835 = vpop.f32.mrf.mxu0
      %836 = vmatprep.mubr.bf16.mxu0 %v667
      %837 = vmatmul.mubr.bf16.gmra.mxu0 %v497
      %v838 = vpop.f32.mrf.mxu0
      %v839 = vadd.f32 0.0, %v838
      %v840 = vpop.f32.mrf.mxu0
      %v841 = vpop.f32.mrf.mxu0
      %v842 = vadd.f32 0.0, %v841
      %v843 = vpop.f32.mrf.mxu0
      %844 = vmatprep.mubr.bf16.mxu0 %v670
      %845 = vmatmul.mubr.bf16.gmra.mxu0 %v499
      %v846 = vpop.f32.mrf.mxu0
      %v847 = vadd.f32 0.0, %v846
      %v848 = vpop.f32.mrf.mxu0
      %v849 = vpop.f32.mrf.mxu0
      %v850 = vadd.f32 0.0, %v849
      %v851 = vpop.f32.mrf.mxu0
      %852 = vmatprep.mubr.bf16.mxu0 %v673
      %853 = vmatmul.mubr.bf16.gmra.mxu0 %v501
      %v854 = vpop.f32.mrf.mxu0
      %v855 = vadd.f32 0.0, %v854
      %v856 = vpop.f32.mrf.mxu0
      %v857 = vpop.f32.mrf.mxu0
      %v858 = vadd.f32 0.0, %v857
      %v859 = vpop.f32.mrf.mxu0
      %860 = vmatprep.mubr.bf16.mxu0 %v676
      %861 = vmatmul.mubr.bf16.gmra.mxu0 %v503
      %v862 = vpop.f32.mrf.mxu0
      %v863 = vadd.f32 0.0, %v862
      %v864 = vpop.f32.mrf.mxu0
      %v865 = vpop.f32.mrf.mxu0
      %v866 = vadd.f32 0.0, %v865
      %v867 = vpop.f32.mrf.mxu0
      %868 = vmatprep.mubr.bf16.mxu0 %v679
      %869 = vmatmul.mubr.bf16.gmra.mxu0 %v505
      %v870 = vpop.f32.mrf.mxu0
      %v871 = vadd.f32 0.0, %v870
      %v872 = vpop.f32.mrf.mxu0
      %v873 = vpop.f32.mrf.mxu0
      %v874 = vadd.f32 0.0, %v873
      %v875 = vpop.f32.mrf.mxu0
      %876 = vmatprep.mubr.bf16.mxu0 %v682
      %877 = vmatmul.mubr.bf16.gmra.mxu0 %v507
      %v878 = vpop.f32.mrf.mxu0
      %v879 = vadd.f32 0.0, %v878
      %v880 = vpop.f32.mrf.mxu0
      %v881 = vpop.f32.mrf.mxu0
      %v882 = vadd.f32 0.0, %v881
      %v883 = vpop.f32.mrf.mxu0
      %884 = vmatprep.mubr.bf16.mxu0 %v685
      %885 = vmatmul.mubr.bf16.gmra.mxu0 %v509
      %v886 = vpop.f32.mrf.mxu0
      %v887 = vadd.f32 0.0, %v886
      %v888 = vpop.f32.mrf.mxu0
      %v889 = vpop.f32.mrf.mxu0
      %v890 = vadd.f32 0.0, %v889
      %v891 = vpop.f32.mrf.mxu0
      %892 = vmatprep.mubr.bf16.mxu0 %v688
      %893 = vmatmul.mubr.bf16.gmra.mxu0 %v511
      %v894 = vpop.f32.mrf.mxu0
      %v895 = vadd.f32 0.0, %v894
      %v896 = vpop.f32.mrf.mxu0
      %v897 = vpop.f32.mrf.mxu0
      %v898 = vadd.f32 0.0, %v897
      %v899 = vpop.f32.mrf.mxu0
      %900 = vmatprep.mubr.bf16.mxu0 %v691
      %901 = vmatmul.mubr.bf16.gmra.mxu0 %v513
      %v902 = vpop.f32.mrf.mxu0
      %v903 = vadd.f32 0.0, %v902
      %v904 = vpop.f32.mrf.mxu0
      %v905 = vpop.f32.mrf.mxu0
      %v906 = vadd.f32 0.0, %v905
      %v907 = vpop.f32.mrf.mxu0
      %908 = vmatprep.mubr.bf16.mxu0 %v694
      %909 = vmatmul.mubr.bf16.gmra.mxu0 %v515
      %v910 = vpop.f32.mrf.mxu0
      %v911 = vadd.f32 0.0, %v910
      %v912 = vpop.f32.mrf.mxu0
      %v913 = vpop.f32.mrf.mxu0
      %v914 = vadd.f32 0.0, %v913
      %v915 = vpop.f32.mrf.mxu0
      %916 = vmatprep.mubr.bf16.mxu0 %v697
      %917 = vmatmul.mubr.bf16.gmra.mxu0 %v517
      %v918 = vpop.f32.mrf.mxu0
      %v919 = vadd.f32 0.0, %v918
      %v920 = vpop.f32.mrf.mxu0
      %v921 = vpop.f32.mrf.mxu0
      %v922 = vadd.f32 0.0, %v921
      %v923 = vpop.f32.mrf.mxu0
      %924 = vmatprep.mubr.bf16.mxu0 %v700
      %925 = vmatmul.mubr.bf16.gmra.mxu0 %v519
      %v926 = vpop.f32.mrf.mxu0
      %v927 = vadd.f32 0.0, %v926
      %v928 = vpop.f32.mrf.mxu0
      %v929 = vpop.f32.mrf.mxu0
      %v930 = vadd.f32 0.0, %v929
      %v931 = vpop.f32.mrf.mxu0
      %932 = vmatprep.mubr.bf16.mxu0 %v703
      %933 = vmatmul.mubr.bf16.gmra.mxu0 %v521
      %v934 = vpop.f32.mrf.mxu0
      %v935 = vadd.f32 0.0, %v934
      %v936 = vpop.f32.mrf.mxu0
      %v937 = vpop.f32.mrf.mxu0
      %v938 = vadd.f32 0.0, %v937
      %v939 = vpop.f32.mrf.mxu0
      %940 = vmatprep.mubr.bf16.mxu0 %v706
      %941 = vmatmul.mubr.bf16.gmra.mxu0 %v523
      %v942 = vpop.f32.mrf.mxu0
      %v943 = vadd.f32 0.0, %v942
      %v944 = vpop.f32.mrf.mxu0
      %v945 = vpop.f32.mrf.mxu0
      %v946 = vadd.f32 0.0, %v945
      %v947 = vpop.f32.mrf.mxu0
      %948 = vmatprep.mubr.bf16.mxu0 %v709
      %949 = vmatmul.mubr.bf16.gmra.mxu0 %v525
      %v950 = vpop.f32.mrf.mxu0
      %v951 = vadd.f32 0.0, %v950
      %v952 = vpop.f32.mrf.mxu0
      %v953 = vpop.f32.mrf.mxu0
      %v954 = vadd.f32 0.0, %v953
      %v955 = vpop.f32.mrf.mxu0
      %956 = vmatprep.mubr.bf16.mxu0 %v712
      %957 = vmatmul.mubr.bf16.gmra.mxu0 %v527
      %v958 = vpop.f32.mrf.mxu0
      %v959 = vadd.f32 0.0, %v958
      %v960 = vpop.f32.mrf.mxu0
      %v961 = vpop.f32.mrf.mxu0
      %v962 = vadd.f32 0.0, %v961
      %v963 = vpop.f32.mrf.mxu0
      %964 = vmatprep.mubr.bf16.mxu0 %v715
      %965 = vmatmul.mubr.bf16.gmra.mxu0 %v529
      %v966 = vpop.f32.mrf.mxu0
      %v967 = vadd.f32 0.0, %v966
      %v968 = vpop.f32.mrf.mxu0
      %v969 = vpop.f32.mrf.mxu0
      %v970 = vadd.f32 0.0, %v969
      %v971 = vpop.f32.mrf.mxu0
      %972 = vmatprep.mubr.bf16.mxu0 %v718
      %973 = vmatmul.mubr.bf16.gmra.mxu0 %v531
      %v974 = vpop.f32.mrf.mxu0
      %v975 = vadd.f32 0.0, %v974
      %v976 = vpop.f32.mrf.mxu0
      %v977 = vpop.f32.mrf.mxu0
      %v978 = vadd.f32 0.0, %v977
      %v979 = vpop.f32.mrf.mxu0
      %980 = vmatprep.mubr.bf16.mxu0 %v721
      %981 = vmatmul.mubr.bf16.gmra.mxu0 %v533
      %v982 = vpop.f32.mrf.mxu0
      %v983 = vadd.f32 0.0, %v982
      %v984 = vpop.f32.mrf.mxu0
      %v985 = vpop.f32.mrf.mxu0
      %v986 = vadd.f32 0.0, %v985
      %v987 = vpop.f32.mrf.mxu0
      %988 = vmatprep.mubr.bf16.mxu0 %v724
      %989 = vmatmul.mubr.bf16.gmra.mxu0 %v535
      %v990 = vpop.f32.mrf.mxu0
      %v991 = vadd.f32 0.0, %v990
      %v992 = vpop.f32.mrf.mxu0
      %v993 = vpop.f32.mrf.mxu0
      %v994 = vadd.f32 0.0, %v993
      %v995 = vpop.f32.mrf.mxu0
      %996 = vmatprep.mubr.bf16.mxu0 %v727
      %997 = vmatmul.mubr.bf16.gmra.mxu0 %v537
      %v998 = vpop.f32.mrf.mxu0
      %v999 = vadd.f32 0.0, %v998
      %v1000 = vpop.f32.mrf.mxu0
      %v1001 = vpop.f32.mrf.mxu0
      %v1002 = vadd.f32 0.0, %v1001
      %v1003 = vpop.f32.mrf.mxu0
      %1004 = vmatprep.mubr.bf16.mxu0 %v730
      %1005 = vmatmul.mubr.bf16.gmra.mxu0 %v539
      %v1006 = vpop.f32.mrf.mxu0
      %v1007 = vadd.f32 0.0, %v1006
      %v1008 = vpop.f32.mrf.mxu0
      %v1009 = vpop.f32.mrf.mxu0
      %v1010 = vadd.f32 0.0, %v1009
      %v1011 = vpop.f32.mrf.mxu0
      %1012 = vmatprep.mubr.bf16.mxu0 %v733
      %1013 = vmatmul.mubr.bf16.gmra.mxu0 %v541
      %v1014 = vpop.f32.mrf.mxu0
      %v1015 = vadd.f32 0.0, %v1014
      %v1016 = vpop.f32.mrf.mxu0
      %v1017 = vpop.f32.mrf.mxu0
      %v1018 = vadd.f32 0.0, %v1017
      %v1019 = vpop.f32.mrf.mxu0
      %1020 = vmatprep.mubr.bf16.mxu0 %v736
      %1021 = vmatmul.mubr.bf16.gmra.mxu0 %v543
      %v1022 = vpop.f32.mrf.mxu0
      %v1023 = vadd.f32 0.0, %v1022
      %v1024 = vpop.f32.mrf.mxu0
      %v1025 = vpop.f32.mrf.mxu0
      %v1026 = vadd.f32 0.0, %v1025
      %v1027 = vpop.f32.mrf.mxu0
      %1028 = vmatprep.mubr.bf16.mxu0 %v739
      %1029 = vmatmul.mubr.bf16.gmra.mxu0 %v545
      %v1030 = vpop.f32.mrf.mxu0
      %v1031 = vadd.f32 0.0, %v1030
      %v1032 = vpop.f32.mrf.mxu0
      %v1033 = vpop.f32.mrf.mxu0
      %v1034 = vadd.f32 0.0, %v1033
      %v1035 = vpop.f32.mrf.mxu0
      %1036 = vdwg.mxu0
      %v1037 = vld [vmem:[%s2] sm:$0x1]
      %v1039 = vlaneseq
      %v1040 = vshrl.u32 %v1039, 7
      %v1041 = vsub.s32 0, %v1040
      %v1042 = vrot.slane %v1037, %v1041
      %v1044 = vmul.f32 %v783, %v1042
      %v1045 = vmul.f32 %v786, %v1042
      %v1046 = vmul.f32 %v791, %v1042
      %v1047 = vmul.f32 %v794, %v1042
      %v1048 = vmul.f32 %v799, %v1042
      %v1049 = vmul.f32 %v802, %v1042
      %v1050 = vmul.f32 %v807, %v1042
      %v1051 = vmul.f32 %v810, %v1042
      %v1052 = vmul.f32 %v815, %v1042
      %v1053 = vmul.f32 %v818, %v1042
      %v1054 = vmul.f32 %v823, %v1042
      %v1055 = vmul.f32 %v826, %v1042
      %v1056 = vmul.f32 %v831, %v1042
      %v1057 = vmul.f32 %v834, %v1042
      %v1058 = vmul.f32 %v839, %v1042
      %v1059 = vmul.f32 %v842, %v1042
      %v1060 = vmul.f32 %v847, %v1042
      %v1061 = vmul.f32 %v850, %v1042
      %v1062 = vmul.f32 %v855, %v1042
      %v1063 = vmul.f32 %v858, %v1042
      %v1064 = vmul.f32 %v863, %v1042
      %v1065 = vmul.f32 %v866, %v1042
      %v1066 = vmul.f32 %v871, %v1042
      %v1067 = vmul.f32 %v874, %v1042
      %v1068 = vmul.f32 %v879, %v1042
      %v1069 = vmul.f32 %v882, %v1042
      %v1070 = vmul.f32 %v887, %v1042
      %v1071 = vmul.f32 %v890, %v1042
      %v1072 = vmul.f32 %v895, %v1042
      %v1073 = vmul.f32 %v898, %v1042
      %v1074 = vmul.f32 %v903, %v1042
      %v1075 = vmul.f32 %v906, %v1042
      %v1076 = vmul.f32 %v911, %v1042
      %v1077 = vmul.f32 %v914, %v1042
      %v1078 = vmul.f32 %v919, %v1042
      %v1079 = vmul.f32 %v922, %v1042
      %v1080 = vmul.f32 %v927, %v1042
      %v1081 = vmul.f32 %v930, %v1042
      %v1082 = vmul.f32 %v935, %v1042
      %v1083 = vmul.f32 %v938, %v1042
      %v1084 = vmul.f32 %v943, %v1042
      %v1085 = vmul.f32 %v946, %v1042
      %v1086 = vmul.f32 %v951, %v1042
      %v1087 = vmul.f32 %v954, %v1042
      %v1088 = vmul.f32 %v959, %v1042
      %v1089 = vmul.f32 %v962, %v1042
      %v1090 = vmul.f32 %v967, %v1042
      %v1091 = vmul.f32 %v970, %v1042
      %v1092 = vmul.f32 %v975, %v1042
      %v1093 = vmul.f32 %v978, %v1042
      %v1094 = vmul.f32 %v983, %v1042
      %v1095 = vmul.f32 %v986, %v1042
      %v1096 = vmul.f32 %v991, %v1042
      %v1097 = vmul.f32 %v994, %v1042
      %v1098 = vmul.f32 %v999, %v1042
      %v1099 = vmul.f32 %v1002, %v1042
      %v1100 = vmul.f32 %v1007, %v1042
      %v1101 = vmul.f32 %v1010, %v1042
      %v1102 = vmul.f32 %v1015, %v1042
      %v1103 = vmul.f32 %v1018, %v1042
      %v1104 = vmul.f32 %v1023, %v1042
      %v1105 = vmul.f32 %v1026, %v1042
      %v1106 = vmul.f32 %v1031, %v1042
      %v1107 = vmul.f32 %v1034, %v1042
      %v1108 = vld [vmem:[%s3] sm:$0x1]
      %v1110 = vlaneseq
      %v1111 = vshrl.u32 %v1110, 7
      %v1112 = vsub.s32 0, %v1111
      %v1113 = vrot.slane %v1108, %v1112
      %v1115 = vadd.f32 %v1044, %v1113
      %v1116 = vadd.f32 %v1045, %v1113
      %v1117 = vadd.f32 %v1046, %v1113
      %v1118 = vadd.f32 %v1047, %v1113
      %v1119 = vadd.f32 %v1048, %v1113
      %v1120 = vadd.f32 %v1049, %v1113
      %v1121 = vadd.f32 %v1050, %v1113
      %v1122 = vadd.f32 %v1051, %v1113
      %v1123 = vadd.f32 %v1052, %v1113
      %v1124 = vadd.f32 %v1053, %v1113
      %v1125 = vadd.f32 %v1054, %v1113
      %v1126 = vadd.f32 %v1055, %v1113
      %v1127 = vadd.f32 %v1056, %v1113
      %v1128 = vadd.f32 %v1057, %v1113
      %v1129 = vadd.f32 %v1058, %v1113
      %v1130 = vadd.f32 %v1059, %v1113
      %v1131 = vadd.f32 %v1060, %v1113
      %v1132 = vadd.f32 %v1061, %v1113
      %v1133 = vadd.f32 %v1062, %v1113
      %v1134 = vadd.f32 %v1063, %v1113
      %v1135 = vadd.f32 %v1064, %v1113
      %v1136 = vadd.f32 %v1065, %v1113
      %v1137 = vadd.f32 %v1066, %v1113
      %v1138 = vadd.f32 %v1067, %v1113
      %v1139 = vadd.f32 %v1068, %v1113
      %v1140 = vadd.f32 %v1069, %v1113
      %v1141 = vadd.f32 %v1070, %v1113
      %v1142 = vadd.f32 %v1071, %v1113
      %v1143 = vadd.f32 %v1072, %v1113
      %v1144 = vadd.f32 %v1073, %v1113
      %v1145 = vadd.f32 %v1074, %v1113
      %v1146 = vadd.f32 %v1075, %v1113
      %v1147 = vadd.f32 %v1076, %v1113
      %v1148 = vadd.f32 %v1077, %v1113
      %v1149 = vadd.f32 %v1078, %v1113
      %v1150 = vadd.f32 %v1079, %v1113
      %v1151 = vadd.f32 %v1080, %v1113
      %v1152 = vadd.f32 %v1081, %v1113
      %v1153 = vadd.f32 %v1082, %v1113
      %v1154 = vadd.f32 %v1083, %v1113
      %v1155 = vadd.f32 %v1084, %v1113
      %v1156 = vadd.f32 %v1085, %v1113
      %v1157 = vadd.f32 %v1086, %v1113
      %v1158 = vadd.f32 %v1087, %v1113
      %v1159 = vadd.f32 %v1088, %v1113
      %v1160 = vadd.f32 %v1089, %v1113
      %v1161 = vadd.f32 %v1090, %v1113
      %v1162 = vadd.f32 %v1091, %v1113
      %v1163 = vadd.f32 %v1092, %v1113
      %v1164 = vadd.f32 %v1093, %v1113
      %v1165 = vadd.f32 %v1094, %v1113
      %v1166 = vadd.f32 %v1095, %v1113
      %v1167 = vadd.f32 %v1096, %v1113
      %v1168 = vadd.f32 %v1097, %v1113
      %v1169 = vadd.f32 %v1098, %v1113
      %v1170 = vadd.f32 %v1099, %v1113
      %v1171 = vadd.f32 %v1100, %v1113
      %v1172 = vadd.f32 %v1101, %v1113
      %v1173 = vadd.f32 %v1102, %v1113
      %v1174 = vadd.f32 %v1103, %v1113
      %v1175 = vadd.f32 %v1104, %v1113
      %v1176 = vadd.f32 %v1105, %v1113
      %v1177 = vadd.f32 %v1106, %v1113
      %v1178 = vadd.f32 %v1107, %v1113
      %v1179 = vxor.u32 %v1115, 2147483648
      %v1180 = vxor.u32 %v1116, 2147483648
      %v1181 = vxor.u32 %v1117, 2147483648
      %v1182 = vxor.u32 %v1118, 2147483648
      %v1183 = vxor.u32 %v1119, 2147483648
      %v1184 = vxor.u32 %v1120, 2147483648
      %v1185 = vxor.u32 %v1121, 2147483648
      %v1186 = vxor.u32 %v1122, 2147483648
      %v1187 = vxor.u32 %v1123, 2147483648
      %v1188 = vxor.u32 %v1124, 2147483648
      %v1189 = vxor.u32 %v1125, 2147483648
      %v1190 = vxor.u32 %v1126, 2147483648
      %v1191 = vxor.u32 %v1127, 2147483648
      %v1192 = vxor.u32 %v1128, 2147483648
      %v1193 = vxor.u32 %v1129, 2147483648
      %v1194 = vxor.u32 %v1130, 2147483648
      %v1195 = vxor.u32 %v1131, 2147483648
      %v1196 = vxor.u32 %v1132, 2147483648
      %v1197 = vxor.u32 %v1133, 2147483648
      %v1198 = vxor.u32 %v1134, 2147483648
      %v1199 = vxor.u32 %v1135, 2147483648
      %v1200 = vxor.u32 %v1136, 2147483648
      %v1201 = vxor.u32 %v1137, 2147483648
      %v1202 = vxor.u32 %v1138, 2147483648
      %v1203 = vxor.u32 %v1139, 2147483648
      %v1204 = vxor.u32 %v1140, 2147483648
      %v1205 = vxor.u32 %v1141, 2147483648
      %v1206 = vxor.u32 %v1142, 2147483648
      %v1207 = vxor.u32 %v1143, 2147483648
      %v1208 = vxor.u32 %v1144, 2147483648
      %v1209 = vxor.u32 %v1145, 2147483648
      %v1210 = vxor.u32 %v1146, 2147483648
      %v1211 = vxor.u32 %v1147, 2147483648
      %v1212 = vxor.u32 %v1148, 2147483648
      %v1213 = vxor.u32 %v1149, 2147483648
      %v1214 = vxor.u32 %v1150, 2147483648
      %v1215 = vxor.u32 %v1151, 2147483648
      %v1216 = vxor.u32 %v1152, 2147483648
      %v1217 = vxor.u32 %v1153, 2147483648
      %v1218 = vxor.u32 %v1154, 2147483648
      %v1219 = vxor.u32 %v1155, 2147483648
      %v1220 = vxor.u32 %v1156, 2147483648
      %v1221 = vxor.u32 %v1157, 2147483648
      %v1222 = vxor.u32 %v1158, 2147483648
      %v1223 = vxor.u32 %v1159, 2147483648
      %v1224 = vxor.u32 %v1160, 2147483648
      %v1225 = vxor.u32 %v1161, 2147483648
      %v1226 = vxor.u32 %v1162, 2147483648
      %v1227 = vxor.u32 %v1163, 2147483648
      %v1228 = vxor.u32 %v1164, 2147483648
      %v1229 = vxor.u32 %v1165, 2147483648
      %v1230 = vxor.u32 %v1166, 2147483648
      %v1231 = vxor.u32 %v1167, 2147483648
      %v1232 = vxor.u32 %v1168, 2147483648
      %v1233 = vxor.u32 %v1169, 2147483648
      %v1234 = vxor.u32 %v1170, 2147483648
      %v1235 = vxor.u32 %v1171, 2147483648
      %v1236 = vxor.u32 %v1172, 2147483648
      %v1237 = vxor.u32 %v1173, 2147483648
      %v1238 = vxor.u32 %v1174, 2147483648
      %v1239 = vxor.u32 %v1175, 2147483648
      %v1240 = vxor.u32 %v1176, 2147483648
      %v1241 = vxor.u32 %v1177, 2147483648
      %v1242 = vxor.u32 %v1178, 2147483648
      %v1243 = vmul.f32 %v1179, 1.442695
      %v1244 = vpow.pop %v1243
      %v1245 = vmul.f32 %v1180, 1.442695
      %v1246 = vpow.pop %v1245
      %v1247 = vmul.f32 %v1181, 1.442695
      %v1248 = vpow.pop %v1247
      %v1249 = vmul.f32 %v1182, 1.442695
      %v1250 = vpow.pop %v1249
      %v1251 = vmul.f32 %v1183, 1.442695
      %v1252 = vpow.pop %v1251
      %v1253 = vmul.f32 %v1184, 1.442695
      %v1254 = vpow.pop %v1253
      %v1255 = vmul.f32 %v1185, 1.442695
      %v1256 = vpow.pop %v1255
      %v1257 = vmul.f32 %v1186, 1.442695
      %v1258 = vpow.pop %v1257
      %v1259 = vmul.f32 %v1187, 1.442695
      %v1260 = vpow.pop %v1259
      %v1261 = vmul.f32 %v1188, 1.442695
      %v1262 = vpow.pop %v1261
      %v1263 = vmul.f32 %v1189, 1.442695
      %v1264 = vpow.pop %v1263
      %v1265 = vmul.f32 %v1190, 1.442695
      %v1266 = vpow.pop %v1265
      %v1267 = vmul.f32 %v1191, 1.442695
      %v1268 = vpow.pop %v1267
      %v1269 = vmul.f32 %v1192, 1.442695
      %v1270 = vpow.pop %v1269
      %v1271 = vmul.f32 %v1193, 1.442695
      %v1272 = vpow.pop %v1271
      %v1273 = vmul.f32 %v1194, 1.442695
      %v1274 = vpow.pop %v1273
      %v1275 = vmul.f32 %v1195, 1.442695
      %v1276 = vpow.pop %v1275
      %v1277 = vmul.f32 %v1196, 1.442695
      %v1278 = vpow.pop %v1277
      %v1279 = vmul.f32 %v1197, 1.442695
      %v1280 = vpow.pop %v1279
      %v1281 = vmul.f32 %v1198, 1.442695
      %v1282 = vpow.pop %v1281
      %v1283 = vmul.f32 %v1199, 1.442695
      %v1284 = vpow.pop %v1283
      %v1285 = vmul.f32 %v1200, 1.442695
      %v1286 = vpow.pop %v1285
      %v1287 = vmul.f32 %v1201, 1.442695
      %v1288 = vpow.pop %v1287
      %v1289 = vmul.f32 %v1202, 1.442695
      %v1290 = vpow.pop %v1289
      %v1291 = vmul.f32 %v1203, 1.442695
      %v1292 = vpow.pop %v1291
      %v1293 = vmul.f32 %v1204, 1.442695
      %v1294 = vpow.pop %v1293
      %v1295 = vmul.f32 %v1205, 1.442695
      %v1296 = vpow.pop %v1295
      %v1297 = vmul.f32 %v1206, 1.442695
      %v1298 = vpow.pop %v1297
      %v1299 = vmul.f32 %v1207, 1.442695
      %v1300 = vpow.pop %v1299
      %v1301 = vmul.f32 %v1208, 1.442695
      %v1302 = vpow.pop %v1301
      %v1303 = vmul.f32 %v1209, 1.442695
      %v1304 = vpow.pop %v1303
      %v1305 = vmul.f32 %v1210, 1.442695
      %v1306 = vpow.pop %v1305
      %v1307 = vmul.f32 %v1211, 1.442695
      %v1308 = vpow.pop %v1307
      %v1309 = vmul.f32 %v1212, 1.442695
      %v1310 = vpow.pop %v1309
      %v1311 = vmul.f32 %v1213, 1.442695
      %v1312 = vpow.pop %v1311
      %v1313 = vmul.f32 %v1214, 1.442695
      %v1314 = vpow.pop %v1313
      %v1315 = vmul.f32 %v1215, 1.442695
      %v1316 = vpow.pop %v1315
      %v1317 = vmul.f32 %v1216, 1.442695
      %v1318 = vpow.pop %v1317
      %v1319 = vmul.f32 %v1217, 1.442695
      %v1320 = vpow.pop %v1319
      %v1321 = vmul.f32 %v1218, 1.442695
      %v1322 = vpow.pop %v1321
      %v1323 = vmul.f32 %v1219, 1.442695
      %v1324 = vpow.pop %v1323
      %v1325 = vmul.f32 %v1220, 1.442695
      %v1326 = vpow.pop %v1325
      %v1327 = vmul.f32 %v1221, 1.442695
      %v1328 = vpow.pop %v1327
      %v1329 = vmul.f32 %v1222, 1.442695
      %v1330 = vpow.pop %v1329
      %v1331 = vmul.f32 %v1223, 1.442695
      %v1332 = vpow.pop %v1331
      %v1333 = vmul.f32 %v1224, 1.442695
      %v1334 = vpow.pop %v1333
      %v1335 = vmul.f32 %v1225, 1.442695
      %v1336 = vpow.pop %v1335
      %v1337 = vmul.f32 %v1226, 1.442695
      %v1338 = vpow.pop %v1337
      %v1339 = vmul.f32 %v1227, 1.442695
      %v1340 = vpow.pop %v1339
      %v1341 = vmul.f32 %v1228, 1.442695
      %v1342 = vpow.pop %v1341
      %v1343 = vmul.f32 %v1229, 1.442695
      %v1344 = vpow.pop %v1343
      %v1345 = vmul.f32 %v1230, 1.442695
      %v1346 = vpow.pop %v1345
      %v1347 = vmul.f32 %v1231, 1.442695
      %v1348 = vpow.pop %v1347
      %v1349 = vmul.f32 %v1232, 1.442695
      %v1350 = vpow.pop %v1349
      %v1351 = vmul.f32 %v1233, 1.442695
      %v1352 = vpow.pop %v1351
      %v1353 = vmul.f32 %v1234, 1.442695
      %v1354 = vpow.pop %v1353
      %v1355 = vmul.f32 %v1235, 1.442695
      %v1356 = vpow.pop %v1355
      %v1357 = vmul.f32 %v1236, 1.442695
      %v1358 = vpow.pop %v1357
      %v1359 = vmul.f32 %v1237, 1.442695
      %v1360 = vpow.pop %v1359
      %v1361 = vmul.f32 %v1238, 1.442695
      %v1362 = vpow.pop %v1361
      %v1363 = vmul.f32 %v1239, 1.442695
      %v1364 = vpow.pop %v1363
      %v1365 = vmul.f32 %v1240, 1.442695
      %v1366 = vpow.pop %v1365
      %v1367 = vmul.f32 %v1241, 1.442695
      %v1368 = vpow.pop %v1367
      %v1369 = vmul.f32 %v1242, 1.442695
      %v1370 = vpow.pop %v1369
      %v1371 = vadd.f32 %v1244, 1.0
      %v1372 = vadd.f32 %v1246, 1.0
      %v1373 = vadd.f32 %v1248, 1.0
      %v1374 = vadd.f32 %v1250, 1.0
      %v1375 = vadd.f32 %v1252, 1.0
      %v1376 = vadd.f32 %v1254, 1.0
      %v1377 = vadd.f32 %v1256, 1.0
      %v1378 = vadd.f32 %v1258, 1.0
      %v1379 = vadd.f32 %v1260, 1.0
      %v1380 = vadd.f32 %v1262, 1.0
      %v1381 = vadd.f32 %v1264, 1.0
      %v1382 = vadd.f32 %v1266, 1.0
      %v1383 = vadd.f32 %v1268, 1.0
      %v1384 = vadd.f32 %v1270, 1.0
      %v1385 = vadd.f32 %v1272, 1.0
      %v1386 = vadd.f32 %v1274, 1.0
      %v1387 = vadd.f32 %v1276, 1.0
      %v1388 = vadd.f32 %v1278, 1.0
      %v1389 = vadd.f32 %v1280, 1.0
      %v1390 = vadd.f32 %v1282, 1.0
      %v1391 = vadd.f32 %v1284, 1.0
      %v1392 = vadd.f32 %v1286, 1.0
      %v1393 = vadd.f32 %v1288, 1.0
      %v1394 = vadd.f32 %v1290, 1.0
      %v1395 = vadd.f32 %v1292, 1.0
      %v1396 = vadd.f32 %v1294, 1.0
      %v1397 = vadd.f32 %v1296, 1.0
      %v1398 = vadd.f32 %v1298, 1.0
      %v1399 = vadd.f32 %v1300, 1.0
      %v1400 = vadd.f32 %v1302, 1.0
      %v1401 = vadd.f32 %v1304, 1.0
      %v1402 = vadd.f32 %v1306, 1.0
      %v1403 = vadd.f32 %v1308, 1.0
      %v1404 = vadd.f32 %v1310, 1.0
      %v1405 = vadd.f32 %v1312, 1.0
      %v1406 = vadd.f32 %v1314, 1.0
      %v1407 = vadd.f32 %v1316, 1.0
      %v1408 = vadd.f32 %v1318, 1.0
      %v1409 = vadd.f32 %v1320, 1.0
      %v1410 = vadd.f32 %v1322, 1.0
      %v1411 = vadd.f32 %v1324, 1.0
      %v1412 = vadd.f32 %v1326, 1.0
      %v1413 = vadd.f32 %v1328, 1.0
      %v1414 = vadd.f32 %v1330, 1.0
      %v1415 = vadd.f32 %v1332, 1.0
      %v1416 = vadd.f32 %v1334, 1.0
      %v1417 = vadd.f32 %v1336, 1.0
      %v1418 = vadd.f32 %v1338, 1.0
      %v1419 = vadd.f32 %v1340, 1.0
      %v1420 = vadd.f32 %v1342, 1.0
      %v1421 = vadd.f32 %v1344, 1.0
      %v1422 = vadd.f32 %v1346, 1.0
      %v1423 = vadd.f32 %v1348, 1.0
      %v1424 = vadd.f32 %v1350, 1.0
      %v1425 = vadd.f32 %v1352, 1.0
      %v1426 = vadd.f32 %v1354, 1.0
      %v1427 = vadd.f32 %v1356, 1.0
      %v1428 = vadd.f32 %v1358, 1.0
      %v1429 = vadd.f32 %v1360, 1.0
      %v1430 = vadd.f32 %v1362, 1.0
      %v1431 = vadd.f32 %v1364, 1.0
      %v1432 = vadd.f32 %v1366, 1.0
      %v1433 = vadd.f32 %v1368, 1.0
      %v1434 = vadd.f32 %v1370, 1.0
      %v1435 = vrcp.pop %v1371
      %v1436 = vmul.f32 1.0, %v1435
      %v1437 = vrcp.pop %v1372
      %v1438 = vmul.f32 1.0, %v1437
      %v1439 = vrcp.pop %v1373
      %v1440 = vmul.f32 1.0, %v1439
      %v1441 = vrcp.pop %v1374
      %v1442 = vmul.f32 1.0, %v1441
      %v1443 = vrcp.pop %v1375
      %v1444 = vmul.f32 1.0, %v1443
      %v1445 = vrcp.pop %v1376
      %v1446 = vmul.f32 1.0, %v1445
      %v1447 = vrcp.pop %v1377
      %v1448 = vmul.f32 1.0, %v1447
      %v1449 = vrcp.pop %v1378
      %v1450 = vmul.f32 1.0, %v1449
      %v1451 = vrcp.pop %v1379
      %v1452 = vmul.f32 1.0, %v1451
      %v1453 = vrcp.pop %v1380
      %v1454 = vmul.f32 1.0, %v1453
      %v1455 = vrcp.pop %v1381
      %v1456 = vmul.f32 1.0, %v1455
      %v1457 = vrcp.pop %v1382
      %v1458 = vmul.f32 1.0, %v1457
      %v1459 = vrcp.pop %v1383
      %v1460 = vmul.f32 1.0, %v1459
      %v1461 = vrcp.pop %v1384
      %v1462 = vmul.f32 1.0, %v1461
      %v1463 = vrcp.pop %v1385
      %v1464 = vmul.f32 1.0, %v1463
      %v1465 = vrcp.pop %v1386
      %v1466 = vmul.f32 1.0, %v1465
      %v1467 = vrcp.pop %v1387
      %v1468 = vmul.f32 1.0, %v1467
      %v1469 = vrcp.pop %v1388
      %v1470 = vmul.f32 1.0, %v1469
      %v1471 = vrcp.pop %v1389
      %v1472 = vmul.f32 1.0, %v1471
      %v1473 = vrcp.pop %v1390
      %v1474 = vmul.f32 1.0, %v1473
      %v1475 = vrcp.pop %v1391
      %v1476 = vmul.f32 1.0, %v1475
      %v1477 = vrcp.pop %v1392
      %v1478 = vmul.f32 1.0, %v1477
      %v1479 = vrcp.pop %v1393
      %v1480 = vmul.f32 1.0, %v1479
      %v1481 = vrcp.pop %v1394
      %v1482 = vmul.f32 1.0, %v1481
      %v1483 = vrcp.pop %v1395
      %v1484 = vmul.f32 1.0, %v1483
      %v1485 = vrcp.pop %v1396
      %v1486 = vmul.f32 1.0, %v1485
      %v1487 = vrcp.pop %v1397
      %v1488 = vmul.f32 1.0, %v1487
      %v1489 = vrcp.pop %v1398
      %v1490 = vmul.f32 1.0, %v1489
      %v1491 = vrcp.pop %v1399
      %v1492 = vmul.f32 1.0, %v1491
      %v1493 = vrcp.pop %v1400
      %v1494 = vmul.f32 1.0, %v1493
      %v1495 = vrcp.pop %v1401
      %v1496 = vmul.f32 1.0, %v1495
      %v1497 = vrcp.pop %v1402
      %v1498 = vmul.f32 1.0, %v1497
      %v1499 = vrcp.pop %v1403
      %v1500 = vmul.f32 1.0, %v1499
      %v1501 = vrcp.pop %v1404
      %v1502 = vmul.f32 1.0, %v1501
      %v1503 = vrcp.pop %v1405
      %v1504 = vmul.f32 1.0, %v1503
      %v1505 = vrcp.pop %v1406
      %v1506 = vmul.f32 1.0, %v1505
      %v1507 = vrcp.pop %v1407
      %v1508 = vmul.f32 1.0, %v1507
      %v1509 = vrcp.pop %v1408
      %v1510 = vmul.f32 1.0, %v1509
      %v1511 = vrcp.pop %v1409
      %v1512 = vmul.f32 1.0, %v1511
      %v1513 = vrcp.pop %v1410
      %v1514 = vmul.f32 1.0, %v1513
      %v1515 = vrcp.pop %v1411
      %v1516 = vmul.f32 1.0, %v1515
      %v1517 = vrcp.pop %v1412
      %v1518 = vmul.f32 1.0, %v1517
      %v1519 = vrcp.pop %v1413
      %v1520 = vmul.f32 1.0, %v1519
      %v1521 = vrcp.pop %v1414
      %v1522 = vmul.f32 1.0, %v1521
      %v1523 = vrcp.pop %v1415
      %v1524 = vmul.f32 1.0, %v1523
      %v1525 = vrcp.pop %v1416
      %v1526 = vmul.f32 1.0, %v1525
      %v1527 = vrcp.pop %v1417
      %v1528 = vmul.f32 1.0, %v1527
      %v1529 = vrcp.pop %v1418
      %v1530 = vmul.f32 1.0, %v1529
      %v1531 = vrcp.pop %v1419
      %v1532 = vmul.f32 1.0, %v1531
      %v1533 = vrcp.pop %v1420
      %v1534 = vmul.f32 1.0, %v1533
      %v1535 = vrcp.pop %v1421
      %v1536 = vmul.f32 1.0, %v1535
      %v1537 = vrcp.pop %v1422
      %v1538 = vmul.f32 1.0, %v1537
      %v1539 = vrcp.pop %v1423
      %v1540 = vmul.f32 1.0, %v1539
      %v1541 = vrcp.pop %v1424
      %v1542 = vmul.f32 1.0, %v1541
      %v1543 = vrcp.pop %v1425
      %v1544 = vmul.f32 1.0, %v1543
      %v1545 = vrcp.pop %v1426
      %v1546 = vmul.f32 1.0, %v1545
      %v1547 = vrcp.pop %v1427
      %v1548 = vmul.f32 1.0, %v1547
      %v1549 = vrcp.pop %v1428
      %v1550 = vmul.f32 1.0, %v1549
      %v1551 = vrcp.pop %v1429
      %v1552 = vmul.f32 1.0, %v1551
      %v1553 = vrcp.pop %v1430
      %v1554 = vmul.f32 1.0, %v1553
      %v1555 = vrcp.pop %v1431
      %v1556 = vmul.f32 1.0, %v1555
      %v1557 = vrcp.pop %v1432
      %v1558 = vmul.f32 1.0, %v1557
      %v1559 = vrcp.pop %v1433
      %v1560 = vmul.f32 1.0, %v1559
      %v1561 = vrcp.pop %v1434
      %v1562 = vmul.f32 1.0, %v1561
      %v1563 = vmul.f32 %v1115, %v1436
      %v1564 = vmul.f32 %v1116, %v1438
      %v1565 = vmul.f32 %v1117, %v1440
      %v1566 = vmul.f32 %v1118, %v1442
      %v1567 = vmul.f32 %v1119, %v1444
      %v1568 = vmul.f32 %v1120, %v1446
      %v1569 = vmul.f32 %v1121, %v1448
      %v1570 = vmul.f32 %v1122, %v1450
      %v1571 = vmul.f32 %v1123, %v1452
      %v1572 = vmul.f32 %v1124, %v1454
      %v1573 = vmul.f32 %v1125, %v1456
      %v1574 = vmul.f32 %v1126, %v1458
      %v1575 = vmul.f32 %v1127, %v1460
      %v1576 = vmul.f32 %v1128, %v1462
      %v1577 = vmul.f32 %v1129, %v1464
      %v1578 = vmul.f32 %v1130, %v1466
      %v1579 = vmul.f32 %v1131, %v1468
      %v1580 = vmul.f32 %v1132, %v1470
      %v1581 = vmul.f32 %v1133, %v1472
      %v1582 = vmul.f32 %v1134, %v1474
      %v1583 = vmul.f32 %v1135, %v1476
      %v1584 = vmul.f32 %v1136, %v1478
      %v1585 = vmul.f32 %v1137, %v1480
      %v1586 = vmul.f32 %v1138, %v1482
      %v1587 = vmul.f32 %v1139, %v1484
      %v1588 = vmul.f32 %v1140, %v1486
      %v1589 = vmul.f32 %v1141, %v1488
      %v1590 = vmul.f32 %v1142, %v1490
      %v1591 = vmul.f32 %v1143, %v1492
      %v1592 = vmul.f32 %v1144, %v1494
      %v1593 = vmul.f32 %v1145, %v1496
      %v1594 = vmul.f32 %v1146, %v1498
      %v1595 = vmul.f32 %v1147, %v1500
      %v1596 = vmul.f32 %v1148, %v1502
      %v1597 = vmul.f32 %v1149, %v1504
      %v1598 = vmul.f32 %v1150, %v1506
      %v1599 = vmul.f32 %v1151, %v1508
      %v1600 = vmul.f32 %v1152, %v1510
      %v1601 = vmul.f32 %v1153, %v1512
      %v1602 = vmul.f32 %v1154, %v1514
      %v1603 = vmul.f32 %v1155, %v1516
      %v1604 = vmul.f32 %v1156, %v1518
      %v1605 = vmul.f32 %v1157, %v1520
      %v1606 = vmul.f32 %v1158, %v1522
      %v1607 = vmul.f32 %v1159, %v1524
      %v1608 = vmul.f32 %v1160, %v1526
      %v1609 = vmul.f32 %v1161, %v1528
      %v1610 = vmul.f32 %v1162, %v1530
      %v1611 = vmul.f32 %v1163, %v1532
      %v1612 = vmul.f32 %v1164, %v1534
      %v1613 = vmul.f32 %v1165, %v1536
      %v1614 = vmul.f32 %v1166, %v1538
      %v1615 = vmul.f32 %v1167, %v1540
      %v1616 = vmul.f32 %v1168, %v1542
      %v1617 = vmul.f32 %v1169, %v1544
      %v1618 = vmul.f32 %v1170, %v1546
      %v1619 = vmul.f32 %v1171, %v1548
      %v1620 = vmul.f32 %v1172, %v1550
      %v1621 = vmul.f32 %v1173, %v1552
      %v1622 = vmul.f32 %v1174, %v1554
      %v1623 = vmul.f32 %v1175, %v1556
      %v1624 = vmul.f32 %v1176, %v1558
      %v1625 = vmul.f32 %v1177, %v1560
      %v1626 = vmul.f32 %v1178, %v1562
      %vm1627 = vcmask 31744
      %1628 = vst.msk [vmem:[%s202] sm:$0xff] %vm1627, %v1563
      %1629 = vst.msk [vmem:[%s202 + $0x8] sm:$0xff] %vm1627, %v1564
      %1630 = vst.msk [vmem:[%s202 + $0x10] sm:$0xff] %vm1627, %v1565
      %1631 = vst.msk [vmem:[%s202 + $0x18] sm:$0xff] %vm1627, %v1566
      %1632 = vst.msk [vmem:[%s202 + $0x20] sm:$0xff] %vm1627, %v1567
      %1633 = vst.msk [vmem:[%s202 + $0x28] sm:$0xff] %vm1627, %v1568
      %1634 = vst.msk [vmem:[%s202 + $0x30] sm:$0xff] %vm1627, %v1569
      %1635 = vst.msk [vmem:[%s202 + $0x38] sm:$0xff] %vm1627, %v1570
      %1636 = vst.msk [vmem:[%s202 + $0x40] sm:$0xff] %vm1627, %v1571
      %1637 = vst.msk [vmem:[%s202 + $0x48] sm:$0xff] %vm1627, %v1572
      %1638 = vst.msk [vmem:[%s202 + $0x50] sm:$0xff] %vm1627, %v1573
      %1639 = vst.msk [vmem:[%s202 + $0x58] sm:$0xff] %vm1627, %v1574
      %1640 = vst.msk [vmem:[%s202 + $0x60] sm:$0xff] %vm1627, %v1575
      %1641 = vst.msk [vmem:[%s202 + $0x68] sm:$0xff] %vm1627, %v1576
      %1642 = vst.msk [vmem:[%s202 + $0x70] sm:$0xff] %vm1627, %v1577
      %1643 = vst.msk [vmem:[%s202 + $0x78] sm:$0xff] %vm1627, %v1578
      %1644 = vst.msk [vmem:[%s202 + $0x80] sm:$0xff] %vm1627, %v1579
      %1645 = vst.msk [vmem:[%s202 + $0x88] sm:$0xff] %vm1627, %v1580
      %1646 = vst.msk [vmem:[%s202 + $0x90] sm:$0xff] %vm1627, %v1581
      %1647 = vst.msk [vmem:[%s202 + $0x98] sm:$0xff] %vm1627, %v1582
      %1648 = vst.msk [vmem:[%s202 + $0xa0] sm:$0xff] %vm1627, %v1583
      %1649 = vst.msk [vmem:[%s202 + $0xa8] sm:$0xff] %vm1627, %v1584
      %1650 = vst.msk [vmem:[%s202 + $0xb0] sm:$0xff] %vm1627, %v1585
      %1651 = vst.msk [vmem:[%s202 + $0xb8] sm:$0xff] %vm1627, %v1586
      %1652 = vst.msk [vmem:[%s202 + $0xc0] sm:$0xff] %vm1627, %v1587
      %1653 = vst.msk [vmem:[%s202 + $0xc8] sm:$0xff] %vm1627, %v1588
      %1654 = vst.msk [vmem:[%s202 + $0xd0] sm:$0xff] %vm1627, %v1589
      %1655 = vst.msk [vmem:[%s202 + $0xd8] sm:$0xff] %vm1627, %v1590
      %1656 = vst.msk [vmem:[%s202 + $0xe0] sm:$0xff] %vm1627, %v1591
      %1657 = vst.msk [vmem:[%s202 + $0xe8] sm:$0xff] %vm1627, %v1592
      %1658 = vst.msk [vmem:[%s202 + $0xf0] sm:$0xff] %vm1627, %v1593
      %1659 = vst.msk [vmem:[%s202 + $0xf8] sm:$0xff] %vm1627, %v1594
      %1660 = vst.msk [vmem:[%s202 + $0x100] sm:$0xff] %vm1627, %v1595
      %1661 = vst.msk [vmem:[%s202 + $0x108] sm:$0xff] %vm1627, %v1596
      %1662 = vst.msk [vmem:[%s202 + $0x110] sm:$0xff] %vm1627, %v1597
      %1663 = vst.msk [vmem:[%s202 + $0x118] sm:$0xff] %vm1627, %v1598
      %1664 = vst.msk [vmem:[%s202 + $0x120] sm:$0xff] %vm1627, %v1599
      %1665 = vst.msk [vmem:[%s202 + $0x128] sm:$0xff] %vm1627, %v1600
      %1666 = vst.msk [vmem:[%s202 + $0x130] sm:$0xff] %vm1627, %v1601
      %1667 = vst.msk [vmem:[%s202 + $0x138] sm:$0xff] %vm1627, %v1602
      %1668 = vst.msk [vmem:[%s202 + $0x140] sm:$0xff] %vm1627, %v1603
      %1669 = vst.msk [vmem:[%s202 + $0x148] sm:$0xff] %vm1627, %v1604
      %1670 = vst.msk [vmem:[%s202 + $0x150] sm:$0xff] %vm1627, %v1605
      %1671 = vst.msk [vmem:[%s202 + $0x158] sm:$0xff] %vm1627, %v1606
      %1672 = vst.msk [vmem:[%s202 + $0x160] sm:$0xff] %vm1627, %v1607
      %1673 = vst.msk [vmem:[%s202 + $0x168] sm:$0xff] %vm1627, %v1608
      %1674 = vst.msk [vmem:[%s202 + $0x170] sm:$0xff] %vm1627, %v1609
      %1675 = vst.msk [vmem:[%s202 + $0x178] sm:$0xff] %vm1627, %v1610
      %1676 = vst.msk [vmem:[%s202 + $0x180] sm:$0xff] %vm1627, %v1611
      %1677 = vst.msk [vmem:[%s202 + $0x188] sm:$0xff] %vm1627, %v1612
      %1678 = vst.msk [vmem:[%s202 + $0x190] sm:$0xff] %vm1627, %v1613
      %1679 = vst.msk [vmem:[%s202 + $0x198] sm:$0xff] %vm1627, %v1614
      %1680 = vst.msk [vmem:[%s202 + $0x1a0] sm:$0xff] %vm1627, %v1615
      %1681 = vst.msk [vmem:[%s202 + $0x1a8] sm:$0xff] %vm1627, %v1616
      %1682 = vst.msk [vmem:[%s202 + $0x1b0] sm:$0xff] %vm1627, %v1617
      %1683 = vst.msk [vmem:[%s202 + $0x1b8] sm:$0xff] %vm1627, %v1618
      %1684 = vst.msk [vmem:[%s202 + $0x1c0] sm:$0xff] %vm1627, %v1619
      %1685 = vst.msk [vmem:[%s202 + $0x1c8] sm:$0xff] %vm1627, %v1620
      %1686 = vst.msk [vmem:[%s202 + $0x1d0] sm:$0xff] %vm1627, %v1621
      %1687 = vst.msk [vmem:[%s202 + $0x1d8] sm:$0xff] %vm1627, %v1622
      %1688 = vst.msk [vmem:[%s202 + $0x1e0] sm:$0xff] %vm1627, %v1623
      %1689 = vst.msk [vmem:[%s202 + $0x1e8] sm:$0xff] %vm1627, %v1624
      %1690 = vst.msk [vmem:[%s202 + $0x1f0] sm:$0xff] %vm1627, %v1625
      %1691 = vst.msk [vmem:[%s202 + $0x1f8] sm:$0xff] %vm1627, %v1626
      %s1692 = smul.u32 64, %s15
      %p1693 = scmp.lt.s32.totalorder %s1692, 191
      %s1694 = scalar_select %p1693, %s1692, 191
      %s1695 = smul.addr %s1694, 8
      %s1696 = scalar_lea.vmem %s4, %s1695
      // Predicated region
      $region37: #{multi_classification_forward.16} parent=35 // pred_check
        %p1697 = pneg %p122
      $region38: #{multi_classification_forward.16} parent=35 // pred_check_branch
        %1699 = sbr.rel (%p1697) target = $region40
      $region39: #{multi_classification_forward.16} parent=35 // pred_region
        %s1700 = smul.u32 64, %s15
      $region40: #{multi_classification_forward.16} parent=35 // pred_fallthru
        _
    $region36: #{multi_classification_forward.16} parent=5 // pred_fallthru
      _
    %p1701 = scmp.le.s32.totalorder 2, %s10
    // Predicated region
    $region41: #{multi_classification_forward.16} parent=5 // pred_check
      %p1702 = pneg %p1701
    $region42: #{multi_classification_forward.16} parent=5 // pred_check_branch
      %1704 = sbr.rel (%p1702) target = $region44
    $region43: #{multi_classification_forward.16} parent=5 // pred_region
      %s1705 = ssub.s32 %s10, 2
      // Predicated region
      $region45: #{multi_classification_forward.16} parent=43 // pred_check
        %p1706 = pneg %p128
      $region46: #{multi_classification_forward.16} parent=43 // pred_check_branch
        %1708 = sbr.rel (%p1706) target = $region48
      $region47: #{multi_classification_forward.16} parent=43 // pred_region
        %s1709 = smul.u32 64, %s16
        %p1710 = scmp.lt.s32.totalorder %s1709, 191
        %s1711 = scalar_select %p1710, %s1709, 191
        %s1712 = smul.addr %s1711, 8
        %s1713 = scalar_lea.vmem %s4, %s1712
      $region48: #{multi_classification_forward.16} parent=43 // pred_fallthru
        _
    $region44: #{multi_classification_forward.16} parent=5 // pred_fallthru
      _
  $region6: #{multi_classification_forward.16} parent=0 // loop_footer
    %s14 = sadd.s32 1, %s10
  $region7: #{multi_classification_forward.16} parent=0 // loop_footer_branch
    %9 = sbr.rel target = $region3
  $region8: #{multi_classification_forward.16} parent=0 // loop_exit
    _

// kernel: multi_classification_forward.17
$region0: #{multi_classification_forward.17}
  #allocation0 [shape = 'u32[]', space=smem, size = 0x4, offset = 0x4, fixed_abs, tag = 'smem constant byte address 0x4 - core index']
  #allocation1 [shape = 'u32[144,128]{1,0:T(1,128)}', space=vmem, size = 0x12000, scoped, tag = 'internal scratch']
  %s0 = inlined_call_operand.vmem [shape: bf16[288,196], index: 0, kind: input, shape index: {}]
  %s1 = inlined_call_operand.vmem [shape: bf16[196,16], index: 1, kind: input, shape index: {}]
  %s2 = inlined_call_operand.vmem [shape: f32[1,16], index: 2, kind: input, shape index: {}]
  %s3 = inlined_call_operand.vmem [shape: f32[1,16], index: 3, kind: input, shape index: {}]
  %s4 = inlined_call_operand.vmem [shape: f32[288,16], index: 4, kind: output, shape index: {}]
  %s5 = sld [smem:[#allocation0]]
  $region26: #{multi_classification_forward.17} parent=0
    _
  %s7 = ssub.s32 1, %s5
  %s8 = scalar_select 0, %s7, %s5
  // Predicated region
  $region2: #{multi_classification_forward.17} parent=0 // pred_check
    _
  $region3: #{multi_classification_forward.17} parent=0 // pred_check_branch
    %10 = sbr.rel (0) target = $region5
  $region4: #{multi_classification_forward.17} parent=0 // pred_region
    _
  $region5: #{multi_classification_forward.17} parent=0 // pred_fallthru
    _
  // Predicated region
  $region6: #{multi_classification_forward.17} parent=0 // pred_check
    _
  $region7: #{multi_classification_forward.17} parent=0 // pred_check_branch
    %12 = sbr.rel (0) target = $region9
  $region8: #{multi_classification_forward.17} parent=0 // pred_region
    _
  $region9: #{multi_classification_forward.17} parent=0 // pred_fallthru
    _
  // Predicated region
  $region10: #{multi_classification_forward.17} parent=0 // pred_check
    _
  $region11: #{multi_classification_forward.17} parent=0 // pred_check_branch
    %14 = sbr.rel (0) target = $region13
  $region12: #{multi_classification_forward.17} parent=0 // pred_region
    _
  $region13: #{multi_classification_forward.17} parent=0 // pred_fallthru
    _
  // Predicated region
  $region14: #{multi_classification_forward.17} parent=0 // pred_check
    _
  $region15: #{multi_classification_forward.17} parent=0 // pred_check_branch
    %16 = sbr.rel (0) target = $region17
  $region16: #{multi_classification_forward.17} parent=0 // pred_region
    _
  $region17: #{multi_classification_forward.17} parent=0 // pred_fallthru
    _
  %v18 = vld [vmem:[%s0] sm:$0xff]
  %v19 = vld [vmem:[%s0 + $0x8] sm:$0xff]
  %v20 = vld [vmem:[%s0 + $0x10] sm:$0xff]
  %v21 = vld [vmem:[%s0 + $0x18] sm:$0xff]
  %v22 = vld [vmem:[%s0 + $0x20] sm:$0xff]
  %v23 = vld [vmem:[%s0 + $0x28] sm:$0xff]
  %v24 = vld [vmem:[%s0 + $0x30] sm:$0xff]
  %v25 = vld [vmem:[%s0 + $0x38] sm:$0xff]
  %v26 = vld [vmem:[%s0 + $0x40] sm:$0xff]
  %v27 = vld [vmem:[%s0 + $0x48] sm:$0xff]
  %v28 = vld [vmem:[%s0 + $0x50] sm:$0xff]
  %v29 = vld [vmem:[%s0 + $0x58] sm:$0xff]
  %v30 = vld [vmem:[%s0 + $0x60] sm:$0xff]
  %v31 = vld [vmem:[%s0 + $0x68] sm:$0xff]
  %v32 = vld [vmem:[%s0 + $0x70] sm:$0xff]
  %v33 = vld [vmem:[%s0 + $0x78] sm:$0xff]
  %v34 = vld [vmem:[%s0 + $0x80] sm:$0xff]
  %v35 = vld [vmem:[%s0 + $0x88] sm:$0xff]
  %v36 = vld [vmem:[%s0 + $0x90] sm:$0xff]
  %v37 = vld [vmem:[%s0 + $0x98] sm:$0xff]
  %v38 = vld [vmem:[%s0 + $0xa0] sm:$0xff]
  %v39 = vld [vmem:[%s0 + $0xa8] sm:$0xff]
  %v40 = vld [vmem:[%s0 + $0xb0] sm:$0xff]
  %v41 = vld [vmem:[%s0 + $0xb8] sm:$0xff]
  %v42 = vld [vmem:[%s0 + $0xc0] sm:$0xff]
  %v43 = vld [vmem:[%s0 + $0xc8] sm:$0xff]
  %v44 = vld [vmem:[%s0 + $0xd0] sm:$0xff]
  %v45 = vld [vmem:[%s0 + $0xd8] sm:$0xff]
  %v46 = vld [vmem:[%s0 + $0xe0] sm:$0xff]
  %v47 = vld [vmem:[%s0 + $0xe8] sm:$0xff]
  %v48 = vld [vmem:[%s0 + $0xf0] sm:$0xff]
  %v49 = vld [vmem:[%s0 + $0xf8] sm:$0xff]
  %v50 = vld [vmem:[%s0 + $0x100] sm:$0xff]
  %v51 = vld [vmem:[%s0 + $0x108] sm:$0xff]
  %v52 = vld [vmem:[%s0 + $0x110] sm:$0xff]
  %v53 = vld [vmem:[%s0 + $0x118] sm:$0xff]
  %v54 = vld [vmem:[%s1] sm:$0xf]
  %v55 = vld [vmem:[%s1 + $0x4] sm:$0xf]
  %v56 = vld [vmem:[%s1 + $0x8] sm:$0xf]
  %v57 = vld [vmem:[%s1 + $0xc] sm:$0xf]
  %v58 = vld [vmem:[%s1 + $0x10] sm:$0xf]
  %v59 = vld [vmem:[%s1 + $0x14] sm:$0xf]
  %v60 = vld [vmem:[%s1 + $0x18] sm:$0xf]
  %v61 = vld [vmem:[%s1 + $0x1c] sm:$0xf]
  %v62 = vld [vmem:[%s1 + $0x20] sm:$0xf]
  %v63 = vld [vmem:[%s1 + $0x24] sm:$0xf]
  %v64 = vld [vmem:[%s1 + $0x28] sm:$0xf]
  %v65 = vld [vmem:[%s1 + $0x2c] sm:$0xf]
  %v66 = vld [vmem:[%s1 + $0x30] sm:$0xf]
  %v67 = vld [vmem:[%s1 + $0x34] sm:$0xf]
  %v68 = vld [vmem:[%s1 + $0x38] sm:$0xf]
  %v69 = vld [vmem:[%s1 + $0x3c] sm:$0xf]
  %v70 = vld [vmem:[%s1 + $0x40] sm:$0xf]
  %v71 = vld [vmem:[%s1 + $0x44] sm:$0xf]
  %v72 = vld [vmem:[%s1 + $0x48] sm:$0xf]
  %v73 = vld [vmem:[%s1 + $0x4c] sm:$0xf]
  %v74 = vld [vmem:[%s1 + $0x50] sm:$0xf]
  %v75 = vld [vmem:[%s1 + $0x54] sm:$0xf]
  %v76 = vld [vmem:[%s1 + $0x58] sm:$0xf]
  %v77 = vld [vmem:[%s1 + $0x5c] sm:$0xf]
  %v78 = vld [vmem:[%s1 + $0x60] sm:$0x3]
  %v115 = vunpack.c.l.b16 %v18
  %v116 = vunpack.c.h.b16 %v18
  %v117 = vunpack.c.l.b16 %v19
  %v118 = vunpack.c.h.b16 %v19
  %v119 = vunpack.c.l.b16 %v20
  %v120 = vunpack.c.h.b16 %v20
  %v121 = vunpack.c.l.b16 %v21
  %v122 = vunpack.c.h.b16 %v21
  %v123 = vunpack.c.l.b16 %v22
  %v124 = vunpack.c.h.b16 %v22
  %v125 = vunpack.c.l.b16 %v23
  %v126 = vunpack.c.h.b16 %v23
  %v127 = vunpack.c.l.b16 %v24
  %v128 = vunpack.c.h.b16 %v24
  %v129 = vunpack.c.l.b16 %v25
  %v130 = vunpack.c.h.b16 %v25
  %v131 = vunpack.c.l.b16 %v26
  %v132 = vunpack.c.h.b16 %v26
  %v133 = vunpack.c.l.b16 %v27
  %v134 = vunpack.c.h.b16 %v27
  %v135 = vunpack.c.l.b16 %v28
  %v136 = vunpack.c.h.b16 %v28
  %v137 = vunpack.c.l.b16 %v29
  %v138 = vunpack.c.h.b16 %v29
  %v139 = vunpack.c.l.b16 %v30
  %v140 = vunpack.c.h.b16 %v30
  %v141 = vunpack.c.l.b16 %v31
  %v142 = vunpack.c.h.b16 %v31
  %v143 = vunpack.c.l.b16 %v32
  %v144 = vunpack.c.h.b16 %v32
  %v145 = vunpack.c.l.b16 %v33
  %v146 = vunpack.c.h.b16 %v33
  %v147 = vunpack.c.l.b16 %v34
  %v148 = vunpack.c.h.b16 %v34
  %v149 = vunpack.c.l.b16 %v35
  %v150 = vunpack.c.h.b16 %v35
  %v151 = vunpack.c.l.b16 %v36
  %v152 = vunpack.c.h.b16 %v36
  %v153 = vunpack.c.l.b16 %v37
  %v154 = vunpack.c.h.b16 %v37
  %v155 = vunpack.c.l.b16 %v38
  %v156 = vunpack.c.h.b16 %v38
  %v157 = vunpack.c.l.b16 %v39
  %v158 = vunpack.c.h.b16 %v39
  %v159 = vunpack.c.l.b16 %v40
  %v160 = vunpack.c.h.b16 %v40
  %v161 = vunpack.c.l.b16 %v41
  %v162 = vunpack.c.h.b16 %v41
  %v163 = vunpack.c.l.b16 %v42
  %v164 = vunpack.c.h.b16 %v42
  %v165 = vunpack.c.l.b16 %v43
  %v166 = vunpack.c.h.b16 %v43
  %v167 = vunpack.c.l.b16 %v44
  %v168 = vunpack.c.h.b16 %v44
  %v169 = vunpack.c.l.b16 %v45
  %v170 = vunpack.c.h.b16 %v45
  %v171 = vunpack.c.l.b16 %v46
  %v172 = vunpack.c.h.b16 %v46
  %v173 = vunpack.c.l.b16 %v47
  %v174 = vunpack.c.h.b16 %v47
  %v175 = vunpack.c.l.b16 %v48
  %v176 = vunpack.c.h.b16 %v48
  %v177 = vunpack.c.l.b16 %v49
  %v178 = vunpack.c.h.b16 %v49
  %v179 = vunpack.c.l.b16 %v50
  %v180 = vunpack.c.h.b16 %v50
  %v181 = vunpack.c.l.b16 %v51
  %v182 = vunpack.c.h.b16 %v51
  %v183 = vunpack.c.l.b16 %v52
  %v184 = vunpack.c.h.b16 %v52
  %v185 = vunpack.c.l.b16 %v53
  %v186 = vunpack.c.h.b16 %v53
  %v187 = vpack.c.b16 %v117, %v115
  %v188 = vpack.c.b16 %v118, %v116
  %v189 = vpack.c.b16 %v121, %v119
  %v190 = vpack.c.b16 %v122, %v120
  %v191 = vpack.c.b16 %v125, %v123
  %v192 = vpack.c.b16 %v126, %v124
  %v193 = vpack.c.b16 %v129, %v127
  %v194 = vpack.c.b16 %v130, %v128
  %v195 = vpack.c.b16 %v133, %v131
  %v196 = vpack.c.b16 %v134, %v132
  %v197 = vpack.c.b16 %v137, %v135
  %v198 = vpack.c.b16 %v138, %v136
  %v199 = vpack.c.b16 %v141, %v139
  %v200 = vpack.c.b16 %v142, %v140
  %v201 = vpack.c.b16 %v145, %v143
  %v202 = vpack.c.b16 %v146, %v144
  %v203 = vpack.c.b16 %v149, %v147
  %v204 = vpack.c.b16 %v150, %v148
  %v205 = vpack.c.b16 %v153, %v151
  %v206 = vpack.c.b16 %v154, %v152
  %v207 = vpack.c.b16 %v157, %v155
  %v208 = vpack.c.b16 %v158, %v156
  %v209 = vpack.c.b16 %v161, %v159
  %v210 = vpack.c.b16 %v162, %v160
  %v211 = vpack.c.b16 %v165, %v163
  %v212 = vpack.c.b16 %v166, %v164
  %v213 = vpack.c.b16 %v169, %v167
  %v214 = vpack.c.b16 %v170, %v168
  %v215 = vpack.c.b16 %v173, %v171
  %v216 = vpack.c.b16 %v174, %v172
  %v217 = vpack.c.b16 %v177, %v175
  %v218 = vpack.c.b16 %v178, %v176
  %v219 = vpack.c.b16 %v181, %v179
  %v220 = vpack.c.b16 %v182, %v180
  %v221 = vpack.c.b16 %v185, %v183
  %v222 = vpack.c.b16 %v186, %v184
  %v266 = vunpack.c.l.b16 %v54
  %v267 = vunpack.c.l.b16 %v55
  %v268 = vunpack.c.l.b16 %v56
  %v269 = vunpack.c.l.b16 %v57
  %v270 = vunpack.c.l.b16 %v58
  %v271 = vunpack.c.l.b16 %v59
  %v272 = vunpack.c.l.b16 %v60
  %v273 = vunpack.c.l.b16 %v61
  %v274 = vunpack.c.l.b16 %v62
  %v275 = vunpack.c.l.b16 %v63
  %v276 = vunpack.c.l.b16 %v64
  %v277 = vunpack.c.l.b16 %v65
  %v278 = vunpack.c.l.b16 %v66
  %v279 = vunpack.c.l.b16 %v67
  %v280 = vunpack.c.l.b16 %v68
  %v281 = vunpack.c.l.b16 %v69
  %v282 = vunpack.c.l.b16 %v70
  %v283 = vunpack.c.l.b16 %v71
  %v284 = vunpack.c.l.b16 %v72
  %v285 = vunpack.c.l.b16 %v73
  %v286 = vunpack.c.l.b16 %v74
  %v287 = vunpack.c.l.b16 %v75
  %v288 = vunpack.c.l.b16 %v76
  %v289 = vunpack.c.l.b16 %v77
  %v290 = vunpack.c.l.b16 %v78
  %v291 = vpack.c.b16 %v267, %v266
  %v292 = vpack.c.b16 %v269, %v268
  %v293 = vpack.c.b16 %v271, %v270
  %v294 = vpack.c.b16 %v273, %v272
  %v295 = vpack.c.b16 %v275, %v274
  %v296 = vpack.c.b16 %v277, %v276
  %v297 = vpack.c.b16 %v279, %v278
  %v298 = vpack.c.b16 %v281, %v280
  %v299 = vpack.c.b16 %v283, %v282
  %v300 = vpack.c.b16 %v285, %v284
  %v301 = vpack.c.b16 %v287, %v286
  %v302 = vpack.c.b16 %v289, %v288
  %v303 = vpack.c.b16 %v290, %v290
  %vm316 = vcmask 556032
  %v318 = vsel %vm316, %v188, 0
  %v321 = vsel %vm316, %v190, 0
  %v324 = vsel %vm316, %v192, 0
  %v327 = vsel %vm316, %v194, 0
  %v330 = vsel %vm316, %v196, 0
  %v333 = vsel %vm316, %v198, 0
  %v336 = vsel %vm316, %v200, 0
  %v339 = vsel %vm316, %v202, 0
  %v342 = vsel %vm316, %v204, 0
  %v345 = vsel %vm316, %v206, 0
  %v348 = vsel %vm316, %v208, 0
  %v351 = vsel %vm316, %v210, 0
  %v354 = vsel %vm316, %v212, 0
  %v357 = vsel %vm316, %v214, 0
  %v360 = vsel %vm316, %v216, 0
  %v363 = vsel %vm316, %v218, 0
  %v366 = vsel %vm316, %v220, 0
  %v369 = vsel %vm316, %v222, 0
  %vm371 = vcmask 1041408
  %v373 = vsel %vm371, %v303, 0
  %375 = vmatprep.subr.bf16.mxu0 0
  %376 = vmatpush1.bf16.msra.mxu0 %v298
  %377 = vmatprep.subr.bf16.mxu0 0
  %378 = vmatpush1.bf16.msra.mxu0 %v297
  %379 = vmatprep.subr.bf16.mxu0 0
  %380 = vmatpush1.bf16.msra.mxu0 %v296
  %381 = vmatprep.subr.bf16.mxu0 0
  %382 = vmatpush1.bf16.msra.mxu0 %v295
  %383 = vmatprep.subr.bf16.mxu0 0
  %384 = vmatpush1.bf16.msra.mxu0 %v294
  %385 = vmatprep.subr.bf16.mxu0 0
  %386 = vmatpush1.bf16.msra.mxu0 %v293
  %387 = vmatprep.subr.bf16.mxu0 0
  %388 = vmatpush1.bf16.msra.mxu0 %v292
  %389 = vmatprep.subr.bf16.mxu0 0
  %390 = vmatpush1.bf16.msra.mxu0 %v291
  %391 = vmatprep.subr.bf16.mxu0 0
  %392 = vmatpush2.bf16.msra.mxu0 0
  %393 = vmatprep.subr.bf16.mxu0 0
  %394 = vmatpush2.bf16.msra.mxu0 0
  %395 = vmatprep.subr.bf16.mxu0 0
  %396 = vmatpush2.bf16.msra.mxu0 0
  %397 = vmatprep.subr.bf16.mxu0 0
  %398 = vmatpush2.bf16.msra.mxu0 %v373
  %399 = vmatprep.subr.bf16.mxu0 0
  %400 = vmatpush2.bf16.msra.mxu0 %v302
  %401 = vmatprep.subr.bf16.mxu0 0
  %402 = vmatpush2.bf16.msra.mxu0 %v301
  %403 = vmatprep.subr.bf16.mxu0 0
  %404 = vmatpush2.bf16.msra.mxu0 %v300
  %405 = vmatprep.subr.bf16.mxu0 0
  %406 = vmatpush2.bf16.msra.mxu0 %v299
  %407 = vmatprep.mubr.bf16.mxu0 %v318
  %408 = vmatmul.mubr.bf16.gmra.mxu0 %v187
  %v409 = vpop.f32.mrf.mxu0
  %v410 = vadd.f32 0.0, %v409
  %v411 = vpop.f32.mrf.mxu0
  %v412 = vpop.f32.mrf.mxu0
  %v413 = vadd.f32 0.0, %v412
  %v414 = vpop.f32.mrf.mxu0
  %415 = vmatprep.mubr.bf16.mxu0 %v321
  %416 = vmatmul.mubr.bf16.gmra.mxu0 %v189
  %v417 = vpop.f32.mrf.mxu0
  %v418 = vadd.f32 0.0, %v417
  %v419 = vpop.f32.mrf.mxu0
  %v420 = vpop.f32.mrf.mxu0
  %v421 = vadd.f32 0.0, %v420
  %v422 = vpop.f32.mrf.mxu0
  %423 = vmatprep.mubr.bf16.mxu0 %v324
  %424 = vmatmul.mubr.bf16.gmra.mxu0 %v191
  %v425 = vpop.f32.mrf.mxu0
  %v426 = vadd.f32 0.0, %v425
  %v427 = vpop.f32.mrf.mxu0
  %v428 = vpop.f32.mrf.mxu0
  %v429 = vadd.f32 0.0, %v428
  %v430 = vpop.f32.mrf.mxu0
  %431 = vmatprep.mubr.bf16.mxu0 %v327
  %432 = vmatmul.mubr.bf16.gmra.mxu0 %v193
  %v433 = vpop.f32.mrf.mxu0
  %v434 = vadd.f32 0.0, %v433
  %v435 = vpop.f32.mrf.mxu0
  %v436 = vpop.f32.mrf.mxu0
  %v437 = vadd.f32 0.0, %v436
  %v438 = vpop.f32.mrf.mxu0
  %439 = vmatprep.mubr.bf16.mxu0 %v330
  %440 = vmatmul.mubr.bf16.gmra.mxu0 %v195
  %v441 = vpop.f32.mrf.mxu0
  %v442 = vadd.f32 0.0, %v441
  %v443 = vpop.f32.mrf.mxu0
  %v444 = vpop.f32.mrf.mxu0
  %v445 = vadd.f32 0.0, %v444
  %v446 = vpop.f32.mrf.mxu0
  %447 = vmatprep.mubr.bf16.mxu0 %v333
  %448 = vmatmul.mubr.bf16.gmra.mxu0 %v197
  %v449 = vpop.f32.mrf.mxu0
  %v450 = vadd.f32 0.0, %v449
  %v451 = vpop.f32.mrf.mxu0
  %v452 = vpop.f32.mrf.mxu0
  %v453 = vadd.f32 0.0, %v452
  %v454 = vpop.f32.mrf.mxu0
  %455 = vmatprep.mubr.bf16.mxu0 %v336
  %456 = vmatmul.mubr.bf16.gmra.mxu0 %v199
  %v457 = vpop.f32.mrf.mxu0
  %v458 = vadd.f32 0.0, %v457
  %v459 = vpop.f32.mrf.mxu0
  %v460 = vpop.f32.mrf.mxu0
  %v461 = vadd.f32 0.0, %v460
  %v462 = vpop.f32.mrf.mxu0
  %463 = vmatprep.mubr.bf16.mxu0 %v339
  %464 = vmatmul.mubr.bf16.gmra.mxu0 %v201
  %v465 = vpop.f32.mrf.mxu0
  %v466 = vadd.f32 0.0, %v465
  %v467 = vpop.f32.mrf.mxu0
  %v468 = vpop.f32.mrf.mxu0
  %v469 = vadd.f32 0.0, %v468
  %v470 = vpop.f32.mrf.mxu0
  %471 = vmatprep.mubr.bf16.mxu0 %v342
  %472 = vmatmul.mubr.bf16.gmra.mxu0 %v203
  %v473 = vpop.f32.mrf.mxu0
  %v474 = vadd.f32 0.0, %v473
  %v475 = vpop.f32.mrf.mxu0
  %v476 = vpop.f32.mrf.mxu0
  %v477 = vadd.f32 0.0, %v476
  %v478 = vpop.f32.mrf.mxu0
  %479 = vmatprep.mubr.bf16.mxu0 %v345
  %480 = vmatmul.mubr.bf16.gmra.mxu0 %v205
  %v481 = vpop.f32.mrf.mxu0
  %v482 = vadd.f32 0.0, %v481
  %v483 = vpop.f32.mrf.mxu0
  %v484 = vpop.f32.mrf.mxu0
  %v485 = vadd.f32 0.0, %v484
  %v486 = vpop.f32.mrf.mxu0
  %487 = vmatprep.mubr.bf16.mxu0 %v348
  %488 = vmatmul.mubr.bf16.gmra.mxu0 %v207
  %v489 = vpop.f32.mrf.mxu0
  %v490 = vadd.f32 0.0, %v489
  %v491 = vpop.f32.mrf.mxu0
  %v492 = vpop.f32.mrf.mxu0
  %v493 = vadd.f32 0.0, %v492
  %v494 = vpop.f32.mrf.mxu0
  %495 = vmatprep.mubr.bf16.mxu0 %v351
  %496 = vmatmul.mubr.bf16.gmra.mxu0 %v209
  %v497 = vpop.f32.mrf.mxu0
  %v498 = vadd.f32 0.0, %v497
  %v499 = vpop.f32.mrf.mxu0
  %v500 = vpop.f32.mrf.mxu0
  %v501 = vadd.f32 0.0, %v500
  %v502 = vpop.f32.mrf.mxu0
  %503 = vmatprep.mubr.bf16.mxu0 %v354
  %504 = vmatmul.mubr.bf16.gmra.mxu0 %v211
  %v505 = vpop.f32.mrf.mxu0
  %v506 = vadd.f32 0.0, %v505
  %v507 = vpop.f32.mrf.mxu0
  %v508 = vpop.f32.mrf.mxu0
  %v509 = vadd.f32 0.0, %v508
  %v510 = vpop.f32.mrf.mxu0
  %511 = vmatprep.mubr.bf16.mxu0 %v357
  %512 = vmatmul.mubr.bf16.gmra.mxu0 %v213
  %v513 = vpop.f32.mrf.mxu0
  %v514 = vadd.f32 0.0, %v513
  %v515 = vpop.f32.mrf.mxu0
  %v516 = vpop.f32.mrf.mxu0
  %v517 = vadd.f32 0.0, %v516
  %v518 = vpop.f32.mrf.mxu0
  %519 = vmatprep.mubr.bf16.mxu0 %v360
  %520 = vmatmul.mubr.bf16.gmra.mxu0 %v215
  %v521 = vpop.f32.mrf.mxu0
  %v522 = vadd.f32 0.0, %v521
  %v523 = vpop.f32.mrf.mxu0
  %v524 = vpop.f32.mrf.mxu0
  %v525 = vadd.f32 0.0, %v524
  %v526 = vpop.f32.mrf.mxu0
  %527 = vmatprep.mubr.bf16.mxu0 %v363
  %528 = vmatmul.mubr.bf16.gmra.mxu0 %v217
  %v529 = vpop.f32.mrf.mxu0
  %v530 = vadd.f32 0.0, %v529
  %v531 = vpop.f32.mrf.mxu0
  %v532 = vpop.f32.mrf.mxu0
  %v533 = vadd.f32 0.0, %v532
  %v534 = vpop.f32.mrf.mxu0
  %535 = vmatprep.mubr.bf16.mxu0 %v366
  %536 = vmatmul.mubr.bf16.gmra.mxu0 %v219
  %v537 = vpop.f32.mrf.mxu0
  %v538 = vadd.f32 0.0, %v537
  %v539 = vpop.f32.mrf.mxu0
  %v540 = vpop.f32.mrf.mxu0
  %v541 = vadd.f32 0.0, %v540
  %v542 = vpop.f32.mrf.mxu0
  %543 = vmatprep.mubr.bf16.mxu0 %v369
  %544 = vmatmul.mubr.bf16.gmra.mxu0 %v221
  %v545 = vpop.f32.mrf.mxu0
  %v546 = vadd.f32 0.0, %v545
  %v547 = vpop.f32.mrf.mxu0
  %v548 = vpop.f32.mrf.mxu0
  %v549 = vadd.f32 0.0, %v548
  %v550 = vpop.f32.mrf.mxu0
  %551 = vdwg.mxu0
  %v552 = vld [vmem:[%s2] sm:$0x1]
  %v554 = vlaneseq
  %v555 = vshrl.u32 %v554, 7
  %v556 = vsub.s32 0, %v555
  %v557 = vrot.slane %v552, %v556
  %v559 = vmul.f32 %v410, %v557
  %v560 = vmul.f32 %v413, %v557
  %v561 = vmul.f32 %v418, %v557
  %v562 = vmul.f32 %v421, %v557
  %v563 = vmul.f32 %v426, %v557
  %v564 = vmul.f32 %v429, %v557
  %v565 = vmul.f32 %v434, %v557
  %v566 = vmul.f32 %v437, %v557
  %v567 = vmul.f32 %v442, %v557
  %v568 = vmul.f32 %v445, %v557
  %v569 = vmul.f32 %v450, %v557
  %v570 = vmul.f32 %v453, %v557
  %v571 = vmul.f32 %v458, %v557
  %v572 = vmul.f32 %v461, %v557
  %v573 = vmul.f32 %v466, %v557
  %v574 = vmul.f32 %v469, %v557
  %v575 = vmul.f32 %v474, %v557
  %v576 = vmul.f32 %v477, %v557
  %v577 = vmul.f32 %v482, %v557
  %v578 = vmul.f32 %v485, %v557
  %v579 = vmul.f32 %v490, %v557
  %v580 = vmul.f32 %v493, %v557
  %v581 = vmul.f32 %v498, %v557
  %v582 = vmul.f32 %v501, %v557
  %v583 = vmul.f32 %v506, %v557
  %v584 = vmul.f32 %v509, %v557
  %v585 = vmul.f32 %v514, %v557
  %v586 = vmul.f32 %v517, %v557
  %v587 = vmul.f32 %v522, %v557
  %v588 = vmul.f32 %v525, %v557
  %v589 = vmul.f32 %v530, %v557
  %v590 = vmul.f32 %v533, %v557
  %v591 = vmul.f32 %v538, %v557
  %v592 = vmul.f32 %v541, %v557
  %v593 = vmul.f32 %v546, %v557
  %v594 = vmul.f32 %v549, %v557
  %v595 = vld [vmem:[%s3] sm:$0x1]
  %v597 = vlaneseq
  %v598 = vshrl.u32 %v597, 7
  %v599 = vsub.s32 0, %v598
  %v600 = vrot.slane %v595, %v599
  %v602 = vadd.f32 %v559, %v600
  %v603 = vadd.f32 %v560, %v600
  %v604 = vadd.f32 %v561, %v600
  %v605 = vadd.f32 %v562, %v600
  %v606 = vadd.f32 %v563, %v600
  %v607 = vadd.f32 %v564, %v600
  %v608 = vadd.f32 %v565, %v600
  %v609 = vadd.f32 %v566, %v600
  %v610 = vadd.f32 %v567, %v600
  %v611 = vadd.f32 %v568, %v600
  %v612 = vadd.f32 %v569, %v600
  %v613 = vadd.f32 %v570, %v600
  %v614 = vadd.f32 %v571, %v600
  %v615 = vadd.f32 %v572, %v600
  %v616 = vadd.f32 %v573, %v600
  %v617 = vadd.f32 %v574, %v600
  %v618 = vadd.f32 %v575, %v600
  %v619 = vadd.f32 %v576, %v600
  %v620 = vadd.f32 %v577, %v600
  %v621 = vadd.f32 %v578, %v600
  %v622 = vadd.f32 %v579, %v600
  %v623 = vadd.f32 %v580, %v600
  %v624 = vadd.f32 %v581, %v600
  %v625 = vadd.f32 %v582, %v600
  %v626 = vadd.f32 %v583, %v600
  %v627 = vadd.f32 %v584, %v600
  %v628 = vadd.f32 %v585, %v600
  %v629 = vadd.f32 %v586, %v600
  %v630 = vadd.f32 %v587, %v600
  %v631 = vadd.f32 %v588, %v600
  %v632 = vadd.f32 %v589, %v600
  %v633 = vadd.f32 %v590, %v600
  %v634 = vadd.f32 %v591, %v600
  %v635 = vadd.f32 %v592, %v600
  %v636 = vadd.f32 %v593, %v600
  %v637 = vadd.f32 %v594, %v600
  %v638 = vxor.u32 %v602, 2147483648
  %v639 = vxor.u32 %v603, 2147483648
  %v640 = vxor.u32 %v604, 2147483648
  %v641 = vxor.u32 %v605, 2147483648
  %v642 = vxor.u32 %v606, 2147483648
  %v643 = vxor.u32 %v607, 2147483648
  %v644 = vxor.u32 %v608, 2147483648
  %v645 = vxor.u32 %v609, 2147483648
  %v646 = vxor.u32 %v610, 2147483648
  %v647 = vxor.u32 %v611, 2147483648
  %v648 = vxor.u32 %v612, 2147483648
  %v649 = vxor.u32 %v613, 2147483648
  %v650 = vxor.u32 %v614, 2147483648
  %v651 = vxor.u32 %v615, 2147483648
  %v652 = vxor.u32 %v616, 2147483648
  %v653 = vxor.u32 %v617, 2147483648
  %v654 = vxor.u32 %v618, 2147483648
  %v655 = vxor.u32 %v619, 2147483648
  %v656 = vxor.u32 %v620, 2147483648
  %v657 = vxor.u32 %v621, 2147483648
  %v658 = vxor.u32 %v622, 2147483648
  %v659 = vxor.u32 %v623, 2147483648
  %v660 = vxor.u32 %v624, 2147483648
  %v661 = vxor.u32 %v625, 2147483648
  %v662 = vxor.u32 %v626, 2147483648
  %v663 = vxor.u32 %v627, 2147483648
  %v664 = vxor.u32 %v628, 2147483648
  %v665 = vxor.u32 %v629, 2147483648
  %v666 = vxor.u32 %v630, 2147483648
  %v667 = vxor.u32 %v631, 2147483648
  %v668 = vxor.u32 %v632, 2147483648
  %v669 = vxor.u32 %v633, 2147483648
  %v670 = vxor.u32 %v634, 2147483648
  %v671 = vxor.u32 %v635, 2147483648
  %v672 = vxor.u32 %v636, 2147483648
  %v673 = vxor.u32 %v637, 2147483648
  %v674 = vmul.f32 %v638, 1.442695
  %v675 = vpow.pop %v674
  %v676 = vmul.f32 %v639, 1.442695
  %v677 = vpow.pop %v676
  %v678 = vmul.f32 %v640, 1.442695
  %v679 = vpow.pop %v678
  %v680 = vmul.f32 %v641, 1.442695
  %v681 = vpow.pop %v680
  %v682 = vmul.f32 %v642, 1.442695
  %v683 = vpow.pop %v682
  %v684 = vmul.f32 %v643, 1.442695
  %v685 = vpow.pop %v684
  %v686 = vmul.f32 %v644, 1.442695
  %v687 = vpow.pop %v686
  %v688 = vmul.f32 %v645, 1.442695
  %v689 = vpow.pop %v688
  %v690 = vmul.f32 %v646, 1.442695
  %v691 = vpow.pop %v690
  %v692 = vmul.f32 %v647, 1.442695
  %v693 = vpow.pop %v692
  %v694 = vmul.f32 %v648, 1.442695
  %v695 = vpow.pop %v694
  %v696 = vmul.f32 %v649, 1.442695
  %v697 = vpow.pop %v696
  %v698 = vmul.f32 %v650, 1.442695
  %v699 = vpow.pop %v698
  %v700 = vmul.f32 %v651, 1.442695
  %v701 = vpow.pop %v700
  %v702 = vmul.f32 %v652, 1.442695
  %v703 = vpow.pop %v702
  %v704 = vmul.f32 %v653, 1.442695
  %v705 = vpow.pop %v704
  %v706 = vmul.f32 %v654, 1.442695
  %v707 = vpow.pop %v706
  %v708 = vmul.f32 %v655, 1.442695
  %v709 = vpow.pop %v708
  %v710 = vmul.f32 %v656, 1.442695
  %v711 = vpow.pop %v710
  %v712 = vmul.f32 %v657, 1.442695
  %v713 = vpow.pop %v712
  %v714 = vmul.f32 %v658, 1.442695
  %v715 = vpow.pop %v714
  %v716 = vmul.f32 %v659, 1.442695
  %v717 = vpow.pop %v716
  %v718 = vmul.f32 %v660, 1.442695
  %v719 = vpow.pop %v718
  %v720 = vmul.f32 %v661, 1.442695
  %v721 = vpow.pop %v720
  %v722 = vmul.f32 %v662, 1.442695
  %v723 = vpow.pop %v722
  %v724 = vmul.f32 %v663, 1.442695
  %v725 = vpow.pop %v724
  %v726 = vmul.f32 %v664, 1.442695
  %v727 = vpow.pop %v726
  %v728 = vmul.f32 %v665, 1.442695
  %v729 = vpow.pop %v728
  %v730 = vmul.f32 %v666, 1.442695
  %v731 = vpow.pop %v730
  %v732 = vmul.f32 %v667, 1.442695
  %v733 = vpow.pop %v732
  %v734 = vmul.f32 %v668, 1.442695
  %v735 = vpow.pop %v734
  %v736 = vmul.f32 %v669, 1.442695
  %v737 = vpow.pop %v736
  %v738 = vmul.f32 %v670, 1.442695
  %v739 = vpow.pop %v738
  %v740 = vmul.f32 %v671, 1.442695
  %v741 = vpow.pop %v740
  %v742 = vmul.f32 %v672, 1.442695
  %v743 = vpow.pop %v742
  %v744 = vmul.f32 %v673, 1.442695
  %v745 = vpow.pop %v744
  %v746 = vadd.f32 %v675, 1.0
  %v747 = vadd.f32 %v677, 1.0
  %v748 = vadd.f32 %v679, 1.0
  %v749 = vadd.f32 %v681, 1.0
  %v750 = vadd.f32 %v683, 1.0
  %v751 = vadd.f32 %v685, 1.0
  %v752 = vadd.f32 %v687, 1.0
  %v753 = vadd.f32 %v689, 1.0
  %v754 = vadd.f32 %v691, 1.0
  %v755 = vadd.f32 %v693, 1.0
  %v756 = vadd.f32 %v695, 1.0
  %v757 = vadd.f32 %v697, 1.0
  %v758 = vadd.f32 %v699, 1.0
  %v759 = vadd.f32 %v701, 1.0
  %v760 = vadd.f32 %v703, 1.0
  %v761 = vadd.f32 %v705, 1.0
  %v762 = vadd.f32 %v707, 1.0
  %v763 = vadd.f32 %v709, 1.0
  %v764 = vadd.f32 %v711, 1.0
  %v765 = vadd.f32 %v713, 1.0
  %v766 = vadd.f32 %v715, 1.0
  %v767 = vadd.f32 %v717, 1.0
  %v768 = vadd.f32 %v719, 1.0
  %v769 = vadd.f32 %v721, 1.0
  %v770 = vadd.f32 %v723, 1.0
  %v771 = vadd.f32 %v725, 1.0
  %v772 = vadd.f32 %v727, 1.0
  %v773 = vadd.f32 %v729, 1.0
  %v774 = vadd.f32 %v731, 1.0
  %v775 = vadd.f32 %v733, 1.0
  %v776 = vadd.f32 %v735, 1.0
  %v777 = vadd.f32 %v737, 1.0
  %v778 = vadd.f32 %v739, 1.0
  %v779 = vadd.f32 %v741, 1.0
  %v780 = vadd.f32 %v743, 1.0
  %v781 = vadd.f32 %v745, 1.0
  %v782 = vrcp.pop %v746
  %v783 = vmul.f32 1.0, %v782
  %v784 = vrcp.pop %v747
  %v785 = vmul.f32 1.0, %v784
  %v786 = vrcp.pop %v748
  %v787 = vmul.f32 1.0, %v786
  %v788 = vrcp.pop %v749
  %v789 = vmul.f32 1.0, %v788
  %v790 = vrcp.pop %v750
  %v791 = vmul.f32 1.0, %v790
  %v792 = vrcp.pop %v751
  %v793 = vmul.f32 1.0, %v792
  %v794 = vrcp.pop %v752
  %v795 = vmul.f32 1.0, %v794
  %v796 = vrcp.pop %v753
  %v797 = vmul.f32 1.0, %v796
  %v798 = vrcp.pop %v754
  %v799 = vmul.f32 1.0, %v798
  %v800 = vrcp.pop %v755
  %v801 = vmul.f32 1.0, %v800
  %v802 = vrcp.pop %v756
  %v803 = vmul.f32 1.0, %v802
  %v804 = vrcp.pop %v757
  %v805 = vmul.f32 1.0, %v804
  %v806 = vrcp.pop %v758
  %v807 = vmul.f32 1.0, %v806
  %v808 = vrcp.pop %v759
  %v809 = vmul.f32 1.0, %v808
  %v810 = vrcp.pop %v760
  %v811 = vmul.f32 1.0, %v810
  %v812 = vrcp.pop %v761
  %v813 = vmul.f32 1.0, %v812
  %v814 = vrcp.pop %v762
  %v815 = vmul.f32 1.0, %v814
  %v816 = vrcp.pop %v763
  %v817 = vmul.f32 1.0, %v816
  %v818 = vrcp.pop %v764
  %v819 = vmul.f32 1.0, %v818
  %v820 = vrcp.pop %v765
  %v821 = vmul.f32 1.0, %v820
  %v822 = vrcp.pop %v766
  %v823 = vmul.f32 1.0, %v822
  %v824 = vrcp.pop %v767
  %v825 = vmul.f32 1.0, %v824
  %v826 = vrcp.pop %v768
  %v827 = vmul.f32 1.0, %v826
  %v828 = vrcp.pop %v769
  %v829 = vmul.f32 1.0, %v828
  %v830 = vrcp.pop %v770
  %v831 = vmul.f32 1.0, %v830
  %v832 = vrcp.pop %v771
  %v833 = vmul.f32 1.0, %v832
  %v834 = vrcp.pop %v772
  %v835 = vmul.f32 1.0, %v834
  %v836 = vrcp.pop %v773
  %v837 = vmul.f32 1.0, %v836
  %v838 = vrcp.pop %v774
  %v839 = vmul.f32 1.0, %v838
  %v840 = vrcp.pop %v775
  %v841 = vmul.f32 1.0, %v840
  %v842 = vrcp.pop %v776
  %v843 = vmul.f32 1.0, %v842
  %v844 = vrcp.pop %v777
  %v845 = vmul.f32 1.0, %v844
  %v846 = vrcp.pop %v778
  %v847 = vmul.f32 1.0, %v846
  %v848 = vrcp.pop %v779
  %v849 = vmul.f32 1.0, %v848
  %v850 = vrcp.pop %v780
  %v851 = vmul.f32 1.0, %v850
  %v852 = vrcp.pop %v781
  %v853 = vmul.f32 1.0, %v852
  %v854 = vmul.f32 %v602, %v783
  %v855 = vmul.f32 %v603, %v785
  %v856 = vmul.f32 %v604, %v787
  %v857 = vmul.f32 %v605, %v789
  %v858 = vmul.f32 %v606, %v791
  %v859 = vmul.f32 %v607, %v793
  %v860 = vmul.f32 %v608, %v795
  %v861 = vmul.f32 %v609, %v797
  %v862 = vmul.f32 %v610, %v799
  %v863 = vmul.f32 %v611, %v801
  %v864 = vmul.f32 %v612, %v803
  %v865 = vmul.f32 %v613, %v805
  %v866 = vmul.f32 %v614, %v807
  %v867 = vmul.f32 %v615, %v809
  %v868 = vmul.f32 %v616, %v811
  %v869 = vmul.f32 %v617, %v813
  %v870 = vmul.f32 %v618, %v815
  %v871 = vmul.f32 %v619, %v817
  %v872 = vmul.f32 %v620, %v819
  %v873 = vmul.f32 %v621, %v821
  %v874 = vmul.f32 %v622, %v823
  %v875 = vmul.f32 %v623, %v825
  %v876 = vmul.f32 %v624, %v827
  %v877 = vmul.f32 %v625, %v829
  %v878 = vmul.f32 %v626, %v831
  %v879 = vmul.f32 %v627, %v833
  %v880 = vmul.f32 %v628, %v835
  %v881 = vmul.f32 %v629, %v837
  %v882 = vmul.f32 %v630, %v839
  %v883 = vmul.f32 %v631, %v841
  %v884 = vmul.f32 %v632, %v843
  %v885 = vmul.f32 %v633, %v845
  %v886 = vmul.f32 %v634, %v847
  %v887 = vmul.f32 %v635, %v849
  %v888 = vmul.f32 %v636, %v851
  %v889 = vmul.f32 %v637, %v853
  %vm890 = vcmask 130048
  %891 = vst.msk [vmem:[%s4] sm:$0xff] %vm890, %v854
  %892 = vst.msk [vmem:[%s4 + $0x8] sm:$0xff] %vm890, %v855
  %893 = vst.msk [vmem:[%s4 + $0x10] sm:$0xff] %vm890, %v856
  %894 = vst.msk [vmem:[%s4 + $0x18] sm:$0xff] %vm890, %v857
  %895 = vst.msk [vmem:[%s4 + $0x20] sm:$0xff] %vm890, %v858
  %896 = vst.msk [vmem:[%s4 + $0x28] sm:$0xff] %vm890, %v859
  %897 = vst.msk [vmem:[%s4 + $0x30] sm:$0xff] %vm890, %v860
  %898 = vst.msk [vmem:[%s4 + $0x38] sm:$0xff] %vm890, %v861
  %899 = vst.msk [vmem:[%s4 + $0x40] sm:$0xff] %vm890, %v862
  %900 = vst.msk [vmem:[%s4 + $0x48] sm:$0xff] %vm890, %v863
  %901 = vst.msk [vmem:[%s4 + $0x50] sm:$0xff] %vm890, %v864
  %902 = vst.msk [vmem:[%s4 + $0x58] sm:$0xff] %vm890, %v865
  %903 = vst.msk [vmem:[%s4 + $0x60] sm:$0xff] %vm890, %v866
  %904 = vst.msk [vmem:[%s4 + $0x68] sm:$0xff] %vm890, %v867
  %905 = vst.msk [vmem:[%s4 + $0x70] sm:$0xff] %vm890, %v868
  %906 = vst.msk [vmem:[%s4 + $0x78] sm:$0xff] %vm890, %v869
  %907 = vst.msk [vmem:[%s4 + $0x80] sm:$0xff] %vm890, %v870
  %908 = vst.msk [vmem:[%s4 + $0x88] sm:$0xff] %vm890, %v871
  %909 = vst.msk [vmem:[%s4 + $0x90] sm:$0xff] %vm890, %v872
  %910 = vst.msk [vmem:[%s4 + $0x98] sm:$0xff] %vm890, %v873
  %911 = vst.msk [vmem:[%s4 + $0xa0] sm:$0xff] %vm890, %v874
  %912 = vst.msk [vmem:[%s4 + $0xa8] sm:$0xff] %vm890, %v875
  %913 = vst.msk [vmem:[%s4 + $0xb0] sm:$0xff] %vm890, %v876
  %914 = vst.msk [vmem:[%s4 + $0xb8] sm:$0xff] %vm890, %v877
  %915 = vst.msk [vmem:[%s4 + $0xc0] sm:$0xff] %vm890, %v878
  %916 = vst.msk [vmem:[%s4 + $0xc8] sm:$0xff] %vm890, %v879
  %917 = vst.msk [vmem:[%s4 + $0xd0] sm:$0xff] %vm890, %v880
  %918 = vst.msk [vmem:[%s4 + $0xd8] sm:$0xff] %vm890, %v881
  %919 = vst.msk [vmem:[%s4 + $0xe0] sm:$0xff] %vm890, %v882
  %920 = vst.msk [vmem:[%s4 + $0xe8] sm:$0xff] %vm890, %v883
  %921 = vst.msk [vmem:[%s4 + $0xf0] sm:$0xff] %vm890, %v884
  %922 = vst.msk [vmem:[%s4 + $0xf8] sm:$0xff] %vm890, %v885
  %923 = vst.msk [vmem:[%s4 + $0x100] sm:$0xff] %vm890, %v886
  %924 = vst.msk [vmem:[%s4 + $0x108] sm:$0xff] %vm890, %v887
  %925 = vst.msk [vmem:[%s4 + $0x110] sm:$0xff] %vm890, %v888
  %926 = vst.msk [vmem:[%s4 + $0x118] sm:$0xff] %vm890, %v889
  // Predicated region
  $region18: #{multi_classification_forward.17} parent=0 // pred_check
    _
  $region19: #{multi_classification_forward.17} parent=0 // pred_check_branch
    %928 = sbr.rel (0) target = $region21
  $region20: #{multi_classification_forward.17} parent=0 // pred_region
    _
  $region21: #{multi_classification_forward.17} parent=0 // pred_fallthru
    _
  // Predicated region
  $region22: #{multi_classification_forward.17} parent=0 // pred_check
    _
  $region23: #{multi_classification_forward.17} parent=0 // pred_check_branch
    %930 = sbr.rel (0) target = $region25
  $region24: #{multi_classification_forward.17} parent=0 // pred_region
    _
  $region25: #{multi_classification_forward.17} parent=0 // pred_fallthru
    _

// kernel: multi_classification_forward.18
$region0: #{multi_classification_forward.18}
  #allocation0 [shape = 'u32[]', space=smem, size = 0x4, offset = 0x4, fixed_abs, tag = 'smem constant byte address 0x4 - core index']
  #allocation1 [shape = 'u32[144,128]{1,0:T(1,128)}', space=vmem, size = 0x12000, scoped, tag = 'internal scratch']
  %s0 = inlined_call_operand.vmem [shape: bf16[50,400], index: 0, kind: input, shape index: {}]
  %s1 = inlined_call_operand.vmem [shape: bf16[400,32], index: 1, kind: input, shape index: {}]
  %s2 = inlined_call_operand.vmem [shape: f32[1,32], index: 2, kind: input, shape index: {}]
  %s3 = inlined_call_operand.vmem [shape: f32[1,32], index: 3, kind: input, shape index: {}]
  %s4 = inlined_call_operand.vmem [shape: f32[50,32], index: 4, kind: output, shape index: {}]
  %s5 = sld [smem:[#allocation0]]
  $region26: #{multi_classification_forward.18} parent=0
    _
  %s7 = ssub.s32 1, %s5
  %s8 = scalar_select 0, %s7, %s5
  // Predicated region
  $region2: #{multi_classification_forward.18} parent=0 // pred_check
    _
  $region3: #{multi_classification_forward.18} parent=0 // pred_check_branch
    %10 = sbr.rel (0) target = $region5
  $region4: #{multi_classification_forward.18} parent=0 // pred_region
    _
  $region5: #{multi_classification_forward.18} parent=0 // pred_fallthru
    _
  // Predicated region
  $region6: #{multi_classification_forward.18} parent=0 // pred_check
    _
  $region7: #{multi_classification_forward.18} parent=0 // pred_check_branch
    %12 = sbr.rel (0) target = $region9
  $region8: #{multi_classification_forward.18} parent=0 // pred_region
    _
  $region9: #{multi_classification_forward.18} parent=0 // pred_fallthru
    _
  // Predicated region
  $region10: #{multi_classification_forward.18} parent=0 // pred_check
    _
  $region11: #{multi_classification_forward.18} parent=0 // pred_check_branch
    %14 = sbr.rel (0) target = $region13
  $region12: #{multi_classification_forward.18} parent=0 // pred_region
    _
  $region13: #{multi_classification_forward.18} parent=0 // pred_fallthru
    _
  // Predicated region
  $region14: #{multi_classification_forward.18} parent=0 // pred_check
    _
  $region15: #{multi_classification_forward.18} parent=0 // pred_check_branch
    %16 = sbr.rel (0) target = $region17
  $region16: #{multi_classification_forward.18} parent=0 // pred_region
    _
  $region17: #{multi_classification_forward.18} parent=0 // pred_fallthru
    _
  %v18 = vld [vmem:[%s0] sm:$0xff]
  %v19 = vld [vmem:[%s0 + $0x8] sm:$0xff]
  %v20 = vld [vmem:[%s0 + $0x10] sm:$0xff]
  %v21 = vld [vmem:[%s0 + $0x18] sm:$0xff]
  %v22 = vld [vmem:[%s0 + $0x20] sm:$0xff]
  %v23 = vld [vmem:[%s0 + $0x28] sm:$0xff]
  %v24 = vld [vmem:[%s0 + $0x30] sm:$0xff]
  %v25 = vld [vmem:[%s0 + $0x38] sm:$0xff]
  %v26 = vld [vmem:[%s0 + $0x40] sm:$0xff]
  %v27 = vld [vmem:[%s0 + $0x48] sm:$0xff]
  %v28 = vld [vmem:[%s0 + $0x50] sm:$0xff]
  %v29 = vld [vmem:[%s0 + $0x58] sm:$0xff]
  %v30 = vld [vmem:[%s0 + $0x60] sm:$0x11]
  %v31 = vld [vmem:[%s0 + $0x68] sm:$0x11]
  %v32 = vld [vmem:[%s1] sm:$0xf]
  %v33 = vld [vmem:[%s1 + $0x4] sm:$0xf]
  %v34 = vld [vmem:[%s1 + $0x8] sm:$0xf]
  %v35 = vld [vmem:[%s1 + $0xc] sm:$0xf]
  %v36 = vld [vmem:[%s1 + $0x10] sm:$0xf]
  %v37 = vld [vmem:[%s1 + $0x14] sm:$0xf]
  %v38 = vld [vmem:[%s1 + $0x18] sm:$0xf]
  %v39 = vld [vmem:[%s1 + $0x1c] sm:$0xf]
  %v40 = vld [vmem:[%s1 + $0x20] sm:$0xf]
  %v41 = vld [vmem:[%s1 + $0x24] sm:$0xf]
  %v42 = vld [vmem:[%s1 + $0x28] sm:$0xf]
  %v43 = vld [vmem:[%s1 + $0x2c] sm:$0xf]
  %v44 = vld [vmem:[%s1 + $0x30] sm:$0xf]
  %v45 = vld [vmem:[%s1 + $0x34] sm:$0xf]
  %v46 = vld [vmem:[%s1 + $0x38] sm:$0xf]
  %v47 = vld [vmem:[%s1 + $0x3c] sm:$0xf]
  %v48 = vld [vmem:[%s1 + $0x40] sm:$0xf]
  %v49 = vld [vmem:[%s1 + $0x44] sm:$0xf]
  %v50 = vld [vmem:[%s1 + $0x48] sm:$0xf]
  %v51 = vld [vmem:[%s1 + $0x4c] sm:$0xf]
  %v52 = vld [vmem:[%s1 + $0x50] sm:$0xf]
  %v53 = vld [vmem:[%s1 + $0x54] sm:$0xf]
  %v54 = vld [vmem:[%s1 + $0x58] sm:$0xf]
  %v55 = vld [vmem:[%s1 + $0x5c] sm:$0xf]
  %v56 = vld [vmem:[%s1 + $0x60] sm:$0xf]
  %v57 = vld [vmem:[%s1 + $0x64] sm:$0xf]
  %v58 = vld [vmem:[%s1 + $0x68] sm:$0xf]
  %v59 = vld [vmem:[%s1 + $0x6c] sm:$0xf]
  %v60 = vld [vmem:[%s1 + $0x70] sm:$0xf]
  %v61 = vld [vmem:[%s1 + $0x74] sm:$0xf]
  %v62 = vld [vmem:[%s1 + $0x78] sm:$0xf]
  %v63 = vld [vmem:[%s1 + $0x7c] sm:$0xf]
  %v64 = vld [vmem:[%s1 + $0x80] sm:$0xf]
  %v65 = vld [vmem:[%s1 + $0x84] sm:$0xf]
  %v66 = vld [vmem:[%s1 + $0x88] sm:$0xf]
  %v67 = vld [vmem:[%s1 + $0x8c] sm:$0xf]
  %v68 = vld [vmem:[%s1 + $0x90] sm:$0xf]
  %v69 = vld [vmem:[%s1 + $0x94] sm:$0xf]
  %v70 = vld [vmem:[%s1 + $0x98] sm:$0xf]
  %v71 = vld [vmem:[%s1 + $0x9c] sm:$0xf]
  %v72 = vld [vmem:[%s1 + $0xa0] sm:$0xf]
  %v73 = vld [vmem:[%s1 + $0xa4] sm:$0xf]
  %v74 = vld [vmem:[%s1 + $0xa8] sm:$0xf]
  %v75 = vld [vmem:[%s1 + $0xac] sm:$0xf]
  %v76 = vld [vmem:[%s1 + $0xb0] sm:$0xf]
  %v77 = vld [vmem:[%s1 + $0xb4] sm:$0xf]
  %v78 = vld [vmem:[%s1 + $0xb8] sm:$0xf]
  %v79 = vld [vmem:[%s1 + $0xbc] sm:$0xf]
  %v80 = vld [vmem:[%s1 + $0xc0] sm:$0xf]
  %v81 = vld [vmem:[%s1 + $0xc4] sm:$0xf]
  %v96 = vunpack.c.l.b16 %v18
  %v97 = vunpack.c.h.b16 %v18
  %v98 = vunpack.c.l.b16 %v19
  %v99 = vunpack.c.h.b16 %v19
  %v100 = vunpack.c.l.b16 %v20
  %v101 = vunpack.c.h.b16 %v20
  %v102 = vunpack.c.l.b16 %v21
  %v103 = vunpack.c.h.b16 %v21
  %v104 = vunpack.c.l.b16 %v22
  %v105 = vunpack.c.h.b16 %v22
  %v106 = vunpack.c.l.b16 %v23
  %v107 = vunpack.c.h.b16 %v23
  %v108 = vunpack.c.l.b16 %v24
  %v109 = vunpack.c.h.b16 %v24
  %v110 = vunpack.c.l.b16 %v25
  %v111 = vunpack.c.h.b16 %v25
  %v112 = vunpack.c.l.b16 %v26
  %v113 = vunpack.c.h.b16 %v26
  %v114 = vunpack.c.l.b16 %v27
  %v115 = vunpack.c.h.b16 %v27
  %v116 = vunpack.c.l.b16 %v28
  %v117 = vunpack.c.h.b16 %v28
  %v118 = vunpack.c.l.b16 %v29
  %v119 = vunpack.c.h.b16 %v29
  %v120 = vunpack.c.l.b16 %v30
  %v121 = vunpack.c.h.b16 %v30
  %v122 = vunpack.c.l.b16 %v31
  %v123 = vunpack.c.h.b16 %v31
  %v124 = vpack.c.b16 %v100, %v96
  %v125 = vpack.c.b16 %v101, %v97
  %v126 = vpack.c.b16 %v102, %v98
  %v127 = vpack.c.b16 %v103, %v99
  %v128 = vpack.c.b16 %v108, %v104
  %v129 = vpack.c.b16 %v109, %v105
  %v130 = vpack.c.b16 %v110, %v106
  %v131 = vpack.c.b16 %v111, %v107
  %v132 = vpack.c.b16 %v116, %v112
  %v133 = vpack.c.b16 %v117, %v113
  %v134 = vpack.c.b16 %v118, %v114
  %v135 = vpack.c.b16 %v119, %v115
  %v136 = vpack.c.b16 %v120, %v120
  %v137 = vpack.c.b16 %v121, %v121
  %v138 = vpack.c.b16 %v122, %v122
  %v139 = vpack.c.b16 %v123, %v123
  %v202 = vunpack.c.l.b16 %v32
  %v203 = vunpack.c.l.b16 %v33
  %v204 = vunpack.c.l.b16 %v34
  %v205 = vunpack.c.l.b16 %v35
  %v206 = vunpack.c.l.b16 %v36
  %v207 = vunpack.c.l.b16 %v37
  %v208 = vunpack.c.l.b16 %v38
  %v209 = vunpack.c.l.b16 %v39
  %v210 = vunpack.c.l.b16 %v40
  %v211 = vunpack.c.l.b16 %v41
  %v212 = vunpack.c.l.b16 %v42
  %v213 = vunpack.c.l.b16 %v43
  %v214 = vunpack.c.l.b16 %v44
  %v215 = vunpack.c.l.b16 %v45
  %v216 = vunpack.c.l.b16 %v46
  %v217 = vunpack.c.l.b16 %v47
  %v218 = vunpack.c.l.b16 %v48
  %v219 = vunpack.c.l.b16 %v49
  %v220 = vunpack.c.l.b16 %v50
  %v221 = vunpack.c.l.b16 %v51
  %v222 = vunpack.c.l.b16 %v52
  %v223 = vunpack.c.l.b16 %v53
  %v224 = vunpack.c.l.b16 %v54
  %v225 = vunpack.c.l.b16 %v55
  %v226 = vunpack.c.l.b16 %v56
  %v227 = vunpack.c.l.b16 %v57
  %v228 = vunpack.c.l.b16 %v58
  %v229 = vunpack.c.l.b16 %v59
  %v230 = vunpack.c.l.b16 %v60
  %v231 = vunpack.c.l.b16 %v61
  %v232 = vunpack.c.l.b16 %v62
  %v233 = vunpack.c.l.b16 %v63
  %v234 = vunpack.c.l.b16 %v64
  %v235 = vunpack.c.l.b16 %v65
  %v236 = vunpack.c.l.b16 %v66
  %v237 = vunpack.c.l.b16 %v67
  %v238 = vunpack.c.l.b16 %v68
  %v239 = vunpack.c.l.b16 %v69
  %v240 = vunpack.c.l.b16 %v70
  %v241 = vunpack.c.l.b16 %v71
  %v242 = vunpack.c.l.b16 %v72
  %v243 = vunpack.c.l.b16 %v73
  %v244 = vunpack.c.l.b16 %v74
  %v245 = vunpack.c.l.b16 %v75
  %v246 = vunpack.c.l.b16 %v76
  %v247 = vunpack.c.l.b16 %v77
  %v248 = vunpack.c.l.b16 %v78
  %v249 = vunpack.c.l.b16 %v79
  %v250 = vunpack.c.l.b16 %v80
  %v251 = vunpack.c.l.b16 %v81
  %v252 = vpack.c.b16 %v203, %v202
  %v253 = vpack.c.b16 %v205, %v204
  %v254 = vpack.c.b16 %v207, %v206
  %v255 = vpack.c.b16 %v209, %v208
  %v256 = vpack.c.b16 %v211, %v210
  %v257 = vpack.c.b16 %v213, %v212
  %v258 = vpack.c.b16 %v215, %v214
  %v259 = vpack.c.b16 %v217, %v216
  %v260 = vpack.c.b16 %v219, %v218
  %v261 = vpack.c.b16 %v221, %v220
  %v262 = vpack.c.b16 %v223, %v222
  %v263 = vpack.c.b16 %v225, %v224
  %v264 = vpack.c.b16 %v227, %v226
  %v265 = vpack.c.b16 %v229, %v228
  %v266 = vpack.c.b16 %v231, %v230
  %v267 = vpack.c.b16 %v233, %v232
  %v268 = vpack.c.b16 %v235, %v234
  %v269 = vpack.c.b16 %v237, %v236
  %v270 = vpack.c.b16 %v239, %v238
  %v271 = vpack.c.b16 %v241, %v240
  %v272 = vpack.c.b16 %v243, %v242
  %v273 = vpack.c.b16 %v245, %v244
  %v274 = vpack.c.b16 %v247, %v246
  %v275 = vpack.c.b16 %v249, %v248
  %v276 = vpack.c.b16 %v251, %v250
  %vm302 = vcmask 130048
  %v304 = vsel %vm302, %v127, 0
  %v307 = vsel %vm302, %v131, 0
  %v310 = vsel %vm302, %v135, 0
  %v313 = vsel %vm302, %v139, 0
  %315 = vmatprep.subr.bf16.mxu0 0
  %316 = vmatpush1.bf16.msra.mxu0 %v259
  %317 = vmatprep.subr.bf16.mxu0 0
  %318 = vmatpush1.bf16.msra.mxu0 %v258
  %319 = vmatprep.subr.bf16.mxu0 0
  %320 = vmatpush1.bf16.msra.mxu0 %v257
  %321 = vmatprep.subr.bf16.mxu0 0
  %322 = vmatpush1.bf16.msra.mxu0 %v256
  %323 = vmatprep.subr.bf16.mxu0 0
  %324 = vmatpush1.bf16.msra.mxu0 %v255
  %325 = vmatprep.subr.bf16.mxu0 0
  %326 = vmatpush1.bf16.msra.mxu0 %v254
  %327 = vmatprep.subr.bf16.mxu0 0
  %328 = vmatpush1.bf16.msra.mxu0 %v253
  %329 = vmatprep.subr.bf16.mxu0 0
  %330 = vmatpush1.bf16.msra.mxu0 %v252
  %331 = vmatprep.subr.bf16.mxu0 0
  %332 = vmatpush2.bf16.msra.mxu0 %v267
  %333 = vmatprep.subr.bf16.mxu0 0
  %334 = vmatpush2.bf16.msra.mxu0 %v266
  %335 = vmatprep.subr.bf16.mxu0 0
  %336 = vmatpush2.bf16.msra.mxu0 %v265
  %337 = vmatprep.subr.bf16.mxu0 0
  %338 = vmatpush2.bf16.msra.mxu0 %v264
  %339 = vmatprep.subr.bf16.mxu0 0
  %340 = vmatpush2.bf16.msra.mxu0 %v263
  %341 = vmatprep.subr.bf16.mxu0 0
  %342 = vmatpush2.bf16.msra.mxu0 %v262
  %343 = vmatprep.subr.bf16.mxu0 0
  %344 = vmatpush2.bf16.msra.mxu0 %v261
  %345 = vmatprep.subr.bf16.mxu0 0
  %346 = vmatpush2.bf16.msra.mxu0 %v260
  %347 = vmatprep.mubr.bf16.mxu0 %v125
  %348 = vmatmul.mubr.bf16.gmra.mxu0 %v124
  %v349 = vpop.f32.mrf.mxu0
  %v350 = vadd.f32 0.0, %v349
  %v351 = vpop.f32.mrf.mxu0
  %v352 = vpop.f32.mrf.mxu0
  %v353 = vadd.f32 0.0, %v352
  %v354 = vpop.f32.mrf.mxu0
  %355 = vmatprep.mubr.bf16.mxu0 %v129
  %356 = vmatmul.mubr.bf16.gmra.mxu0 %v128
  %v357 = vpop.f32.mrf.mxu0
  %v358 = vadd.f32 0.0, %v357
  %v359 = vpop.f32.mrf.mxu0
  %v360 = vpop.f32.mrf.mxu0
  %v361 = vadd.f32 0.0, %v360
  %v362 = vpop.f32.mrf.mxu0
  %363 = vmatprep.mubr.bf16.mxu0 %v133
  %364 = vmatmul.mubr.bf16.gmra.mxu0 %v132
  %v365 = vpop.f32.mrf.mxu0
  %v366 = vadd.f32 0.0, %v365
  %v367 = vpop.f32.mrf.mxu0
  %v368 = vpop.f32.mrf.mxu0
  %v369 = vadd.f32 0.0, %v368
  %v370 = vpop.f32.mrf.mxu0
  %371 = vmatprep.mubr.bf16.mxu0 %v137
  %372 = vmatmul.mubr.bf16.gmra.mxu0 %v136
  %v373 = vpop.f32.mrf.mxu0
  %v374 = vadd.f32 0.0, %v373
  %v375 = vpop.f32.mrf.mxu0
  %v376 = vpop.f32.mrf.mxu0
  %v377 = vpop.f32.mrf.mxu0
  %378 = vdwg.mxu0
  %379 = vmatprep.subr.bf16.mxu0 0
  %380 = vmatpush1.bf16.msra.mxu0 %v275
  %381 = vmatprep.subr.bf16.mxu0 0
  %382 = vmatpush1.bf16.msra.mxu0 %v274
  %383 = vmatprep.subr.bf16.mxu0 0
  %384 = vmatpush1.bf16.msra.mxu0 %v273
  %385 = vmatprep.subr.bf16.mxu0 0
  %386 = vmatpush1.bf16.msra.mxu0 %v272
  %387 = vmatprep.subr.bf16.mxu0 0
  %388 = vmatpush1.bf16.msra.mxu0 %v271
  %389 = vmatprep.subr.bf16.mxu0 0
  %390 = vmatpush1.bf16.msra.mxu0 %v270
  %391 = vmatprep.subr.bf16.mxu0 0
  %392 = vmatpush1.bf16.msra.mxu0 %v269
  %393 = vmatprep.subr.bf16.mxu0 0
  %394 = vmatpush1.bf16.msra.mxu0 %v268
  %395 = vmatprep.subr.bf16.mxu0 0
  %396 = vmatpush2.bf16.msra.mxu0 0
  %397 = vmatprep.subr.bf16.mxu0 0
  %398 = vmatpush2.bf16.msra.mxu0 0
  %399 = vmatprep.subr.bf16.mxu0 0
  %400 = vmatpush2.bf16.msra.mxu0 0
  %401 = vmatprep.subr.bf16.mxu0 0
  %402 = vmatpush2.bf16.msra.mxu0 0
  %403 = vmatprep.subr.bf16.mxu0 0
  %404 = vmatpush2.bf16.msra.mxu0 0
  %405 = vmatprep.subr.bf16.mxu0 0
  %406 = vmatpush2.bf16.msra.mxu0 0
  %407 = vmatprep.subr.bf16.mxu0 0
  %408 = vmatpush2.bf16.msra.mxu0 0
  %409 = vmatprep.subr.bf16.mxu0 0
  %410 = vmatpush2.bf16.msra.mxu0 %v276
  %411 = vmatprep.mubr.bf16.mxu0 %v304
  %412 = vmatmul.mubr.bf16.gmra.mxu0 %v126
  %v413 = vpop.f32.mrf.mxu0
  %v414 = vadd.f32 %v350, %v413
  %v415 = vpop.f32.mrf.mxu0
  %v416 = vpop.f32.mrf.mxu0
  %v417 = vadd.f32 %v353, %v416
  %v418 = vpop.f32.mrf.mxu0
  %419 = vmatprep.mubr.bf16.mxu0 %v307
  %420 = vmatmul.mubr.bf16.gmra.mxu0 %v130
  %v421 = vpop.f32.mrf.mxu0
  %v422 = vadd.f32 %v358, %v421
  %v423 = vpop.f32.mrf.mxu0
  %v424 = vpop.f32.mrf.mxu0
  %v425 = vadd.f32 %v361, %v424
  %v426 = vpop.f32.mrf.mxu0
  %427 = vmatprep.mubr.bf16.mxu0 %v310
  %428 = vmatmul.mubr.bf16.gmra.mxu0 %v134
  %v429 = vpop.f32.mrf.mxu0
  %v430 = vadd.f32 %v366, %v429
  %v431 = vpop.f32.mrf.mxu0
  %v432 = vpop.f32.mrf.mxu0
  %v433 = vadd.f32 %v369, %v432
  %v434 = vpop.f32.mrf.mxu0
  %435 = vmatprep.mubr.bf16.mxu0 %v313
  %436 = vmatmul.mubr.bf16.gmra.mxu0 %v138
  %v437 = vpop.f32.mrf.mxu0
  %v438 = vadd.f32 %v374, %v437
  %v439 = vpop.f32.mrf.mxu0
  %v440 = vpop.f32.mrf.mxu0
  %v441 = vpop.f32.mrf.mxu0
  %442 = vdwg.mxu0
  %v443 = vld [vmem:[%s2] sm:$0x1]
  %v445 = vlaneseq
  %v446 = vshrl.u32 %v445, 7
  %v447 = vsub.s32 0, %v446
  %v448 = vrot.slane %v443, %v447
  %v450 = vmul.f32 %v414, %v448
  %v451 = vmul.f32 %v417, %v448
  %v452 = vmul.f32 %v422, %v448
  %v453 = vmul.f32 %v425, %v448
  %v454 = vmul.f32 %v430, %v448
  %v455 = vmul.f32 %v433, %v448
  %v456 = vmul.f32 %v438, %v448
  %v457 = vld [vmem:[%s3] sm:$0x1]
  %v459 = vlaneseq
  %v460 = vshrl.u32 %v459, 7
  %v461 = vsub.s32 0, %v460
  %v462 = vrot.slane %v457, %v461
  %v464 = vadd.f32 %v450, %v462
  %v465 = vadd.f32 %v451, %v462
  %v466 = vadd.f32 %v452, %v462
  %v467 = vadd.f32 %v453, %v462
  %v468 = vadd.f32 %v454, %v462
  %v469 = vadd.f32 %v455, %v462
  %v470 = vadd.f32 %v456, %v462
  %v471 = vxor.u32 %v464, 2147483648
  %v472 = vxor.u32 %v465, 2147483648
  %v473 = vxor.u32 %v466, 2147483648
  %v474 = vxor.u32 %v467, 2147483648
  %v475 = vxor.u32 %v468, 2147483648
  %v476 = vxor.u32 %v469, 2147483648
  %v477 = vxor.u32 %v470, 2147483648
  %v478 = vmul.f32 %v471, 1.442695
  %v479 = vpow.pop %v478
  %v480 = vmul.f32 %v472, 1.442695
  %v481 = vpow.pop %v480
  %v482 = vmul.f32 %v473, 1.442695
  %v483 = vpow.pop %v482
  %v484 = vmul.f32 %v474, 1.442695
  %v485 = vpow.pop %v484
  %v486 = vmul.f32 %v475, 1.442695
  %v487 = vpow.pop %v486
  %v488 = vmul.f32 %v476, 1.442695
  %v489 = vpow.pop %v488
  %v490 = vmul.f32 %v477, 1.442695
  %v491 = vpow.pop %v490
  %v492 = vadd.f32 %v479, 1.0
  %v493 = vadd.f32 %v481, 1.0
  %v494 = vadd.f32 %v483, 1.0
  %v495 = vadd.f32 %v485, 1.0
  %v496 = vadd.f32 %v487, 1.0
  %v497 = vadd.f32 %v489, 1.0
  %v498 = vadd.f32 %v491, 1.0
  %v499 = vrcp.pop %v492
  %v500 = vmul.f32 1.0, %v499
  %v501 = vrcp.pop %v493
  %v502 = vmul.f32 1.0, %v501
  %v503 = vrcp.pop %v494
  %v504 = vmul.f32 1.0, %v503
  %v505 = vrcp.pop %v495
  %v506 = vmul.f32 1.0, %v505
  %v507 = vrcp.pop %v496
  %v508 = vmul.f32 1.0, %v507
  %v509 = vrcp.pop %v497
  %v510 = vmul.f32 1.0, %v509
  %v511 = vrcp.pop %v498
  %v512 = vmul.f32 1.0, %v511
  %v513 = vmul.f32 %v464, %v500
  %v514 = vmul.f32 %v465, %v502
  %v515 = vmul.f32 %v466, %v504
  %v516 = vmul.f32 %v467, %v506
  %v517 = vmul.f32 %v468, %v508
  %v518 = vmul.f32 %v469, %v510
  %v519 = vmul.f32 %v470, %v512
  %vm520 = vcmask 261120
  %521 = vst.msk [vmem:[%s4] sm:$0xff] %vm520, %v513
  %522 = vst.msk [vmem:[%s4 + $0x8] sm:$0xff] %vm520, %v514
  %523 = vst.msk [vmem:[%s4 + $0x10] sm:$0xff] %vm520, %v515
  %524 = vst.msk [vmem:[%s4 + $0x18] sm:$0xff] %vm520, %v516
  %525 = vst.msk [vmem:[%s4 + $0x20] sm:$0xff] %vm520, %v517
  %526 = vst.msk [vmem:[%s4 + $0x28] sm:$0xff] %vm520, %v518
  %vm527 = vcmask 254976
  %528 = vst.msk [vmem:[%s4 + $0x30] sm:$0x3] %vm527, %v519
  // Predicated region
  $region18: #{multi_classification_forward.18} parent=0 // pred_check
    _
  $region19: #{multi_classification_forward.18} parent=0 // pred_check_branch
    %530 = sbr.rel (0) target = $region21
  $region20: #{multi_classification_forward.18} parent=0 // pred_region
    _
  $region21: #{multi_classification_forward.18} parent=0 // pred_fallthru
    _
  // Predicated region
  $region22: #{multi_classification_forward.18} parent=0 // pred_check
    _
  $region23: #{multi_classification_forward.18} parent=0 // pred_check_branch
    %532 = sbr.rel (0) target = $region25
  $region24: #{multi_classification_forward.18} parent=0 // pred_region
    _
  $region25: #{multi_classification_forward.18} parent=0 // pred_fallthru
    _

// kernel: multi_classification_forward.20
$region0: #{multi_classification_forward.20}
  #allocation0 [shape = 'u32[]', space=smem, size = 0x4, offset = 0x4, fixed_abs, tag = 'smem constant byte address 0x4 - core index']
  #allocation1 [shape = 'u32[144,128]{1,0:T(1,128)}', space=vmem, size = 0x12000, scoped, tag = 'internal scratch']
  %s0 = inlined_call_operand.vmem [shape: bf16[50,288], index: 0, kind: input, shape index: {}]
  %s1 = inlined_call_operand.vmem [shape: bf16[288,32], index: 1, kind: input, shape index: {}]
  %s2 = inlined_call_operand.vmem [shape: f32[1,32], index: 2, kind: input, shape index: {}]
  %s3 = inlined_call_operand.vmem [shape: f32[1,32], index: 3, kind: input, shape index: {}]
  %s4 = inlined_call_operand.vmem [shape: f32[50,32], index: 4, kind: input, shape index: {}]
  %s5 = inlined_call_operand.vmem [shape: f32[50,32], index: 5, kind: output, shape index: {}]
  %s6 = sld [smem:[#allocation0]]
  $region30: #{multi_classification_forward.20} parent=0
    _
  %s8 = ssub.s32 1, %s6
  %s9 = scalar_select 0, %s8, %s6
  // Predicated region
  $region2: #{multi_classification_forward.20} parent=0 // pred_check
    _
  $region3: #{multi_classification_forward.20} parent=0 // pred_check_branch
    %11 = sbr.rel (0) target = $region5
  $region4: #{multi_classification_forward.20} parent=0 // pred_region
    _
  $region5: #{multi_classification_forward.20} parent=0 // pred_fallthru
    _
  // Predicated region
  $region6: #{multi_classification_forward.20} parent=0 // pred_check
    _
  $region7: #{multi_classification_forward.20} parent=0 // pred_check_branch
    %13 = sbr.rel (0) target = $region9
  $region8: #{multi_classification_forward.20} parent=0 // pred_region
    _
  $region9: #{multi_classification_forward.20} parent=0 // pred_fallthru
    _
  // Predicated region
  $region10: #{multi_classification_forward.20} parent=0 // pred_check
    _
  $region11: #{multi_classification_forward.20} parent=0 // pred_check_branch
    %15 = sbr.rel (0) target = $region13
  $region12: #{multi_classification_forward.20} parent=0 // pred_region
    _
  $region13: #{multi_classification_forward.20} parent=0 // pred_fallthru
    _
  // Predicated region
  $region14: #{multi_classification_forward.20} parent=0 // pred_check
    _
  $region15: #{multi_classification_forward.20} parent=0 // pred_check_branch
    %17 = sbr.rel (0) target = $region17
  $region16: #{multi_classification_forward.20} parent=0 // pred_region
    _
  $region17: #{multi_classification_forward.20} parent=0 // pred_fallthru
    _
  // Predicated region
  $region18: #{multi_classification_forward.20} parent=0 // pred_check
    _
  $region19: #{multi_classification_forward.20} parent=0 // pred_check_branch
    %19 = sbr.rel (0) target = $region21
  $region20: #{multi_classification_forward.20} parent=0 // pred_region
    _
  $region21: #{multi_classification_forward.20} parent=0 // pred_fallthru
    _
  %v21 = vld [vmem:[%s0] sm:$0xff]
  %v22 = vld [vmem:[%s0 + $0x8] sm:$0xf]
  %v23 = vld [vmem:[%s0 + $0xc] sm:$0xff]
  %v24 = vld [vmem:[%s0 + $0x14] sm:$0xf]
  %v25 = vld [vmem:[%s0 + $0x18] sm:$0xff]
  %v26 = vld [vmem:[%s0 + $0x20] sm:$0xf]
  %v27 = vld [vmem:[%s0 + $0x24] sm:$0xff]
  %v28 = vld [vmem:[%s0 + $0x2c] sm:$0xf]
  %v29 = vld [vmem:[%s0 + $0x30] sm:$0xff]
  %v30 = vld [vmem:[%s0 + $0x38] sm:$0xf]
  %v31 = vld [vmem:[%s0 + $0x3c] sm:$0xff]
  %v32 = vld [vmem:[%s0 + $0x44] sm:$0xf]
  %v33 = vld [vmem:[%s0 + $0x48] sm:$0x11]
  %v34 = vld [vmem:[%s0 + $0x50] sm:$0x1]
  %v35 = vld [vmem:[%s1] sm:$0xf]
  %v36 = vld [vmem:[%s1 + $0x4] sm:$0xf]
  %v37 = vld [vmem:[%s1 + $0x8] sm:$0xf]
  %v38 = vld [vmem:[%s1 + $0xc] sm:$0xf]
  %v39 = vld [vmem:[%s1 + $0x10] sm:$0xf]
  %v40 = vld [vmem:[%s1 + $0x14] sm:$0xf]
  %v41 = vld [vmem:[%s1 + $0x18] sm:$0xf]
  %v42 = vld [vmem:[%s1 + $0x1c] sm:$0xf]
  %v43 = vld [vmem:[%s1 + $0x20] sm:$0xf]
  %v44 = vld [vmem:[%s1 + $0x24] sm:$0xf]
  %v45 = vld [vmem:[%s1 + $0x28] sm:$0xf]
  %v46 = vld [vmem:[%s1 + $0x2c] sm:$0xf]
  %v47 = vld [vmem:[%s1 + $0x30] sm:$0xf]
  %v48 = vld [vmem:[%s1 + $0x34] sm:$0xf]
  %v49 = vld [vmem:[%s1 + $0x38] sm:$0xf]
  %v50 = vld [vmem:[%s1 + $0x3c] sm:$0xf]
  %v51 = vld [vmem:[%s1 + $0x40] sm:$0xf]
  %v52 = vld [vmem:[%s1 + $0x44] sm:$0xf]
  %v53 = vld [vmem:[%s1 + $0x48] sm:$0xf]
  %v54 = vld [vmem:[%s1 + $0x4c] sm:$0xf]
  %v55 = vld [vmem:[%s1 + $0x50] sm:$0xf]
  %v56 = vld [vmem:[%s1 + $0x54] sm:$0xf]
  %v57 = vld [vmem:[%s1 + $0x58] sm:$0xf]
  %v58 = vld [vmem:[%s1 + $0x5c] sm:$0xf]
  %v59 = vld [vmem:[%s1 + $0x60] sm:$0xf]
  %v60 = vld [vmem:[%s1 + $0x64] sm:$0xf]
  %v61 = vld [vmem:[%s1 + $0x68] sm:$0xf]
  %v62 = vld [vmem:[%s1 + $0x6c] sm:$0xf]
  %v63 = vld [vmem:[%s1 + $0x70] sm:$0xf]
  %v64 = vld [vmem:[%s1 + $0x74] sm:$0xf]
  %v65 = vld [vmem:[%s1 + $0x78] sm:$0xf]
  %v66 = vld [vmem:[%s1 + $0x7c] sm:$0xf]
  %v67 = vld [vmem:[%s1 + $0x80] sm:$0xf]
  %v68 = vld [vmem:[%s1 + $0x84] sm:$0xf]
  %v69 = vld [vmem:[%s1 + $0x88] sm:$0xf]
  %v70 = vld [vmem:[%s1 + $0x8c] sm:$0xf]
  %v85 = vunpack.c.l.b16 %v21
  %v86 = vunpack.c.h.b16 %v21
  %v87 = vunpack.c.l.b16 %v22
  %v88 = vunpack.c.l.b16 %v23
  %v89 = vunpack.c.h.b16 %v23
  %v90 = vunpack.c.l.b16 %v24
  %v91 = vunpack.c.l.b16 %v25
  %v92 = vunpack.c.h.b16 %v25
  %v93 = vunpack.c.l.b16 %v26
  %v94 = vunpack.c.l.b16 %v27
  %v95 = vunpack.c.h.b16 %v27
  %v96 = vunpack.c.l.b16 %v28
  %v97 = vunpack.c.l.b16 %v29
  %v98 = vunpack.c.h.b16 %v29
  %v99 = vunpack.c.l.b16 %v30
  %v100 = vunpack.c.l.b16 %v31
  %v101 = vunpack.c.h.b16 %v31
  %v102 = vunpack.c.l.b16 %v32
  %v103 = vunpack.c.l.b16 %v33
  %v104 = vunpack.c.h.b16 %v33
  %v105 = vunpack.c.l.b16 %v34
  %v106 = vpack.c.b16 %v88, %v85
  %v107 = vpack.c.b16 %v89, %v86
  %v108 = vpack.c.b16 %v90, %v87
  %v109 = vpack.c.b16 %v94, %v91
  %v110 = vpack.c.b16 %v95, %v92
  %v111 = vpack.c.b16 %v96, %v93
  %v112 = vpack.c.b16 %v100, %v97
  %v113 = vpack.c.b16 %v101, %v98
  %v114 = vpack.c.b16 %v102, %v99
  %v115 = vpack.c.b16 %v103, %v103
  %v116 = vpack.c.b16 %v104, %v104
  %v117 = vpack.c.b16 %v105, %v105
  %v162 = vunpack.c.l.b16 %v35
  %v163 = vunpack.c.l.b16 %v36
  %v164 = vunpack.c.l.b16 %v37
  %v165 = vunpack.c.l.b16 %v38
  %v166 = vunpack.c.l.b16 %v39
  %v167 = vunpack.c.l.b16 %v40
  %v168 = vunpack.c.l.b16 %v41
  %v169 = vunpack.c.l.b16 %v42
  %v170 = vunpack.c.l.b16 %v43
  %v171 = vunpack.c.l.b16 %v44
  %v172 = vunpack.c.l.b16 %v45
  %v173 = vunpack.c.l.b16 %v46
  %v174 = vunpack.c.l.b16 %v47
  %v175 = vunpack.c.l.b16 %v48
  %v176 = vunpack.c.l.b16 %v49
  %v177 = vunpack.c.l.b16 %v50
  %v178 = vunpack.c.l.b16 %v51
  %v179 = vunpack.c.l.b16 %v52
  %v180 = vunpack.c.l.b16 %v53
  %v181 = vunpack.c.l.b16 %v54
  %v182 = vunpack.c.l.b16 %v55
  %v183 = vunpack.c.l.b16 %v56
  %v184 = vunpack.c.l.b16 %v57
  %v185 = vunpack.c.l.b16 %v58
  %v186 = vunpack.c.l.b16 %v59
  %v187 = vunpack.c.l.b16 %v60
  %v188 = vunpack.c.l.b16 %v61
  %v189 = vunpack.c.l.b16 %v62
  %v190 = vunpack.c.l.b16 %v63
  %v191 = vunpack.c.l.b16 %v64
  %v192 = vunpack.c.l.b16 %v65
  %v193 = vunpack.c.l.b16 %v66
  %v194 = vunpack.c.l.b16 %v67
  %v195 = vunpack.c.l.b16 %v68
  %v196 = vunpack.c.l.b16 %v69
  %v197 = vunpack.c.l.b16 %v70
  %v198 = vpack.c.b16 %v163, %v162
  %v199 = vpack.c.b16 %v165, %v164
  %v200 = vpack.c.b16 %v167, %v166
  %v201 = vpack.c.b16 %v169, %v168
  %v202 = vpack.c.b16 %v171, %v170
  %v203 = vpack.c.b16 %v173, %v172
  %v204 = vpack.c.b16 %v175, %v174
  %v205 = vpack.c.b16 %v177, %v176
  %v206 = vpack.c.b16 %v179, %v178
  %v207 = vpack.c.b16 %v181, %v180
  %v208 = vpack.c.b16 %v183, %v182
  %v209 = vpack.c.b16 %v185, %v184
  %v210 = vpack.c.b16 %v187, %v186
  %v211 = vpack.c.b16 %v189, %v188
  %v212 = vpack.c.b16 %v191, %v190
  %v213 = vpack.c.b16 %v193, %v192
  %v214 = vpack.c.b16 %v195, %v194
  %v215 = vpack.c.b16 %v197, %v196
  %vm234 = vcmask 261120
  %v236 = vsel %vm234, %v108, 0
  %v239 = vsel %vm234, %v111, 0
  %v242 = vsel %vm234, %v114, 0
  %v245 = vsel %vm234, %v117, 0
  %247 = vmatprep.subr.bf16.mxu0 0
  %248 = vmatpush1.bf16.msra.mxu0 %v205
  %249 = vmatprep.subr.bf16.mxu0 0
  %250 = vmatpush1.bf16.msra.mxu0 %v204
  %251 = vmatprep.subr.bf16.mxu0 0
  %252 = vmatpush1.bf16.msra.mxu0 %v203
  %253 = vmatprep.subr.bf16.mxu0 0
  %254 = vmatpush1.bf16.msra.mxu0 %v202
  %255 = vmatprep.subr.bf16.mxu0 0
  %256 = vmatpush1.bf16.msra.mxu0 %v201
  %257 = vmatprep.subr.bf16.mxu0 0
  %258 = vmatpush1.bf16.msra.mxu0 %v200
  %259 = vmatprep.subr.bf16.mxu0 0
  %260 = vmatpush1.bf16.msra.mxu0 %v199
  %261 = vmatprep.subr.bf16.mxu0 0
  %262 = vmatpush1.bf16.msra.mxu0 %v198
  %263 = vmatprep.subr.bf16.mxu0 0
  %264 = vmatpush2.bf16.msra.mxu0 %v213
  %265 = vmatprep.subr.bf16.mxu0 0
  %266 = vmatpush2.bf16.msra.mxu0 %v212
  %267 = vmatprep.subr.bf16.mxu0 0
  %268 = vmatpush2.bf16.msra.mxu0 %v211
  %269 = vmatprep.subr.bf16.mxu0 0
  %270 = vmatpush2.bf16.msra.mxu0 %v210
  %271 = vmatprep.subr.bf16.mxu0 0
  %272 = vmatpush2.bf16.msra.mxu0 %v209
  %273 = vmatprep.subr.bf16.mxu0 0
  %274 = vmatpush2.bf16.msra.mxu0 %v208
  %275 = vmatprep.subr.bf16.mxu0 0
  %276 = vmatpush2.bf16.msra.mxu0 %v207
  %277 = vmatprep.subr.bf16.mxu0 0
  %278 = vmatpush2.bf16.msra.mxu0 %v206
  %279 = vmatprep.mubr.bf16.mxu0 %v107
  %280 = vmatmul.mubr.bf16.gmra.mxu0 %v106
  %v281 = vpop.f32.mrf.mxu0
  %v282 = vadd.f32 0.0, %v281
  %v283 = vpop.f32.mrf.mxu0
  %v284 = vpop.f32.mrf.mxu0
  %v285 = vadd.f32 0.0, %v284
  %v286 = vpop.f32.mrf.mxu0
  %287 = vmatprep.mubr.bf16.mxu0 %v110
  %288 = vmatmul.mubr.bf16.gmra.mxu0 %v109
  %v289 = vpop.f32.mrf.mxu0
  %v290 = vadd.f32 0.0, %v289
  %v291 = vpop.f32.mrf.mxu0
  %v292 = vpop.f32.mrf.mxu0
  %v293 = vadd.f32 0.0, %v292
  %v294 = vpop.f32.mrf.mxu0
  %295 = vmatprep.mubr.bf16.mxu0 %v113
  %296 = vmatmul.mubr.bf16.gmra.mxu0 %v112
  %v297 = vpop.f32.mrf.mxu0
  %v298 = vadd.f32 0.0, %v297
  %v299 = vpop.f32.mrf.mxu0
  %v300 = vpop.f32.mrf.mxu0
  %v301 = vadd.f32 0.0, %v300
  %v302 = vpop.f32.mrf.mxu0
  %303 = vmatprep.mubr.bf16.mxu0 %v116
  %304 = vmatmul.mubr.bf16.gmra.mxu0 %v115
  %v305 = vpop.f32.mrf.mxu0
  %v306 = vadd.f32 0.0, %v305
  %v307 = vpop.f32.mrf.mxu0
  %v308 = vpop.f32.mrf.mxu0
  %v309 = vpop.f32.mrf.mxu0
  %310 = vdwg.mxu0
  %311 = vmatprep.subr.bf16.mxu0 0
  %312 = vmatpush1.bf16.msra.mxu0 0
  %313 = vmatprep.subr.bf16.mxu0 0
  %314 = vmatpush1.bf16.msra.mxu0 0
  %315 = vmatprep.subr.bf16.mxu0 0
  %316 = vmatpush1.bf16.msra.mxu0 0
  %317 = vmatprep.subr.bf16.mxu0 0
  %318 = vmatpush1.bf16.msra.mxu0 0
  %319 = vmatprep.subr.bf16.mxu0 0
  %320 = vmatpush1.bf16.msra.mxu0 0
  %321 = vmatprep.subr.bf16.mxu0 0
  %322 = vmatpush1.bf16.msra.mxu0 0
  %323 = vmatprep.subr.bf16.mxu0 0
  %324 = vmatpush1.bf16.msra.mxu0 %v215
  %325 = vmatprep.subr.bf16.mxu0 0
  %326 = vmatpush1.bf16.msra.mxu0 %v214
  %327 = vmatprep.subr.bf16.mxu0 0
  %328 = vmatpush2.bf16.msra.mxu0 0
  %329 = vmatprep.subr.bf16.mxu0 0
  %330 = vmatpush2.bf16.msra.mxu0 0
  %331 = vmatprep.subr.bf16.mxu0 0
  %332 = vmatpush2.bf16.msra.mxu0 0
  %333 = vmatprep.subr.bf16.mxu0 0
  %334 = vmatpush2.bf16.msra.mxu0 0
  %335 = vmatprep.subr.bf16.mxu0 0
  %336 = vmatpush2.bf16.msra.mxu0 0
  %337 = vmatprep.subr.bf16.mxu0 0
  %338 = vmatpush2.bf16.msra.mxu0 0
  %339 = vmatprep.subr.bf16.mxu0 0
  %340 = vmatpush2.bf16.msra.mxu0 0
  %341 = vmatprep.subr.bf16.mxu0 0
  %342 = vmatpush2.bf16.msra.mxu0 0
  %343 = vmatprep.mubr.bf16.mxu0 0
  %344 = vmatmul.mubr.bf16.gmra.mxu0 %v236
  %v345 = vpop.f32.mrf.mxu0
  %v346 = vadd.f32 %v282, %v345
  %v347 = vpop.f32.mrf.mxu0
  %v348 = vpop.f32.mrf.mxu0
  %v349 = vadd.f32 %v285, %v348
  %v350 = vpop.f32.mrf.mxu0
  %351 = vmatprep.mubr.bf16.mxu0 0
  %352 = vmatmul.mubr.bf16.gmra.mxu0 %v239
  %v353 = vpop.f32.mrf.mxu0
  %v354 = vadd.f32 %v290, %v353
  %v355 = vpop.f32.mrf.mxu0
  %v356 = vpop.f32.mrf.mxu0
  %v357 = vadd.f32 %v293, %v356
  %v358 = vpop.f32.mrf.mxu0
  %359 = vmatprep.mubr.bf16.mxu0 0
  %360 = vmatmul.mubr.bf16.gmra.mxu0 %v242
  %v361 = vpop.f32.mrf.mxu0
  %v362 = vadd.f32 %v298, %v361
  %v363 = vpop.f32.mrf.mxu0
  %v364 = vpop.f32.mrf.mxu0
  %v365 = vadd.f32 %v301, %v364
  %v366 = vpop.f32.mrf.mxu0
  %367 = vmatprep.mubr.bf16.mxu0 0
  %368 = vmatmul.mubr.bf16.gmra.mxu0 %v245
  %v369 = vpop.f32.mrf.mxu0
  %v370 = vadd.f32 %v306, %v369
  %v371 = vpop.f32.mrf.mxu0
  %v372 = vpop.f32.mrf.mxu0
  %v373 = vpop.f32.mrf.mxu0
  %374 = vdwg.mxu0
  %v375 = vld [vmem:[%s2] sm:$0x1]
  %v377 = vlaneseq
  %v378 = vshrl.u32 %v377, 7
  %v379 = vsub.s32 0, %v378
  %v380 = vrot.slane %v375, %v379
  %v382 = vmul.f32 %v346, %v380
  %v383 = vmul.f32 %v349, %v380
  %v384 = vmul.f32 %v354, %v380
  %v385 = vmul.f32 %v357, %v380
  %v386 = vmul.f32 %v362, %v380
  %v387 = vmul.f32 %v365, %v380
  %v388 = vmul.f32 %v370, %v380
  %v389 = vld [vmem:[%s3] sm:$0x1]
  %v391 = vlaneseq
  %v392 = vshrl.u32 %v391, 7
  %v393 = vsub.s32 0, %v392
  %v394 = vrot.slane %v389, %v393
  %v396 = vadd.f32 %v382, %v394
  %v397 = vadd.f32 %v383, %v394
  %v398 = vadd.f32 %v384, %v394
  %v399 = vadd.f32 %v385, %v394
  %v400 = vadd.f32 %v386, %v394
  %v401 = vadd.f32 %v387, %v394
  %v402 = vadd.f32 %v388, %v394
  %v403 = vld [vmem:[%s4] sm:$0xff]
  %v404 = vld [vmem:[%s4 + $0x8] sm:$0xff]
  %v405 = vld [vmem:[%s4 + $0x10] sm:$0xff]
  %v406 = vld [vmem:[%s4 + $0x18] sm:$0xff]
  %v407 = vld [vmem:[%s4 + $0x20] sm:$0xff]
  %v408 = vld [vmem:[%s4 + $0x28] sm:$0xff]
  %v409 = vld [vmem:[%s4 + $0x30] sm:$0x3]
  %v410 = vadd.f32 %v396, %v403
  %v411 = vadd.f32 %v397, %v404
  %v412 = vadd.f32 %v398, %v405
  %v413 = vadd.f32 %v399, %v406
  %v414 = vadd.f32 %v400, %v407
  %v415 = vadd.f32 %v401, %v408
  %v416 = vadd.f32 %v402, %v409
  %v417 = vmax.f32 %v410, 0.0
  %v418 = vmax.f32 %v411, 0.0
  %v419 = vmax.f32 %v412, 0.0
  %v420 = vmax.f32 %v413, 0.0
  %v421 = vmax.f32 %v414, 0.0
  %v422 = vmax.f32 %v415, 0.0
  %v423 = vmax.f32 %v416, 0.0
  %424 = vst.msk [vmem:[%s5] sm:$0xff] %vm234, %v417
  %425 = vst.msk [vmem:[%s5 + $0x8] sm:$0xff] %vm234, %v418
  %426 = vst.msk [vmem:[%s5 + $0x10] sm:$0xff] %vm234, %v419
  %427 = vst.msk [vmem:[%s5 + $0x18] sm:$0xff] %vm234, %v420
  %428 = vst.msk [vmem:[%s5 + $0x20] sm:$0xff] %vm234, %v421
  %429 = vst.msk [vmem:[%s5 + $0x28] sm:$0xff] %vm234, %v422
  %vm430 = vcmask 254976
  %431 = vst.msk [vmem:[%s5 + $0x30] sm:$0x3] %vm430, %v423
  // Predicated region
  $region22: #{multi_classification_forward.20} parent=0 // pred_check
    _
  $region23: #{multi_classification_forward.20} parent=0 // pred_check_branch
    %433 = sbr.rel (0) target = $region25
  $region24: #{multi_classification_forward.20} parent=0 // pred_region
    _
  $region25: #{multi_classification_forward.20} parent=0 // pred_fallthru
    _
  // Predicated region
  $region26: #{multi_classification_forward.20} parent=0 // pred_check
    _
  $region27: #{multi_classification_forward.20} parent=0 // pred_check_branch
    %435 = sbr.rel (0) target = $region29
  $region28: #{multi_classification_forward.20} parent=0 // pred_region
    _
  $region29: #{multi_classification_forward.20} parent=0 // pred_fallthru
    _

// kernel: multi_classification_forward.19
$region0: #{multi_classification_forward.19}
  #allocation0 [shape = 'u32[]', space=smem, size = 0x4, offset = 0x4, fixed_abs, tag = 'smem constant byte address 0x4 - core index']
  #allocation1 [shape = 'u32[144,128]{1,0:T(1,128)}', space=vmem, size = 0x12000, scoped, tag = 'internal scratch']
  %s0 = inlined_call_operand.vmem [shape: bf16[50,288], index: 0, kind: input, shape index: {}]
  %s1 = inlined_call_operand.vmem [shape: bf16[288,32], index: 1, kind: input, shape index: {}]
  %s2 = inlined_call_operand.vmem [shape: f32[1,32], index: 2, kind: input, shape index: {}]
  %s3 = inlined_call_operand.vmem [shape: f32[1,32], index: 3, kind: input, shape index: {}]
  %s4 = inlined_call_operand.vmem [shape: f32[50,32], index: 4, kind: output, shape index: {}]
  %s5 = sld [smem:[#allocation0]]
  $region26: #{multi_classification_forward.19} parent=0
    _
  %s7 = ssub.s32 1, %s5
  %s8 = scalar_select 0, %s7, %s5
  // Predicated region
  $region2: #{multi_classification_forward.19} parent=0 // pred_check
    _
  $region3: #{multi_classification_forward.19} parent=0 // pred_check_branch
    %10 = sbr.rel (0) target = $region5
  $region4: #{multi_classification_forward.19} parent=0 // pred_region
    _
  $region5: #{multi_classification_forward.19} parent=0 // pred_fallthru
    _
  // Predicated region
  $region6: #{multi_classification_forward.19} parent=0 // pred_check
    _
  $region7: #{multi_classification_forward.19} parent=0 // pred_check_branch
    %12 = sbr.rel (0) target = $region9
  $region8: #{multi_classification_forward.19} parent=0 // pred_region
    _
  $region9: #{multi_classification_forward.19} parent=0 // pred_fallthru
    _
  // Predicated region
  $region10: #{multi_classification_forward.19} parent=0 // pred_check
    _
  $region11: #{multi_classification_forward.19} parent=0 // pred_check_branch
    %14 = sbr.rel (0) target = $region13
  $region12: #{multi_classification_forward.19} parent=0 // pred_region
    _
  $region13: #{multi_classification_forward.19} parent=0 // pred_fallthru
    _
  // Predicated region
  $region14: #{multi_classification_forward.19} parent=0 // pred_check
    _
  $region15: #{multi_classification_forward.19} parent=0 // pred_check_branch
    %16 = sbr.rel (0) target = $region17
  $region16: #{multi_classification_forward.19} parent=0 // pred_region
    _
  $region17: #{multi_classification_forward.19} parent=0 // pred_fallthru
    _
  %v18 = vld [vmem:[%s0] sm:$0xff]
  %v19 = vld [vmem:[%s0 + $0x8] sm:$0xf]
  %v20 = vld [vmem:[%s0 + $0xc] sm:$0xff]
  %v21 = vld [vmem:[%s0 + $0x14] sm:$0xf]
  %v22 = vld [vmem:[%s0 + $0x18] sm:$0xff]
  %v23 = vld [vmem:[%s0 + $0x20] sm:$0xf]
  %v24 = vld [vmem:[%s0 + $0x24] sm:$0xff]
  %v25 = vld [vmem:[%s0 + $0x2c] sm:$0xf]
  %v26 = vld [vmem:[%s0 + $0x30] sm:$0xff]
  %v27 = vld [vmem:[%s0 + $0x38] sm:$0xf]
  %v28 = vld [vmem:[%s0 + $0x3c] sm:$0xff]
  %v29 = vld [vmem:[%s0 + $0x44] sm:$0xf]
  %v30 = vld [vmem:[%s0 + $0x48] sm:$0x11]
  %v31 = vld [vmem:[%s0 + $0x50] sm:$0x1]
  %v32 = vld [vmem:[%s1] sm:$0xf]
  %v33 = vld [vmem:[%s1 + $0x4] sm:$0xf]
  %v34 = vld [vmem:[%s1 + $0x8] sm:$0xf]
  %v35 = vld [vmem:[%s1 + $0xc] sm:$0xf]
  %v36 = vld [vmem:[%s1 + $0x10] sm:$0xf]
  %v37 = vld [vmem:[%s1 + $0x14] sm:$0xf]
  %v38 = vld [vmem:[%s1 + $0x18] sm:$0xf]
  %v39 = vld [vmem:[%s1 + $0x1c] sm:$0xf]
  %v40 = vld [vmem:[%s1 + $0x20] sm:$0xf]
  %v41 = vld [vmem:[%s1 + $0x24] sm:$0xf]
  %v42 = vld [vmem:[%s1 + $0x28] sm:$0xf]
  %v43 = vld [vmem:[%s1 + $0x2c] sm:$0xf]
  %v44 = vld [vmem:[%s1 + $0x30] sm:$0xf]
  %v45 = vld [vmem:[%s1 + $0x34] sm:$0xf]
  %v46 = vld [vmem:[%s1 + $0x38] sm:$0xf]
  %v47 = vld [vmem:[%s1 + $0x3c] sm:$0xf]
  %v48 = vld [vmem:[%s1 + $0x40] sm:$0xf]
  %v49 = vld [vmem:[%s1 + $0x44] sm:$0xf]
  %v50 = vld [vmem:[%s1 + $0x48] sm:$0xf]
  %v51 = vld [vmem:[%s1 + $0x4c] sm:$0xf]
  %v52 = vld [vmem:[%s1 + $0x50] sm:$0xf]
  %v53 = vld [vmem:[%s1 + $0x54] sm:$0xf]
  %v54 = vld [vmem:[%s1 + $0x58] sm:$0xf]
  %v55 = vld [vmem:[%s1 + $0x5c] sm:$0xf]
  %v56 = vld [vmem:[%s1 + $0x60] sm:$0xf]
  %v57 = vld [vmem:[%s1 + $0x64] sm:$0xf]
  %v58 = vld [vmem:[%s1 + $0x68] sm:$0xf]
  %v59 = vld [vmem:[%s1 + $0x6c] sm:$0xf]
  %v60 = vld [vmem:[%s1 + $0x70] sm:$0xf]
  %v61 = vld [vmem:[%s1 + $0x74] sm:$0xf]
  %v62 = vld [vmem:[%s1 + $0x78] sm:$0xf]
  %v63 = vld [vmem:[%s1 + $0x7c] sm:$0xf]
  %v64 = vld [vmem:[%s1 + $0x80] sm:$0xf]
  %v65 = vld [vmem:[%s1 + $0x84] sm:$0xf]
  %v66 = vld [vmem:[%s1 + $0x88] sm:$0xf]
  %v67 = vld [vmem:[%s1 + $0x8c] sm:$0xf]
  %v82 = vunpack.c.l.b16 %v18
  %v83 = vunpack.c.h.b16 %v18
  %v84 = vunpack.c.l.b16 %v19
  %v85 = vunpack.c.l.b16 %v20
  %v86 = vunpack.c.h.b16 %v20
  %v87 = vunpack.c.l.b16 %v21
  %v88 = vunpack.c.l.b16 %v22
  %v89 = vunpack.c.h.b16 %v22
  %v90 = vunpack.c.l.b16 %v23
  %v91 = vunpack.c.l.b16 %v24
  %v92 = vunpack.c.h.b16 %v24
  %v93 = vunpack.c.l.b16 %v25
  %v94 = vunpack.c.l.b16 %v26
  %v95 = vunpack.c.h.b16 %v26
  %v96 = vunpack.c.l.b16 %v27
  %v97 = vunpack.c.l.b16 %v28
  %v98 = vunpack.c.h.b16 %v28
  %v99 = vunpack.c.l.b16 %v29
  %v100 = vunpack.c.l.b16 %v30
  %v101 = vunpack.c.h.b16 %v30
  %v102 = vunpack.c.l.b16 %v31
  %v103 = vpack.c.b16 %v85, %v82
  %v104 = vpack.c.b16 %v86, %v83
  %v105 = vpack.c.b16 %v87, %v84
  %v106 = vpack.c.b16 %v91, %v88
  %v107 = vpack.c.b16 %v92, %v89
  %v108 = vpack.c.b16 %v93, %v90
  %v109 = vpack.c.b16 %v97, %v94
  %v110 = vpack.c.b16 %v98, %v95
  %v111 = vpack.c.b16 %v99, %v96
  %v112 = vpack.c.b16 %v100, %v100
  %v113 = vpack.c.b16 %v101, %v101
  %v114 = vpack.c.b16 %v102, %v102
  %v159 = vunpack.c.l.b16 %v32
  %v160 = vunpack.c.l.b16 %v33
  %v161 = vunpack.c.l.b16 %v34
  %v162 = vunpack.c.l.b16 %v35
  %v163 = vunpack.c.l.b16 %v36
  %v164 = vunpack.c.l.b16 %v37
  %v165 = vunpack.c.l.b16 %v38
  %v166 = vunpack.c.l.b16 %v39
  %v167 = vunpack.c.l.b16 %v40
  %v168 = vunpack.c.l.b16 %v41
  %v169 = vunpack.c.l.b16 %v42
  %v170 = vunpack.c.l.b16 %v43
  %v171 = vunpack.c.l.b16 %v44
  %v172 = vunpack.c.l.b16 %v45
  %v173 = vunpack.c.l.b16 %v46
  %v174 = vunpack.c.l.b16 %v47
  %v175 = vunpack.c.l.b16 %v48
  %v176 = vunpack.c.l.b16 %v49
  %v177 = vunpack.c.l.b16 %v50
  %v178 = vunpack.c.l.b16 %v51
  %v179 = vunpack.c.l.b16 %v52
  %v180 = vunpack.c.l.b16 %v53
  %v181 = vunpack.c.l.b16 %v54
  %v182 = vunpack.c.l.b16 %v55
  %v183 = vunpack.c.l.b16 %v56
  %v184 = vunpack.c.l.b16 %v57
  %v185 = vunpack.c.l.b16 %v58
  %v186 = vunpack.c.l.b16 %v59
  %v187 = vunpack.c.l.b16 %v60
  %v188 = vunpack.c.l.b16 %v61
  %v189 = vunpack.c.l.b16 %v62
  %v190 = vunpack.c.l.b16 %v63
  %v191 = vunpack.c.l.b16 %v64
  %v192 = vunpack.c.l.b16 %v65
  %v193 = vunpack.c.l.b16 %v66
  %v194 = vunpack.c.l.b16 %v67
  %v195 = vpack.c.b16 %v160, %v159
  %v196 = vpack.c.b16 %v162, %v161
  %v197 = vpack.c.b16 %v164, %v163
  %v198 = vpack.c.b16 %v166, %v165
  %v199 = vpack.c.b16 %v168, %v167
  %v200 = vpack.c.b16 %v170, %v169
  %v201 = vpack.c.b16 %v172, %v171
  %v202 = vpack.c.b16 %v174, %v173
  %v203 = vpack.c.b16 %v176, %v175
  %v204 = vpack.c.b16 %v178, %v177
  %v205 = vpack.c.b16 %v180, %v179
  %v206 = vpack.c.b16 %v182, %v181
  %v207 = vpack.c.b16 %v184, %v183
  %v208 = vpack.c.b16 %v186, %v185
  %v209 = vpack.c.b16 %v188, %v187
  %v210 = vpack.c.b16 %v190, %v189
  %v211 = vpack.c.b16 %v192, %v191
  %v212 = vpack.c.b16 %v194, %v193
  %vm231 = vcmask 261120
  %v233 = vsel %vm231, %v105, 0
  %v236 = vsel %vm231, %v108, 0
  %v239 = vsel %vm231, %v111, 0
  %v242 = vsel %vm231, %v114, 0
  %244 = vmatprep.subr.bf16.mxu0 0
  %245 = vmatpush1.bf16.msra.mxu0 %v202
  %246 = vmatprep.subr.bf16.mxu0 0
  %247 = vmatpush1.bf16.msra.mxu0 %v201
  %248 = vmatprep.subr.bf16.mxu0 0
  %249 = vmatpush1.bf16.msra.mxu0 %v200
  %250 = vmatprep.subr.bf16.mxu0 0
  %251 = vmatpush1.bf16.msra.mxu0 %v199
  %252 = vmatprep.subr.bf16.mxu0 0
  %253 = vmatpush1.bf16.msra.mxu0 %v198
  %254 = vmatprep.subr.bf16.mxu0 0
  %255 = vmatpush1.bf16.msra.mxu0 %v197
  %256 = vmatprep.subr.bf16.mxu0 0
  %257 = vmatpush1.bf16.msra.mxu0 %v196
  %258 = vmatprep.subr.bf16.mxu0 0
  %259 = vmatpush1.bf16.msra.mxu0 %v195
  %260 = vmatprep.subr.bf16.mxu0 0
  %261 = vmatpush2.bf16.msra.mxu0 %v210
  %262 = vmatprep.subr.bf16.mxu0 0
  %263 = vmatpush2.bf16.msra.mxu0 %v209
  %264 = vmatprep.subr.bf16.mxu0 0
  %265 = vmatpush2.bf16.msra.mxu0 %v208
  %266 = vmatprep.subr.bf16.mxu0 0
  %267 = vmatpush2.bf16.msra.mxu0 %v207
  %268 = vmatprep.subr.bf16.mxu0 0
  %269 = vmatpush2.bf16.msra.mxu0 %v206
  %270 = vmatprep.subr.bf16.mxu0 0
  %271 = vmatpush2.bf16.msra.mxu0 %v205
  %272 = vmatprep.subr.bf16.mxu0 0
  %273 = vmatpush2.bf16.msra.mxu0 %v204
  %274 = vmatprep.subr.bf16.mxu0 0
  %275 = vmatpush2.bf16.msra.mxu0 %v203
  %276 = vmatprep.mubr.bf16.mxu0 %v104
  %277 = vmatmul.mubr.bf16.gmra.mxu0 %v103
  %v278 = vpop.f32.mrf.mxu0
  %v279 = vadd.f32 0.0, %v278
  %v280 = vpop.f32.mrf.mxu0
  %v281 = vpop.f32.mrf.mxu0
  %v282 = vadd.f32 0.0, %v281
  %v283 = vpop.f32.mrf.mxu0
  %284 = vmatprep.mubr.bf16.mxu0 %v107
  %285 = vmatmul.mubr.bf16.gmra.mxu0 %v106
  %v286 = vpop.f32.mrf.mxu0
  %v287 = vadd.f32 0.0, %v286
  %v288 = vpop.f32.mrf.mxu0
  %v289 = vpop.f32.mrf.mxu0
  %v290 = vadd.f32 0.0, %v289
  %v291 = vpop.f32.mrf.mxu0
  %292 = vmatprep.mubr.bf16.mxu0 %v110
  %293 = vmatmul.mubr.bf16.gmra.mxu0 %v109
  %v294 = vpop.f32.mrf.mxu0
  %v295 = vadd.f32 0.0, %v294
  %v296 = vpop.f32.mrf.mxu0
  %v297 = vpop.f32.mrf.mxu0
  %v298 = vadd.f32 0.0, %v297
  %v299 = vpop.f32.mrf.mxu0
  %300 = vmatprep.mubr.bf16.mxu0 %v113
  %301 = vmatmul.mubr.bf16.gmra.mxu0 %v112
  %v302 = vpop.f32.mrf.mxu0
  %v303 = vadd.f32 0.0, %v302
  %v304 = vpop.f32.mrf.mxu0
  %v305 = vpop.f32.mrf.mxu0
  %v306 = vpop.f32.mrf.mxu0
  %307 = vdwg.mxu0
  %308 = vmatprep.subr.bf16.mxu0 0
  %309 = vmatpush1.bf16.msra.mxu0 0
  %310 = vmatprep.subr.bf16.mxu0 0
  %311 = vmatpush1.bf16.msra.mxu0 0
  %312 = vmatprep.subr.bf16.mxu0 0
  %313 = vmatpush1.bf16.msra.mxu0 0
  %314 = vmatprep.subr.bf16.mxu0 0
  %315 = vmatpush1.bf16.msra.mxu0 0
  %316 = vmatprep.subr.bf16.mxu0 0
  %317 = vmatpush1.bf16.msra.mxu0 0
  %318 = vmatprep.subr.bf16.mxu0 0
  %319 = vmatpush1.bf16.msra.mxu0 0
  %320 = vmatprep.subr.bf16.mxu0 0
  %321 = vmatpush1.bf16.msra.mxu0 %v212
  %322 = vmatprep.subr.bf16.mxu0 0
  %323 = vmatpush1.bf16.msra.mxu0 %v211
  %324 = vmatprep.subr.bf16.mxu0 0
  %325 = vmatpush2.bf16.msra.mxu0 0
  %326 = vmatprep.subr.bf16.mxu0 0
  %327 = vmatpush2.bf16.msra.mxu0 0
  %328 = vmatprep.subr.bf16.mxu0 0
  %329 = vmatpush2.bf16.msra.mxu0 0
  %330 = vmatprep.subr.bf16.mxu0 0
  %331 = vmatpush2.bf16.msra.mxu0 0
  %332 = vmatprep.subr.bf16.mxu0 0
  %333 = vmatpush2.bf16.msra.mxu0 0
  %334 = vmatprep.subr.bf16.mxu0 0
  %335 = vmatpush2.bf16.msra.mxu0 0
  %336 = vmatprep.subr.bf16.mxu0 0
  %337 = vmatpush2.bf16.msra.mxu0 0
  %338 = vmatprep.subr.bf16.mxu0 0
  %339 = vmatpush2.bf16.msra.mxu0 0
  %340 = vmatprep.mubr.bf16.mxu0 0
  %341 = vmatmul.mubr.bf16.gmra.mxu0 %v233
  %v342 = vpop.f32.mrf.mxu0
  %v343 = vadd.f32 %v279, %v342
  %v344 = vpop.f32.mrf.mxu0
  %v345 = vpop.f32.mrf.mxu0
  %v346 = vadd.f32 %v282, %v345
  %v347 = vpop.f32.mrf.mxu0
  %348 = vmatprep.mubr.bf16.mxu0 0
  %349 = vmatmul.mubr.bf16.gmra.mxu0 %v236
  %v350 = vpop.f32.mrf.mxu0
  %v351 = vadd.f32 %v287, %v350
  %v352 = vpop.f32.mrf.mxu0
  %v353 = vpop.f32.mrf.mxu0
  %v354 = vadd.f32 %v290, %v353
  %v355 = vpop.f32.mrf.mxu0
  %356 = vmatprep.mubr.bf16.mxu0 0
  %357 = vmatmul.mubr.bf16.gmra.mxu0 %v239
  %v358 = vpop.f32.mrf.mxu0
  %v359 = vadd.f32 %v295, %v358
  %v360 = vpop.f32.mrf.mxu0
  %v361 = vpop.f32.mrf.mxu0
  %v362 = vadd.f32 %v298, %v361
  %v363 = vpop.f32.mrf.mxu0
  %364 = vmatprep.mubr.bf16.mxu0 0
  %365 = vmatmul.mubr.bf16.gmra.mxu0 %v242
  %v366 = vpop.f32.mrf.mxu0
  %v367 = vadd.f32 %v303, %v366
  %v368 = vpop.f32.mrf.mxu0
  %v369 = vpop.f32.mrf.mxu0
  %v370 = vpop.f32.mrf.mxu0
  %371 = vdwg.mxu0
  %v372 = vld [vmem:[%s2] sm:$0x1]
  %v374 = vlaneseq
  %v375 = vshrl.u32 %v374, 7
  %v376 = vsub.s32 0, %v375
  %v377 = vrot.slane %v372, %v376
  %v379 = vmul.f32 %v343, %v377
  %v380 = vmul.f32 %v346, %v377
  %v381 = vmul.f32 %v351, %v377
  %v382 = vmul.f32 %v354, %v377
  %v383 = vmul.f32 %v359, %v377
  %v384 = vmul.f32 %v362, %v377
  %v385 = vmul.f32 %v367, %v377
  %v386 = vld [vmem:[%s3] sm:$0x1]
  %v388 = vlaneseq
  %v389 = vshrl.u32 %v388, 7
  %v390 = vsub.s32 0, %v389
  %v391 = vrot.slane %v386, %v390
  %v393 = vadd.f32 %v379, %v391
  %v394 = vadd.f32 %v380, %v391
  %v395 = vadd.f32 %v381, %v391
  %v396 = vadd.f32 %v382, %v391
  %v397 = vadd.f32 %v383, %v391
  %v398 = vadd.f32 %v384, %v391
  %v399 = vadd.f32 %v385, %v391
  %v400 = vmax.f32 %v393, 0.0
  %v401 = vmax.f32 %v394, 0.0
  %v402 = vmax.f32 %v395, 0.0
  %v403 = vmax.f32 %v396, 0.0
  %v404 = vmax.f32 %v397, 0.0
  %v405 = vmax.f32 %v398, 0.0
  %v406 = vmax.f32 %v399, 0.0
  %407 = vst.msk [vmem:[%s4] sm:$0xff] %vm231, %v400
  %408 = vst.msk [vmem:[%s4 + $0x8] sm:$0xff] %vm231, %v401
  %409 = vst.msk [vmem:[%s4 + $0x10] sm:$0xff] %vm231, %v402
  %410 = vst.msk [vmem:[%s4 + $0x18] sm:$0xff] %vm231, %v403
  %411 = vst.msk [vmem:[%s4 + $0x20] sm:$0xff] %vm231, %v404
  %412 = vst.msk [vmem:[%s4 + $0x28] sm:$0xff] %vm231, %v405
  %vm413 = vcmask 254976
  %414 = vst.msk [vmem:[%s4 + $0x30] sm:$0x3] %vm413, %v406
  // Predicated region
  $region18: #{multi_classification_forward.19} parent=0 // pred_check
    _
  $region19: #{multi_classification_forward.19} parent=0 // pred_check_branch
    %416 = sbr.rel (0) target = $region21
  $region20: #{multi_classification_forward.19} parent=0 // pred_region
    _
  $region21: #{multi_classification_forward.19} parent=0 // pred_fallthru
    _
  // Predicated region
  $region22: #{multi_classification_forward.19} parent=0 // pred_check
    _
  $region23: #{multi_classification_forward.19} parent=0 // pred_check_branch
    %418 = sbr.rel (0) target = $region25
  $region24: #{multi_classification_forward.19} parent=0 // pred_region
    _
  $region25: #{multi_classification_forward.19} parent=0 // pred_fallthru
    _

// kernel: multi_classification_forward.23
$region0: #{multi_classification_forward.23}
  #allocation0 [shape = 'u32[]', space=smem, size = 0x4, offset = 0x4, fixed_abs, tag = 'smem constant byte address 0x4 - core index']
  #allocation1 [shape = 'u32[144,128]{1,0:T(1,128)}', space=vmem, size = 0x12000, scoped, tag = 'internal scratch']
  #allocation2 [shape = 'f32[2,32]{1,0:T(2,128)}', space=vmem, size = 0x400, scoped, tag = 'scratch operand']
  #allocation3 [shape = 'f32[2,32]{1,0:T(2,128)}', space=vmem, size = 0x400, scoped, tag = 'scratch operand']
  %s0 = inlined_call_operand.vmem [shape: f32[2,25,32], index: 0, kind: input, shape index: {}]
  %s1 = inlined_call_operand.vmem [shape: f32[32,2], index: 1, kind: input, shape index: {}]
  %s2 = inlined_call_operand.vmem [shape: f32[2,32], index: 2, kind: input, shape index: {}]
  %s3 = inlined_call_operand.vmem [shape: f32[2,32], index: 3, kind: output, shape index: {}]
  %s4 = sld [smem:[#allocation0]]
  $region30: #{multi_classification_forward.23} parent=0
    _
  %s6 = ssub.s32 1, %s4
  %s7 = scalar_select 0, %s6, %s4
  // Predicated region
  $region2: #{multi_classification_forward.23} parent=0 // pred_check
    _
  $region3: #{multi_classification_forward.23} parent=0 // pred_check_branch
    %9 = sbr.rel (0) target = $region5
  $region4: #{multi_classification_forward.23} parent=0 // pred_region
    _
  $region5: #{multi_classification_forward.23} parent=0 // pred_fallthru
    _
  // Predicated region
  $region6: #{multi_classification_forward.23} parent=0 // pred_check
    _
  $region7: #{multi_classification_forward.23} parent=0 // pred_check_branch
    %11 = sbr.rel (0) target = $region9
  $region8: #{multi_classification_forward.23} parent=0 // pred_region
    _
  $region9: #{multi_classification_forward.23} parent=0 // pred_fallthru
    _
  // Predicated region
  $region10: #{multi_classification_forward.23} parent=0 // pred_check
    _
  $region11: #{multi_classification_forward.23} parent=0 // pred_check_branch
    %13 = sbr.rel (0) target = $region13
  $region12: #{multi_classification_forward.23} parent=0 // pred_region
    _
  $region13: #{multi_classification_forward.23} parent=0 // pred_fallthru
    _
  %p14 = scmp.eq.s32.totalorder 0, 0
  // Predicated region
  $region14: #{multi_classification_forward.23} parent=0 // pred_check
    %p15 = pneg %p14
  $region15: #{multi_classification_forward.23} parent=0 // pred_check_branch
    %17 = sbr.rel (%p15) target = $region17
  $region16: #{multi_classification_forward.23} parent=0 // pred_region
    %vm18 = vcmask 254976
    %19 = vst.msk [vmem:[#allocation2] sm:$0x3] %vm18, 0.0
    %20 = vst.msk [vmem:[#allocation3] sm:$0x3] %vm18, -inf
  $region17: #{multi_classification_forward.23} parent=0 // pred_fallthru
    _
  %v21 = vld [vmem:[%s0] sm:$0xff]
  %v22 = vld [vmem:[%s0 + $0x8] sm:$0xff]
  %v23 = vld [vmem:[%s0 + $0x10] sm:$0xff]
  %v24 = vld [vmem:[%s0 + $0x18] sm:$0x1]
  %v25 = vld [vmem:[%s0 + $0x20] sm:$0xff]
  %v26 = vld [vmem:[%s0 + $0x28] sm:$0xff]
  %v27 = vld [vmem:[%s0 + $0x30] sm:$0xff]
  %v28 = vld [vmem:[%s0 + $0x38] sm:$0x1]
  %v29 = vld [vmem:[#allocation2] sm:$0x3]
  %vm30 = vcmask 261120
  %v31 = vsel %vm30, %v21, 0.0
  %v32 = vsel %vm30, %v22, 0.0
  %v33 = vadd.f32 %v31, %v32
  %v34 = vsel %vm30, %v23, 0.0
  %v35 = vadd.f32 %v33, %v34
  %vm36 = vcmask 253952
  %v37 = vsel %vm36, %v24, 0.0
  %v38 = vadd.f32 %v35, %v37
  %v39 = vrot.slane %v38, 4
  %v40 = vadd.f32 %v38, %v39
  %v41 = vrot.slane %v40, 2
  %v42 = vadd.f32 %v40, %v41
  %v43 = vrot.slane %v42, 1
  %v44 = vadd.f32 %v42, %v43
  %v45 = vsel %vm30, %v25, 0.0
  %v46 = vsel %vm30, %v26, 0.0
  %v47 = vadd.f32 %v45, %v46
  %v48 = vsel %vm30, %v27, 0.0
  %v49 = vadd.f32 %v47, %v48
  %v50 = vsel %vm36, %v28, 0.0
  %v51 = vadd.f32 %v49, %v50
  %v52 = vrot.slane %v51, 4
  %v53 = vadd.f32 %v51, %v52
  %v54 = vrot.slane %v53, 2
  %v55 = vadd.f32 %v53, %v54
  %v56 = vrot.slane %v55, 1
  %v57 = vadd.f32 %v55, %v56
  %vm60 = vcmask 1041409
  %v61 = vsel %vm60, %v57, %v44
  %v63 = vadd.f32 %v29, %v61
  %vm64 = vcmask 254976
  %65 = vst.msk [vmem:[#allocation2] sm:$0x3] %vm64, %v63
  %v66 = vld [vmem:[#allocation3] sm:$0x3]
  %v67 = vsel %vm30, %v21, -inf
  %v68 = vsel %vm30, %v22, -inf
  %v69 = vsel %vm30, %v23, -inf
  %v70 = vmax.f32 %v67, %v69
  %v71 = vsel %vm36, %v24, -inf
  %v72 = vmax.f32 %v68, %v71
  %v73 = vmax.f32 %v70, %v72
  %v74 = vrot.slane %v73, 4
  %v75 = vmax.f32 %v73, %v74
  %v76 = vrot.slane %v75, 2
  %v77 = vmax.f32 %v75, %v76
  %v78 = vrot.slane %v77, 1
  %v79 = vmax.f32 %v77, %v78
  %v80 = vsel %vm30, %v25, -inf
  %v81 = vsel %vm30, %v26, -inf
  %v82 = vsel %vm30, %v27, -inf
  %v83 = vmax.f32 %v80, %v82
  %v84 = vsel %vm36, %v28, -inf
  %v85 = vmax.f32 %v81, %v84
  %v86 = vmax.f32 %v83, %v85
  %v87 = vrot.slane %v86, 4
  %v88 = vmax.f32 %v86, %v87
  %v89 = vrot.slane %v88, 2
  %v90 = vmax.f32 %v88, %v89
  %v91 = vrot.slane %v90, 1
  %v92 = vmax.f32 %v90, %v91
  %v95 = vsel %vm60, %v92, %v79
  %v97 = vmax.f32 %v66, %v95
  %98 = vst.msk [vmem:[#allocation3] sm:$0x3] %vm64, %v97
  // Predicated region
  $region18: #{multi_classification_forward.23} parent=0 // pred_check
    %p99 = pneg %p14
  $region19: #{multi_classification_forward.23} parent=0 // pred_check_branch
    %101 = sbr.rel (%p99) target = $region21
  $region20: #{multi_classification_forward.23} parent=0 // pred_region
    %v102 = vld [vmem:[#allocation2] sm:$0x3]
    %v103 = vmul.f32 %v102, 0.04
    %v104 = vld [vmem:[%s1] sm:$0xff]
    %v105 = vld [vmem:[%s1 + $0x8] sm:$0xff]
    %v106 = vld [vmem:[%s1 + $0x10] sm:$0xff]
    %v107 = vld [vmem:[%s1 + $0x18] sm:$0xff]
    %v109 = vsel %vm30, %v103, 0
    %111 = vmatprep.subr.mxu0 0.0
    %112 = vmatpush1.msra.mxu0 0.0
    %113 = vmatprep.subr.mxu0 0.0
    %114 = vmatpush1.msra.mxu0 0.0
    %115 = vmatprep.subr.mxu0 0.0
    %116 = vmatpush1.msra.mxu0 0.0
    %117 = vmatprep.subr.mxu0 0.0
    %118 = vmatpush1.msra.mxu0 0.0
    %119 = vmatprep.subr.mxu0 0.0
    %120 = vmatpush1.msra.mxu0 0.0
    %121 = vmatprep.subr.mxu0 0.0
    %122 = vmatpush1.msra.mxu0 0.0
    %123 = vmatprep.subr.mxu0 0.0
    %124 = vmatpush1.msra.mxu0 0.0
    %125 = vmatprep.subr.mxu0 0.0
    %126 = vmatpush1.msra.mxu0 0.0
    %127 = vmatprep.subr.mxu0 0.0
    %128 = vmatpush1.msra.mxu0 0.0
    %129 = vmatprep.subr.mxu0 0.0
    %130 = vmatpush1.msra.mxu0 0.0
    %131 = vmatprep.subr.mxu0 0.0
    %132 = vmatpush1.msra.mxu0 0.0
    %133 = vmatprep.subr.mxu0 0.0
    %134 = vmatpush1.msra.mxu0 0.0
    %135 = vmatprep.subr.mxu0 0.0
    %136 = vmatpush1.msra.mxu0 %v107
    %137 = vmatprep.subr.mxu0 0.0
    %138 = vmatpush1.msra.mxu0 %v106
    %139 = vmatprep.subr.mxu0 0.0
    %140 = vmatpush1.msra.mxu0 %v105
    %141 = vmatprep.subr.mxu0 0.0
    %142 = vmatpush1.msra.mxu0 %v104
    %143 = vmatprep.subr.mxu0 0.0
    %144 = vmatpush2.msra.mxu0 0.0
    %145 = vmatprep.subr.mxu0 0.0
    %146 = vmatpush2.msra.mxu0 0.0
    %147 = vmatprep.subr.mxu0 0.0
    %148 = vmatpush2.msra.mxu0 0.0
    %149 = vmatprep.subr.mxu0 0.0
    %150 = vmatpush2.msra.mxu0 0.0
    %151 = vmatprep.subr.mxu0 0.0
    %152 = vmatpush2.msra.mxu0 0.0
    %153 = vmatprep.subr.mxu0 0.0
    %154 = vmatpush2.msra.mxu0 0.0
    %155 = vmatprep.subr.mxu0 0.0
    %156 = vmatpush2.msra.mxu0 0.0
    %157 = vmatprep.subr.mxu0 0.0
    %158 = vmatpush2.msra.mxu0 0.0
    %159 = vmatprep.subr.mxu0 0.0
    %160 = vmatpush2.msra.mxu0 0.0
    %161 = vmatprep.subr.mxu0 0.0
    %162 = vmatpush2.msra.mxu0 0.0
    %163 = vmatprep.subr.mxu0 0.0
    %164 = vmatpush2.msra.mxu0 0.0
    %165 = vmatprep.subr.mxu0 0.0
    %166 = vmatpush2.msra.mxu0 0.0
    %167 = vmatprep.subr.mxu0 0.0
    %168 = vmatpush2.msra.mxu0 0.0
    %169 = vmatprep.subr.mxu0 0.0
    %170 = vmatpush2.msra.mxu0 0.0
    %171 = vmatprep.subr.mxu0 0.0
    %172 = vmatpush2.msra.mxu0 0.0
    %173 = vmatprep.subr.mxu0 0.0
    %174 = vmatpush2.msra.mxu0 0.0
    %175 = vmatprep.mubr.f32.mxu0 0.0
    %176 = vmatmul.mubr.f32.gmra.mxu0 %v109
    %v177 = vpop.f32.mrf.mxu0
    %v178 = vadd.f32 0.0, %v177
    %v179 = vpop.f32.mrf.mxu0
    %180 = vdwg.mxu0
    %v181 = vmax.f32 %v178, 0.0
    %v182 = vld [vmem:[%s2] sm:$0x3]
    %v183 = vld [vmem:[#allocation3] sm:$0x3]
    %v185 = vsel %vm30, %v183, 0
    %187 = vmatprep.subr.mxu0 0.0
    %188 = vmatpush1.msra.mxu0 0.0
    %189 = vmatprep.subr.mxu0 0.0
    %190 = vmatpush1.msra.mxu0 0.0
    %191 = vmatprep.subr.mxu0 0.0
    %192 = vmatpush1.msra.mxu0 0.0
    %193 = vmatprep.subr.mxu0 0.0
    %194 = vmatpush1.msra.mxu0 0.0
    %195 = vmatprep.subr.mxu0 0.0
    %196 = vmatpush1.msra.mxu0 0.0
    %197 = vmatprep.subr.mxu0 0.0
    %198 = vmatpush1.msra.mxu0 0.0
    %199 = vmatprep.subr.mxu0 0.0
    %200 = vmatpush1.msra.mxu0 0.0
    %201 = vmatprep.subr.mxu0 0.0
    %202 = vmatpush1.msra.mxu0 0.0
    %203 = vmatprep.subr.mxu0 0.0
    %204 = vmatpush1.msra.mxu0 0.0
    %205 = vmatprep.subr.mxu0 0.0
    %206 = vmatpush1.msra.mxu0 0.0
    %207 = vmatprep.subr.mxu0 0.0
    %208 = vmatpush1.msra.mxu0 0.0
    %209 = vmatprep.subr.mxu0 0.0
    %210 = vmatpush1.msra.mxu0 0.0
    %211 = vmatprep.subr.mxu0 0.0
    %212 = vmatpush1.msra.mxu0 %v107
    %213 = vmatprep.subr.mxu0 0.0
    %214 = vmatpush1.msra.mxu0 %v106
    %215 = vmatprep.subr.mxu0 0.0
    %216 = vmatpush1.msra.mxu0 %v105
    %217 = vmatprep.subr.mxu0 0.0
    %218 = vmatpush1.msra.mxu0 %v104
    %219 = vmatprep.subr.mxu0 0.0
    %220 = vmatpush2.msra.mxu0 0.0
    %221 = vmatprep.subr.mxu0 0.0
    %222 = vmatpush2.msra.mxu0 0.0
    %223 = vmatprep.subr.mxu0 0.0
    %224 = vmatpush2.msra.mxu0 0.0
    %225 = vmatprep.subr.mxu0 0.0
    %226 = vmatpush2.msra.mxu0 0.0
    %227 = vmatprep.subr.mxu0 0.0
    %228 = vmatpush2.msra.mxu0 0.0
    %229 = vmatprep.subr.mxu0 0.0
    %230 = vmatpush2.msra.mxu0 0.0
    %231 = vmatprep.subr.mxu0 0.0
    %232 = vmatpush2.msra.mxu0 0.0
    %233 = vmatprep.subr.mxu0 0.0
    %234 = vmatpush2.msra.mxu0 0.0
    %235 = vmatprep.subr.mxu0 0.0
    %236 = vmatpush2.msra.mxu0 0.0
    %237 = vmatprep.subr.mxu0 0.0
    %238 = vmatpush2.msra.mxu0 0.0
    %239 = vmatprep.subr.mxu0 0.0
    %240 = vmatpush2.msra.mxu0 0.0
    %241 = vmatprep.subr.mxu0 0.0
    %242 = vmatpush2.msra.mxu0 0.0
    %243 = vmatprep.subr.mxu0 0.0
    %244 = vmatpush2.msra.mxu0 0.0
    %245 = vmatprep.subr.mxu0 0.0
    %246 = vmatpush2.msra.mxu0 0.0
    %247 = vmatprep.subr.mxu0 0.0
    %248 = vmatpush2.msra.mxu0 0.0
    %249 = vmatprep.subr.mxu0 0.0
    %250 = vmatpush2.msra.mxu0 0.0
    %251 = vmatprep.mubr.f32.mxu0 0.0
    %252 = vmatmul.mubr.f32.gmra.mxu0 %v185
    %v253 = vpop.f32.mrf.mxu0
    %v254 = vadd.f32 0.0, %v253
    %v255 = vpop.f32.mrf.mxu0
    %256 = vdwg.mxu0
    %v257 = vmax.f32 %v254, 0.0
    %vm258 = vcmask 15360
    %v260 = vsel %vm258, %v257, 0
    %vm262 = vcmask 1041408
    %v264 = vsel %vm262, %v182, 0
    %266 = vmatprep.subr.mxu0 0.0
    %267 = vmatpush1.msra.mxu0 0.0
    %268 = vmatprep.subr.mxu0 0.0
    %269 = vmatpush1.msra.mxu0 0.0
    %270 = vmatprep.subr.mxu0 0.0
    %271 = vmatpush1.msra.mxu0 0.0
    %272 = vmatprep.subr.mxu0 0.0
    %273 = vmatpush1.msra.mxu0 0.0
    %274 = vmatprep.subr.mxu0 0.0
    %275 = vmatpush1.msra.mxu0 0.0
    %276 = vmatprep.subr.mxu0 0.0
    %277 = vmatpush1.msra.mxu0 0.0
    %278 = vmatprep.subr.mxu0 0.0
    %279 = vmatpush1.msra.mxu0 0.0
    %280 = vmatprep.subr.mxu0 0.0
    %281 = vmatpush1.msra.mxu0 0.0
    %282 = vmatprep.subr.mxu0 0.0
    %283 = vmatpush1.msra.mxu0 0.0
    %284 = vmatprep.subr.mxu0 0.0
    %285 = vmatpush1.msra.mxu0 0.0
    %286 = vmatprep.subr.mxu0 0.0
    %287 = vmatpush1.msra.mxu0 0.0
    %288 = vmatprep.subr.mxu0 0.0
    %289 = vmatpush1.msra.mxu0 0.0
    %290 = vmatprep.subr.mxu0 0.0
    %291 = vmatpush1.msra.mxu0 0.0
    %292 = vmatprep.subr.mxu0 0.0
    %293 = vmatpush1.msra.mxu0 0.0
    %294 = vmatprep.subr.mxu0 0.0
    %295 = vmatpush1.msra.mxu0 0.0
    %296 = vmatprep.subr.mxu0 0.0
    %297 = vmatpush1.msra.mxu0 %v264
    %298 = vmatprep.subr.mxu0 0.0
    %299 = vmatpush2.msra.mxu0 0.0
    %300 = vmatprep.subr.mxu0 0.0
    %301 = vmatpush2.msra.mxu0 0.0
    %302 = vmatprep.subr.mxu0 0.0
    %303 = vmatpush2.msra.mxu0 0.0
    %304 = vmatprep.subr.mxu0 0.0
    %305 = vmatpush2.msra.mxu0 0.0
    %306 = vmatprep.subr.mxu0 0.0
    %307 = vmatpush2.msra.mxu0 0.0
    %308 = vmatprep.subr.mxu0 0.0
    %309 = vmatpush2.msra.mxu0 0.0
    %310 = vmatprep.subr.mxu0 0.0
    %311 = vmatpush2.msra.mxu0 0.0
    %312 = vmatprep.subr.mxu0 0.0
    %313 = vmatpush2.msra.mxu0 0.0
    %314 = vmatprep.subr.mxu0 0.0
    %315 = vmatpush2.msra.mxu0 0.0
    %316 = vmatprep.subr.mxu0 0.0
    %317 = vmatpush2.msra.mxu0 0.0
    %318 = vmatprep.subr.mxu0 0.0
    %319 = vmatpush2.msra.mxu0 0.0
    %320 = vmatprep.subr.mxu0 0.0
    %321 = vmatpush2.msra.mxu0 0.0
    %322 = vmatprep.subr.mxu0 0.0
    %323 = vmatpush2.msra.mxu0 0.0
    %324 = vmatprep.subr.mxu0 0.0
    %325 = vmatpush2.msra.mxu0 0.0
    %326 = vmatprep.subr.mxu0 0.0
    %327 = vmatpush2.msra.mxu0 0.0
    %328 = vmatprep.subr.mxu0 0.0
    %329 = vmatpush2.msra.mxu0 0.0
    %330 = vmatprep.mubr.f32.mxu0 0.0
    %331 = vmatmul.mubr.f32.gmra.mxu0 %v260
    %v332 = vpop.f32.mrf.mxu0
    %v333 = vadd.f32 0.0, %v332
    %v334 = vpop.f32.mrf.mxu0
    %335 = vdwg.mxu0
    %v337 = vsel %vm258, %v181, 0
    %339 = vmatprep.subr.mxu0 0.0
    %340 = vmatpush1.msra.mxu0 0.0
    %341 = vmatprep.subr.mxu0 0.0
    %342 = vmatpush1.msra.mxu0 0.0
    %343 = vmatprep.subr.mxu0 0.0
    %344 = vmatpush1.msra.mxu0 0.0
    %345 = vmatprep.subr.mxu0 0.0
    %346 = vmatpush1.msra.mxu0 0.0
    %347 = vmatprep.subr.mxu0 0.0
    %348 = vmatpush1.msra.mxu0 0.0
    %349 = vmatprep.subr.mxu0 0.0
    %350 = vmatpush1.msra.mxu0 0.0
    %351 = vmatprep.subr.mxu0 0.0
    %352 = vmatpush1.msra.mxu0 0.0
    %353 = vmatprep.subr.mxu0 0.0
    %354 = vmatpush1.msra.mxu0 0.0
    %355 = vmatprep.subr.mxu0 0.0
    %356 = vmatpush1.msra.mxu0 0.0
    %357 = vmatprep.subr.mxu0 0.0
    %358 = vmatpush1.msra.mxu0 0.0
    %359 = vmatprep.subr.mxu0 0.0
    %360 = vmatpush1.msra.mxu0 0.0
    %361 = vmatprep.subr.mxu0 0.0
    %362 = vmatpush1.msra.mxu0 0.0
    %363 = vmatprep.subr.mxu0 0.0
    %364 = vmatpush1.msra.mxu0 0.0
    %365 = vmatprep.subr.mxu0 0.0
    %366 = vmatpush1.msra.mxu0 0.0
    %367 = vmatprep.subr.mxu0 0.0
    %368 = vmatpush1.msra.mxu0 0.0
    %369 = vmatprep.subr.mxu0 0.0
    %370 = vmatpush1.msra.mxu0 %v264
    %371 = vmatprep.subr.mxu0 0.0
    %372 = vmatpush2.msra.mxu0 0.0
    %373 = vmatprep.subr.mxu0 0.0
    %374 = vmatpush2.msra.mxu0 0.0
    %375 = vmatprep.subr.mxu0 0.0
    %376 = vmatpush2.msra.mxu0 0.0
    %377 = vmatprep.subr.mxu0 0.0
    %378 = vmatpush2.msra.mxu0 0.0
    %379 = vmatprep.subr.mxu0 0.0
    %380 = vmatpush2.msra.mxu0 0.0
    %381 = vmatprep.subr.mxu0 0.0
    %382 = vmatpush2.msra.mxu0 0.0
    %383 = vmatprep.subr.mxu0 0.0
    %384 = vmatpush2.msra.mxu0 0.0
    %385 = vmatprep.subr.mxu0 0.0
    %386 = vmatpush2.msra.mxu0 0.0
    %387 = vmatprep.subr.mxu0 0.0
    %388 = vmatpush2.msra.mxu0 0.0
    %389 = vmatprep.subr.mxu0 0.0
    %390 = vmatpush2.msra.mxu0 0.0
    %391 = vmatprep.subr.mxu0 0.0
    %392 = vmatpush2.msra.mxu0 0.0
    %393 = vmatprep.subr.mxu0 0.0
    %394 = vmatpush2.msra.mxu0 0.0
    %395 = vmatprep.subr.mxu0 0.0
    %396 = vmatpush2.msra.mxu0 0.0
    %397 = vmatprep.subr.mxu0 0.0
    %398 = vmatpush2.msra.mxu0 0.0
    %399 = vmatprep.subr.mxu0 0.0
    %400 = vmatpush2.msra.mxu0 0.0
    %401 = vmatprep.subr.mxu0 0.0
    %402 = vmatpush2.msra.mxu0 0.0
    %403 = vmatprep.mubr.f32.mxu0 0.0
    %404 = vmatmul.mubr.f32.gmra.mxu0 %v337
    %v405 = vpop.f32.mrf.mxu0
    %v406 = vadd.f32 %v333, %v405
    %v407 = vpop.f32.mrf.mxu0
    %408 = vdwg.mxu0
    %v409 = vxor.u32 %v406, 2147483648
    %v410 = vmul.f32 %v409, 1.442695
    %v411 = vpow.pop %v410
    %v412 = vadd.f32 %v411, 1.0
    %v413 = vrcp.pop %v412
    %v414 = vmul.f32 1.0, %v413
    %415 = vst.msk [vmem:[%s3] sm:$0x3] %vm64, %v414
  $region21: #{multi_classification_forward.23} parent=0 // pred_fallthru
    _
  // Predicated region
  $region22: #{multi_classification_forward.23} parent=0 // pred_check
    _
  $region23: #{multi_classification_forward.23} parent=0 // pred_check_branch
    %417 = sbr.rel (0) target = $region25
  $region24: #{multi_classification_forward.23} parent=0 // pred_region
    _
  $region25: #{multi_classification_forward.23} parent=0 // pred_fallthru
    _
  // Predicated region
  $region26: #{multi_classification_forward.23} parent=0 // pred_check
    _
  $region27: #{multi_classification_forward.23} parent=0 // pred_check_branch
    %419 = sbr.rel (0) target = $region29
  $region28: #{multi_classification_forward.23} parent=0 // pred_region
    _
  $region29: #{multi_classification_forward.23} parent=0 // pred_fallthru
    _

// kernel: multi_classification_forward.24
$region0: #{multi_classification_forward.24}
  #allocation0 [shape = 'u32[]', space=smem, size = 0x4, offset = 0x4, fixed_abs, tag = 'smem constant byte address 0x4 - core index']
  #allocation1 [shape = 'u32[144,128]{1,0:T(1,128)}', space=vmem, size = 0x12000, scoped, tag = 'internal scratch']
  %s0 = inlined_call_operand.vmem [shape: f32[2,25,32], index: 0, kind: input, shape index: {}]
  %s1 = inlined_call_operand.vmem [shape: f32[2,32], index: 1, kind: input, shape index: {}]
  %s2 = inlined_call_operand.vmem [shape: f32[2,25,1], index: 2, kind: output, shape index: {0}]
  %s3 = inlined_call_operand.vmem [shape: f32[2,25,1], index: 3, kind: output, shape index: {1}]
  %4 = xla_tuple %s2, %s3
  %s5 = sld [smem:[#allocation0]]
  $region26: #{multi_classification_forward.24} parent=0
    _
  %s7 = ssub.s32 1, %s5
  %s8 = scalar_select 0, %s7, %s5
  // Predicated region
  $region2: #{multi_classification_forward.24} parent=0 // pred_check
    _
  $region3: #{multi_classification_forward.24} parent=0 // pred_check_branch
    %10 = sbr.rel (0) target = $region5
  $region4: #{multi_classification_forward.24} parent=0 // pred_region
    _
  $region5: #{multi_classification_forward.24} parent=0 // pred_fallthru
    _
  // Predicated region
  $region6: #{multi_classification_forward.24} parent=0 // pred_check
    _
  $region7: #{multi_classification_forward.24} parent=0 // pred_check_branch
    %12 = sbr.rel (0) target = $region9
  $region8: #{multi_classification_forward.24} parent=0 // pred_region
    _
  $region9: #{multi_classification_forward.24} parent=0 // pred_fallthru
    _
  %v13 = vld [vmem:[%s0] sm:$0xff]
  %v14 = vld [vmem:[%s0 + $0x8] sm:$0xff]
  %v15 = vld [vmem:[%s0 + $0x10] sm:$0xff]
  %v16 = vld [vmem:[%s0 + $0x18] sm:$0x1]
  %v17 = vld [vmem:[%s0 + $0x20] sm:$0xff]
  %v18 = vld [vmem:[%s0 + $0x28] sm:$0xff]
  %v19 = vld [vmem:[%s0 + $0x30] sm:$0xff]
  %v20 = vld [vmem:[%s0 + $0x38] sm:$0x1]
  %v21 = vld [vmem:[%s1] sm:$0x3]
  %v24 = vunpack.c.l.s4 1966171168
  %v25 = vunpack.c.0.s8 %v24
  %v26 = vlaneseq
  %v27 = vshrl.u32 %v26, 7
  %v28 = vsub.s32 %v25, %v27
  %v29 = vrot.slane %v21, %v28
  %v30 = vcombine.high %v29, %v29
  %v32 = vunpack.c.l.s4 1966171168
  %v33 = vunpack.c.0.s8 %v32
  %v34 = vlaneseq
  %v35 = vshrl.u32 %v34, 7
  %v36 = vsub.s32 %v33, %v35
  %v37 = vrot.slane %v29, %v36
  %v39 = vunpack.c.l.s4 1966171168
  %v40 = vunpack.c.0.s8 %v39
  %v41 = vlaneseq
  %v42 = vshrl.u32 %v41, 7
  %v43 = vsub.s32 %v40, %v42
  %v44 = vrot.slane %v30, %v43
  %v45 = vlaneseq
  %v46 = vshrl.u32 %v45, 7
  %v47 = vsub.s32 0, %v46
  %v48 = vrot.slane %v37, %v47
  %v49 = vlaneseq
  %v50 = vshrl.u32 %v49, 7
  %v51 = vsub.s32 0, %v50
  %v52 = vrot.slane %v44, %v51
  %v55 = vmul.f32 %v13, %v48
  %v56 = vmul.f32 %v14, %v48
  %v57 = vmul.f32 %v15, %v48
  %v58 = vmul.f32 %v16, %v48
  %v59 = vmul.f32 %v17, %v52
  %v60 = vmul.f32 %v18, %v52
  %v61 = vmul.f32 %v19, %v52
  %v62 = vmul.f32 %v20, %v52
  %vm63 = vcmask 261120
  %v64 = vsel %vm63, %v55, 0.0
  %65 = vadd.xlane.f32.xlu0 %v64
  %v66 = vpop.xlane.xlu0 %65
  %v67 = vsel %vm63, %v56, 0.0
  %68 = vadd.xlane.f32.xlu0 %v67
  %v69 = vpop.xlane.xlu0 %68
  %v70 = vsel %vm63, %v57, 0.0
  %71 = vadd.xlane.f32.xlu0 %v70
  %v72 = vpop.xlane.xlu0 %71
  %vm73 = vcmask 253952
  %v74 = vsel %vm73, %v58, 0.0
  %75 = vadd.xlane.f32.xlu0 %v74
  %v76 = vpop.xlane.xlu0 %75
  %v77 = vsel %vm63, %v59, 0.0
  %78 = vadd.xlane.f32.xlu0 %v77
  %v79 = vpop.xlane.xlu0 %78
  %v80 = vsel %vm63, %v60, 0.0
  %81 = vadd.xlane.f32.xlu0 %v80
  %v82 = vpop.xlane.xlu0 %81
  %v83 = vsel %vm63, %v61, 0.0
  %84 = vadd.xlane.f32.xlu0 %v83
  %v85 = vpop.xlane.xlu0 %84
  %v86 = vsel %vm73, %v62, 0.0
  %87 = vadd.xlane.f32.xlu0 %v86
  %v88 = vpop.xlane.xlu0 %87
  %v89 = vrcp.pop 32.0
  %v90 = vmul.f32 %v66, %v89
  %v91 = vmul.f32 %v69, %v89
  %v92 = vmul.f32 %v72, %v89
  %v93 = vmul.f32 %v76, %v89
  %v94 = vmul.f32 %v79, %v89
  %v95 = vmul.f32 %v82, %v89
  %v96 = vmul.f32 %v85, %v89
  %v97 = vmul.f32 %v88, %v89
  %vm98 = vcmask 7168
  %99 = vst.msk [vmem:[%s2] sm:$0xff] %vm98, %v90
  %100 = vst.msk [vmem:[%s2 + $0x8] sm:$0xff] %vm98, %v91
  %101 = vst.msk [vmem:[%s2 + $0x10] sm:$0xff] %vm98, %v92
  %vm102 = vcmask 0
  %103 = vst.msk [vmem:[%s2 + $0x18] sm:$0x1] %vm102, %v93
  %104 = vst.msk [vmem:[%s2 + $0x20] sm:$0xff] %vm98, %v94
  %105 = vst.msk [vmem:[%s2 + $0x28] sm:$0xff] %vm98, %v95
  %106 = vst.msk [vmem:[%s2 + $0x30] sm:$0xff] %vm98, %v96
  %107 = vst.msk [vmem:[%s2 + $0x38] sm:$0x1] %vm102, %v97
  %v108 = vsel %vm63, %v55, -inf
  %109 = vmax.xlane.f32.xlu0 %v108
  %v110 = vpop.xlane.xlu0 %109
  %v111 = vsel %vm63, %v56, -inf
  %112 = vmax.xlane.f32.xlu0 %v111
  %v113 = vpop.xlane.xlu0 %112
  %v114 = vsel %vm63, %v57, -inf
  %115 = vmax.xlane.f32.xlu0 %v114
  %v116 = vpop.xlane.xlu0 %115
  %v117 = vsel %vm73, %v58, -inf
  %118 = vmax.xlane.f32.xlu0 %v117
  %v119 = vpop.xlane.xlu0 %118
  %v120 = vsel %vm63, %v59, -inf
  %121 = vmax.xlane.f32.xlu0 %v120
  %v122 = vpop.xlane.xlu0 %121
  %v123 = vsel %vm63, %v60, -inf
  %124 = vmax.xlane.f32.xlu0 %v123
  %v125 = vpop.xlane.xlu0 %124
  %v126 = vsel %vm63, %v61, -inf
  %127 = vmax.xlane.f32.xlu0 %v126
  %v128 = vpop.xlane.xlu0 %127
  %v129 = vsel %vm73, %v62, -inf
  %130 = vmax.xlane.f32.xlu0 %v129
  %v131 = vpop.xlane.xlu0 %130
  %132 = vst.msk [vmem:[%s3] sm:$0xff] %vm98, %v110
  %133 = vst.msk [vmem:[%s3 + $0x8] sm:$0xff] %vm98, %v113
  %134 = vst.msk [vmem:[%s3 + $0x10] sm:$0xff] %vm98, %v116
  %135 = vst.msk [vmem:[%s3 + $0x18] sm:$0x1] %vm102, %v119
  %136 = vst.msk [vmem:[%s3 + $0x20] sm:$0xff] %vm98, %v122
  %137 = vst.msk [vmem:[%s3 + $0x28] sm:$0xff] %vm98, %v125
  %138 = vst.msk [vmem:[%s3 + $0x30] sm:$0xff] %vm98, %v128
  %139 = vst.msk [vmem:[%s3 + $0x38] sm:$0x1] %vm102, %v131
  // Predicated region
  $region10: #{multi_classification_forward.24} parent=0 // pred_check
    _
  $region11: #{multi_classification_forward.24} parent=0 // pred_check_branch
    %141 = sbr.rel (0) target = $region13
  $region12: #{multi_classification_forward.24} parent=0 // pred_region
    _
  $region13: #{multi_classification_forward.24} parent=0 // pred_fallthru
    _
  // Predicated region
  $region14: #{multi_classification_forward.24} parent=0 // pred_check
    _
  $region15: #{multi_classification_forward.24} parent=0 // pred_check_branch
    %143 = sbr.rel (0) target = $region17
  $region16: #{multi_classification_forward.24} parent=0 // pred_region
    _
  $region17: #{multi_classification_forward.24} parent=0 // pred_fallthru
    _
  // Predicated region
  $region18: #{multi_classification_forward.24} parent=0 // pred_check
    _
  $region19: #{multi_classification_forward.24} parent=0 // pred_check_branch
    %145 = sbr.rel (0) target = $region21
  $region20: #{multi_classification_forward.24} parent=0 // pred_region
    _
  $region21: #{multi_classification_forward.24} parent=0 // pred_fallthru
    _
  // Predicated region
  $region22: #{multi_classification_forward.24} parent=0 // pred_check
    _
  $region23: #{multi_classification_forward.24} parent=0 // pred_check_branch
    %147 = sbr.rel (0) target = $region25
  $region24: #{multi_classification_forward.24} parent=0 // pred_region
    _
  $region25: #{multi_classification_forward.24} parent=0 // pred_fallthru
    _

// kernel: multi_classification_forward.25
$region0: #{multi_classification_forward.25}
  #allocation0 [shape = 'u32[]', space=smem, size = 0x4, offset = 0x4, fixed_abs, tag = 'smem constant byte address 0x4 - core index']
  #allocation1 [shape = 'u32[144,128]{1,0:T(1,128)}', space=vmem, size = 0x12000, scoped, tag = 'internal scratch']
  #allocation2 [shape = 'f32[1,1]{1,0:T(1,128)S(1)}', space=vmem, size = 0x200, scoped, tag = 'scoped memory for multi_classification_forward.25']
  #allocation3 [shape = 'f32[1,1]{1,0:T(1,128)S(1)}', space=vmem, size = 0x200, scoped, tag = 'scoped memory for multi_classification_forward.25']
  %s0 = inlined_call_operand.vmem [shape: bf16[50,98], index: 0, kind: input, shape index: {}]
  %s1 = inlined_call_operand.vmem [shape: bf16[98,1], index: 1, kind: input, shape index: {}]
  %s2 = inlined_call_operand.<no memory space> [shape: f32[1,1], index: 2, kind: input, shape index: {}]
  %s3 = inlined_call_operand.<no memory space> [shape: f32[1,1], index: 3, kind: input, shape index: {}]
  %s4 = inlined_call_operand.vmem [shape: f32[50,1], index: 4, kind: output, shape index: {}]
  %s5 = sld [smem:[#allocation0]]
  $region26: #{multi_classification_forward.25} parent=0
    _
  %s7 = ssub.s32 1, %s5
  %s8 = scalar_select 0, %s7, %s5
  %v9 = vstv %s2
  %10 = vst [vmem:[#allocation2] sm:$0x1] %v9
  %v11 = vstv %s3
  %12 = vst [vmem:[#allocation3] sm:$0x1] %v11
  // Predicated region
  $region2: #{multi_classification_forward.25} parent=0 // pred_check
    _
  $region3: #{multi_classification_forward.25} parent=0 // pred_check_branch
    %14 = sbr.rel (0) target = $region5
  $region4: #{multi_classification_forward.25} parent=0 // pred_region
    _
  $region5: #{multi_classification_forward.25} parent=0 // pred_fallthru
    _
  // Predicated region
  $region6: #{multi_classification_forward.25} parent=0 // pred_check
    _
  $region7: #{multi_classification_forward.25} parent=0 // pred_check_branch
    %16 = sbr.rel (0) target = $region9
  $region8: #{multi_classification_forward.25} parent=0 // pred_region
    _
  $region9: #{multi_classification_forward.25} parent=0 // pred_fallthru
    _
  // Predicated region
  $region10: #{multi_classification_forward.25} parent=0 // pred_check
    _
  $region11: #{multi_classification_forward.25} parent=0 // pred_check_branch
    %18 = sbr.rel (0) target = $region13
  $region12: #{multi_classification_forward.25} parent=0 // pred_region
    _
  $region13: #{multi_classification_forward.25} parent=0 // pred_fallthru
    _
  // Predicated region
  $region14: #{multi_classification_forward.25} parent=0 // pred_check
    _
  $region15: #{multi_classification_forward.25} parent=0 // pred_check_branch
    %20 = sbr.rel (0) target = $region17
  $region16: #{multi_classification_forward.25} parent=0 // pred_region
    _
  $region17: #{multi_classification_forward.25} parent=0 // pred_fallthru
    _
  %v22 = vld [vmem:[%s0] sm:$0xf]
  %v23 = vld [vmem:[%s0 + $0x4] sm:$0xf]
  %v24 = vld [vmem:[%s0 + $0x8] sm:$0xf]
  %v25 = vld [vmem:[%s0 + $0xc] sm:$0xf]
  %v26 = vld [vmem:[%s0 + $0x10] sm:$0xf]
  %v27 = vld [vmem:[%s0 + $0x14] sm:$0xf]
  %v28 = vld [vmem:[%s0 + $0x18] sm:$0x1]
  %v29 = vld [vmem:[%s1] sm:$0xf]
  %v30 = vld [vmem:[%s1 + $0x4] sm:$0xf]
  %v31 = vld [vmem:[%s1 + $0x8] sm:$0xf]
  %v32 = vld [vmem:[%s1 + $0xc] sm:$0xf]
  %v33 = vld [vmem:[%s1 + $0x10] sm:$0xf]
  %v34 = vld [vmem:[%s1 + $0x14] sm:$0xf]
  %v35 = vld [vmem:[%s1 + $0x18] sm:$0xf]
  %v36 = vld [vmem:[%s1 + $0x1c] sm:$0xf]
  %v37 = vld [vmem:[%s1 + $0x20] sm:$0xf]
  %v38 = vld [vmem:[%s1 + $0x24] sm:$0xf]
  %v39 = vld [vmem:[%s1 + $0x28] sm:$0xf]
  %v40 = vld [vmem:[%s1 + $0x2c] sm:$0xf]
  %v41 = vld [vmem:[%s1 + $0x30] sm:$0x1]
  %v49 = vunpack.c.l.b16 %v22
  %v50 = vunpack.c.l.b16 %v23
  %v51 = vunpack.c.l.b16 %v24
  %v52 = vunpack.c.l.b16 %v25
  %v53 = vunpack.c.l.b16 %v26
  %v54 = vunpack.c.l.b16 %v27
  %v55 = vunpack.c.l.b16 %v28
  %v56 = vpack.c.b16 %v50, %v49
  %v57 = vpack.c.b16 %v52, %v51
  %v58 = vpack.c.b16 %v54, %v53
  %v59 = vpack.c.b16 %v55, %v55
  %v73 = vunpack.c.l.b16 %v29
  %v74 = vunpack.c.l.b16 %v30
  %v75 = vunpack.c.l.b16 %v31
  %v76 = vunpack.c.l.b16 %v32
  %v77 = vunpack.c.l.b16 %v33
  %v78 = vunpack.c.l.b16 %v34
  %v79 = vunpack.c.l.b16 %v35
  %v80 = vunpack.c.l.b16 %v36
  %v81 = vunpack.c.l.b16 %v37
  %v82 = vunpack.c.l.b16 %v38
  %v83 = vunpack.c.l.b16 %v39
  %v84 = vunpack.c.l.b16 %v40
  %v85 = vunpack.c.l.b16 %v41
  %v86 = vpack.c.b16 %v74, %v73
  %v87 = vpack.c.b16 %v76, %v75
  %v88 = vpack.c.b16 %v78, %v77
  %v89 = vpack.c.b16 %v80, %v79
  %v90 = vpack.c.b16 %v82, %v81
  %v91 = vpack.c.b16 %v84, %v83
  %v92 = vpack.c.b16 %v85, %v85
  %vm99 = vcmask 801792
  %v101 = vsel %vm99, %v56, 0
  %v104 = vsel %vm99, %v57, 0
  %v107 = vsel %vm99, %v58, 0
  %v110 = vsel %vm99, %v59, 0
  %vm112 = vcmask 1040384
  %v114 = vsel %vm112, %v92, 0
  %116 = vmatprep.subr.bf16.mxu0 0
  %117 = vmatpush1.bf16.msra.mxu0 0
  %118 = vmatprep.subr.bf16.mxu0 0
  %119 = vmatpush1.bf16.msra.mxu0 %v114
  %120 = vmatprep.subr.bf16.mxu0 0
  %121 = vmatpush1.bf16.msra.mxu0 %v91
  %122 = vmatprep.subr.bf16.mxu0 0
  %123 = vmatpush1.bf16.msra.mxu0 %v90
  %124 = vmatprep.subr.bf16.mxu0 0
  %125 = vmatpush1.bf16.msra.mxu0 %v89
  %126 = vmatprep.subr.bf16.mxu0 0
  %127 = vmatpush1.bf16.msra.mxu0 %v88
  %128 = vmatprep.subr.bf16.mxu0 0
  %129 = vmatpush1.bf16.msra.mxu0 %v87
  %130 = vmatprep.subr.bf16.mxu0 0
  %131 = vmatpush1.bf16.msra.mxu0 %v86
  %132 = vmatprep.subr.bf16.mxu0 0
  %133 = vmatpush2.bf16.msra.mxu0 0
  %134 = vmatprep.subr.bf16.mxu0 0
  %135 = vmatpush2.bf16.msra.mxu0 0
  %136 = vmatprep.subr.bf16.mxu0 0
  %137 = vmatpush2.bf16.msra.mxu0 0
  %138 = vmatprep.subr.bf16.mxu0 0
  %139 = vmatpush2.bf16.msra.mxu0 0
  %140 = vmatprep.subr.bf16.mxu0 0
  %141 = vmatpush2.bf16.msra.mxu0 0
  %142 = vmatprep.subr.bf16.mxu0 0
  %143 = vmatpush2.bf16.msra.mxu0 0
  %144 = vmatprep.subr.bf16.mxu0 0
  %145 = vmatpush2.bf16.msra.mxu0 0
  %146 = vmatprep.subr.bf16.mxu0 0
  %147 = vmatpush2.bf16.msra.mxu0 0
  %148 = vmatprep.mubr.bf16.mxu0 0
  %149 = vmatmul.mubr.bf16.gmra.mxu0 %v101
  %v150 = vpop.f32.mrf.mxu0
  %v151 = vadd.f32 0.0, %v150
  %v152 = vpop.f32.mrf.mxu0
  %v153 = vpop.f32.mrf.mxu0
  %v154 = vadd.f32 0.0, %v153
  %v155 = vpop.f32.mrf.mxu0
  %156 = vmatprep.mubr.bf16.mxu0 0
  %157 = vmatmul.mubr.bf16.gmra.mxu0 %v104
  %v158 = vpop.f32.mrf.mxu0
  %v159 = vadd.f32 0.0, %v158
  %v160 = vpop.f32.mrf.mxu0
  %v161 = vpop.f32.mrf.mxu0
  %v162 = vadd.f32 0.0, %v161
  %v163 = vpop.f32.mrf.mxu0
  %164 = vmatprep.mubr.bf16.mxu0 0
  %165 = vmatmul.mubr.bf16.gmra.mxu0 %v107
  %v166 = vpop.f32.mrf.mxu0
  %v167 = vadd.f32 0.0, %v166
  %v168 = vpop.f32.mrf.mxu0
  %v169 = vpop.f32.mrf.mxu0
  %v170 = vadd.f32 0.0, %v169
  %v171 = vpop.f32.mrf.mxu0
  %172 = vmatprep.mubr.bf16.mxu0 0
  %173 = vmatmul.mubr.bf16.gmra.mxu0 %v110
  %v174 = vpop.f32.mrf.mxu0
  %v175 = vadd.f32 0.0, %v174
  %v176 = vpop.f32.mrf.mxu0
  %v177 = vpop.f32.mrf.mxu0
  %v178 = vpop.f32.mrf.mxu0
  %179 = vdwg.mxu0
  %v180 = vld [vmem:[#allocation2] sm:$0x1]
  %v182 = vlaneseq
  %v183 = vshrl.u32 %v182, 7
  %v184 = vsub.s32 0, %v183
  %v185 = vrot.slane %v180, %v184
  %v187 = vmul.f32 %v151, %v185
  %v188 = vmul.f32 %v154, %v185
  %v189 = vmul.f32 %v159, %v185
  %v190 = vmul.f32 %v162, %v185
  %v191 = vmul.f32 %v167, %v185
  %v192 = vmul.f32 %v170, %v185
  %v193 = vmul.f32 %v175, %v185
  %v194 = vld [vmem:[#allocation3] sm:$0x1]
  %v196 = vlaneseq
  %v197 = vshrl.u32 %v196, 7
  %v198 = vsub.s32 0, %v197
  %v199 = vrot.slane %v194, %v198
  %v201 = vadd.f32 %v187, %v199
  %v202 = vadd.f32 %v188, %v199
  %v203 = vadd.f32 %v189, %v199
  %v204 = vadd.f32 %v190, %v199
  %v205 = vadd.f32 %v191, %v199
  %v206 = vadd.f32 %v192, %v199
  %v207 = vadd.f32 %v193, %v199
  %v208 = vxor.u32 %v201, 2147483648
  %v209 = vxor.u32 %v202, 2147483648
  %v210 = vxor.u32 %v203, 2147483648
  %v211 = vxor.u32 %v204, 2147483648
  %v212 = vxor.u32 %v205, 2147483648
  %v213 = vxor.u32 %v206, 2147483648
  %v214 = vxor.u32 %v207, 2147483648
  %v215 = vmul.f32 %v208, 1.442695
  %v216 = vpow.pop %v215
  %v217 = vmul.f32 %v209, 1.442695
  %v218 = vpow.pop %v217
  %v219 = vmul.f32 %v210, 1.442695
  %v220 = vpow.pop %v219
  %v221 = vmul.f32 %v211, 1.442695
  %v222 = vpow.pop %v221
  %v223 = vmul.f32 %v212, 1.442695
  %v224 = vpow.pop %v223
  %v225 = vmul.f32 %v213, 1.442695
  %v226 = vpow.pop %v225
  %v227 = vmul.f32 %v214, 1.442695
  %v228 = vpow.pop %v227
  %v229 = vadd.f32 %v216, 1.0
  %v230 = vadd.f32 %v218, 1.0
  %v231 = vadd.f32 %v220, 1.0
  %v232 = vadd.f32 %v222, 1.0
  %v233 = vadd.f32 %v224, 1.0
  %v234 = vadd.f32 %v226, 1.0
  %v235 = vadd.f32 %v228, 1.0
  %v236 = vrcp.pop %v229
  %v237 = vmul.f32 1.0, %v236
  %v238 = vrcp.pop %v230
  %v239 = vmul.f32 1.0, %v238
  %v240 = vrcp.pop %v231
  %v241 = vmul.f32 1.0, %v240
  %v242 = vrcp.pop %v232
  %v243 = vmul.f32 1.0, %v242
  %v244 = vrcp.pop %v233
  %v245 = vmul.f32 1.0, %v244
  %v246 = vrcp.pop %v234
  %v247 = vmul.f32 1.0, %v246
  %v248 = vrcp.pop %v235
  %v249 = vmul.f32 1.0, %v248
  %vm250 = vcmask 7168
  %251 = vst.msk [vmem:[%s4] sm:$0xff] %vm250, %v237
  %252 = vst.msk [vmem:[%s4 + $0x8] sm:$0xff] %vm250, %v239
  %253 = vst.msk [vmem:[%s4 + $0x10] sm:$0xff] %vm250, %v241
  %254 = vst.msk [vmem:[%s4 + $0x18] sm:$0xff] %vm250, %v243
  %255 = vst.msk [vmem:[%s4 + $0x20] sm:$0xff] %vm250, %v245
  %256 = vst.msk [vmem:[%s4 + $0x28] sm:$0xff] %vm250, %v247
  %vm257 = vcmask 1024
  %258 = vst.msk [vmem:[%s4 + $0x30] sm:$0x3] %vm257, %v249
  // Predicated region
  $region18: #{multi_classification_forward.25} parent=0 // pred_check
    _
  $region19: #{multi_classification_forward.25} parent=0 // pred_check_branch
    %260 = sbr.rel (0) target = $region21
  $region20: #{multi_classification_forward.25} parent=0 // pred_region
    _
  $region21: #{multi_classification_forward.25} parent=0 // pred_fallthru
    _
  // Predicated region
  $region22: #{multi_classification_forward.25} parent=0 // pred_check
    _
  $region23: #{multi_classification_forward.25} parent=0 // pred_check_branch
    %262 = sbr.rel (0) target = $region25
  $region24: #{multi_classification_forward.25} parent=0 // pred_region
    _
  $region25: #{multi_classification_forward.25} parent=0 // pred_fallthru
    _

// kernel: multi_classification_forward.26
$region0: #{multi_classification_forward.26}
  #allocation0 [shape = 'u32[]', space=smem, size = 0x4, offset = 0x4, fixed_abs, tag = 'smem constant byte address 0x4 - core index']
  #allocation1 [shape = 'u32[144,128]{1,0:T(1,128)}', space=vmem, size = 0x12000, scoped, tag = 'internal scratch']
  %s0 = inlined_call_operand.vmem [shape: f32[2,25,32], index: 0, kind: input, shape index: {}]
  %s1 = inlined_call_operand.vmem [shape: f32[2,32], index: 1, kind: input, shape index: {}]
  %s2 = inlined_call_operand.vmem [shape: f32[2,25,1], index: 2, kind: input, shape index: {}]
  %s3 = inlined_call_operand.vmem [shape: f32[2,25,32], index: 3, kind: output, shape index: {}]
  %s4 = sld [smem:[#allocation0]]
  $region22: #{multi_classification_forward.26} parent=0
    _
  %s6 = ssub.s32 1, %s4
  %s7 = scalar_select 0, %s6, %s4
  // Predicated region
  $region2: #{multi_classification_forward.26} parent=0 // pred_check
    _
  $region3: #{multi_classification_forward.26} parent=0 // pred_check_branch
    %9 = sbr.rel (0) target = $region5
  $region4: #{multi_classification_forward.26} parent=0 // pred_region
    _
  $region5: #{multi_classification_forward.26} parent=0 // pred_fallthru
    _
  // Predicated region
  $region6: #{multi_classification_forward.26} parent=0 // pred_check
    _
  $region7: #{multi_classification_forward.26} parent=0 // pred_check_branch
    %11 = sbr.rel (0) target = $region9
  $region8: #{multi_classification_forward.26} parent=0 // pred_region
    _
  $region9: #{multi_classification_forward.26} parent=0 // pred_fallthru
    _
  // Predicated region
  $region10: #{multi_classification_forward.26} parent=0 // pred_check
    _
  $region11: #{multi_classification_forward.26} parent=0 // pred_check_branch
    %13 = sbr.rel (0) target = $region13
  $region12: #{multi_classification_forward.26} parent=0 // pred_region
    _
  $region13: #{multi_classification_forward.26} parent=0 // pred_fallthru
    _
  %v14 = vld [vmem:[%s0] sm:$0xff]
  %v15 = vld [vmem:[%s0 + $0x8] sm:$0xff]
  %v16 = vld [vmem:[%s0 + $0x10] sm:$0xff]
  %v17 = vld [vmem:[%s0 + $0x18] sm:$0x1]
  %v18 = vld [vmem:[%s0 + $0x20] sm:$0xff]
  %v19 = vld [vmem:[%s0 + $0x28] sm:$0xff]
  %v20 = vld [vmem:[%s0 + $0x30] sm:$0xff]
  %v21 = vld [vmem:[%s0 + $0x38] sm:$0x1]
  %v22 = vld [vmem:[%s1] sm:$0x3]
  %v25 = vunpack.c.l.s4 1966171168
  %v26 = vunpack.c.0.s8 %v25
  %v27 = vlaneseq
  %v28 = vshrl.u32 %v27, 7
  %v29 = vsub.s32 %v26, %v28
  %v30 = vrot.slane %v22, %v29
  %v31 = vcombine.high %v30, %v30
  %v33 = vunpack.c.l.s4 1966171168
  %v34 = vunpack.c.0.s8 %v33
  %v35 = vlaneseq
  %v36 = vshrl.u32 %v35, 7
  %v37 = vsub.s32 %v34, %v36
  %v38 = vrot.slane %v30, %v37
  %v40 = vunpack.c.l.s4 1966171168
  %v41 = vunpack.c.0.s8 %v40
  %v42 = vlaneseq
  %v43 = vshrl.u32 %v42, 7
  %v44 = vsub.s32 %v41, %v43
  %v45 = vrot.slane %v31, %v44
  %v46 = vlaneseq
  %v47 = vshrl.u32 %v46, 7
  %v48 = vsub.s32 0, %v47
  %v49 = vrot.slane %v38, %v48
  %v50 = vlaneseq
  %v51 = vshrl.u32 %v50, 7
  %v52 = vsub.s32 0, %v51
  %v53 = vrot.slane %v45, %v52
  %v56 = vmul.f32 %v14, %v49
  %v57 = vmul.f32 %v15, %v49
  %v58 = vmul.f32 %v16, %v49
  %v59 = vmul.f32 %v17, %v49
  %v60 = vmul.f32 %v18, %v53
  %v61 = vmul.f32 %v19, %v53
  %v62 = vmul.f32 %v20, %v53
  %v63 = vmul.f32 %v21, %v53
  %v64 = vld [vmem:[%s2] sm:$0xff]
  %v65 = vld [vmem:[%s2 + $0x8] sm:$0xff]
  %v66 = vld [vmem:[%s2 + $0x10] sm:$0xff]
  %v67 = vld [vmem:[%s2 + $0x18] sm:$0x1]
  %v68 = vld [vmem:[%s2 + $0x20] sm:$0xff]
  %v69 = vld [vmem:[%s2 + $0x28] sm:$0xff]
  %v70 = vld [vmem:[%s2 + $0x30] sm:$0xff]
  %v71 = vld [vmem:[%s2 + $0x38] sm:$0x1]
  %73 = vset.pattern.permute.xlu0 0
  %74 = vperm.xlu0 %73, %v64
  %v75 = vpop.permute.xlu0 %74
  %78 = vset.pattern.permute.xlu0 0
  %79 = vperm.xlu0 %78, %v65
  %v80 = vpop.permute.xlu0 %79
  %83 = vset.pattern.permute.xlu0 0
  %84 = vperm.xlu0 %83, %v66
  %v85 = vpop.permute.xlu0 %84
  %88 = vset.pattern.permute.xlu0 0
  %89 = vperm.xlu0 %88, %v67
  %v90 = vpop.permute.xlu0 %89
  %93 = vset.pattern.permute.xlu0 0
  %94 = vperm.xlu0 %93, %v68
  %v95 = vpop.permute.xlu0 %94
  %98 = vset.pattern.permute.xlu0 0
  %99 = vperm.xlu0 %98, %v69
  %v100 = vpop.permute.xlu0 %99
  %103 = vset.pattern.permute.xlu0 0
  %104 = vperm.xlu0 %103, %v70
  %v105 = vpop.permute.xlu0 %104
  %108 = vset.pattern.permute.xlu0 0
  %109 = vperm.xlu0 %108, %v71
  %v110 = vpop.permute.xlu0 %109
  %v112 = vmul.f32 %v56, %v75
  %v113 = vmul.f32 %v57, %v80
  %v114 = vmul.f32 %v58, %v85
  %v115 = vmul.f32 %v59, %v90
  %v116 = vmul.f32 %v60, %v95
  %v117 = vmul.f32 %v61, %v100
  %v118 = vmul.f32 %v62, %v105
  %v119 = vmul.f32 %v63, %v110
  %vm120 = vcmask 261120
  %121 = vst.msk [vmem:[%s3] sm:$0xff] %vm120, %v112
  %122 = vst.msk [vmem:[%s3 + $0x8] sm:$0xff] %vm120, %v113
  %123 = vst.msk [vmem:[%s3 + $0x10] sm:$0xff] %vm120, %v114
  %vm124 = vcmask 253952
  %125 = vst.msk [vmem:[%s3 + $0x18] sm:$0x1] %vm124, %v115
  %126 = vst.msk [vmem:[%s3 + $0x20] sm:$0xff] %vm120, %v116
  %127 = vst.msk [vmem:[%s3 + $0x28] sm:$0xff] %vm120, %v117
  %128 = vst.msk [vmem:[%s3 + $0x30] sm:$0xff] %vm120, %v118
  %129 = vst.msk [vmem:[%s3 + $0x38] sm:$0x1] %vm124, %v119
  // Predicated region
  $region14: #{multi_classification_forward.26} parent=0 // pred_check
    _
  $region15: #{multi_classification_forward.26} parent=0 // pred_check_branch
    %131 = sbr.rel (0) target = $region17
  $region16: #{multi_classification_forward.26} parent=0 // pred_region
    _
  $region17: #{multi_classification_forward.26} parent=0 // pred_fallthru
    _
  // Predicated region
  $region18: #{multi_classification_forward.26} parent=0 // pred_check
    _
  $region19: #{multi_classification_forward.26} parent=0 // pred_check_branch
    %133 = sbr.rel (0) target = $region21
  $region20: #{multi_classification_forward.26} parent=0 // pred_region
    _
  $region21: #{multi_classification_forward.26} parent=0 // pred_fallthru
    _

// kernel: multi_classification_forward.27
$region0: #{multi_classification_forward.27}
  #allocation0 [shape = 'u32[]', space=smem, size = 0x4, offset = 0x4, fixed_abs, tag = 'smem constant byte address 0x4 - core index']
  #allocation1 [shape = 'u32[144,128]{1,0:T(1,128)}', space=vmem, size = 0x12000, scoped, tag = 'internal scratch']
  %s0 = inlined_call_operand.vmem [shape: bf16[50,288], index: 0, kind: input, shape index: {}]
  %s1 = inlined_call_operand.vmem [shape: bf16[288,8], index: 1, kind: input, shape index: {}]
  %s2 = inlined_call_operand.vmem [shape: f32[1,8], index: 2, kind: input, shape index: {}]
  %s3 = inlined_call_operand.vmem [shape: f32[1,8], index: 3, kind: input, shape index: {}]
  %s4 = inlined_call_operand.vmem [shape: f32[50,8], index: 4, kind: output, shape index: {}]
  %s5 = sld [smem:[#allocation0]]
  $region26: #{multi_classification_forward.27} parent=0
    _
  %s7 = ssub.s32 1, %s5
  %s8 = scalar_select 0, %s7, %s5
  // Predicated region
  $region2: #{multi_classification_forward.27} parent=0 // pred_check
    _
  $region3: #{multi_classification_forward.27} parent=0 // pred_check_branch
    %10 = sbr.rel (0) target = $region5
  $region4: #{multi_classification_forward.27} parent=0 // pred_region
    _
  $region5: #{multi_classification_forward.27} parent=0 // pred_fallthru
    _
  // Predicated region
  $region6: #{multi_classification_forward.27} parent=0 // pred_check
    _
  $region7: #{multi_classification_forward.27} parent=0 // pred_check_branch
    %12 = sbr.rel (0) target = $region9
  $region8: #{multi_classification_forward.27} parent=0 // pred_region
    _
  $region9: #{multi_classification_forward.27} parent=0 // pred_fallthru
    _
  // Predicated region
  $region10: #{multi_classification_forward.27} parent=0 // pred_check
    _
  $region11: #{multi_classification_forward.27} parent=0 // pred_check_branch
    %14 = sbr.rel (0) target = $region13
  $region12: #{multi_classification_forward.27} parent=0 // pred_region
    _
  $region13: #{multi_classification_forward.27} parent=0 // pred_fallthru
    _
  // Predicated region
  $region14: #{multi_classification_forward.27} parent=0 // pred_check
    _
  $region15: #{multi_classification_forward.27} parent=0 // pred_check_branch
    %16 = sbr.rel (0) target = $region17
  $region16: #{multi_classification_forward.27} parent=0 // pred_region
    _
  $region17: #{multi_classification_forward.27} parent=0 // pred_fallthru
    _
  %v18 = vld [vmem:[%s0] sm:$0xff]
  %v19 = vld [vmem:[%s0 + $0x8] sm:$0xf]
  %v20 = vld [vmem:[%s0 + $0xc] sm:$0xff]
  %v21 = vld [vmem:[%s0 + $0x14] sm:$0xf]
  %v22 = vld [vmem:[%s0 + $0x18] sm:$0xff]
  %v23 = vld [vmem:[%s0 + $0x20] sm:$0xf]
  %v24 = vld [vmem:[%s0 + $0x24] sm:$0xff]
  %v25 = vld [vmem:[%s0 + $0x2c] sm:$0xf]
  %v26 = vld [vmem:[%s0 + $0x30] sm:$0xff]
  %v27 = vld [vmem:[%s0 + $0x38] sm:$0xf]
  %v28 = vld [vmem:[%s0 + $0x3c] sm:$0xff]
  %v29 = vld [vmem:[%s0 + $0x44] sm:$0xf]
  %v30 = vld [vmem:[%s0 + $0x48] sm:$0x11]
  %v31 = vld [vmem:[%s0 + $0x50] sm:$0x1]
  %v32 = vld [vmem:[%s1] sm:$0xf]
  %v33 = vld [vmem:[%s1 + $0x4] sm:$0xf]
  %v34 = vld [vmem:[%s1 + $0x8] sm:$0xf]
  %v35 = vld [vmem:[%s1 + $0xc] sm:$0xf]
  %v36 = vld [vmem:[%s1 + $0x10] sm:$0xf]
  %v37 = vld [vmem:[%s1 + $0x14] sm:$0xf]
  %v38 = vld [vmem:[%s1 + $0x18] sm:$0xf]
  %v39 = vld [vmem:[%s1 + $0x1c] sm:$0xf]
  %v40 = vld [vmem:[%s1 + $0x20] sm:$0xf]
  %v41 = vld [vmem:[%s1 + $0x24] sm:$0xf]
  %v42 = vld [vmem:[%s1 + $0x28] sm:$0xf]
  %v43 = vld [vmem:[%s1 + $0x2c] sm:$0xf]
  %v44 = vld [vmem:[%s1 + $0x30] sm:$0xf]
  %v45 = vld [vmem:[%s1 + $0x34] sm:$0xf]
  %v46 = vld [vmem:[%s1 + $0x38] sm:$0xf]
  %v47 = vld [vmem:[%s1 + $0x3c] sm:$0xf]
  %v48 = vld [vmem:[%s1 + $0x40] sm:$0xf]
  %v49 = vld [vmem:[%s1 + $0x44] sm:$0xf]
  %v50 = vld [vmem:[%s1 + $0x48] sm:$0xf]
  %v51 = vld [vmem:[%s1 + $0x4c] sm:$0xf]
  %v52 = vld [vmem:[%s1 + $0x50] sm:$0xf]
  %v53 = vld [vmem:[%s1 + $0x54] sm:$0xf]
  %v54 = vld [vmem:[%s1 + $0x58] sm:$0xf]
  %v55 = vld [vmem:[%s1 + $0x5c] sm:$0xf]
  %v56 = vld [vmem:[%s1 + $0x60] sm:$0xf]
  %v57 = vld [vmem:[%s1 + $0x64] sm:$0xf]
  %v58 = vld [vmem:[%s1 + $0x68] sm:$0xf]
  %v59 = vld [vmem:[%s1 + $0x6c] sm:$0xf]
  %v60 = vld [vmem:[%s1 + $0x70] sm:$0xf]
  %v61 = vld [vmem:[%s1 + $0x74] sm:$0xf]
  %v62 = vld [vmem:[%s1 + $0x78] sm:$0xf]
  %v63 = vld [vmem:[%s1 + $0x7c] sm:$0xf]
  %v64 = vld [vmem:[%s1 + $0x80] sm:$0xf]
  %v65 = vld [vmem:[%s1 + $0x84] sm:$0xf]
  %v66 = vld [vmem:[%s1 + $0x88] sm:$0xf]
  %v67 = vld [vmem:[%s1 + $0x8c] sm:$0xf]
  %v82 = vunpack.c.l.b16 %v18
  %v83 = vunpack.c.h.b16 %v18
  %v84 = vunpack.c.l.b16 %v19
  %v85 = vunpack.c.l.b16 %v20
  %v86 = vunpack.c.h.b16 %v20
  %v87 = vunpack.c.l.b16 %v21
  %v88 = vunpack.c.l.b16 %v22
  %v89 = vunpack.c.h.b16 %v22
  %v90 = vunpack.c.l.b16 %v23
  %v91 = vunpack.c.l.b16 %v24
  %v92 = vunpack.c.h.b16 %v24
  %v93 = vunpack.c.l.b16 %v25
  %v94 = vunpack.c.l.b16 %v26
  %v95 = vunpack.c.h.b16 %v26
  %v96 = vunpack.c.l.b16 %v27
  %v97 = vunpack.c.l.b16 %v28
  %v98 = vunpack.c.h.b16 %v28
  %v99 = vunpack.c.l.b16 %v29
  %v100 = vunpack.c.l.b16 %v30
  %v101 = vunpack.c.h.b16 %v30
  %v102 = vunpack.c.l.b16 %v31
  %v103 = vpack.c.b16 %v85, %v82
  %v104 = vpack.c.b16 %v86, %v83
  %v105 = vpack.c.b16 %v87, %v84
  %v106 = vpack.c.b16 %v91, %v88
  %v107 = vpack.c.b16 %v92, %v89
  %v108 = vpack.c.b16 %v93, %v90
  %v109 = vpack.c.b16 %v97, %v94
  %v110 = vpack.c.b16 %v98, %v95
  %v111 = vpack.c.b16 %v99, %v96
  %v112 = vpack.c.b16 %v100, %v100
  %v113 = vpack.c.b16 %v101, %v101
  %v114 = vpack.c.b16 %v102, %v102
  %v159 = vunpack.c.l.b16 %v32
  %v160 = vunpack.c.l.b16 %v33
  %v161 = vunpack.c.l.b16 %v34
  %v162 = vunpack.c.l.b16 %v35
  %v163 = vunpack.c.l.b16 %v36
  %v164 = vunpack.c.l.b16 %v37
  %v165 = vunpack.c.l.b16 %v38
  %v166 = vunpack.c.l.b16 %v39
  %v167 = vunpack.c.l.b16 %v40
  %v168 = vunpack.c.l.b16 %v41
  %v169 = vunpack.c.l.b16 %v42
  %v170 = vunpack.c.l.b16 %v43
  %v171 = vunpack.c.l.b16 %v44
  %v172 = vunpack.c.l.b16 %v45
  %v173 = vunpack.c.l.b16 %v46
  %v174 = vunpack.c.l.b16 %v47
  %v175 = vunpack.c.l.b16 %v48
  %v176 = vunpack.c.l.b16 %v49
  %v177 = vunpack.c.l.b16 %v50
  %v178 = vunpack.c.l.b16 %v51
  %v179 = vunpack.c.l.b16 %v52
  %v180 = vunpack.c.l.b16 %v53
  %v181 = vunpack.c.l.b16 %v54
  %v182 = vunpack.c.l.b16 %v55
  %v183 = vunpack.c.l.b16 %v56
  %v184 = vunpack.c.l.b16 %v57
  %v185 = vunpack.c.l.b16 %v58
  %v186 = vunpack.c.l.b16 %v59
  %v187 = vunpack.c.l.b16 %v60
  %v188 = vunpack.c.l.b16 %v61
  %v189 = vunpack.c.l.b16 %v62
  %v190 = vunpack.c.l.b16 %v63
  %v191 = vunpack.c.l.b16 %v64
  %v192 = vunpack.c.l.b16 %v65
  %v193 = vunpack.c.l.b16 %v66
  %v194 = vunpack.c.l.b16 %v67
  %v195 = vpack.c.b16 %v160, %v159
  %v196 = vpack.c.b16 %v162, %v161
  %v197 = vpack.c.b16 %v164, %v163
  %v198 = vpack.c.b16 %v166, %v165
  %v199 = vpack.c.b16 %v168, %v167
  %v200 = vpack.c.b16 %v170, %v169
  %v201 = vpack.c.b16 %v172, %v171
  %v202 = vpack.c.b16 %v174, %v173
  %v203 = vpack.c.b16 %v176, %v175
  %v204 = vpack.c.b16 %v178, %v177
  %v205 = vpack.c.b16 %v180, %v179
  %v206 = vpack.c.b16 %v182, %v181
  %v207 = vpack.c.b16 %v184, %v183
  %v208 = vpack.c.b16 %v186, %v185
  %v209 = vpack.c.b16 %v188, %v187
  %v210 = vpack.c.b16 %v190, %v189
  %v211 = vpack.c.b16 %v192, %v191
  %v212 = vpack.c.b16 %v194, %v193
  %vm231 = vcmask 261120
  %v233 = vsel %vm231, %v105, 0
  %v236 = vsel %vm231, %v108, 0
  %v239 = vsel %vm231, %v111, 0
  %v242 = vsel %vm231, %v114, 0
  %244 = vmatprep.subr.bf16.mxu0 0
  %245 = vmatpush1.bf16.msra.mxu0 %v202
  %246 = vmatprep.subr.bf16.mxu0 0
  %247 = vmatpush1.bf16.msra.mxu0 %v201
  %248 = vmatprep.subr.bf16.mxu0 0
  %249 = vmatpush1.bf16.msra.mxu0 %v200
  %250 = vmatprep.subr.bf16.mxu0 0
  %251 = vmatpush1.bf16.msra.mxu0 %v199
  %252 = vmatprep.subr.bf16.mxu0 0
  %253 = vmatpush1.bf16.msra.mxu0 %v198
  %254 = vmatprep.subr.bf16.mxu0 0
  %255 = vmatpush1.bf16.msra.mxu0 %v197
  %256 = vmatprep.subr.bf16.mxu0 0
  %257 = vmatpush1.bf16.msra.mxu0 %v196
  %258 = vmatprep.subr.bf16.mxu0 0
  %259 = vmatpush1.bf16.msra.mxu0 %v195
  %260 = vmatprep.subr.bf16.mxu0 0
  %261 = vmatpush2.bf16.msra.mxu0 %v210
  %262 = vmatprep.subr.bf16.mxu0 0
  %263 = vmatpush2.bf16.msra.mxu0 %v209
  %264 = vmatprep.subr.bf16.mxu0 0
  %265 = vmatpush2.bf16.msra.mxu0 %v208
  %266 = vmatprep.subr.bf16.mxu0 0
  %267 = vmatpush2.bf16.msra.mxu0 %v207
  %268 = vmatprep.subr.bf16.mxu0 0
  %269 = vmatpush2.bf16.msra.mxu0 %v206
  %270 = vmatprep.subr.bf16.mxu0 0
  %271 = vmatpush2.bf16.msra.mxu0 %v205
  %272 = vmatprep.subr.bf16.mxu0 0
  %273 = vmatpush2.bf16.msra.mxu0 %v204
  %274 = vmatprep.subr.bf16.mxu0 0
  %275 = vmatpush2.bf16.msra.mxu0 %v203
  %276 = vmatprep.mubr.bf16.mxu0 %v104
  %277 = vmatmul.mubr.bf16.gmra.mxu0 %v103
  %v278 = vpop.f32.mrf.mxu0
  %v279 = vadd.f32 0.0, %v278
  %v280 = vpop.f32.mrf.mxu0
  %v281 = vpop.f32.mrf.mxu0
  %v282 = vadd.f32 0.0, %v281
  %v283 = vpop.f32.mrf.mxu0
  %284 = vmatprep.mubr.bf16.mxu0 %v107
  %285 = vmatmul.mubr.bf16.gmra.mxu0 %v106
  %v286 = vpop.f32.mrf.mxu0
  %v287 = vadd.f32 0.0, %v286
  %v288 = vpop.f32.mrf.mxu0
  %v289 = vpop.f32.mrf.mxu0
  %v290 = vadd.f32 0.0, %v289
  %v291 = vpop.f32.mrf.mxu0
  %292 = vmatprep.mubr.bf16.mxu0 %v110
  %293 = vmatmul.mubr.bf16.gmra.mxu0 %v109
  %v294 = vpop.f32.mrf.mxu0
  %v295 = vadd.f32 0.0, %v294
  %v296 = vpop.f32.mrf.mxu0
  %v297 = vpop.f32.mrf.mxu0
  %v298 = vadd.f32 0.0, %v297
  %v299 = vpop.f32.mrf.mxu0
  %300 = vmatprep.mubr.bf16.mxu0 %v113
  %301 = vmatmul.mubr.bf16.gmra.mxu0 %v112
  %v302 = vpop.f32.mrf.mxu0
  %v303 = vadd.f32 0.0, %v302
  %v304 = vpop.f32.mrf.mxu0
  %v305 = vpop.f32.mrf.mxu0
  %v306 = vpop.f32.mrf.mxu0
  %307 = vdwg.mxu0
  %308 = vmatprep.subr.bf16.mxu0 0
  %309 = vmatpush1.bf16.msra.mxu0 0
  %310 = vmatprep.subr.bf16.mxu0 0
  %311 = vmatpush1.bf16.msra.mxu0 0
  %312 = vmatprep.subr.bf16.mxu0 0
  %313 = vmatpush1.bf16.msra.mxu0 0
  %314 = vmatprep.subr.bf16.mxu0 0
  %315 = vmatpush1.bf16.msra.mxu0 0
  %316 = vmatprep.subr.bf16.mxu0 0
  %317 = vmatpush1.bf16.msra.mxu0 0
  %318 = vmatprep.subr.bf16.mxu0 0
  %319 = vmatpush1.bf16.msra.mxu0 0
  %320 = vmatprep.subr.bf16.mxu0 0
  %321 = vmatpush1.bf16.msra.mxu0 %v212
  %322 = vmatprep.subr.bf16.mxu0 0
  %323 = vmatpush1.bf16.msra.mxu0 %v211
  %324 = vmatprep.subr.bf16.mxu0 0
  %325 = vmatpush2.bf16.msra.mxu0 0
  %326 = vmatprep.subr.bf16.mxu0 0
  %327 = vmatpush2.bf16.msra.mxu0 0
  %328 = vmatprep.subr.bf16.mxu0 0
  %329 = vmatpush2.bf16.msra.mxu0 0
  %330 = vmatprep.subr.bf16.mxu0 0
  %331 = vmatpush2.bf16.msra.mxu0 0
  %332 = vmatprep.subr.bf16.mxu0 0
  %333 = vmatpush2.bf16.msra.mxu0 0
  %334 = vmatprep.subr.bf16.mxu0 0
  %335 = vmatpush2.bf16.msra.mxu0 0
  %336 = vmatprep.subr.bf16.mxu0 0
  %337 = vmatpush2.bf16.msra.mxu0 0
  %338 = vmatprep.subr.bf16.mxu0 0
  %339 = vmatpush2.bf16.msra.mxu0 0
  %340 = vmatprep.mubr.bf16.mxu0 0
  %341 = vmatmul.mubr.bf16.gmra.mxu0 %v233
  %v342 = vpop.f32.mrf.mxu0
  %v343 = vadd.f32 %v279, %v342
  %v344 = vpop.f32.mrf.mxu0
  %v345 = vpop.f32.mrf.mxu0
  %v346 = vadd.f32 %v282, %v345
  %v347 = vpop.f32.mrf.mxu0
  %348 = vmatprep.mubr.bf16.mxu0 0
  %349 = vmatmul.mubr.bf16.gmra.mxu0 %v236
  %v350 = vpop.f32.mrf.mxu0
  %v351 = vadd.f32 %v287, %v350
  %v352 = vpop.f32.mrf.mxu0
  %v353 = vpop.f32.mrf.mxu0
  %v354 = vadd.f32 %v290, %v353
  %v355 = vpop.f32.mrf.mxu0
  %356 = vmatprep.mubr.bf16.mxu0 0
  %357 = vmatmul.mubr.bf16.gmra.mxu0 %v239
  %v358 = vpop.f32.mrf.mxu0
  %v359 = vadd.f32 %v295, %v358
  %v360 = vpop.f32.mrf.mxu0
  %v361 = vpop.f32.mrf.mxu0
  %v362 = vadd.f32 %v298, %v361
  %v363 = vpop.f32.mrf.mxu0
  %364 = vmatprep.mubr.bf16.mxu0 0
  %365 = vmatmul.mubr.bf16.gmra.mxu0 %v242
  %v366 = vpop.f32.mrf.mxu0
  %v367 = vadd.f32 %v303, %v366
  %v368 = vpop.f32.mrf.mxu0
  %v369 = vpop.f32.mrf.mxu0
  %v370 = vpop.f32.mrf.mxu0
  %371 = vdwg.mxu0
  %v372 = vld [vmem:[%s2] sm:$0x1]
  %v374 = vlaneseq
  %v375 = vshrl.u32 %v374, 7
  %v376 = vsub.s32 0, %v375
  %v377 = vrot.slane %v372, %v376
  %v379 = vmul.f32 %v343, %v377
  %v380 = vmul.f32 %v346, %v377
  %v381 = vmul.f32 %v351, %v377
  %v382 = vmul.f32 %v354, %v377
  %v383 = vmul.f32 %v359, %v377
  %v384 = vmul.f32 %v362, %v377
  %v385 = vmul.f32 %v367, %v377
  %v386 = vld [vmem:[%s3] sm:$0x1]
  %v388 = vlaneseq
  %v389 = vshrl.u32 %v388, 7
  %v390 = vsub.s32 0, %v389
  %v391 = vrot.slane %v386, %v390
  %v393 = vadd.f32 %v379, %v391
  %v394 = vadd.f32 %v380, %v391
  %v395 = vadd.f32 %v381, %v391
  %v396 = vadd.f32 %v382, %v391
  %v397 = vadd.f32 %v383, %v391
  %v398 = vadd.f32 %v384, %v391
  %v399 = vadd.f32 %v385, %v391
  %vm400 = vcmp.ge.f32.partialorder %v393, 0.0
  %vm401 = vcmp.ge.f32.partialorder %v394, 0.0
  %vm402 = vcmp.ge.f32.partialorder %v395, 0.0
  %vm403 = vcmp.ge.f32.partialorder %v396, 0.0
  %vm404 = vcmp.ge.f32.partialorder %v397, 0.0
  %vm405 = vcmp.ge.f32.partialorder %v398, 0.0
  %vm406 = vcmp.ge.f32.partialorder %v399, 0.0
  %v407 = vmul.f32 %v393, 0.01
  %v408 = vmul.f32 %v394, 0.01
  %v409 = vmul.f32 %v395, 0.01
  %v410 = vmul.f32 %v396, 0.01
  %v411 = vmul.f32 %v397, 0.01
  %v412 = vmul.f32 %v398, 0.01
  %v413 = vmul.f32 %v399, 0.01
  %v414 = vsel %vm400, %v393, %v407
  %v415 = vsel %vm401, %v394, %v408
  %v416 = vsel %vm402, %v395, %v409
  %v417 = vsel %vm403, %v396, %v410
  %v418 = vsel %vm404, %v397, %v411
  %v419 = vsel %vm405, %v398, %v412
  %v420 = vsel %vm406, %v399, %v413
  %vm421 = vcmask 64512
  %422 = vst.msk [vmem:[%s4] sm:$0xff] %vm421, %v414
  %423 = vst.msk [vmem:[%s4 + $0x8] sm:$0xff] %vm421, %v415
  %424 = vst.msk [vmem:[%s4 + $0x10] sm:$0xff] %vm421, %v416
  %425 = vst.msk [vmem:[%s4 + $0x18] sm:$0xff] %vm421, %v417
  %426 = vst.msk [vmem:[%s4 + $0x20] sm:$0xff] %vm421, %v418
  %427 = vst.msk [vmem:[%s4 + $0x28] sm:$0xff] %vm421, %v419
  %vm428 = vcmask 58368
  %429 = vst.msk [vmem:[%s4 + $0x30] sm:$0x3] %vm428, %v420
  // Predicated region
  $region18: #{multi_classification_forward.27} parent=0 // pred_check
    _
  $region19: #{multi_classification_forward.27} parent=0 // pred_check_branch
    %431 = sbr.rel (0) target = $region21
  $region20: #{multi_classification_forward.27} parent=0 // pred_region
    _
  $region21: #{multi_classification_forward.27} parent=0 // pred_fallthru
    _
  // Predicated region
  $region22: #{multi_classification_forward.27} parent=0 // pred_check
    _
  $region23: #{multi_classification_forward.27} parent=0 // pred_check_branch
    %433 = sbr.rel (0) target = $region25
  $region24: #{multi_classification_forward.27} parent=0 // pred_region
    _
  $region25: #{multi_classification_forward.27} parent=0 // pred_fallthru
    _

// kernel: multi_classification_forward.28
$region0: #{multi_classification_forward.28}
  #allocation0 [shape = 'u32[]', space=smem, size = 0x4, offset = 0x4, fixed_abs, tag = 'smem constant byte address 0x4 - core index']
  #allocation1 [shape = 'u32[144,128]{1,0:T(1,128)}', space=vmem, size = 0x12000, scoped, tag = 'internal scratch']
  %s0 = inlined_call_operand.vmem [shape: bf16[50,72], index: 0, kind: input, shape index: {}]
  %s1 = inlined_call_operand.vmem [shape: bf16[72,3], index: 1, kind: input, shape index: {}]
  %s2 = inlined_call_operand.vmem [shape: f32[1,3], index: 2, kind: input, shape index: {}]
  %s3 = inlined_call_operand.vmem [shape: f32[1,3], index: 3, kind: input, shape index: {}]
  %s4 = inlined_call_operand.vmem [shape: f32[50,3], index: 4, kind: output, shape index: {}]
  %s5 = sld [smem:[#allocation0]]
  $region26: #{multi_classification_forward.28} parent=0
    _
  %s7 = ssub.s32 1, %s5
  %s8 = scalar_select 0, %s7, %s5
  // Predicated region
  $region2: #{multi_classification_forward.28} parent=0 // pred_check
    _
  $region3: #{multi_classification_forward.28} parent=0 // pred_check_branch
    %10 = sbr.rel (0) target = $region5
  $region4: #{multi_classification_forward.28} parent=0 // pred_region
    _
  $region5: #{multi_classification_forward.28} parent=0 // pred_fallthru
    _
  // Predicated region
  $region6: #{multi_classification_forward.28} parent=0 // pred_check
    _
  $region7: #{multi_classification_forward.28} parent=0 // pred_check_branch
    %12 = sbr.rel (0) target = $region9
  $region8: #{multi_classification_forward.28} parent=0 // pred_region
    _
  $region9: #{multi_classification_forward.28} parent=0 // pred_fallthru
    _
  // Predicated region
  $region10: #{multi_classification_forward.28} parent=0 // pred_check
    _
  $region11: #{multi_classification_forward.28} parent=0 // pred_check_branch
    %14 = sbr.rel (0) target = $region13
  $region12: #{multi_classification_forward.28} parent=0 // pred_region
    _
  $region13: #{multi_classification_forward.28} parent=0 // pred_fallthru
    _
  // Predicated region
  $region14: #{multi_classification_forward.28} parent=0 // pred_check
    _
  $region15: #{multi_classification_forward.28} parent=0 // pred_check_branch
    %16 = sbr.rel (0) target = $region17
  $region16: #{multi_classification_forward.28} parent=0 // pred_region
    _
  $region17: #{multi_classification_forward.28} parent=0 // pred_fallthru
    _
  %v18 = vld [vmem:[%s0] sm:$0xf]
  %v19 = vld [vmem:[%s0 + $0x4] sm:$0xf]
  %v20 = vld [vmem:[%s0 + $0x8] sm:$0xf]
  %v21 = vld [vmem:[%s0 + $0xc] sm:$0xf]
  %v22 = vld [vmem:[%s0 + $0x10] sm:$0xf]
  %v23 = vld [vmem:[%s0 + $0x14] sm:$0xf]
  %v24 = vld [vmem:[%s0 + $0x18] sm:$0x1]
  %v25 = vld [vmem:[%s1] sm:$0xf]
  %v26 = vld [vmem:[%s1 + $0x4] sm:$0xf]
  %v27 = vld [vmem:[%s1 + $0x8] sm:$0xf]
  %v28 = vld [vmem:[%s1 + $0xc] sm:$0xf]
  %v29 = vld [vmem:[%s1 + $0x10] sm:$0xf]
  %v30 = vld [vmem:[%s1 + $0x14] sm:$0xf]
  %v31 = vld [vmem:[%s1 + $0x18] sm:$0xf]
  %v32 = vld [vmem:[%s1 + $0x1c] sm:$0xf]
  %v33 = vld [vmem:[%s1 + $0x20] sm:$0xf]
  %v41 = vunpack.c.l.b16 %v18
  %v42 = vunpack.c.l.b16 %v19
  %v43 = vunpack.c.l.b16 %v20
  %v44 = vunpack.c.l.b16 %v21
  %v45 = vunpack.c.l.b16 %v22
  %v46 = vunpack.c.l.b16 %v23
  %v47 = vunpack.c.l.b16 %v24
  %v48 = vpack.c.b16 %v42, %v41
  %v49 = vpack.c.b16 %v44, %v43
  %v50 = vpack.c.b16 %v46, %v45
  %v51 = vpack.c.b16 %v47, %v47
  %v61 = vunpack.c.l.b16 %v25
  %v62 = vunpack.c.l.b16 %v26
  %v63 = vunpack.c.l.b16 %v27
  %v64 = vunpack.c.l.b16 %v28
  %v65 = vunpack.c.l.b16 %v29
  %v66 = vunpack.c.l.b16 %v30
  %v67 = vunpack.c.l.b16 %v31
  %v68 = vunpack.c.l.b16 %v32
  %v69 = vunpack.c.l.b16 %v33
  %v70 = vpack.c.b16 %v62, %v61
  %v71 = vpack.c.b16 %v64, %v63
  %v72 = vpack.c.b16 %v66, %v65
  %v73 = vpack.c.b16 %v68, %v67
  %v74 = vpack.c.b16 %v69, %v69
  %vm79 = vcmask 588800
  %v81 = vsel %vm79, %v48, 0
  %v84 = vsel %vm79, %v49, 0
  %v87 = vsel %vm79, %v50, 0
  %v90 = vsel %vm79, %v51, 0
  %vm92 = vcmask 1043456
  %v94 = vsel %vm92, %v74, 0
  %96 = vmatprep.subr.bf16.mxu0 0
  %97 = vmatpush1.bf16.msra.mxu0 0
  %98 = vmatprep.subr.bf16.mxu0 0
  %99 = vmatpush1.bf16.msra.mxu0 0
  %100 = vmatprep.subr.bf16.mxu0 0
  %101 = vmatpush1.bf16.msra.mxu0 0
  %102 = vmatprep.subr.bf16.mxu0 0
  %103 = vmatpush1.bf16.msra.mxu0 %v94
  %104 = vmatprep.subr.bf16.mxu0 0
  %105 = vmatpush1.bf16.msra.mxu0 %v73
  %106 = vmatprep.subr.bf16.mxu0 0
  %107 = vmatpush1.bf16.msra.mxu0 %v72
  %108 = vmatprep.subr.bf16.mxu0 0
  %109 = vmatpush1.bf16.msra.mxu0 %v71
  %110 = vmatprep.subr.bf16.mxu0 0
  %111 = vmatpush1.bf16.msra.mxu0 %v70
  %112 = vmatprep.subr.bf16.mxu0 0
  %113 = vmatpush2.bf16.msra.mxu0 0
  %114 = vmatprep.subr.bf16.mxu0 0
  %115 = vmatpush2.bf16.msra.mxu0 0
  %116 = vmatprep.subr.bf16.mxu0 0
  %117 = vmatpush2.bf16.msra.mxu0 0
  %118 = vmatprep.subr.bf16.mxu0 0
  %119 = vmatpush2.bf16.msra.mxu0 0
  %120 = vmatprep.subr.bf16.mxu0 0
  %121 = vmatpush2.bf16.msra.mxu0 0
  %122 = vmatprep.subr.bf16.mxu0 0
  %123 = vmatpush2.bf16.msra.mxu0 0
  %124 = vmatprep.subr.bf16.mxu0 0
  %125 = vmatpush2.bf16.msra.mxu0 0
  %126 = vmatprep.subr.bf16.mxu0 0
  %127 = vmatpush2.bf16.msra.mxu0 0
  %128 = vmatprep.mubr.bf16.mxu0 0
  %129 = vmatmul.mubr.bf16.gmra.mxu0 %v81
  %v130 = vpop.f32.mrf.mxu0
  %v131 = vadd.f32 0.0, %v130
  %v132 = vpop.f32.mrf.mxu0
  %v133 = vpop.f32.mrf.mxu0
  %v134 = vadd.f32 0.0, %v133
  %v135 = vpop.f32.mrf.mxu0
  %136 = vmatprep.mubr.bf16.mxu0 0
  %137 = vmatmul.mubr.bf16.gmra.mxu0 %v84
  %v138 = vpop.f32.mrf.mxu0
  %v139 = vadd.f32 0.0, %v138
  %v140 = vpop.f32.mrf.mxu0
  %v141 = vpop.f32.mrf.mxu0
  %v142 = vadd.f32 0.0, %v141
  %v143 = vpop.f32.mrf.mxu0
  %144 = vmatprep.mubr.bf16.mxu0 0
  %145 = vmatmul.mubr.bf16.gmra.mxu0 %v87
  %v146 = vpop.f32.mrf.mxu0
  %v147 = vadd.f32 0.0, %v146
  %v148 = vpop.f32.mrf.mxu0
  %v149 = vpop.f32.mrf.mxu0
  %v150 = vadd.f32 0.0, %v149
  %v151 = vpop.f32.mrf.mxu0
  %152 = vmatprep.mubr.bf16.mxu0 0
  %153 = vmatmul.mubr.bf16.gmra.mxu0 %v90
  %v154 = vpop.f32.mrf.mxu0
  %v155 = vadd.f32 0.0, %v154
  %v156 = vpop.f32.mrf.mxu0
  %v157 = vpop.f32.mrf.mxu0
  %v158 = vpop.f32.mrf.mxu0
  %159 = vdwg.mxu0
  %v160 = vld [vmem:[%s2] sm:$0x1]
  %v162 = vlaneseq
  %v163 = vshrl.u32 %v162, 7
  %v164 = vsub.s32 0, %v163
  %v165 = vrot.slane %v160, %v164
  %v167 = vmul.f32 %v131, %v165
  %v168 = vmul.f32 %v134, %v165
  %v169 = vmul.f32 %v139, %v165
  %v170 = vmul.f32 %v142, %v165
  %v171 = vmul.f32 %v147, %v165
  %v172 = vmul.f32 %v150, %v165
  %v173 = vmul.f32 %v155, %v165
  %v174 = vld [vmem:[%s3] sm:$0x1]
  %v176 = vlaneseq
  %v177 = vshrl.u32 %v176, 7
  %v178 = vsub.s32 0, %v177
  %v179 = vrot.slane %v174, %v178
  %v181 = vadd.f32 %v167, %v179
  %v182 = vadd.f32 %v168, %v179
  %v183 = vadd.f32 %v169, %v179
  %v184 = vadd.f32 %v170, %v179
  %v185 = vadd.f32 %v171, %v179
  %v186 = vadd.f32 %v172, %v179
  %v187 = vadd.f32 %v173, %v179
  %vm188 = vcmp.ge.f32.partialorder %v181, 0.0
  %vm189 = vcmp.ge.f32.partialorder %v182, 0.0
  %vm190 = vcmp.ge.f32.partialorder %v183, 0.0
  %vm191 = vcmp.ge.f32.partialorder %v184, 0.0
  %vm192 = vcmp.ge.f32.partialorder %v185, 0.0
  %vm193 = vcmp.ge.f32.partialorder %v186, 0.0
  %vm194 = vcmp.ge.f32.partialorder %v187, 0.0
  %v195 = vmul.f32 %v181, 0.01
  %v196 = vmul.f32 %v182, 0.01
  %v197 = vmul.f32 %v183, 0.01
  %v198 = vmul.f32 %v184, 0.01
  %v199 = vmul.f32 %v185, 0.01
  %v200 = vmul.f32 %v186, 0.01
  %v201 = vmul.f32 %v187, 0.01
  %v202 = vsel %vm188, %v181, %v195
  %v203 = vsel %vm189, %v182, %v196
  %v204 = vsel %vm190, %v183, %v197
  %v205 = vsel %vm191, %v184, %v198
  %v206 = vsel %vm192, %v185, %v199
  %v207 = vsel %vm193, %v186, %v200
  %v208 = vsel %vm194, %v187, %v201
  %vm209 = vcmask 23552
  %210 = vst.msk [vmem:[%s4] sm:$0xff] %vm209, %v202
  %211 = vst.msk [vmem:[%s4 + $0x8] sm:$0xff] %vm209, %v203
  %212 = vst.msk [vmem:[%s4 + $0x10] sm:$0xff] %vm209, %v204
  %213 = vst.msk [vmem:[%s4 + $0x18] sm:$0xff] %vm209, %v205
  %214 = vst.msk [vmem:[%s4 + $0x20] sm:$0xff] %vm209, %v206
  %215 = vst.msk [vmem:[%s4 + $0x28] sm:$0xff] %vm209, %v207
  %vm216 = vcmask 17408
  %217 = vst.msk [vmem:[%s4 + $0x30] sm:$0x3] %vm216, %v208
  // Predicated region
  $region18: #{multi_classification_forward.28} parent=0 // pred_check
    _
  $region19: #{multi_classification_forward.28} parent=0 // pred_check_branch
    %219 = sbr.rel (0) target = $region21
  $region20: #{multi_classification_forward.28} parent=0 // pred_region
    _
  $region21: #{multi_classification_forward.28} parent=0 // pred_fallthru
    _
  // Predicated region
  $region22: #{multi_classification_forward.28} parent=0 // pred_check
    _
  $region23: #{multi_classification_forward.28} parent=0 // pred_check_branch
    %221 = sbr.rel (0) target = $region25
  $region24: #{multi_classification_forward.28} parent=0 // pred_region
    _
  $region25: #{multi_classification_forward.28} parent=0 // pred_fallthru
    _

// kernel: multi_classification_forward.29
$region0: #{multi_classification_forward.29}
  #allocation0 [shape = 'u32[]', space=smem, size = 0x4, offset = 0x4, fixed_abs, tag = 'smem constant byte address 0x4 - core index']
  #allocation1 [shape = 'u32[144,128]{1,0:T(1,128)}', space=vmem, size = 0x12000, scoped, tag = 'internal scratch']
  %s0 = inlined_call_operand.vmem [shape: f32[32,5], index: 0, kind: input, shape index: {}]
  %s1 = inlined_call_operand.vmem [shape: f32[2,5,15], index: 1, kind: input, shape index: {}]
  %s2 = inlined_call_operand.vmem [shape: f32[2,32,15], index: 2, kind: output, shape index: {}]
  %s3 = sld [smem:[#allocation0]]
  $region41: #{multi_classification_forward.29} parent=0
    _
  %s5 = ssub.s32 1, %s3
  %s6 = scalar_select 0, %s5, %s3
  loop: start=0, step=1, limit=4
  $region2: #{multi_classification_forward.29} parent=0 // loop_pre_header
    _
  $region3: #{multi_classification_forward.29} parent=0 // loop_header
    %s8 = sphi 0, %s12
    %p9 = scmp.ge.s32.totalorder %s8, 4
    %s16 = sphi 0, %s16
    %s18 = sphi 0, %s16
    %s19 = sphi 0, %s18
    %s33 = sphi 0, %s19
    %s39 = sphi 0, %s41
    %s42 = sphi 0, %s39
    %s43 = sphi 0, %s42
    %s59 = sphi 0, %s43
    %s65 = sphi 0, %s67
    %s68 = sphi 0, %s65
    %s69 = sphi 0, %s68
    %s85 = sphi 0, %s69
  $region4: #{multi_classification_forward.29} parent=0 // loop_header_branch
    %11 = sbr.rel (%p9) target = $region8
  $region5: #{multi_classification_forward.29} parent=0 // loop_body
    %s13 = ssub.s32 %s8, 1
    %s14 = ssub.s32 %s8, 2
    %s15 = sadd.s32 %s8, 1
    %s17 = sadd.s32 %s16, 1
    %p20 = scmp.eq.s32.totalorder %s8, 1
    %p21 = scmp.ne.s32.totalorder %s16, %s18
    %p22 = scmp.eq.s32.totalorder %s8, 0
    %p23 = por %p21, %p22
    %p24 = scmp.ne.s32.totalorder %s16, %s18
    %p25 = scmp.eq.s32.totalorder %s13, 1
    %p26 = por %p24, %p25
    %p27 = scmp.ne.s32.totalorder %s18, %s19
    %p28 = scmp.eq.s32.totalorder %s13, 0
    %p29 = por %p27, %p28
    %p30 = scmp.ne.s32.totalorder %s18, %s19
    %p31 = scmp.eq.s32.totalorder %s14, 1
    %p32 = por %p30, %p31
    %p34 = scmp.ne.s32.totalorder %s19, %s33
    %p35 = scmp.eq.s32.totalorder %s14, 0
    %p36 = por %p34, %p35
    %s37 = ssub.s32 %s8, %s15
    %p38 = scmp.eq.s32.totalorder %s37, 0
    %s40 = sadd.s32 %s39, 1
    %s41 = scalar_select %p38, %s39, %s40
    %p44 = pneg %p38
    %p45 = scmp.eq.s32.totalorder %s8, 1
    %p46 = por %p44, %p45
    %p47 = scmp.ne.s32.totalorder %s39, %s42
    %p48 = scmp.eq.s32.totalorder %s8, 0
    %p49 = por %p47, %p48
    %p50 = scmp.ne.s32.totalorder %s39, %s42
    %p51 = scmp.eq.s32.totalorder %s13, 1
    %p52 = por %p50, %p51
    %p53 = scmp.ne.s32.totalorder %s42, %s43
    %p54 = scmp.eq.s32.totalorder %s13, 0
    %p55 = por %p53, %p54
    %p56 = scmp.ne.s32.totalorder %s42, %s43
    %p57 = scmp.eq.s32.totalorder %s14, 1
    %p58 = por %p56, %p57
    %p60 = scmp.ne.s32.totalorder %s43, %s59
    %p61 = scmp.eq.s32.totalorder %s14, 0
    %p62 = por %p60, %p61
    %s63 = ssub.s32 %s8, %s15
    %p64 = scmp.eq.s32.totalorder %s63, 0
    %s66 = sadd.s32 %s65, 1
    %s67 = scalar_select %p64, %s65, %s66
    %p70 = pneg %p64
    %p71 = scmp.eq.s32.totalorder %s8, 1
    %p72 = por %p70, %p71
    %p73 = scmp.ne.s32.totalorder %s65, %s68
    %p74 = scmp.eq.s32.totalorder %s8, 0
    %p75 = por %p73, %p74
    %p76 = scmp.ne.s32.totalorder %s65, %s68
    %p77 = scmp.eq.s32.totalorder %s13, 1
    %p78 = por %p76, %p77
    %p79 = scmp.ne.s32.totalorder %s68, %s69
    %p80 = scmp.eq.s32.totalorder %s13, 0
    %p81 = por %p79, %p80
    %p82 = scmp.ne.s32.totalorder %s68, %s69
    %p83 = scmp.eq.s32.totalorder %s14, 1
    %p84 = por %p82, %p83
    %p86 = scmp.ne.s32.totalorder %s69, %s85
    %p87 = scmp.eq.s32.totalorder %s14, 0
    %p88 = por %p86, %p87
    %p89 = scmp.le.s32.totalorder 1, %s8
    %p90 = scmp.lt.s32.totalorder %s8, 3
    %p91 = pnand %p89, %p90
    %p92 = pneg %p91
    // Predicated region
    $region9: #{multi_classification_forward.29} parent=5 // pred_check
      _
    $region10: #{multi_classification_forward.29} parent=5 // pred_check_branch
      %94 = sbr.rel (%p91) target = $region12
    $region11: #{multi_classification_forward.29} parent=5 // pred_region
      %s95 = ssub.s32 %s8, 1
      // Predicated region
      $region13: #{multi_classification_forward.29} parent=11 // pred_check
        %p96 = pneg %p29
      $region14: #{multi_classification_forward.29} parent=11 // pred_check_branch
        %98 = sbr.rel (%p96) target = $region16
      $region15: #{multi_classification_forward.29} parent=11 // pred_region
        _
      $region16: #{multi_classification_forward.29} parent=11 // pred_fallthru
        _
    $region12: #{multi_classification_forward.29} parent=5 // pred_fallthru
      _
    %p99 = scmp.lt.s32.totalorder %s8, 2
    // Predicated region
    $region17: #{multi_classification_forward.29} parent=5 // pred_check
      %p100 = pneg %p99
    $region18: #{multi_classification_forward.29} parent=5 // pred_check_branch
      %102 = sbr.rel (%p100) target = $region20
    $region19: #{multi_classification_forward.29} parent=5 // pred_region
      // Predicated region
      $region21: #{multi_classification_forward.29} parent=19 // pred_check
        %p103 = pneg %p49
      $region22: #{multi_classification_forward.29} parent=19 // pred_check_branch
        %105 = sbr.rel (%p103) target = $region24
      $region23: #{multi_classification_forward.29} parent=19 // pred_region
        %p106 = scmp.lt.s32.totalorder %s8, 1
        %s107 = scalar_select %p106, %s8, 1
        %s108 = smul.addr %s107, 8
        %s109 = scalar_lea.vmem %s1, %s108
      $region24: #{multi_classification_forward.29} parent=19 // pred_fallthru
        _
    $region20: #{multi_classification_forward.29} parent=5 // pred_fallthru
      _
    %p110 = scmp.le.s32.totalorder 1, %s8
    %p111 = scmp.lt.s32.totalorder %s8, 3
    %p112 = pnand %p110, %p111
    %p113 = pneg %p112
    // Predicated region
    $region25: #{multi_classification_forward.29} parent=5 // pred_check
      _
    $region26: #{multi_classification_forward.29} parent=5 // pred_check_branch
      %115 = sbr.rel (%p112) target = $region28
    $region27: #{multi_classification_forward.29} parent=5 // pred_region
      %s116 = ssub.s32 %s8, 1
      %p117 = pneg %p29
      %p118 = pneg %p26
      %p119 = scmp.lt.s32.totalorder %s13, 1
      %s120 = scalar_select %p119, %s13, 1
      %s121 = smul.addr %s120, 8
      %s122 = scalar_lea.vmem %s1, %s121
      %p123 = pneg %p55
      %p124 = pneg %p52
      %p125 = pneg %p81
      %p126 = pneg %p78
      %p127 = scmp.lt.s32.totalorder %s13, 1
      %s128 = scalar_select %p127, %s13, 1
      %s129 = smul.addr %s128, 4
      %s130 = smul.addr %s129, 8
      %s131 = scalar_lea.vmem %s2, %s130
      %p132 = scmp.lt.s32.totalorder %s13, 1
      %s133 = scalar_select %p132, %s13, 1
      %s134 = smul.addr %s133, 8
      %s135 = scalar_lea.vmem %s1, %s134
      %p136 = scmp.lt.s32.totalorder %s13, 1
      %s137 = scalar_select %p136, %s13, 1
      %s138 = smul.addr %s137, 4
      %s139 = smul.addr %s138, 8
      %s140 = scalar_lea.vmem %s2, %s139
      %v141 = vld [vmem:[%s0] sm:$0xff]
      %v142 = vld [vmem:[%s0 + $0x8] sm:$0xff]
      %v143 = vld [vmem:[%s0 + $0x10] sm:$0xff]
      %v144 = vld [vmem:[%s0 + $0x18] sm:$0xff]
      %v145 = vld [vmem:[%s135] sm:$0x1f]
      %vm146 = vcmask 39936
      %v148 = vsel %vm146, %v141, 0
      %v151 = vsel %vm146, %v142, 0
      %v154 = vsel %vm146, %v143, 0
      %v157 = vsel %vm146, %v144, 0
      %vm159 = vcmask 1044480
      %v161 = vsel %vm159, %v145, 0
      %163 = vmatprep.subr.mxu0 0.0
      %164 = vmatpush1.msra.mxu0 0.0
      %165 = vmatprep.subr.mxu0 0.0
      %166 = vmatpush1.msra.mxu0 0.0
      %167 = vmatprep.subr.mxu0 0.0
      %168 = vmatpush1.msra.mxu0 0.0
      %169 = vmatprep.subr.mxu0 0.0
      %170 = vmatpush1.msra.mxu0 0.0
      %171 = vmatprep.subr.mxu0 0.0
      %172 = vmatpush1.msra.mxu0 0.0
      %173 = vmatprep.subr.mxu0 0.0
      %174 = vmatpush1.msra.mxu0 0.0
      %175 = vmatprep.subr.mxu0 0.0
      %176 = vmatpush1.msra.mxu0 0.0
      %177 = vmatprep.subr.mxu0 0.0
      %178 = vmatpush1.msra.mxu0 0.0
      %179 = vmatprep.subr.mxu0 0.0
      %180 = vmatpush1.msra.mxu0 0.0
      %181 = vmatprep.subr.mxu0 0.0
      %182 = vmatpush1.msra.mxu0 0.0
      %183 = vmatprep.subr.mxu0 0.0
      %184 = vmatpush1.msra.mxu0 0.0
      %185 = vmatprep.subr.mxu0 0.0
      %186 = vmatpush1.msra.mxu0 0.0
      %187 = vmatprep.subr.mxu0 0.0
      %188 = vmatpush1.msra.mxu0 0.0
      %189 = vmatprep.subr.mxu0 0.0
      %190 = vmatpush1.msra.mxu0 0.0
      %191 = vmatprep.subr.mxu0 0.0
      %192 = vmatpush1.msra.mxu0 0.0
      %193 = vmatprep.subr.mxu0 0.0
      %194 = vmatpush1.msra.mxu0 %v161
      %195 = vmatprep.subr.mxu0 0.0
      %196 = vmatpush2.msra.mxu0 0.0
      %197 = vmatprep.subr.mxu0 0.0
      %198 = vmatpush2.msra.mxu0 0.0
      %199 = vmatprep.subr.mxu0 0.0
      %200 = vmatpush2.msra.mxu0 0.0
      %201 = vmatprep.subr.mxu0 0.0
      %202 = vmatpush2.msra.mxu0 0.0
      %203 = vmatprep.subr.mxu0 0.0
      %204 = vmatpush2.msra.mxu0 0.0
      %205 = vmatprep.subr.mxu0 0.0
      %206 = vmatpush2.msra.mxu0 0.0
      %207 = vmatprep.subr.mxu0 0.0
      %208 = vmatpush2.msra.mxu0 0.0
      %209 = vmatprep.subr.mxu0 0.0
      %210 = vmatpush2.msra.mxu0 0.0
      %211 = vmatprep.subr.mxu0 0.0
      %212 = vmatpush2.msra.mxu0 0.0
      %213 = vmatprep.subr.mxu0 0.0
      %214 = vmatpush2.msra.mxu0 0.0
      %215 = vmatprep.subr.mxu0 0.0
      %216 = vmatpush2.msra.mxu0 0.0
      %217 = vmatprep.subr.mxu0 0.0
      %218 = vmatpush2.msra.mxu0 0.0
      %219 = vmatprep.subr.mxu0 0.0
      %220 = vmatpush2.msra.mxu0 0.0
      %221 = vmatprep.subr.mxu0 0.0
      %222 = vmatpush2.msra.mxu0 0.0
      %223 = vmatprep.subr.mxu0 0.0
      %224 = vmatpush2.msra.mxu0 0.0
      %225 = vmatprep.subr.mxu0 0.0
      %226 = vmatpush2.msra.mxu0 0.0
      %227 = vmatprep.mubr.f32.mxu0 0.0
      %228 = vmatmul.mubr.f32.gmra.mxu0 %v148
      %v229 = vpop.f32.mrf.mxu0
      %v230 = vadd.f32 0.0, %v229
      %v231 = vpop.f32.mrf.mxu0
      %232 = vmatprep.mubr.f32.mxu0 0.0
      %233 = vmatmul.mubr.f32.gmra.mxu0 %v151
      %v234 = vpop.f32.mrf.mxu0
      %v235 = vadd.f32 0.0, %v234
      %v236 = vpop.f32.mrf.mxu0
      %237 = vmatprep.mubr.f32.mxu0 0.0
      %238 = vmatmul.mubr.f32.gmra.mxu0 %v154
      %v239 = vpop.f32.mrf.mxu0
      %v240 = vadd.f32 0.0, %v239
      %v241 = vpop.f32.mrf.mxu0
      %242 = vmatprep.mubr.f32.mxu0 0.0
      %243 = vmatmul.mubr.f32.gmra.mxu0 %v157
      %v244 = vpop.f32.mrf.mxu0
      %v245 = vadd.f32 0.0, %v244
      %v246 = vpop.f32.mrf.mxu0
      %247 = vdwg.mxu0
      %vm248 = vcmask 121856
      %249 = vst.msk [vmem:[%s140] sm:$0xff] %vm248, %v230
      %250 = vst.msk [vmem:[%s140 + $0x8] sm:$0xff] %vm248, %v235
      %251 = vst.msk [vmem:[%s140 + $0x10] sm:$0xff] %vm248, %v240
      %252 = vst.msk [vmem:[%s140 + $0x18] sm:$0xff] %vm248, %v245
      %p253 = scmp.lt.s32.totalorder %s13, 1
      %s254 = scalar_select %p253, %s13, 1
      %s255 = smul.addr %s254, 4
      %s256 = smul.addr %s255, 8
      %s257 = scalar_lea.vmem %s2, %s256
      // Predicated region
      $region29: #{multi_classification_forward.29} parent=27 // pred_check
        %p258 = pneg %p78
      $region30: #{multi_classification_forward.29} parent=27 // pred_check_branch
        %260 = sbr.rel (%p258) target = $region32
      $region31: #{multi_classification_forward.29} parent=27 // pred_region
        _
      $region32: #{multi_classification_forward.29} parent=27 // pred_fallthru
        _
    $region28: #{multi_classification_forward.29} parent=5 // pred_fallthru
      _
    %p261 = scmp.le.s32.totalorder 2, %s8
    // Predicated region
    $region33: #{multi_classification_forward.29} parent=5 // pred_check
      %p262 = pneg %p261
    $region34: #{multi_classification_forward.29} parent=5 // pred_check_branch
      %264 = sbr.rel (%p262) target = $region36
    $region35: #{multi_classification_forward.29} parent=5 // pred_region
      %s265 = ssub.s32 %s8, 2
      // Predicated region
      $region37: #{multi_classification_forward.29} parent=35 // pred_check
        %p266 = pneg %p84
      $region38: #{multi_classification_forward.29} parent=35 // pred_check_branch
        %268 = sbr.rel (%p266) target = $region40
      $region39: #{multi_classification_forward.29} parent=35 // pred_region
        %p269 = scmp.lt.s32.totalorder %s14, 1
        %s270 = scalar_select %p269, %s14, 1
        %s271 = smul.addr %s270, 4
        %s272 = smul.addr %s271, 8
        %s273 = scalar_lea.vmem %s2, %s272
      $region40: #{multi_classification_forward.29} parent=35 // pred_fallthru
        _
    $region36: #{multi_classification_forward.29} parent=5 // pred_fallthru
      _
  $region6: #{multi_classification_forward.29} parent=0 // loop_footer
    %s12 = sadd.s32 1, %s8
  $region7: #{multi_classification_forward.29} parent=0 // loop_footer_branch
    %7 = sbr.rel target = $region3
  $region8: #{multi_classification_forward.29} parent=0 // loop_exit
    _

// kernel: multi_classification_forward.30
$region0: #{multi_classification_forward.30}
  #allocation0 [shape = 'u32[]', space=smem, size = 0x4, offset = 0x4, fixed_abs, tag = 'smem constant byte address 0x4 - core index']
  #allocation1 [shape = 'u32[144,128]{1,0:T(1,128)}', space=vmem, size = 0x12000, scoped, tag = 'internal scratch']
  %s0 = inlined_call_operand.vmem [shape: f32[32,5], index: 0, kind: input, shape index: {}]
  %s1 = inlined_call_operand.vmem [shape: f32[2,5,96], index: 1, kind: input, shape index: {}]
  %s2 = inlined_call_operand.vmem [shape: f32[2,32,96], index: 2, kind: output, shape index: {}]
  %s3 = sld [smem:[#allocation0]]
  $region41: #{multi_classification_forward.30} parent=0
    _
  %s5 = ssub.s32 1, %s3
  %s6 = scalar_select 0, %s5, %s3
  loop: start=0, step=1, limit=4
  $region2: #{multi_classification_forward.30} parent=0 // loop_pre_header
    _
  $region3: #{multi_classification_forward.30} parent=0 // loop_header
    %s8 = sphi 0, %s12
    %p9 = scmp.ge.s32.totalorder %s8, 4
    %s16 = sphi 0, %s16
    %s18 = sphi 0, %s16
    %s19 = sphi 0, %s18
    %s33 = sphi 0, %s19
    %s39 = sphi 0, %s41
    %s42 = sphi 0, %s39
    %s43 = sphi 0, %s42
    %s59 = sphi 0, %s43
    %s65 = sphi 0, %s67
    %s68 = sphi 0, %s65
    %s69 = sphi 0, %s68
    %s85 = sphi 0, %s69
  $region4: #{multi_classification_forward.30} parent=0 // loop_header_branch
    %11 = sbr.rel (%p9) target = $region8
  $region5: #{multi_classification_forward.30} parent=0 // loop_body
    %s13 = ssub.s32 %s8, 1
    %s14 = ssub.s32 %s8, 2
    %s15 = sadd.s32 %s8, 1
    %s17 = sadd.s32 %s16, 1
    %p20 = scmp.eq.s32.totalorder %s8, 1
    %p21 = scmp.ne.s32.totalorder %s16, %s18
    %p22 = scmp.eq.s32.totalorder %s8, 0
    %p23 = por %p21, %p22
    %p24 = scmp.ne.s32.totalorder %s16, %s18
    %p25 = scmp.eq.s32.totalorder %s13, 1
    %p26 = por %p24, %p25
    %p27 = scmp.ne.s32.totalorder %s18, %s19
    %p28 = scmp.eq.s32.totalorder %s13, 0
    %p29 = por %p27, %p28
    %p30 = scmp.ne.s32.totalorder %s18, %s19
    %p31 = scmp.eq.s32.totalorder %s14, 1
    %p32 = por %p30, %p31
    %p34 = scmp.ne.s32.totalorder %s19, %s33
    %p35 = scmp.eq.s32.totalorder %s14, 0
    %p36 = por %p34, %p35
    %s37 = ssub.s32 %s8, %s15
    %p38 = scmp.eq.s32.totalorder %s37, 0
    %s40 = sadd.s32 %s39, 1
    %s41 = scalar_select %p38, %s39, %s40
    %p44 = pneg %p38
    %p45 = scmp.eq.s32.totalorder %s8, 1
    %p46 = por %p44, %p45
    %p47 = scmp.ne.s32.totalorder %s39, %s42
    %p48 = scmp.eq.s32.totalorder %s8, 0
    %p49 = por %p47, %p48
    %p50 = scmp.ne.s32.totalorder %s39, %s42
    %p51 = scmp.eq.s32.totalorder %s13, 1
    %p52 = por %p50, %p51
    %p53 = scmp.ne.s32.totalorder %s42, %s43
    %p54 = scmp.eq.s32.totalorder %s13, 0
    %p55 = por %p53, %p54
    %p56 = scmp.ne.s32.totalorder %s42, %s43
    %p57 = scmp.eq.s32.totalorder %s14, 1
    %p58 = por %p56, %p57
    %p60 = scmp.ne.s32.totalorder %s43, %s59
    %p61 = scmp.eq.s32.totalorder %s14, 0
    %p62 = por %p60, %p61
    %s63 = ssub.s32 %s8, %s15
    %p64 = scmp.eq.s32.totalorder %s63, 0
    %s66 = sadd.s32 %s65, 1
    %s67 = scalar_select %p64, %s65, %s66
    %p70 = pneg %p64
    %p71 = scmp.eq.s32.totalorder %s8, 1
    %p72 = por %p70, %p71
    %p73 = scmp.ne.s32.totalorder %s65, %s68
    %p74 = scmp.eq.s32.totalorder %s8, 0
    %p75 = por %p73, %p74
    %p76 = scmp.ne.s32.totalorder %s65, %s68
    %p77 = scmp.eq.s32.totalorder %s13, 1
    %p78 = por %p76, %p77
    %p79 = scmp.ne.s32.totalorder %s68, %s69
    %p80 = scmp.eq.s32.totalorder %s13, 0
    %p81 = por %p79, %p80
    %p82 = scmp.ne.s32.totalorder %s68, %s69
    %p83 = scmp.eq.s32.totalorder %s14, 1
    %p84 = por %p82, %p83
    %p86 = scmp.ne.s32.totalorder %s69, %s85
    %p87 = scmp.eq.s32.totalorder %s14, 0
    %p88 = por %p86, %p87
    %p89 = scmp.le.s32.totalorder 1, %s8
    %p90 = scmp.lt.s32.totalorder %s8, 3
    %p91 = pnand %p89, %p90
    %p92 = pneg %p91
    // Predicated region
    $region9: #{multi_classification_forward.30} parent=5 // pred_check
      _
    $region10: #{multi_classification_forward.30} parent=5 // pred_check_branch
      %94 = sbr.rel (%p91) target = $region12
    $region11: #{multi_classification_forward.30} parent=5 // pred_region
      %s95 = ssub.s32 %s8, 1
      // Predicated region
      $region13: #{multi_classification_forward.30} parent=11 // pred_check
        %p96 = pneg %p29
      $region14: #{multi_classification_forward.30} parent=11 // pred_check_branch
        %98 = sbr.rel (%p96) target = $region16
      $region15: #{multi_classification_forward.30} parent=11 // pred_region
        _
      $region16: #{multi_classification_forward.30} parent=11 // pred_fallthru
        _
    $region12: #{multi_classification_forward.30} parent=5 // pred_fallthru
      _
    %p99 = scmp.lt.s32.totalorder %s8, 2
    // Predicated region
    $region17: #{multi_classification_forward.30} parent=5 // pred_check
      %p100 = pneg %p99
    $region18: #{multi_classification_forward.30} parent=5 // pred_check_branch
      %102 = sbr.rel (%p100) target = $region20
    $region19: #{multi_classification_forward.30} parent=5 // pred_region
      // Predicated region
      $region21: #{multi_classification_forward.30} parent=19 // pred_check
        %p103 = pneg %p49
      $region22: #{multi_classification_forward.30} parent=19 // pred_check_branch
        %105 = sbr.rel (%p103) target = $region24
      $region23: #{multi_classification_forward.30} parent=19 // pred_region
        %p106 = scmp.lt.s32.totalorder %s8, 1
        %s107 = scalar_select %p106, %s8, 1
        %s108 = smul.addr %s107, 8
        %s109 = scalar_lea.vmem %s1, %s108
      $region24: #{multi_classification_forward.30} parent=19 // pred_fallthru
        _
    $region20: #{multi_classification_forward.30} parent=5 // pred_fallthru
      _
    %p110 = scmp.le.s32.totalorder 1, %s8
    %p111 = scmp.lt.s32.totalorder %s8, 3
    %p112 = pnand %p110, %p111
    %p113 = pneg %p112
    // Predicated region
    $region25: #{multi_classification_forward.30} parent=5 // pred_check
      _
    $region26: #{multi_classification_forward.30} parent=5 // pred_check_branch
      %115 = sbr.rel (%p112) target = $region28
    $region27: #{multi_classification_forward.30} parent=5 // pred_region
      %s116 = ssub.s32 %s8, 1
      %p117 = pneg %p29
      %p118 = pneg %p26
      %p119 = scmp.lt.s32.totalorder %s13, 1
      %s120 = scalar_select %p119, %s13, 1
      %s121 = smul.addr %s120, 8
      %s122 = scalar_lea.vmem %s1, %s121
      %p123 = pneg %p55
      %p124 = pneg %p52
      %p125 = pneg %p81
      %p126 = pneg %p78
      %p127 = scmp.lt.s32.totalorder %s13, 1
      %s128 = scalar_select %p127, %s13, 1
      %s129 = smul.addr %s128, 4
      %s130 = smul.addr %s129, 8
      %s131 = scalar_lea.vmem %s2, %s130
      %p132 = scmp.lt.s32.totalorder %s13, 1
      %s133 = scalar_select %p132, %s13, 1
      %s134 = smul.addr %s133, 8
      %s135 = scalar_lea.vmem %s1, %s134
      %p136 = scmp.lt.s32.totalorder %s13, 1
      %s137 = scalar_select %p136, %s13, 1
      %s138 = smul.addr %s137, 4
      %s139 = smul.addr %s138, 8
      %s140 = scalar_lea.vmem %s2, %s139
      %v141 = vld [vmem:[%s0] sm:$0xff]
      %v142 = vld [vmem:[%s0 + $0x8] sm:$0xff]
      %v143 = vld [vmem:[%s0 + $0x10] sm:$0xff]
      %v144 = vld [vmem:[%s0 + $0x18] sm:$0xff]
      %v145 = vld [vmem:[%s135] sm:$0x1f]
      %vm146 = vcmask 39936
      %v148 = vsel %vm146, %v141, 0
      %v151 = vsel %vm146, %v142, 0
      %v154 = vsel %vm146, %v143, 0
      %v157 = vsel %vm146, %v144, 0
      %vm159 = vcmask 1044480
      %v161 = vsel %vm159, %v145, 0
      %163 = vmatprep.subr.mxu0 0.0
      %164 = vmatpush1.msra.mxu0 0.0
      %165 = vmatprep.subr.mxu0 0.0
      %166 = vmatpush1.msra.mxu0 0.0
      %167 = vmatprep.subr.mxu0 0.0
      %168 = vmatpush1.msra.mxu0 0.0
      %169 = vmatprep.subr.mxu0 0.0
      %170 = vmatpush1.msra.mxu0 0.0
      %171 = vmatprep.subr.mxu0 0.0
      %172 = vmatpush1.msra.mxu0 0.0
      %173 = vmatprep.subr.mxu0 0.0
      %174 = vmatpush1.msra.mxu0 0.0
      %175 = vmatprep.subr.mxu0 0.0
      %176 = vmatpush1.msra.mxu0 0.0
      %177 = vmatprep.subr.mxu0 0.0
      %178 = vmatpush1.msra.mxu0 0.0
      %179 = vmatprep.subr.mxu0 0.0
      %180 = vmatpush1.msra.mxu0 0.0
      %181 = vmatprep.subr.mxu0 0.0
      %182 = vmatpush1.msra.mxu0 0.0
      %183 = vmatprep.subr.mxu0 0.0
      %184 = vmatpush1.msra.mxu0 0.0
      %185 = vmatprep.subr.mxu0 0.0
      %186 = vmatpush1.msra.mxu0 0.0
      %187 = vmatprep.subr.mxu0 0.0
      %188 = vmatpush1.msra.mxu0 0.0
      %189 = vmatprep.subr.mxu0 0.0
      %190 = vmatpush1.msra.mxu0 0.0
      %191 = vmatprep.subr.mxu0 0.0
      %192 = vmatpush1.msra.mxu0 0.0
      %193 = vmatprep.subr.mxu0 0.0
      %194 = vmatpush1.msra.mxu0 %v161
      %195 = vmatprep.subr.mxu0 0.0
      %196 = vmatpush2.msra.mxu0 0.0
      %197 = vmatprep.subr.mxu0 0.0
      %198 = vmatpush2.msra.mxu0 0.0
      %199 = vmatprep.subr.mxu0 0.0
      %200 = vmatpush2.msra.mxu0 0.0
      %201 = vmatprep.subr.mxu0 0.0
      %202 = vmatpush2.msra.mxu0 0.0
      %203 = vmatprep.subr.mxu0 0.0
      %204 = vmatpush2.msra.mxu0 0.0
      %205 = vmatprep.subr.mxu0 0.0
      %206 = vmatpush2.msra.mxu0 0.0
      %207 = vmatprep.subr.mxu0 0.0
      %208 = vmatpush2.msra.mxu0 0.0
      %209 = vmatprep.subr.mxu0 0.0
      %210 = vmatpush2.msra.mxu0 0.0
      %211 = vmatprep.subr.mxu0 0.0
      %212 = vmatpush2.msra.mxu0 0.0
      %213 = vmatprep.subr.mxu0 0.0
      %214 = vmatpush2.msra.mxu0 0.0
      %215 = vmatprep.subr.mxu0 0.0
      %216 = vmatpush2.msra.mxu0 0.0
      %217 = vmatprep.subr.mxu0 0.0
      %218 = vmatpush2.msra.mxu0 0.0
      %219 = vmatprep.subr.mxu0 0.0
      %220 = vmatpush2.msra.mxu0 0.0
      %221 = vmatprep.subr.mxu0 0.0
      %222 = vmatpush2.msra.mxu0 0.0
      %223 = vmatprep.subr.mxu0 0.0
      %224 = vmatpush2.msra.mxu0 0.0
      %225 = vmatprep.subr.mxu0 0.0
      %226 = vmatpush2.msra.mxu0 0.0
      %227 = vmatprep.mubr.f32.mxu0 0.0
      %228 = vmatmul.mubr.f32.gmra.mxu0 %v148
      %v229 = vpop.f32.mrf.mxu0
      %v230 = vadd.f32 0.0, %v229
      %v231 = vpop.f32.mrf.mxu0
      %232 = vmatprep.mubr.f32.mxu0 0.0
      %233 = vmatmul.mubr.f32.gmra.mxu0 %v151
      %v234 = vpop.f32.mrf.mxu0
      %v235 = vadd.f32 0.0, %v234
      %v236 = vpop.f32.mrf.mxu0
      %237 = vmatprep.mubr.f32.mxu0 0.0
      %238 = vmatmul.mubr.f32.gmra.mxu0 %v154
      %v239 = vpop.f32.mrf.mxu0
      %v240 = vadd.f32 0.0, %v239
      %v241 = vpop.f32.mrf.mxu0
      %242 = vmatprep.mubr.f32.mxu0 0.0
      %243 = vmatmul.mubr.f32.gmra.mxu0 %v157
      %v244 = vpop.f32.mrf.mxu0
      %v245 = vadd.f32 0.0, %v244
      %v246 = vpop.f32.mrf.mxu0
      %247 = vdwg.mxu0
      %vm248 = vcmask 785408
      %249 = vst.msk [vmem:[%s140] sm:$0xff] %vm248, %v230
      %250 = vst.msk [vmem:[%s140 + $0x8] sm:$0xff] %vm248, %v235
      %251 = vst.msk [vmem:[%s140 + $0x10] sm:$0xff] %vm248, %v240
      %252 = vst.msk [vmem:[%s140 + $0x18] sm:$0xff] %vm248, %v245
      %p253 = scmp.lt.s32.totalorder %s13, 1
      %s254 = scalar_select %p253, %s13, 1
      %s255 = smul.addr %s254, 4
      %s256 = smul.addr %s255, 8
      %s257 = scalar_lea.vmem %s2, %s256
      // Predicated region
      $region29: #{multi_classification_forward.30} parent=27 // pred_check
        %p258 = pneg %p78
      $region30: #{multi_classification_forward.30} parent=27 // pred_check_branch
        %260 = sbr.rel (%p258) target = $region32
      $region31: #{multi_classification_forward.30} parent=27 // pred_region
        _
      $region32: #{multi_classification_forward.30} parent=27 // pred_fallthru
        _
    $region28: #{multi_classification_forward.30} parent=5 // pred_fallthru
      _
    %p261 = scmp.le.s32.totalorder 2, %s8
    // Predicated region
    $region33: #{multi_classification_forward.30} parent=5 // pred_check
      %p262 = pneg %p261
    $region34: #{multi_classification_forward.30} parent=5 // pred_check_branch
      %264 = sbr.rel (%p262) target = $region36
    $region35: #{multi_classification_forward.30} parent=5 // pred_region
      %s265 = ssub.s32 %s8, 2
      // Predicated region
      $region37: #{multi_classification_forward.30} parent=35 // pred_check
        %p266 = pneg %p84
      $region38: #{multi_classification_forward.30} parent=35 // pred_check_branch
        %268 = sbr.rel (%p266) target = $region40
      $region39: #{multi_classification_forward.30} parent=35 // pred_region
        %p269 = scmp.lt.s32.totalorder %s14, 1
        %s270 = scalar_select %p269, %s14, 1
        %s271 = smul.addr %s270, 4
        %s272 = smul.addr %s271, 8
        %s273 = scalar_lea.vmem %s2, %s272
      $region40: #{multi_classification_forward.30} parent=35 // pred_fallthru
        _
    $region36: #{multi_classification_forward.30} parent=5 // pred_fallthru
      _
  $region6: #{multi_classification_forward.30} parent=0 // loop_footer
    %s12 = sadd.s32 1, %s8
  $region7: #{multi_classification_forward.30} parent=0 // loop_footer_branch
    %7 = sbr.rel target = $region3
  $region8: #{multi_classification_forward.30} parent=0 // loop_exit
    _

// kernel: multi_classification_forward.31
$region0: #{multi_classification_forward.31}
  #allocation0 [shape = 'u32[]', space=smem, size = 0x4, offset = 0x4, fixed_abs, tag = 'smem constant byte address 0x4 - core index']
  #allocation1 [shape = 'u32[144,128]{1,0:T(1,128)}', space=vmem, size = 0x12000, scoped, tag = 'internal scratch']
  #allocation2 [shape = 'f32[2,3]{1,0:T(2,128)}', space=vmem, size = 0x400, scoped, tag = 'scratch operand']
  %s0 = inlined_call_operand.vmem [shape: f32[2,1024,3], index: 0, kind: input, shape index: {}]
  %s1 = inlined_call_operand.vmem [shape: f32[3,1536], index: 1, kind: input, shape index: {}]
  %s2 = inlined_call_operand.vmem [shape: bf16[1536,7], index: 2, kind: input, shape index: {}]
  %s3 = inlined_call_operand.vmem [shape: f32[1,7], index: 3, kind: input, shape index: {}]
  %s4 = inlined_call_operand.hbm [shape: f32[2,7], index: 4, kind: output, shape index: {}]
  %s5 = sld [smem:[#allocation0]]
  $region34: #{multi_classification_forward.31} parent=0
    _
  %s7 = ssub.s32 1, %s5
  %s8 = scalar_select 0, %s7, %s5
  $region1: #{multi_classification_forward.31} parent=0
    #allocation3 [shape = 'u8[1024]{0}', space=vmem, size = 0x400, scoped, tag = 'output window, operand 0, single buffered']
    #allocation4 [shape = 's32[1]{0}', space=sflag, size = 0x4, scoped, tag = 'scoped memory for multi_classification_forward.31']
    %9 = vsyncpa [#allocation4], 0
    // Predicated region
    $region2: #{multi_classification_forward.31} parent=1 // pred_check
      _
    $region3: #{multi_classification_forward.31} parent=1 // pred_check_branch
      %11 = sbr.rel (0) target = $region5
    $region4: #{multi_classification_forward.31} parent=1 // pred_region
      _
    $region5: #{multi_classification_forward.31} parent=1 // pred_fallthru
      _
    // Predicated region
    $region6: #{multi_classification_forward.31} parent=1 // pred_check
      _
    $region7: #{multi_classification_forward.31} parent=1 // pred_check_branch
      %13 = sbr.rel (0) target = $region9
    $region8: #{multi_classification_forward.31} parent=1 // pred_region
      _
    $region9: #{multi_classification_forward.31} parent=1 // pred_fallthru
      _
    // Predicated region
    $region10: #{multi_classification_forward.31} parent=1 // pred_check
      _
    $region11: #{multi_classification_forward.31} parent=1 // pred_check_branch
      %15 = sbr.rel (0) target = $region13
    $region12: #{multi_classification_forward.31} parent=1 // pred_region
      _
    $region13: #{multi_classification_forward.31} parent=1 // pred_fallthru
      _
    // Predicated region
    $region14: #{multi_classification_forward.31} parent=1 // pred_check
      _
    $region15: #{multi_classification_forward.31} parent=1 // pred_check_branch
      %17 = sbr.rel (0) target = $region17
    $region16: #{multi_classification_forward.31} parent=1 // pred_region
      _
    $region17: #{multi_classification_forward.31} parent=1 // pred_fallthru
      _
    %p19 = scmp.eq.s32.totalorder 0, 0
    // Predicated region
    $region18: #{multi_classification_forward.31} parent=1 // pred_check
      %p20 = pneg %p19
    $region19: #{multi_classification_forward.31} parent=1 // pred_check_branch
      %22 = sbr.rel (%p20) target = $region21
    $region20: #{multi_classification_forward.31} parent=1 // pred_region
      %vm23 = vcmask 17408
      %24 = vst.msk [vmem:[#allocation2] sm:$0x3] %vm23, 0.0
    $region21: #{multi_classification_forward.31} parent=1 // pred_fallthru
      _
    %v25 = vld [vmem:[%s0] sm:$0xff]
    %v26 = vld [vmem:[%s0 + $0x8] sm:$0xff]
    %v27 = vld [vmem:[%s0 + $0x10] sm:$0xff]
    %v28 = vld [vmem:[%s0 + $0x18] sm:$0xff]
    %v29 = vld [vmem:[%s0 + $0x20] sm:$0xff]
    %v30 = vld [vmem:[%s0 + $0x28] sm:$0xff]
    %v31 = vld [vmem:[%s0 + $0x30] sm:$0xff]
    %v32 = vld [vmem:[%s0 + $0x38] sm:$0xff]
    %v33 = vld [vmem:[%s0 + $0x40] sm:$0xff]
    %v34 = vld [vmem:[%s0 + $0x48] sm:$0xff]
    %v35 = vld [vmem:[%s0 + $0x50] sm:$0xff]
    %v36 = vld [vmem:[%s0 + $0x58] sm:$0xff]
    %v37 = vld [vmem:[%s0 + $0x60] sm:$0xff]
    %v38 = vld [vmem:[%s0 + $0x68] sm:$0xff]
    %v39 = vld [vmem:[%s0 + $0x70] sm:$0xff]
    %v40 = vld [vmem:[%s0 + $0x78] sm:$0xff]
    %v41 = vld [vmem:[%s0 + $0x80] sm:$0xff]
    %v42 = vld [vmem:[%s0 + $0x88] sm:$0xff]
    %v43 = vld [vmem:[%s0 + $0x90] sm:$0xff]
    %v44 = vld [vmem:[%s0 + $0x98] sm:$0xff]
    %v45 = vld [vmem:[%s0 + $0xa0] sm:$0xff]
    %v46 = vld [vmem:[%s0 + $0xa8] sm:$0xff]
    %v47 = vld [vmem:[%s0 + $0xb0] sm:$0xff]
    %v48 = vld [vmem:[%s0 + $0xb8] sm:$0xff]
    %v49 = vld [vmem:[%s0 + $0xc0] sm:$0xff]
    %v50 = vld [vmem:[%s0 + $0xc8] sm:$0xff]
    %v51 = vld [vmem:[%s0 + $0xd0] sm:$0xff]
    %v52 = vld [vmem:[%s0 + $0xd8] sm:$0xff]
    %v53 = vld [vmem:[%s0 + $0xe0] sm:$0xff]
    %v54 = vld [vmem:[%s0 + $0xe8] sm:$0xff]
    %v55 = vld [vmem:[%s0 + $0xf0] sm:$0xff]
    %v56 = vld [vmem:[%s0 + $0xf8] sm:$0xff]
    %v57 = vld [vmem:[%s0 + $0x100] sm:$0xff]
    %v58 = vld [vmem:[%s0 + $0x108] sm:$0xff]
    %v59 = vld [vmem:[%s0 + $0x110] sm:$0xff]
    %v60 = vld [vmem:[%s0 + $0x118] sm:$0xff]
    %v61 = vld [vmem:[%s0 + $0x120] sm:$0xff]
    %v62 = vld [vmem:[%s0 + $0x128] sm:$0xff]
    %v63 = vld [vmem:[%s0 + $0x130] sm:$0xff]
    %v64 = vld [vmem:[%s0 + $0x138] sm:$0xff]
    %v65 = vld [vmem:[%s0 + $0x140] sm:$0xff]
    %v66 = vld [vmem:[%s0 + $0x148] sm:$0xff]
    %v67 = vld [vmem:[%s0 + $0x150] sm:$0xff]
    %v68 = vld [vmem:[%s0 + $0x158] sm:$0xff]
    %v69 = vld [vmem:[%s0 + $0x160] sm:$0xff]
    %v70 = vld [vmem:[%s0 + $0x168] sm:$0xff]
    %v71 = vld [vmem:[%s0 + $0x170] sm:$0xff]
    %v72 = vld [vmem:[%s0 + $0x178] sm:$0xff]
    %v73 = vld [vmem:[%s0 + $0x180] sm:$0xff]
    %v74 = vld [vmem:[%s0 + $0x188] sm:$0xff]
    %v75 = vld [vmem:[%s0 + $0x190] sm:$0xff]
    %v76 = vld [vmem:[%s0 + $0x198] sm:$0xff]
    %v77 = vld [vmem:[%s0 + $0x1a0] sm:$0xff]
    %v78 = vld [vmem:[%s0 + $0x1a8] sm:$0xff]
    %v79 = vld [vmem:[%s0 + $0x1b0] sm:$0xff]
    %v80 = vld [vmem:[%s0 + $0x1b8] sm:$0xff]
    %v81 = vld [vmem:[%s0 + $0x1c0] sm:$0xff]
    %v82 = vld [vmem:[%s0 + $0x1c8] sm:$0xff]
    %v83 = vld [vmem:[%s0 + $0x1d0] sm:$0xff]
    %v84 = vld [vmem:[%s0 + $0x1d8] sm:$0xff]
    %v85 = vld [vmem:[%s0 + $0x1e0] sm:$0xff]
    %v86 = vld [vmem:[%s0 + $0x1e8] sm:$0xff]
    %v87 = vld [vmem:[%s0 + $0x1f0] sm:$0xff]
    %v88 = vld [vmem:[%s0 + $0x1f8] sm:$0xff]
    %v89 = vld [vmem:[%s0 + $0x200] sm:$0xff]
    %v90 = vld [vmem:[%s0 + $0x208] sm:$0xff]
    %v91 = vld [vmem:[%s0 + $0x210] sm:$0xff]
    %v92 = vld [vmem:[%s0 + $0x218] sm:$0xff]
    %v93 = vld [vmem:[%s0 + $0x220] sm:$0xff]
    %v94 = vld [vmem:[%s0 + $0x228] sm:$0xff]
    %v95 = vld [vmem:[%s0 + $0x230] sm:$0xff]
    %v96 = vld [vmem:[%s0 + $0x238] sm:$0xff]
    %v97 = vld [vmem:[%s0 + $0x240] sm:$0xff]
    %v98 = vld [vmem:[%s0 + $0x248] sm:$0xff]
    %v99 = vld [vmem:[%s0 + $0x250] sm:$0xff]
    %v100 = vld [vmem:[%s0 + $0x258] sm:$0xff]
    %v101 = vld [vmem:[%s0 + $0x260] sm:$0xff]
    %v102 = vld [vmem:[%s0 + $0x268] sm:$0xff]
    %v103 = vld [vmem:[%s0 + $0x270] sm:$0xff]
    %v104 = vld [vmem:[%s0 + $0x278] sm:$0xff]
    %v105 = vld [vmem:[%s0 + $0x280] sm:$0xff]
    %v106 = vld [vmem:[%s0 + $0x288] sm:$0xff]
    %v107 = vld [vmem:[%s0 + $0x290] sm:$0xff]
    %v108 = vld [vmem:[%s0 + $0x298] sm:$0xff]
    %v109 = vld [vmem:[%s0 + $0x2a0] sm:$0xff]
    %v110 = vld [vmem:[%s0 + $0x2a8] sm:$0xff]
    %v111 = vld [vmem:[%s0 + $0x2b0] sm:$0xff]
    %v112 = vld [vmem:[%s0 + $0x2b8] sm:$0xff]
    %v113 = vld [vmem:[%s0 + $0x2c0] sm:$0xff]
    %v114 = vld [vmem:[%s0 + $0x2c8] sm:$0xff]
    %v115 = vld [vmem:[%s0 + $0x2d0] sm:$0xff]
    %v116 = vld [vmem:[%s0 + $0x2d8] sm:$0xff]
    %v117 = vld [vmem:[%s0 + $0x2e0] sm:$0xff]
    %v118 = vld [vmem:[%s0 + $0x2e8] sm:$0xff]
    %v119 = vld [vmem:[%s0 + $0x2f0] sm:$0xff]
    %v120 = vld [vmem:[%s0 + $0x2f8] sm:$0xff]
    %v121 = vld [vmem:[%s0 + $0x300] sm:$0xff]
    %v122 = vld [vmem:[%s0 + $0x308] sm:$0xff]
    %v123 = vld [vmem:[%s0 + $0x310] sm:$0xff]
    %v124 = vld [vmem:[%s0 + $0x318] sm:$0xff]
    %v125 = vld [vmem:[%s0 + $0x320] sm:$0xff]
    %v126 = vld [vmem:[%s0 + $0x328] sm:$0xff]
    %v127 = vld [vmem:[%s0 + $0x330] sm:$0xff]
    %v128 = vld [vmem:[%s0 + $0x338] sm:$0xff]
    %v129 = vld [vmem:[%s0 + $0x340] sm:$0xff]
    %v130 = vld [vmem:[%s0 + $0x348] sm:$0xff]
    %v131 = vld [vmem:[%s0 + $0x350] sm:$0xff]
    %v132 = vld [vmem:[%s0 + $0x358] sm:$0xff]
    %v133 = vld [vmem:[%s0 + $0x360] sm:$0xff]
    %v134 = vld [vmem:[%s0 + $0x368] sm:$0xff]
    %v135 = vld [vmem:[%s0 + $0x370] sm:$0xff]
    %v136 = vld [vmem:[%s0 + $0x378] sm:$0xff]
    %v137 = vld [vmem:[%s0 + $0x380] sm:$0xff]
    %v138 = vld [vmem:[%s0 + $0x388] sm:$0xff]
    %v139 = vld [vmem:[%s0 + $0x390] sm:$0xff]
    %v140 = vld [vmem:[%s0 + $0x398] sm:$0xff]
    %v141 = vld [vmem:[%s0 + $0x3a0] sm:$0xff]
    %v142 = vld [vmem:[%s0 + $0x3a8] sm:$0xff]
    %v143 = vld [vmem:[%s0 + $0x3b0] sm:$0xff]
    %v144 = vld [vmem:[%s0 + $0x3b8] sm:$0xff]
    %v145 = vld [vmem:[%s0 + $0x3c0] sm:$0xff]
    %v146 = vld [vmem:[%s0 + $0x3c8] sm:$0xff]
    %v147 = vld [vmem:[%s0 + $0x3d0] sm:$0xff]
    %v148 = vld [vmem:[%s0 + $0x3d8] sm:$0xff]
    %v149 = vld [vmem:[%s0 + $0x3e0] sm:$0xff]
    %v150 = vld [vmem:[%s0 + $0x3e8] sm:$0xff]
    %v151 = vld [vmem:[%s0 + $0x3f0] sm:$0xff]
    %v152 = vld [vmem:[%s0 + $0x3f8] sm:$0xff]
    %v153 = vld [vmem:[%s0 + $0x400] sm:$0xff]
    %v154 = vld [vmem:[%s0 + $0x408] sm:$0xff]
    %v155 = vld [vmem:[%s0 + $0x410] sm:$0xff]
    %v156 = vld [vmem:[%s0 + $0x418] sm:$0xff]
    %v157 = vld [vmem:[%s0 + $0x420] sm:$0xff]
    %v158 = vld [vmem:[%s0 + $0x428] sm:$0xff]
    %v159 = vld [vmem:[%s0 + $0x430] sm:$0xff]
    %v160 = vld [vmem:[%s0 + $0x438] sm:$0xff]
    %v161 = vld [vmem:[%s0 + $0x440] sm:$0xff]
    %v162 = vld [vmem:[%s0 + $0x448] sm:$0xff]
    %v163 = vld [vmem:[%s0 + $0x450] sm:$0xff]
    %v164 = vld [vmem:[%s0 + $0x458] sm:$0xff]
    %v165 = vld [vmem:[%s0 + $0x460] sm:$0xff]
    %v166 = vld [vmem:[%s0 + $0x468] sm:$0xff]
    %v167 = vld [vmem:[%s0 + $0x470] sm:$0xff]
    %v168 = vld [vmem:[%s0 + $0x478] sm:$0xff]
    %v169 = vld [vmem:[%s0 + $0x480] sm:$0xff]
    %v170 = vld [vmem:[%s0 + $0x488] sm:$0xff]
    %v171 = vld [vmem:[%s0 + $0x490] sm:$0xff]
    %v172 = vld [vmem:[%s0 + $0x498] sm:$0xff]
    %v173 = vld [vmem:[%s0 + $0x4a0] sm:$0xff]
    %v174 = vld [vmem:[%s0 + $0x4a8] sm:$0xff]
    %v175 = vld [vmem:[%s0 + $0x4b0] sm:$0xff]
    %v176 = vld [vmem:[%s0 + $0x4b8] sm:$0xff]
    %v177 = vld [vmem:[%s0 + $0x4c0] sm:$0xff]
    %v178 = vld [vmem:[%s0 + $0x4c8] sm:$0xff]
    %v179 = vld [vmem:[%s0 + $0x4d0] sm:$0xff]
    %v180 = vld [vmem:[%s0 + $0x4d8] sm:$0xff]
    %v181 = vld [vmem:[%s0 + $0x4e0] sm:$0xff]
    %v182 = vld [vmem:[%s0 + $0x4e8] sm:$0xff]
    %v183 = vld [vmem:[%s0 + $0x4f0] sm:$0xff]
    %v184 = vld [vmem:[%s0 + $0x4f8] sm:$0xff]
    %v185 = vld [vmem:[%s0 + $0x500] sm:$0xff]
    %v186 = vld [vmem:[%s0 + $0x508] sm:$0xff]
    %v187 = vld [vmem:[%s0 + $0x510] sm:$0xff]
    %v188 = vld [vmem:[%s0 + $0x518] sm:$0xff]
    %v189 = vld [vmem:[%s0 + $0x520] sm:$0xff]
    %v190 = vld [vmem:[%s0 + $0x528] sm:$0xff]
    %v191 = vld [vmem:[%s0 + $0x530] sm:$0xff]
    %v192 = vld [vmem:[%s0 + $0x538] sm:$0xff]
    %v193 = vld [vmem:[%s0 + $0x540] sm:$0xff]
    %v194 = vld [vmem:[%s0 + $0x548] sm:$0xff]
    %v195 = vld [vmem:[%s0 + $0x550] sm:$0xff]
    %v196 = vld [vmem:[%s0 + $0x558] sm:$0xff]
    %v197 = vld [vmem:[%s0 + $0x560] sm:$0xff]
    %v198 = vld [vmem:[%s0 + $0x568] sm:$0xff]
    %v199 = vld [vmem:[%s0 + $0x570] sm:$0xff]
    %v200 = vld [vmem:[%s0 + $0x578] sm:$0xff]
    %v201 = vld [vmem:[%s0 + $0x580] sm:$0xff]
    %v202 = vld [vmem:[%s0 + $0x588] sm:$0xff]
    %v203 = vld [vmem:[%s0 + $0x590] sm:$0xff]
    %v204 = vld [vmem:[%s0 + $0x598] sm:$0xff]
    %v205 = vld [vmem:[%s0 + $0x5a0] sm:$0xff]
    %v206 = vld [vmem:[%s0 + $0x5a8] sm:$0xff]
    %v207 = vld [vmem:[%s0 + $0x5b0] sm:$0xff]
    %v208 = vld [vmem:[%s0 + $0x5b8] sm:$0xff]
    %v209 = vld [vmem:[%s0 + $0x5c0] sm:$0xff]
    %v210 = vld [vmem:[%s0 + $0x5c8] sm:$0xff]
    %v211 = vld [vmem:[%s0 + $0x5d0] sm:$0xff]
    %v212 = vld [vmem:[%s0 + $0x5d8] sm:$0xff]
    %v213 = vld [vmem:[%s0 + $0x5e0] sm:$0xff]
    %v214 = vld [vmem:[%s0 + $0x5e8] sm:$0xff]
    %v215 = vld [vmem:[%s0 + $0x5f0] sm:$0xff]
    %v216 = vld [vmem:[%s0 + $0x5f8] sm:$0xff]
    %v217 = vld [vmem:[%s0 + $0x600] sm:$0xff]
    %v218 = vld [vmem:[%s0 + $0x608] sm:$0xff]
    %v219 = vld [vmem:[%s0 + $0x610] sm:$0xff]
    %v220 = vld [vmem:[%s0 + $0x618] sm:$0xff]
    %v221 = vld [vmem:[%s0 + $0x620] sm:$0xff]
    %v222 = vld [vmem:[%s0 + $0x628] sm:$0xff]
    %v223 = vld [vmem:[%s0 + $0x630] sm:$0xff]
    %v224 = vld [vmem:[%s0 + $0x638] sm:$0xff]
    %v225 = vld [vmem:[%s0 + $0x640] sm:$0xff]
    %v226 = vld [vmem:[%s0 + $0x648] sm:$0xff]
    %v227 = vld [vmem:[%s0 + $0x650] sm:$0xff]
    %v228 = vld [vmem:[%s0 + $0x658] sm:$0xff]
    %v229 = vld [vmem:[%s0 + $0x660] sm:$0xff]
    %v230 = vld [vmem:[%s0 + $0x668] sm:$0xff]
    %v231 = vld [vmem:[%s0 + $0x670] sm:$0xff]
    %v232 = vld [vmem:[%s0 + $0x678] sm:$0xff]
    %v233 = vld [vmem:[%s0 + $0x680] sm:$0xff]
    %v234 = vld [vmem:[%s0 + $0x688] sm:$0xff]
    %v235 = vld [vmem:[%s0 + $0x690] sm:$0xff]
    %v236 = vld [vmem:[%s0 + $0x698] sm:$0xff]
    %v237 = vld [vmem:[%s0 + $0x6a0] sm:$0xff]
    %v238 = vld [vmem:[%s0 + $0x6a8] sm:$0xff]
    %v239 = vld [vmem:[%s0 + $0x6b0] sm:$0xff]
    %v240 = vld [vmem:[%s0 + $0x6b8] sm:$0xff]
    %v241 = vld [vmem:[%s0 + $0x6c0] sm:$0xff]
    %v242 = vld [vmem:[%s0 + $0x6c8] sm:$0xff]
    %v243 = vld [vmem:[%s0 + $0x6d0] sm:$0xff]
    %v244 = vld [vmem:[%s0 + $0x6d8] sm:$0xff]
    %v245 = vld [vmem:[%s0 + $0x6e0] sm:$0xff]
    %v246 = vld [vmem:[%s0 + $0x6e8] sm:$0xff]
    %v247 = vld [vmem:[%s0 + $0x6f0] sm:$0xff]
    %v248 = vld [vmem:[%s0 + $0x6f8] sm:$0xff]
    %v249 = vld [vmem:[%s0 + $0x700] sm:$0xff]
    %v250 = vld [vmem:[%s0 + $0x708] sm:$0xff]
    %v251 = vld [vmem:[%s0 + $0x710] sm:$0xff]
    %v252 = vld [vmem:[%s0 + $0x718] sm:$0xff]
    %v253 = vld [vmem:[%s0 + $0x720] sm:$0xff]
    %v254 = vld [vmem:[%s0 + $0x728] sm:$0xff]
    %v255 = vld [vmem:[%s0 + $0x730] sm:$0xff]
    %v256 = vld [vmem:[%s0 + $0x738] sm:$0xff]
    %v257 = vld [vmem:[%s0 + $0x740] sm:$0xff]
    %v258 = vld [vmem:[%s0 + $0x748] sm:$0xff]
    %v259 = vld [vmem:[%s0 + $0x750] sm:$0xff]
    %v260 = vld [vmem:[%s0 + $0x758] sm:$0xff]
    %v261 = vld [vmem:[%s0 + $0x760] sm:$0xff]
    %v262 = vld [vmem:[%s0 + $0x768] sm:$0xff]
    %v263 = vld [vmem:[%s0 + $0x770] sm:$0xff]
    %v264 = vld [vmem:[%s0 + $0x778] sm:$0xff]
    %v265 = vld [vmem:[%s0 + $0x780] sm:$0xff]
    %v266 = vld [vmem:[%s0 + $0x788] sm:$0xff]
    %v267 = vld [vmem:[%s0 + $0x790] sm:$0xff]
    %v268 = vld [vmem:[%s0 + $0x798] sm:$0xff]
    %v269 = vld [vmem:[%s0 + $0x7a0] sm:$0xff]
    %v270 = vld [vmem:[%s0 + $0x7a8] sm:$0xff]
    %v271 = vld [vmem:[%s0 + $0x7b0] sm:$0xff]
    %v272 = vld [vmem:[%s0 + $0x7b8] sm:$0xff]
    %v273 = vld [vmem:[%s0 + $0x7c0] sm:$0xff]
    %v274 = vld [vmem:[%s0 + $0x7c8] sm:$0xff]
    %v275 = vld [vmem:[%s0 + $0x7d0] sm:$0xff]
    %v276 = vld [vmem:[%s0 + $0x7d8] sm:$0xff]
    %v277 = vld [vmem:[%s0 + $0x7e0] sm:$0xff]
    %v278 = vld [vmem:[%s0 + $0x7e8] sm:$0xff]
    %v279 = vld [vmem:[%s0 + $0x7f0] sm:$0xff]
    %v280 = vld [vmem:[%s0 + $0x7f8] sm:$0xff]
    %v281 = vld [vmem:[#allocation2] sm:$0x3]
    %vm282 = vcmask 23552
    %v283 = vsel %vm282, %v25, 0.0
    %v284 = vsel %vm282, %v26, 0.0
    %v285 = vadd.f32 %v283, %v284
    %v286 = vsel %vm282, %v27, 0.0
    %v287 = vadd.f32 %v285, %v286
    %v288 = vsel %vm282, %v28, 0.0
    %v289 = vadd.f32 %v287, %v288
    %v290 = vsel %vm282, %v29, 0.0
    %v291 = vadd.f32 %v289, %v290
    %v292 = vsel %vm282, %v30, 0.0
    %v293 = vadd.f32 %v291, %v292
    %v294 = vsel %vm282, %v31, 0.0
    %v295 = vadd.f32 %v293, %v294
    %v296 = vsel %vm282, %v32, 0.0
    %v297 = vadd.f32 %v295, %v296
    %v298 = vsel %vm282, %v33, 0.0
    %v299 = vadd.f32 %v297, %v298
    %v300 = vsel %vm282, %v34, 0.0
    %v301 = vadd.f32 %v299, %v300
    %v302 = vsel %vm282, %v35, 0.0
    %v303 = vadd.f32 %v301, %v302
    %v304 = vsel %vm282, %v36, 0.0
    %v305 = vadd.f32 %v303, %v304
    %v306 = vsel %vm282, %v37, 0.0
    %v307 = vadd.f32 %v305, %v306
    %v308 = vsel %vm282, %v38, 0.0
    %v309 = vadd.f32 %v307, %v308
    %v310 = vsel %vm282, %v39, 0.0
    %v311 = vadd.f32 %v309, %v310
    %v312 = vsel %vm282, %v40, 0.0
    %v313 = vadd.f32 %v311, %v312
    %v314 = vsel %vm282, %v41, 0.0
    %v315 = vadd.f32 %v313, %v314
    %v316 = vsel %vm282, %v42, 0.0
    %v317 = vadd.f32 %v315, %v316
    %v318 = vsel %vm282, %v43, 0.0
    %v319 = vadd.f32 %v317, %v318
    %v320 = vsel %vm282, %v44, 0.0
    %v321 = vadd.f32 %v319, %v320
    %v322 = vsel %vm282, %v45, 0.0
    %v323 = vadd.f32 %v321, %v322
    %v324 = vsel %vm282, %v46, 0.0
    %v325 = vadd.f32 %v323, %v324
    %v326 = vsel %vm282, %v47, 0.0
    %v327 = vadd.f32 %v325, %v326
    %v328 = vsel %vm282, %v48, 0.0
    %v329 = vadd.f32 %v327, %v328
    %v330 = vsel %vm282, %v49, 0.0
    %v331 = vadd.f32 %v329, %v330
    %v332 = vsel %vm282, %v50, 0.0
    %v333 = vadd.f32 %v331, %v332
    %v334 = vsel %vm282, %v51, 0.0
    %v335 = vadd.f32 %v333, %v334
    %v336 = vsel %vm282, %v52, 0.0
    %v337 = vadd.f32 %v335, %v336
    %v338 = vsel %vm282, %v53, 0.0
    %v339 = vadd.f32 %v337, %v338
    %v340 = vsel %vm282, %v54, 0.0
    %v341 = vadd.f32 %v339, %v340
    %v342 = vsel %vm282, %v55, 0.0
    %v343 = vadd.f32 %v341, %v342
    %v344 = vsel %vm282, %v56, 0.0
    %v345 = vadd.f32 %v343, %v344
    %v346 = vsel %vm282, %v57, 0.0
    %v347 = vadd.f32 %v345, %v346
    %v348 = vsel %vm282, %v58, 0.0
    %v349 = vadd.f32 %v347, %v348
    %v350 = vsel %vm282, %v59, 0.0
    %v351 = vadd.f32 %v349, %v350
    %v352 = vsel %vm282, %v60, 0.0
    %v353 = vadd.f32 %v351, %v352
    %v354 = vsel %vm282, %v61, 0.0
    %v355 = vadd.f32 %v353, %v354
    %v356 = vsel %vm282, %v62, 0.0
    %v357 = vadd.f32 %v355, %v356
    %v358 = vsel %vm282, %v63, 0.0
    %v359 = vadd.f32 %v357, %v358
    %v360 = vsel %vm282, %v64, 0.0
    %v361 = vadd.f32 %v359, %v360
    %v362 = vsel %vm282, %v65, 0.0
    %v363 = vadd.f32 %v361, %v362
    %v364 = vsel %vm282, %v66, 0.0
    %v365 = vadd.f32 %v363, %v364
    %v366 = vsel %vm282, %v67, 0.0
    %v367 = vadd.f32 %v365, %v366
    %v368 = vsel %vm282, %v68, 0.0
    %v369 = vadd.f32 %v367, %v368
    %v370 = vsel %vm282, %v69, 0.0
    %v371 = vadd.f32 %v369, %v370
    %v372 = vsel %vm282, %v70, 0.0
    %v373 = vadd.f32 %v371, %v372
    %v374 = vsel %vm282, %v71, 0.0
    %v375 = vadd.f32 %v373, %v374
    %v376 = vsel %vm282, %v72, 0.0
    %v377 = vadd.f32 %v375, %v376
    %v378 = vsel %vm282, %v73, 0.0
    %v379 = vadd.f32 %v377, %v378
    %v380 = vsel %vm282, %v74, 0.0
    %v381 = vadd.f32 %v379, %v380
    %v382 = vsel %vm282, %v75, 0.0
    %v383 = vadd.f32 %v381, %v382
    %v384 = vsel %vm282, %v76, 0.0
    %v385 = vadd.f32 %v383, %v384
    %v386 = vsel %vm282, %v77, 0.0
    %v387 = vadd.f32 %v385, %v386
    %v388 = vsel %vm282, %v78, 0.0
    %v389 = vadd.f32 %v387, %v388
    %v390 = vsel %vm282, %v79, 0.0
    %v391 = vadd.f32 %v389, %v390
    %v392 = vsel %vm282, %v80, 0.0
    %v393 = vadd.f32 %v391, %v392
    %v394 = vsel %vm282, %v81, 0.0
    %v395 = vadd.f32 %v393, %v394
    %v396 = vsel %vm282, %v82, 0.0
    %v397 = vadd.f32 %v395, %v396
    %v398 = vsel %vm282, %v83, 0.0
    %v399 = vadd.f32 %v397, %v398
    %v400 = vsel %vm282, %v84, 0.0
    %v401 = vadd.f32 %v399, %v400
    %v402 = vsel %vm282, %v85, 0.0
    %v403 = vadd.f32 %v401, %v402
    %v404 = vsel %vm282, %v86, 0.0
    %v405 = vadd.f32 %v403, %v404
    %v406 = vsel %vm282, %v87, 0.0
    %v407 = vadd.f32 %v405, %v406
    %v408 = vsel %vm282, %v88, 0.0
    %v409 = vadd.f32 %v407, %v408
    %v410 = vsel %vm282, %v89, 0.0
    %v411 = vadd.f32 %v409, %v410
    %v412 = vsel %vm282, %v90, 0.0
    %v413 = vadd.f32 %v411, %v412
    %v414 = vsel %vm282, %v91, 0.0
    %v415 = vadd.f32 %v413, %v414
    %v416 = vsel %vm282, %v92, 0.0
    %v417 = vadd.f32 %v415, %v416
    %v418 = vsel %vm282, %v93, 0.0
    %v419 = vadd.f32 %v417, %v418
    %v420 = vsel %vm282, %v94, 0.0
    %v421 = vadd.f32 %v419, %v420
    %v422 = vsel %vm282, %v95, 0.0
    %v423 = vadd.f32 %v421, %v422
    %v424 = vsel %vm282, %v96, 0.0
    %v425 = vadd.f32 %v423, %v424
    %v426 = vsel %vm282, %v97, 0.0
    %v427 = vadd.f32 %v425, %v426
    %v428 = vsel %vm282, %v98, 0.0
    %v429 = vadd.f32 %v427, %v428
    %v430 = vsel %vm282, %v99, 0.0
    %v431 = vadd.f32 %v429, %v430
    %v432 = vsel %vm282, %v100, 0.0
    %v433 = vadd.f32 %v431, %v432
    %v434 = vsel %vm282, %v101, 0.0
    %v435 = vadd.f32 %v433, %v434
    %v436 = vsel %vm282, %v102, 0.0
    %v437 = vadd.f32 %v435, %v436
    %v438 = vsel %vm282, %v103, 0.0
    %v439 = vadd.f32 %v437, %v438
    %v440 = vsel %vm282, %v104, 0.0
    %v441 = vadd.f32 %v439, %v440
    %v442 = vsel %vm282, %v105, 0.0
    %v443 = vadd.f32 %v441, %v442
    %v444 = vsel %vm282, %v106, 0.0
    %v445 = vadd.f32 %v443, %v444
    %v446 = vsel %vm282, %v107, 0.0
    %v447 = vadd.f32 %v445, %v446
    %v448 = vsel %vm282, %v108, 0.0
    %v449 = vadd.f32 %v447, %v448
    %v450 = vsel %vm282, %v109, 0.0
    %v451 = vadd.f32 %v449, %v450
    %v452 = vsel %vm282, %v110, 0.0
    %v453 = vadd.f32 %v451, %v452
    %v454 = vsel %vm282, %v111, 0.0
    %v455 = vadd.f32 %v453, %v454
    %v456 = vsel %vm282, %v112, 0.0
    %v457 = vadd.f32 %v455, %v456
    %v458 = vsel %vm282, %v113, 0.0
    %v459 = vadd.f32 %v457, %v458
    %v460 = vsel %vm282, %v114, 0.0
    %v461 = vadd.f32 %v459, %v460
    %v462 = vsel %vm282, %v115, 0.0
    %v463 = vadd.f32 %v461, %v462
    %v464 = vsel %vm282, %v116, 0.0
    %v465 = vadd.f32 %v463, %v464
    %v466 = vsel %vm282, %v117, 0.0
    %v467 = vadd.f32 %v465, %v466
    %v468 = vsel %vm282, %v118, 0.0
    %v469 = vadd.f32 %v467, %v468
    %v470 = vsel %vm282, %v119, 0.0
    %v471 = vadd.f32 %v469, %v470
    %v472 = vsel %vm282, %v120, 0.0
    %v473 = vadd.f32 %v471, %v472
    %v474 = vsel %vm282, %v121, 0.0
    %v475 = vadd.f32 %v473, %v474
    %v476 = vsel %vm282, %v122, 0.0
    %v477 = vadd.f32 %v475, %v476
    %v478 = vsel %vm282, %v123, 0.0
    %v479 = vadd.f32 %v477, %v478
    %v480 = vsel %vm282, %v124, 0.0
    %v481 = vadd.f32 %v479, %v480
    %v482 = vsel %vm282, %v125, 0.0
    %v483 = vadd.f32 %v481, %v482
    %v484 = vsel %vm282, %v126, 0.0
    %v485 = vadd.f32 %v483, %v484
    %v486 = vsel %vm282, %v127, 0.0
    %v487 = vadd.f32 %v485, %v486
    %v488 = vsel %vm282, %v128, 0.0
    %v489 = vadd.f32 %v487, %v488
    %v490 = vsel %vm282, %v129, 0.0
    %v491 = vadd.f32 %v489, %v490
    %v492 = vsel %vm282, %v130, 0.0
    %v493 = vadd.f32 %v491, %v492
    %v494 = vsel %vm282, %v131, 0.0
    %v495 = vadd.f32 %v493, %v494
    %v496 = vsel %vm282, %v132, 0.0
    %v497 = vadd.f32 %v495, %v496
    %v498 = vsel %vm282, %v133, 0.0
    %v499 = vadd.f32 %v497, %v498
    %v500 = vsel %vm282, %v134, 0.0
    %v501 = vadd.f32 %v499, %v500
    %v502 = vsel %vm282, %v135, 0.0
    %v503 = vadd.f32 %v501, %v502
    %v504 = vsel %vm282, %v136, 0.0
    %v505 = vadd.f32 %v503, %v504
    %v506 = vsel %vm282, %v137, 0.0
    %v507 = vadd.f32 %v505, %v506
    %v508 = vsel %vm282, %v138, 0.0
    %v509 = vadd.f32 %v507, %v508
    %v510 = vsel %vm282, %v139, 0.0
    %v511 = vadd.f32 %v509, %v510
    %v512 = vsel %vm282, %v140, 0.0
    %v513 = vadd.f32 %v511, %v512
    %v514 = vsel %vm282, %v141, 0.0
    %v515 = vadd.f32 %v513, %v514
    %v516 = vsel %vm282, %v142, 0.0
    %v517 = vadd.f32 %v515, %v516
    %v518 = vsel %vm282, %v143, 0.0
    %v519 = vadd.f32 %v517, %v518
    %v520 = vsel %vm282, %v144, 0.0
    %v521 = vadd.f32 %v519, %v520
    %v522 = vsel %vm282, %v145, 0.0
    %v523 = vadd.f32 %v521, %v522
    %v524 = vsel %vm282, %v146, 0.0
    %v525 = vadd.f32 %v523, %v524
    %v526 = vsel %vm282, %v147, 0.0
    %v527 = vadd.f32 %v525, %v526
    %v528 = vsel %vm282, %v148, 0.0
    %v529 = vadd.f32 %v527, %v528
    %v530 = vsel %vm282, %v149, 0.0
    %v531 = vadd.f32 %v529, %v530
    %v532 = vsel %vm282, %v150, 0.0
    %v533 = vadd.f32 %v531, %v532
    %v534 = vsel %vm282, %v151, 0.0
    %v535 = vadd.f32 %v533, %v534
    %v536 = vsel %vm282, %v152, 0.0
    %v537 = vadd.f32 %v535, %v536
    %v538 = vrot.slane %v537, 4
    %v539 = vadd.f32 %v537, %v538
    %v540 = vrot.slane %v539, 2
    %v541 = vadd.f32 %v539, %v540
    %v542 = vrot.slane %v541, 1
    %v543 = vadd.f32 %v541, %v542
    %v544 = vsel %vm282, %v153, 0.0
    %v545 = vsel %vm282, %v154, 0.0
    %v546 = vadd.f32 %v544, %v545
    %v547 = vsel %vm282, %v155, 0.0
    %v548 = vadd.f32 %v546, %v547
    %v549 = vsel %vm282, %v156, 0.0
    %v550 = vadd.f32 %v548, %v549
    %v551 = vsel %vm282, %v157, 0.0
    %v552 = vadd.f32 %v550, %v551
    %v553 = vsel %vm282, %v158, 0.0
    %v554 = vadd.f32 %v552, %v553
    %v555 = vsel %vm282, %v159, 0.0
    %v556 = vadd.f32 %v554, %v555
    %v557 = vsel %vm282, %v160, 0.0
    %v558 = vadd.f32 %v556, %v557
    %v559 = vsel %vm282, %v161, 0.0
    %v560 = vadd.f32 %v558, %v559
    %v561 = vsel %vm282, %v162, 0.0
    %v562 = vadd.f32 %v560, %v561
    %v563 = vsel %vm282, %v163, 0.0
    %v564 = vadd.f32 %v562, %v563
    %v565 = vsel %vm282, %v164, 0.0
    %v566 = vadd.f32 %v564, %v565
    %v567 = vsel %vm282, %v165, 0.0
    %v568 = vadd.f32 %v566, %v567
    %v569 = vsel %vm282, %v166, 0.0
    %v570 = vadd.f32 %v568, %v569
    %v571 = vsel %vm282, %v167, 0.0
    %v572 = vadd.f32 %v570, %v571
    %v573 = vsel %vm282, %v168, 0.0
    %v574 = vadd.f32 %v572, %v573
    %v575 = vsel %vm282, %v169, 0.0
    %v576 = vadd.f32 %v574, %v575
    %v577 = vsel %vm282, %v170, 0.0
    %v578 = vadd.f32 %v576, %v577
    %v579 = vsel %vm282, %v171, 0.0
    %v580 = vadd.f32 %v578, %v579
    %v581 = vsel %vm282, %v172, 0.0
    %v582 = vadd.f32 %v580, %v581
    %v583 = vsel %vm282, %v173, 0.0
    %v584 = vadd.f32 %v582, %v583
    %v585 = vsel %vm282, %v174, 0.0
    %v586 = vadd.f32 %v584, %v585
    %v587 = vsel %vm282, %v175, 0.0
    %v588 = vadd.f32 %v586, %v587
    %v589 = vsel %vm282, %v176, 0.0
    %v590 = vadd.f32 %v588, %v589
    %v591 = vsel %vm282, %v177, 0.0
    %v592 = vadd.f32 %v590, %v591
    %v593 = vsel %vm282, %v178, 0.0
    %v594 = vadd.f32 %v592, %v593
    %v595 = vsel %vm282, %v179, 0.0
    %v596 = vadd.f32 %v594, %v595
    %v597 = vsel %vm282, %v180, 0.0
    %v598 = vadd.f32 %v596, %v597
    %v599 = vsel %vm282, %v181, 0.0
    %v600 = vadd.f32 %v598, %v599
    %v601 = vsel %vm282, %v182, 0.0
    %v602 = vadd.f32 %v600, %v601
    %v603 = vsel %vm282, %v183, 0.0
    %v604 = vadd.f32 %v602, %v603
    %v605 = vsel %vm282, %v184, 0.0
    %v606 = vadd.f32 %v604, %v605
    %v607 = vsel %vm282, %v185, 0.0
    %v608 = vadd.f32 %v606, %v607
    %v609 = vsel %vm282, %v186, 0.0
    %v610 = vadd.f32 %v608, %v609
    %v611 = vsel %vm282, %v187, 0.0
    %v612 = vadd.f32 %v610, %v611
    %v613 = vsel %vm282, %v188, 0.0
    %v614 = vadd.f32 %v612, %v613
    %v615 = vsel %vm282, %v189, 0.0
    %v616 = vadd.f32 %v614, %v615
    %v617 = vsel %vm282, %v190, 0.0
    %v618 = vadd.f32 %v616, %v617
    %v619 = vsel %vm282, %v191, 0.0
    %v620 = vadd.f32 %v618, %v619
    %v621 = vsel %vm282, %v192, 0.0
    %v622 = vadd.f32 %v620, %v621
    %v623 = vsel %vm282, %v193, 0.0
    %v624 = vadd.f32 %v622, %v623
    %v625 = vsel %vm282, %v194, 0.0
    %v626 = vadd.f32 %v624, %v625
    %v627 = vsel %vm282, %v195, 0.0
    %v628 = vadd.f32 %v626, %v627
    %v629 = vsel %vm282, %v196, 0.0
    %v630 = vadd.f32 %v628, %v629
    %v631 = vsel %vm282, %v197, 0.0
    %v632 = vadd.f32 %v630, %v631
    %v633 = vsel %vm282, %v198, 0.0
    %v634 = vadd.f32 %v632, %v633
    %v635 = vsel %vm282, %v199, 0.0
    %v636 = vadd.f32 %v634, %v635
    %v637 = vsel %vm282, %v200, 0.0
    %v638 = vadd.f32 %v636, %v637
    %v639 = vsel %vm282, %v201, 0.0
    %v640 = vadd.f32 %v638, %v639
    %v641 = vsel %vm282, %v202, 0.0
    %v642 = vadd.f32 %v640, %v641
    %v643 = vsel %vm282, %v203, 0.0
    %v644 = vadd.f32 %v642, %v643
    %v645 = vsel %vm282, %v204, 0.0
    %v646 = vadd.f32 %v644, %v645
    %v647 = vsel %vm282, %v205, 0.0
    %v648 = vadd.f32 %v646, %v647
    %v649 = vsel %vm282, %v206, 0.0
    %v650 = vadd.f32 %v648, %v649
    %v651 = vsel %vm282, %v207, 0.0
    %v652 = vadd.f32 %v650, %v651
    %v653 = vsel %vm282, %v208, 0.0
    %v654 = vadd.f32 %v652, %v653
    %v655 = vsel %vm282, %v209, 0.0
    %v656 = vadd.f32 %v654, %v655
    %v657 = vsel %vm282, %v210, 0.0
    %v658 = vadd.f32 %v656, %v657
    %v659 = vsel %vm282, %v211, 0.0
    %v660 = vadd.f32 %v658, %v659
    %v661 = vsel %vm282, %v212, 0.0
    %v662 = vadd.f32 %v660, %v661
    %v663 = vsel %vm282, %v213, 0.0
    %v664 = vadd.f32 %v662, %v663
    %v665 = vsel %vm282, %v214, 0.0
    %v666 = vadd.f32 %v664, %v665
    %v667 = vsel %vm282, %v215, 0.0
    %v668 = vadd.f32 %v666, %v667
    %v669 = vsel %vm282, %v216, 0.0
    %v670 = vadd.f32 %v668, %v669
    %v671 = vsel %vm282, %v217, 0.0
    %v672 = vadd.f32 %v670, %v671
    %v673 = vsel %vm282, %v218, 0.0
    %v674 = vadd.f32 %v672, %v673
    %v675 = vsel %vm282, %v219, 0.0
    %v676 = vadd.f32 %v674, %v675
    %v677 = vsel %vm282, %v220, 0.0
    %v678 = vadd.f32 %v676, %v677
    %v679 = vsel %vm282, %v221, 0.0
    %v680 = vadd.f32 %v678, %v679
    %v681 = vsel %vm282, %v222, 0.0
    %v682 = vadd.f32 %v680, %v681
    %v683 = vsel %vm282, %v223, 0.0
    %v684 = vadd.f32 %v682, %v683
    %v685 = vsel %vm282, %v224, 0.0
    %v686 = vadd.f32 %v684, %v685
    %v687 = vsel %vm282, %v225, 0.0
    %v688 = vadd.f32 %v686, %v687
    %v689 = vsel %vm282, %v226, 0.0
    %v690 = vadd.f32 %v688, %v689
    %v691 = vsel %vm282, %v227, 0.0
    %v692 = vadd.f32 %v690, %v691
    %v693 = vsel %vm282, %v228, 0.0
    %v694 = vadd.f32 %v692, %v693
    %v695 = vsel %vm282, %v229, 0.0
    %v696 = vadd.f32 %v694, %v695
    %v697 = vsel %vm282, %v230, 0.0
    %v698 = vadd.f32 %v696, %v697
    %v699 = vsel %vm282, %v231, 0.0
    %v700 = vadd.f32 %v698, %v699
    %v701 = vsel %vm282, %v232, 0.0
    %v702 = vadd.f32 %v700, %v701
    %v703 = vsel %vm282, %v233, 0.0
    %v704 = vadd.f32 %v702, %v703
    %v705 = vsel %vm282, %v234, 0.0
    %v706 = vadd.f32 %v704, %v705
    %v707 = vsel %vm282, %v235, 0.0
    %v708 = vadd.f32 %v706, %v707
    %v709 = vsel %vm282, %v236, 0.0
    %v710 = vadd.f32 %v708, %v709
    %v711 = vsel %vm282, %v237, 0.0
    %v712 = vadd.f32 %v710, %v711
    %v713 = vsel %vm282, %v238, 0.0
    %v714 = vadd.f32 %v712, %v713
    %v715 = vsel %vm282, %v239, 0.0
    %v716 = vadd.f32 %v714, %v715
    %v717 = vsel %vm282, %v240, 0.0
    %v718 = vadd.f32 %v716, %v717
    %v719 = vsel %vm282, %v241, 0.0
    %v720 = vadd.f32 %v718, %v719
    %v721 = vsel %vm282, %v242, 0.0
    %v722 = vadd.f32 %v720, %v721
    %v723 = vsel %vm282, %v243, 0.0
    %v724 = vadd.f32 %v722, %v723
    %v725 = vsel %vm282, %v244, 0.0
    %v726 = vadd.f32 %v724, %v725
    %v727 = vsel %vm282, %v245, 0.0
    %v728 = vadd.f32 %v726, %v727
    %v729 = vsel %vm282, %v246, 0.0
    %v730 = vadd.f32 %v728, %v729
    %v731 = vsel %vm282, %v247, 0.0
    %v732 = vadd.f32 %v730, %v731
    %v733 = vsel %vm282, %v248, 0.0
    %v734 = vadd.f32 %v732, %v733
    %v735 = vsel %vm282, %v249, 0.0
    %v736 = vadd.f32 %v734, %v735
    %v737 = vsel %vm282, %v250, 0.0
    %v738 = vadd.f32 %v736, %v737
    %v739 = vsel %vm282, %v251, 0.0
    %v740 = vadd.f32 %v738, %v739
    %v741 = vsel %vm282, %v252, 0.0
    %v742 = vadd.f32 %v740, %v741
    %v743 = vsel %vm282, %v253, 0.0
    %v744 = vadd.f32 %v742, %v743
    %v745 = vsel %vm282, %v254, 0.0
    %v746 = vadd.f32 %v744, %v745
    %v747 = vsel %vm282, %v255, 0.0
    %v748 = vadd.f32 %v746, %v747
    %v749 = vsel %vm282, %v256, 0.0
    %v750 = vadd.f32 %v748, %v749
    %v751 = vsel %vm282, %v257, 0.0
    %v752 = vadd.f32 %v750, %v751
    %v753 = vsel %vm282, %v258, 0.0
    %v754 = vadd.f32 %v752, %v753
    %v755 = vsel %vm282, %v259, 0.0
    %v756 = vadd.f32 %v754, %v755
    %v757 = vsel %vm282, %v260, 0.0
    %v758 = vadd.f32 %v756, %v757
    %v759 = vsel %vm282, %v261, 0.0
    %v760 = vadd.f32 %v758, %v759
    %v761 = vsel %vm282, %v262, 0.0
    %v762 = vadd.f32 %v760, %v761
    %v763 = vsel %vm282, %v263, 0.0
    %v764 = vadd.f32 %v762, %v763
    %v765 = vsel %vm282, %v264, 0.0
    %v766 = vadd.f32 %v764, %v765
    %v767 = vsel %vm282, %v265, 0.0
    %v768 = vadd.f32 %v766, %v767
    %v769 = vsel %vm282, %v266, 0.0
    %v770 = vadd.f32 %v768, %v769
    %v771 = vsel %vm282, %v267, 0.0
    %v772 = vadd.f32 %v770, %v771
    %v773 = vsel %vm282, %v268, 0.0
    %v774 = vadd.f32 %v772, %v773
    %v775 = vsel %vm282, %v269, 0.0
    %v776 = vadd.f32 %v774, %v775
    %v777 = vsel %vm282, %v270, 0.0
    %v778 = vadd.f32 %v776, %v777
    %v779 = vsel %vm282, %v271, 0.0
    %v780 = vadd.f32 %v778, %v779
    %v781 = vsel %vm282, %v272, 0.0
    %v782 = vadd.f32 %v780, %v781
    %v783 = vsel %vm282, %v273, 0.0
    %v784 = vadd.f32 %v782, %v783
    %v785 = vsel %vm282, %v274, 0.0
    %v786 = vadd.f32 %v784, %v785
    %v787 = vsel %vm282, %v275, 0.0
    %v788 = vadd.f32 %v786, %v787
    %v789 = vsel %vm282, %v276, 0.0
    %v790 = vadd.f32 %v788, %v789
    %v791 = vsel %vm282, %v277, 0.0
    %v792 = vadd.f32 %v790, %v791
    %v793 = vsel %vm282, %v278, 0.0
    %v794 = vadd.f32 %v792, %v793
    %v795 = vsel %vm282, %v279, 0.0
    %v796 = vadd.f32 %v794, %v795
    %v797 = vsel %vm282, %v280, 0.0
    %v798 = vadd.f32 %v796, %v797
    %v799 = vrot.slane %v798, 4
    %v800 = vadd.f32 %v798, %v799
    %v801 = vrot.slane %v800, 2
    %v802 = vadd.f32 %v800, %v801
    %v803 = vrot.slane %v802, 1
    %v804 = vadd.f32 %v802, %v803
    %vm807 = vcmask 1041409
    %v808 = vsel %vm807, %v804, %v543
    %v810 = vadd.f32 %v281, %v808
    %vm811 = vcmask 17408
    %812 = vst.msk [vmem:[#allocation2] sm:$0x3] %vm811, %v810
    // Predicated region
    $region22: #{multi_classification_forward.31} parent=1 // pred_check
      %p813 = pneg %p19
    $region23: #{multi_classification_forward.31} parent=1 // pred_check_branch
      %815 = sbr.rel (%p813) target = $region25
    $region24: #{multi_classification_forward.31} parent=1 // pred_region
      %v816 = vld [vmem:[#allocation2] sm:$0x3]
      %v817 = vmul.f32 %v816, 0.0009765625
      %v818 = vld [vmem:[%s1] sm:$0x77]
      %v819 = vld [vmem:[%s1 + $0x8] sm:$0x77]
      %v820 = vld [vmem:[%s1 + $0x10] sm:$0x77]
      %v821 = vld [vmem:[%s1 + $0x18] sm:$0x77]
      %v822 = vld [vmem:[%s1 + $0x20] sm:$0x77]
      %v823 = vld [vmem:[%s1 + $0x28] sm:$0x77]
      %825 = vset.pattern.permute.xlu0 0
      %826 = vperm.xlu0 %825, %v817
      %v827 = vpop.permute.xlu0 %826
      %v835 = vlaneseq
      %v836 = vshrl.u32 %v835, 7
      %v837 = vsub.s32 0, %v836
      %v838 = vrot.slane %v818, %v837
      %v839 = vlaneseq
      %v840 = vshrl.u32 %v839, 7
      %v841 = vsub.s32 4, %v840
      %v842 = vrot.slane %v818, %v841
      %v843 = vlaneseq
      %v844 = vshrl.u32 %v843, 7
      %v845 = vsub.s32 0, %v844
      %v846 = vrot.slane %v819, %v845
      %v847 = vlaneseq
      %v848 = vshrl.u32 %v847, 7
      %v849 = vsub.s32 4, %v848
      %v850 = vrot.slane %v819, %v849
      %v851 = vlaneseq
      %v852 = vshrl.u32 %v851, 7
      %v853 = vsub.s32 0, %v852
      %v854 = vrot.slane %v820, %v853
      %v855 = vlaneseq
      %v856 = vshrl.u32 %v855, 7
      %v857 = vsub.s32 4, %v856
      %v858 = vrot.slane %v820, %v857
      %v859 = vlaneseq
      %v860 = vshrl.u32 %v859, 7
      %v861 = vsub.s32 0, %v860
      %v862 = vrot.slane %v821, %v861
      %v863 = vlaneseq
      %v864 = vshrl.u32 %v863, 7
      %v865 = vsub.s32 4, %v864
      %v866 = vrot.slane %v821, %v865
      %v867 = vlaneseq
      %v868 = vshrl.u32 %v867, 7
      %v869 = vsub.s32 0, %v868
      %v870 = vrot.slane %v822, %v869
      %v871 = vlaneseq
      %v872 = vshrl.u32 %v871, 7
      %v873 = vsub.s32 4, %v872
      %v874 = vrot.slane %v822, %v873
      %v875 = vlaneseq
      %v876 = vshrl.u32 %v875, 7
      %v877 = vsub.s32 0, %v876
      %v878 = vrot.slane %v823, %v877
      %v879 = vlaneseq
      %v880 = vshrl.u32 %v879, 7
      %v881 = vsub.s32 4, %v880
      %v882 = vrot.slane %v823, %v881
      %v895 = vlaneseq
      %v896 = vshrl.u32 %v895, 7
      %v897 = vsub.s32 0, %v896
      %v898 = vrot.slane %v838, %v897
      %v899 = vlaneseq
      %v900 = vshrl.u32 %v899, 7
      %v901 = vsub.s32 0, %v900
      %v902 = vrot.slane %v842, %v901
      %v903 = vlaneseq
      %v904 = vshrl.u32 %v903, 7
      %v905 = vsub.s32 0, %v904
      %v906 = vrot.slane %v846, %v905
      %v907 = vlaneseq
      %v908 = vshrl.u32 %v907, 7
      %v909 = vsub.s32 0, %v908
      %v910 = vrot.slane %v850, %v909
      %v911 = vlaneseq
      %v912 = vshrl.u32 %v911, 7
      %v913 = vsub.s32 0, %v912
      %v914 = vrot.slane %v854, %v913
      %v915 = vlaneseq
      %v916 = vshrl.u32 %v915, 7
      %v917 = vsub.s32 0, %v916
      %v918 = vrot.slane %v858, %v917
      %v919 = vlaneseq
      %v920 = vshrl.u32 %v919, 7
      %v921 = vsub.s32 0, %v920
      %v922 = vrot.slane %v862, %v921
      %v923 = vlaneseq
      %v924 = vshrl.u32 %v923, 7
      %v925 = vsub.s32 0, %v924
      %v926 = vrot.slane %v866, %v925
      %v927 = vlaneseq
      %v928 = vshrl.u32 %v927, 7
      %v929 = vsub.s32 0, %v928
      %v930 = vrot.slane %v870, %v929
      %v931 = vlaneseq
      %v932 = vshrl.u32 %v931, 7
      %v933 = vsub.s32 0, %v932
      %v934 = vrot.slane %v874, %v933
      %v935 = vlaneseq
      %v936 = vshrl.u32 %v935, 7
      %v937 = vsub.s32 0, %v936
      %v938 = vrot.slane %v878, %v937
      %v939 = vlaneseq
      %v940 = vshrl.u32 %v939, 7
      %v941 = vsub.s32 0, %v940
      %v942 = vrot.slane %v882, %v941
      %v943 = vmul.f32 %v827, %v898
      %v944 = vmul.f32 %v827, %v902
      %v945 = vmul.f32 %v827, %v906
      %v946 = vmul.f32 %v827, %v910
      %v947 = vmul.f32 %v827, %v914
      %v948 = vmul.f32 %v827, %v918
      %v949 = vmul.f32 %v827, %v922
      %v950 = vmul.f32 %v827, %v926
      %v951 = vmul.f32 %v827, %v930
      %v952 = vmul.f32 %v827, %v934
      %v953 = vmul.f32 %v827, %v938
      %v954 = vmul.f32 %v827, %v942
      %955 = vset.pattern.permute.xlu0 1
      %956 = vperm.xlu0 %955, %v817
      %v957 = vpop.permute.xlu0 %956
      %v959 = vlaneseq
      %v960 = vshrl.u32 %v959, 7
      %v961 = vsub.s32 1, %v960
      %v962 = vrot.slane %v818, %v961
      %v963 = vlaneseq
      %v964 = vshrl.u32 %v963, 7
      %v965 = vsub.s32 5, %v964
      %v966 = vrot.slane %v818, %v965
      %v967 = vlaneseq
      %v968 = vshrl.u32 %v967, 7
      %v969 = vsub.s32 1, %v968
      %v970 = vrot.slane %v819, %v969
      %v971 = vlaneseq
      %v972 = vshrl.u32 %v971, 7
      %v973 = vsub.s32 5, %v972
      %v974 = vrot.slane %v819, %v973
      %v975 = vlaneseq
      %v976 = vshrl.u32 %v975, 7
      %v977 = vsub.s32 1, %v976
      %v978 = vrot.slane %v820, %v977
      %v979 = vlaneseq
      %v980 = vshrl.u32 %v979, 7
      %v981 = vsub.s32 5, %v980
      %v982 = vrot.slane %v820, %v981
      %v983 = vlaneseq
      %v984 = vshrl.u32 %v983, 7
      %v985 = vsub.s32 1, %v984
      %v986 = vrot.slane %v821, %v985
      %v987 = vlaneseq
      %v988 = vshrl.u32 %v987, 7
      %v989 = vsub.s32 5, %v988
      %v990 = vrot.slane %v821, %v989
      %v991 = vlaneseq
      %v992 = vshrl.u32 %v991, 7
      %v993 = vsub.s32 1, %v992
      %v994 = vrot.slane %v822, %v993
      %v995 = vlaneseq
      %v996 = vshrl.u32 %v995, 7
      %v997 = vsub.s32 5, %v996
      %v998 = vrot.slane %v822, %v997
      %v999 = vlaneseq
      %v1000 = vshrl.u32 %v999, 7
      %v1001 = vsub.s32 1, %v1000
      %v1002 = vrot.slane %v823, %v1001
      %v1003 = vlaneseq
      %v1004 = vshrl.u32 %v1003, 7
      %v1005 = vsub.s32 5, %v1004
      %v1006 = vrot.slane %v823, %v1005
      %v1019 = vlaneseq
      %v1020 = vshrl.u32 %v1019, 7
      %v1021 = vsub.s32 1, %v1020
      %v1022 = vrot.slane %v962, %v1021
      %v1023 = vlaneseq
      %v1024 = vshrl.u32 %v1023, 7
      %v1025 = vsub.s32 1, %v1024
      %v1026 = vrot.slane %v966, %v1025
      %v1027 = vlaneseq
      %v1028 = vshrl.u32 %v1027, 7
      %v1029 = vsub.s32 1, %v1028
      %v1030 = vrot.slane %v970, %v1029
      %v1031 = vlaneseq
      %v1032 = vshrl.u32 %v1031, 7
      %v1033 = vsub.s32 1, %v1032
      %v1034 = vrot.slane %v974, %v1033
      %v1035 = vlaneseq
      %v1036 = vshrl.u32 %v1035, 7
      %v1037 = vsub.s32 1, %v1036
      %v1038 = vrot.slane %v978, %v1037
      %v1039 = vlaneseq
      %v1040 = vshrl.u32 %v1039, 7
      %v1041 = vsub.s32 1, %v1040
      %v1042 = vrot.slane %v982, %v1041
      %v1043 = vlaneseq
      %v1044 = vshrl.u32 %v1043, 7
      %v1045 = vsub.s32 1, %v1044
      %v1046 = vrot.slane %v986, %v1045
      %v1047 = vlaneseq
      %v1048 = vshrl.u32 %v1047, 7
      %v1049 = vsub.s32 1, %v1048
      %v1050 = vrot.slane %v990, %v1049
      %v1051 = vlaneseq
      %v1052 = vshrl.u32 %v1051, 7
      %v1053 = vsub.s32 1, %v1052
      %v1054 = vrot.slane %v994, %v1053
      %v1055 = vlaneseq
      %v1056 = vshrl.u32 %v1055, 7
      %v1057 = vsub.s32 1, %v1056
      %v1058 = vrot.slane %v998, %v1057
      %v1059 = vlaneseq
      %v1060 = vshrl.u32 %v1059, 7
      %v1061 = vsub.s32 1, %v1060
      %v1062 = vrot.slane %v1002, %v1061
      %v1063 = vlaneseq
      %v1064 = vshrl.u32 %v1063, 7
      %v1065 = vsub.s32 1, %v1064
      %v1066 = vrot.slane %v1006, %v1065
      %v1067 = vmul.f32 %v957, %v1022
      %v1068 = vmul.f32 %v957, %v1026
      %v1069 = vmul.f32 %v957, %v1030
      %v1070 = vmul.f32 %v957, %v1034
      %v1071 = vmul.f32 %v957, %v1038
      %v1072 = vmul.f32 %v957, %v1042
      %v1073 = vmul.f32 %v957, %v1046
      %v1074 = vmul.f32 %v957, %v1050
      %v1075 = vmul.f32 %v957, %v1054
      %v1076 = vmul.f32 %v957, %v1058
      %v1077 = vmul.f32 %v957, %v1062
      %v1078 = vmul.f32 %v957, %v1066
      %v1079 = vadd.f32 %v943, %v1067
      %v1080 = vadd.f32 %v944, %v1068
      %v1081 = vadd.f32 %v945, %v1069
      %v1082 = vadd.f32 %v946, %v1070
      %v1083 = vadd.f32 %v947, %v1071
      %v1084 = vadd.f32 %v948, %v1072
      %v1085 = vadd.f32 %v949, %v1073
      %v1086 = vadd.f32 %v950, %v1074
      %v1087 = vadd.f32 %v951, %v1075
      %v1088 = vadd.f32 %v952, %v1076
      %v1089 = vadd.f32 %v953, %v1077
      %v1090 = vadd.f32 %v954, %v1078
      %1091 = vset.pattern.permute.xlu0 2
      %1092 = vperm.xlu0 %1091, %v817
      %v1093 = vpop.permute.xlu0 %1092
      %v1095 = vlaneseq
      %v1096 = vshrl.u32 %v1095, 7
      %v1097 = vsub.s32 2, %v1096
      %v1098 = vrot.slane %v818, %v1097
      %v1099 = vlaneseq
      %v1100 = vshrl.u32 %v1099, 7
      %v1101 = vsub.s32 6, %v1100
      %v1102 = vrot.slane %v818, %v1101
      %v1103 = vlaneseq
      %v1104 = vshrl.u32 %v1103, 7
      %v1105 = vsub.s32 2, %v1104
      %v1106 = vrot.slane %v819, %v1105
      %v1107 = vlaneseq
      %v1108 = vshrl.u32 %v1107, 7
      %v1109 = vsub.s32 6, %v1108
      %v1110 = vrot.slane %v819, %v1109
      %v1111 = vlaneseq
      %v1112 = vshrl.u32 %v1111, 7
      %v1113 = vsub.s32 2, %v1112
      %v1114 = vrot.slane %v820, %v1113
      %v1115 = vlaneseq
      %v1116 = vshrl.u32 %v1115, 7
      %v1117 = vsub.s32 6, %v1116
      %v1118 = vrot.slane %v820, %v1117
      %v1119 = vlaneseq
      %v1120 = vshrl.u32 %v1119, 7
      %v1121 = vsub.s32 2, %v1120
      %v1122 = vrot.slane %v821, %v1121
      %v1123 = vlaneseq
      %v1124 = vshrl.u32 %v1123, 7
      %v1125 = vsub.s32 6, %v1124
      %v1126 = vrot.slane %v821, %v1125
      %v1127 = vlaneseq
      %v1128 = vshrl.u32 %v1127, 7
      %v1129 = vsub.s32 2, %v1128
      %v1130 = vrot.slane %v822, %v1129
      %v1131 = vlaneseq
      %v1132 = vshrl.u32 %v1131, 7
      %v1133 = vsub.s32 6, %v1132
      %v1134 = vrot.slane %v822, %v1133
      %v1135 = vlaneseq
      %v1136 = vshrl.u32 %v1135, 7
      %v1137 = vsub.s32 2, %v1136
      %v1138 = vrot.slane %v823, %v1137
      %v1139 = vlaneseq
      %v1140 = vshrl.u32 %v1139, 7
      %v1141 = vsub.s32 6, %v1140
      %v1142 = vrot.slane %v823, %v1141
      %v1155 = vlaneseq
      %v1156 = vshrl.u32 %v1155, 7
      %v1157 = vsub.s32 2, %v1156
      %v1158 = vrot.slane %v1098, %v1157
      %v1159 = vlaneseq
      %v1160 = vshrl.u32 %v1159, 7
      %v1161 = vsub.s32 2, %v1160
      %v1162 = vrot.slane %v1102, %v1161
      %v1163 = vlaneseq
      %v1164 = vshrl.u32 %v1163, 7
      %v1165 = vsub.s32 2, %v1164
      %v1166 = vrot.slane %v1106, %v1165
      %v1167 = vlaneseq
      %v1168 = vshrl.u32 %v1167, 7
      %v1169 = vsub.s32 2, %v1168
      %v1170 = vrot.slane %v1110, %v1169
      %v1171 = vlaneseq
      %v1172 = vshrl.u32 %v1171, 7
      %v1173 = vsub.s32 2, %v1172
      %v1174 = vrot.slane %v1114, %v1173
      %v1175 = vlaneseq
      %v1176 = vshrl.u32 %v1175, 7
      %v1177 = vsub.s32 2, %v1176
      %v1178 = vrot.slane %v1118, %v1177
      %v1179 = vlaneseq
      %v1180 = vshrl.u32 %v1179, 7
      %v1181 = vsub.s32 2, %v1180
      %v1182 = vrot.slane %v1122, %v1181
      %v1183 = vlaneseq
      %v1184 = vshrl.u32 %v1183, 7
      %v1185 = vsub.s32 2, %v1184
      %v1186 = vrot.slane %v1126, %v1185
      %v1187 = vlaneseq
      %v1188 = vshrl.u32 %v1187, 7
      %v1189 = vsub.s32 2, %v1188
      %v1190 = vrot.slane %v1130, %v1189
      %v1191 = vlaneseq
      %v1192 = vshrl.u32 %v1191, 7
      %v1193 = vsub.s32 2, %v1192
      %v1194 = vrot.slane %v1134, %v1193
      %v1195 = vlaneseq
      %v1196 = vshrl.u32 %v1195, 7
      %v1197 = vsub.s32 2, %v1196
      %v1198 = vrot.slane %v1138, %v1197
      %v1199 = vlaneseq
      %v1200 = vshrl.u32 %v1199, 7
      %v1201 = vsub.s32 2, %v1200
      %v1202 = vrot.slane %v1142, %v1201
      %v1203 = vmul.f32 %v1093, %v1158
      %v1204 = vmul.f32 %v1093, %v1162
      %v1205 = vmul.f32 %v1093, %v1166
      %v1206 = vmul.f32 %v1093, %v1170
      %v1207 = vmul.f32 %v1093, %v1174
      %v1208 = vmul.f32 %v1093, %v1178
      %v1209 = vmul.f32 %v1093, %v1182
      %v1210 = vmul.f32 %v1093, %v1186
      %v1211 = vmul.f32 %v1093, %v1190
      %v1212 = vmul.f32 %v1093, %v1194
      %v1213 = vmul.f32 %v1093, %v1198
      %v1214 = vmul.f32 %v1093, %v1202
      %v1215 = vadd.f32 %v1079, %v1203
      %v1216 = vadd.f32 %v1080, %v1204
      %v1217 = vadd.f32 %v1081, %v1205
      %v1218 = vadd.f32 %v1082, %v1206
      %v1219 = vadd.f32 %v1083, %v1207
      %v1220 = vadd.f32 %v1084, %v1208
      %v1221 = vadd.f32 %v1085, %v1209
      %v1222 = vadd.f32 %v1086, %v1210
      %v1223 = vadd.f32 %v1087, %v1211
      %v1224 = vadd.f32 %v1088, %v1212
      %v1225 = vadd.f32 %v1089, %v1213
      %v1226 = vadd.f32 %v1090, %v1214
      %v1227 = vmax.f32 %v1215, 0.0
      %v1228 = vmax.f32 %v1216, 0.0
      %v1229 = vmax.f32 %v1217, 0.0
      %v1230 = vmax.f32 %v1218, 0.0
      %v1231 = vmax.f32 %v1219, 0.0
      %v1232 = vmax.f32 %v1220, 0.0
      %v1233 = vmax.f32 %v1221, 0.0
      %v1234 = vmax.f32 %v1222, 0.0
      %v1235 = vmax.f32 %v1223, 0.0
      %v1236 = vmax.f32 %v1224, 0.0
      %v1237 = vmax.f32 %v1225, 0.0
      %v1238 = vmax.f32 %v1226, 0.0
      %v1239 = vpack.c.bf16 %v1227, %v1227
      %v1240 = vpack.c.bf16 %v1228, %v1228
      %v1241 = vpack.c.bf16 %v1229, %v1229
      %v1242 = vpack.c.bf16 %v1230, %v1230
      %v1243 = vpack.c.bf16 %v1231, %v1231
      %v1244 = vpack.c.bf16 %v1232, %v1232
      %v1245 = vpack.c.bf16 %v1233, %v1233
      %v1246 = vpack.c.bf16 %v1234, %v1234
      %v1247 = vpack.c.bf16 %v1235, %v1235
      %v1248 = vpack.c.bf16 %v1236, %v1236
      %v1249 = vpack.c.bf16 %v1237, %v1237
      %v1250 = vpack.c.bf16 %v1238, %v1238
      %v1251 = vld [vmem:[%s2] sm:$0xf]
      %v1252 = vld [vmem:[%s2 + $0x4] sm:$0xf]
      %v1253 = vld [vmem:[%s2 + $0x8] sm:$0xf]
      %v1254 = vld [vmem:[%s2 + $0xc] sm:$0xf]
      %v1255 = vld [vmem:[%s2 + $0x10] sm:$0xf]
      %v1256 = vld [vmem:[%s2 + $0x14] sm:$0xf]
      %v1257 = vld [vmem:[%s2 + $0x18] sm:$0xf]
      %v1258 = vld [vmem:[%s2 + $0x1c] sm:$0xf]
      %v1259 = vld [vmem:[%s2 + $0x20] sm:$0xf]
      %v1260 = vld [vmem:[%s2 + $0x24] sm:$0xf]
      %v1261 = vld [vmem:[%s2 + $0x28] sm:$0xf]
      %v1262 = vld [vmem:[%s2 + $0x2c] sm:$0xf]
      %v1263 = vld [vmem:[%s2 + $0x30] sm:$0xf]
      %v1264 = vld [vmem:[%s2 + $0x34] sm:$0xf]
      %v1265 = vld [vmem:[%s2 + $0x38] sm:$0xf]
      %v1266 = vld [vmem:[%s2 + $0x3c] sm:$0xf]
      %v1267 = vld [vmem:[%s2 + $0x40] sm:$0xf]
      %v1268 = vld [vmem:[%s2 + $0x44] sm:$0xf]
      %v1269 = vld [vmem:[%s2 + $0x48] sm:$0xf]
      %v1270 = vld [vmem:[%s2 + $0x4c] sm:$0xf]
      %v1271 = vld [vmem:[%s2 + $0x50] sm:$0xf]
      %v1272 = vld [vmem:[%s2 + $0x54] sm:$0xf]
      %v1273 = vld [vmem:[%s2 + $0x58] sm:$0xf]
      %v1274 = vld [vmem:[%s2 + $0x5c] sm:$0xf]
      %v1275 = vld [vmem:[%s2 + $0x60] sm:$0xf]
      %v1276 = vld [vmem:[%s2 + $0x64] sm:$0xf]
      %v1277 = vld [vmem:[%s2 + $0x68] sm:$0xf]
      %v1278 = vld [vmem:[%s2 + $0x6c] sm:$0xf]
      %v1279 = vld [vmem:[%s2 + $0x70] sm:$0xf]
      %v1280 = vld [vmem:[%s2 + $0x74] sm:$0xf]
      %v1281 = vld [vmem:[%s2 + $0x78] sm:$0xf]
      %v1282 = vld [vmem:[%s2 + $0x7c] sm:$0xf]
      %v1283 = vld [vmem:[%s2 + $0x80] sm:$0xf]
      %v1284 = vld [vmem:[%s2 + $0x84] sm:$0xf]
      %v1285 = vld [vmem:[%s2 + $0x88] sm:$0xf]
      %v1286 = vld [vmem:[%s2 + $0x8c] sm:$0xf]
      %v1287 = vld [vmem:[%s2 + $0x90] sm:$0xf]
      %v1288 = vld [vmem:[%s2 + $0x94] sm:$0xf]
      %v1289 = vld [vmem:[%s2 + $0x98] sm:$0xf]
      %v1290 = vld [vmem:[%s2 + $0x9c] sm:$0xf]
      %v1291 = vld [vmem:[%s2 + $0xa0] sm:$0xf]
      %v1292 = vld [vmem:[%s2 + $0xa4] sm:$0xf]
      %v1293 = vld [vmem:[%s2 + $0xa8] sm:$0xf]
      %v1294 = vld [vmem:[%s2 + $0xac] sm:$0xf]
      %v1295 = vld [vmem:[%s2 + $0xb0] sm:$0xf]
      %v1296 = vld [vmem:[%s2 + $0xb4] sm:$0xf]
      %v1297 = vld [vmem:[%s2 + $0xb8] sm:$0xf]
      %v1298 = vld [vmem:[%s2 + $0xbc] sm:$0xf]
      %v1299 = vld [vmem:[%s2 + $0xc0] sm:$0xf]
      %v1300 = vld [vmem:[%s2 + $0xc4] sm:$0xf]
      %v1301 = vld [vmem:[%s2 + $0xc8] sm:$0xf]
      %v1302 = vld [vmem:[%s2 + $0xcc] sm:$0xf]
      %v1303 = vld [vmem:[%s2 + $0xd0] sm:$0xf]
      %v1304 = vld [vmem:[%s2 + $0xd4] sm:$0xf]
      %v1305 = vld [vmem:[%s2 + $0xd8] sm:$0xf]
      %v1306 = vld [vmem:[%s2 + $0xdc] sm:$0xf]
      %v1307 = vld [vmem:[%s2 + $0xe0] sm:$0xf]
      %v1308 = vld [vmem:[%s2 + $0xe4] sm:$0xf]
      %v1309 = vld [vmem:[%s2 + $0xe8] sm:$0xf]
      %v1310 = vld [vmem:[%s2 + $0xec] sm:$0xf]
      %v1311 = vld [vmem:[%s2 + $0xf0] sm:$0xf]
      %v1312 = vld [vmem:[%s2 + $0xf4] sm:$0xf]
      %v1313 = vld [vmem:[%s2 + $0xf8] sm:$0xf]
      %v1314 = vld [vmem:[%s2 + $0xfc] sm:$0xf]
      %v1315 = vld [vmem:[%s2 + $0x100] sm:$0xf]
      %v1316 = vld [vmem:[%s2 + $0x104] sm:$0xf]
      %v1317 = vld [vmem:[%s2 + $0x108] sm:$0xf]
      %v1318 = vld [vmem:[%s2 + $0x10c] sm:$0xf]
      %v1319 = vld [vmem:[%s2 + $0x110] sm:$0xf]
      %v1320 = vld [vmem:[%s2 + $0x114] sm:$0xf]
      %v1321 = vld [vmem:[%s2 + $0x118] sm:$0xf]
      %v1322 = vld [vmem:[%s2 + $0x11c] sm:$0xf]
      %v1323 = vld [vmem:[%s2 + $0x120] sm:$0xf]
      %v1324 = vld [vmem:[%s2 + $0x124] sm:$0xf]
      %v1325 = vld [vmem:[%s2 + $0x128] sm:$0xf]
      %v1326 = vld [vmem:[%s2 + $0x12c] sm:$0xf]
      %v1327 = vld [vmem:[%s2 + $0x130] sm:$0xf]
      %v1328 = vld [vmem:[%s2 + $0x134] sm:$0xf]
      %v1329 = vld [vmem:[%s2 + $0x138] sm:$0xf]
      %v1330 = vld [vmem:[%s2 + $0x13c] sm:$0xf]
      %v1331 = vld [vmem:[%s2 + $0x140] sm:$0xf]
      %v1332 = vld [vmem:[%s2 + $0x144] sm:$0xf]
      %v1333 = vld [vmem:[%s2 + $0x148] sm:$0xf]
      %v1334 = vld [vmem:[%s2 + $0x14c] sm:$0xf]
      %v1335 = vld [vmem:[%s2 + $0x150] sm:$0xf]
      %v1336 = vld [vmem:[%s2 + $0x154] sm:$0xf]
      %v1337 = vld [vmem:[%s2 + $0x158] sm:$0xf]
      %v1338 = vld [vmem:[%s2 + $0x15c] sm:$0xf]
      %v1339 = vld [vmem:[%s2 + $0x160] sm:$0xf]
      %v1340 = vld [vmem:[%s2 + $0x164] sm:$0xf]
      %v1341 = vld [vmem:[%s2 + $0x168] sm:$0xf]
      %v1342 = vld [vmem:[%s2 + $0x16c] sm:$0xf]
      %v1343 = vld [vmem:[%s2 + $0x170] sm:$0xf]
      %v1344 = vld [vmem:[%s2 + $0x174] sm:$0xf]
      %v1345 = vld [vmem:[%s2 + $0x178] sm:$0xf]
      %v1346 = vld [vmem:[%s2 + $0x17c] sm:$0xf]
      %v1347 = vld [vmem:[%s2 + $0x180] sm:$0xf]
      %v1348 = vld [vmem:[%s2 + $0x184] sm:$0xf]
      %v1349 = vld [vmem:[%s2 + $0x188] sm:$0xf]
      %v1350 = vld [vmem:[%s2 + $0x18c] sm:$0xf]
      %v1351 = vld [vmem:[%s2 + $0x190] sm:$0xf]
      %v1352 = vld [vmem:[%s2 + $0x194] sm:$0xf]
      %v1353 = vld [vmem:[%s2 + $0x198] sm:$0xf]
      %v1354 = vld [vmem:[%s2 + $0x19c] sm:$0xf]
      %v1355 = vld [vmem:[%s2 + $0x1a0] sm:$0xf]
      %v1356 = vld [vmem:[%s2 + $0x1a4] sm:$0xf]
      %v1357 = vld [vmem:[%s2 + $0x1a8] sm:$0xf]
      %v1358 = vld [vmem:[%s2 + $0x1ac] sm:$0xf]
      %v1359 = vld [vmem:[%s2 + $0x1b0] sm:$0xf]
      %v1360 = vld [vmem:[%s2 + $0x1b4] sm:$0xf]
      %v1361 = vld [vmem:[%s2 + $0x1b8] sm:$0xf]
      %v1362 = vld [vmem:[%s2 + $0x1bc] sm:$0xf]
      %v1363 = vld [vmem:[%s2 + $0x1c0] sm:$0xf]
      %v1364 = vld [vmem:[%s2 + $0x1c4] sm:$0xf]
      %v1365 = vld [vmem:[%s2 + $0x1c8] sm:$0xf]
      %v1366 = vld [vmem:[%s2 + $0x1cc] sm:$0xf]
      %v1367 = vld [vmem:[%s2 + $0x1d0] sm:$0xf]
      %v1368 = vld [vmem:[%s2 + $0x1d4] sm:$0xf]
      %v1369 = vld [vmem:[%s2 + $0x1d8] sm:$0xf]
      %v1370 = vld [vmem:[%s2 + $0x1dc] sm:$0xf]
      %v1371 = vld [vmem:[%s2 + $0x1e0] sm:$0xf]
      %v1372 = vld [vmem:[%s2 + $0x1e4] sm:$0xf]
      %v1373 = vld [vmem:[%s2 + $0x1e8] sm:$0xf]
      %v1374 = vld [vmem:[%s2 + $0x1ec] sm:$0xf]
      %v1375 = vld [vmem:[%s2 + $0x1f0] sm:$0xf]
      %v1376 = vld [vmem:[%s2 + $0x1f4] sm:$0xf]
      %v1377 = vld [vmem:[%s2 + $0x1f8] sm:$0xf]
      %v1378 = vld [vmem:[%s2 + $0x1fc] sm:$0xf]
      %v1379 = vld [vmem:[%s2 + $0x200] sm:$0xf]
      %v1380 = vld [vmem:[%s2 + $0x204] sm:$0xf]
      %v1381 = vld [vmem:[%s2 + $0x208] sm:$0xf]
      %v1382 = vld [vmem:[%s2 + $0x20c] sm:$0xf]
      %v1383 = vld [vmem:[%s2 + $0x210] sm:$0xf]
      %v1384 = vld [vmem:[%s2 + $0x214] sm:$0xf]
      %v1385 = vld [vmem:[%s2 + $0x218] sm:$0xf]
      %v1386 = vld [vmem:[%s2 + $0x21c] sm:$0xf]
      %v1387 = vld [vmem:[%s2 + $0x220] sm:$0xf]
      %v1388 = vld [vmem:[%s2 + $0x224] sm:$0xf]
      %v1389 = vld [vmem:[%s2 + $0x228] sm:$0xf]
      %v1390 = vld [vmem:[%s2 + $0x22c] sm:$0xf]
      %v1391 = vld [vmem:[%s2 + $0x230] sm:$0xf]
      %v1392 = vld [vmem:[%s2 + $0x234] sm:$0xf]
      %v1393 = vld [vmem:[%s2 + $0x238] sm:$0xf]
      %v1394 = vld [vmem:[%s2 + $0x23c] sm:$0xf]
      %v1395 = vld [vmem:[%s2 + $0x240] sm:$0xf]
      %v1396 = vld [vmem:[%s2 + $0x244] sm:$0xf]
      %v1397 = vld [vmem:[%s2 + $0x248] sm:$0xf]
      %v1398 = vld [vmem:[%s2 + $0x24c] sm:$0xf]
      %v1399 = vld [vmem:[%s2 + $0x250] sm:$0xf]
      %v1400 = vld [vmem:[%s2 + $0x254] sm:$0xf]
      %v1401 = vld [vmem:[%s2 + $0x258] sm:$0xf]
      %v1402 = vld [vmem:[%s2 + $0x25c] sm:$0xf]
      %v1403 = vld [vmem:[%s2 + $0x260] sm:$0xf]
      %v1404 = vld [vmem:[%s2 + $0x264] sm:$0xf]
      %v1405 = vld [vmem:[%s2 + $0x268] sm:$0xf]
      %v1406 = vld [vmem:[%s2 + $0x26c] sm:$0xf]
      %v1407 = vld [vmem:[%s2 + $0x270] sm:$0xf]
      %v1408 = vld [vmem:[%s2 + $0x274] sm:$0xf]
      %v1409 = vld [vmem:[%s2 + $0x278] sm:$0xf]
      %v1410 = vld [vmem:[%s2 + $0x27c] sm:$0xf]
      %v1411 = vld [vmem:[%s2 + $0x280] sm:$0xf]
      %v1412 = vld [vmem:[%s2 + $0x284] sm:$0xf]
      %v1413 = vld [vmem:[%s2 + $0x288] sm:$0xf]
      %v1414 = vld [vmem:[%s2 + $0x28c] sm:$0xf]
      %v1415 = vld [vmem:[%s2 + $0x290] sm:$0xf]
      %v1416 = vld [vmem:[%s2 + $0x294] sm:$0xf]
      %v1417 = vld [vmem:[%s2 + $0x298] sm:$0xf]
      %v1418 = vld [vmem:[%s2 + $0x29c] sm:$0xf]
      %v1419 = vld [vmem:[%s2 + $0x2a0] sm:$0xf]
      %v1420 = vld [vmem:[%s2 + $0x2a4] sm:$0xf]
      %v1421 = vld [vmem:[%s2 + $0x2a8] sm:$0xf]
      %v1422 = vld [vmem:[%s2 + $0x2ac] sm:$0xf]
      %v1423 = vld [vmem:[%s2 + $0x2b0] sm:$0xf]
      %v1424 = vld [vmem:[%s2 + $0x2b4] sm:$0xf]
      %v1425 = vld [vmem:[%s2 + $0x2b8] sm:$0xf]
      %v1426 = vld [vmem:[%s2 + $0x2bc] sm:$0xf]
      %v1427 = vld [vmem:[%s2 + $0x2c0] sm:$0xf]
      %v1428 = vld [vmem:[%s2 + $0x2c4] sm:$0xf]
      %v1429 = vld [vmem:[%s2 + $0x2c8] sm:$0xf]
      %v1430 = vld [vmem:[%s2 + $0x2cc] sm:$0xf]
      %v1431 = vld [vmem:[%s2 + $0x2d0] sm:$0xf]
      %v1432 = vld [vmem:[%s2 + $0x2d4] sm:$0xf]
      %v1433 = vld [vmem:[%s2 + $0x2d8] sm:$0xf]
      %v1434 = vld [vmem:[%s2 + $0x2dc] sm:$0xf]
      %v1435 = vld [vmem:[%s2 + $0x2e0] sm:$0xf]
      %v1436 = vld [vmem:[%s2 + $0x2e4] sm:$0xf]
      %v1437 = vld [vmem:[%s2 + $0x2e8] sm:$0xf]
      %v1438 = vld [vmem:[%s2 + $0x2ec] sm:$0xf]
      %v1439 = vld [vmem:[%s2 + $0x2f0] sm:$0xf]
      %v1440 = vld [vmem:[%s2 + $0x2f4] sm:$0xf]
      %v1441 = vld [vmem:[%s2 + $0x2f8] sm:$0xf]
      %v1442 = vld [vmem:[%s2 + $0x2fc] sm:$0xf]
      %v1443 = vld [vmem:[%s3] sm:$0x1]
      %v1445 = vlaneseq
      %v1446 = vshrl.u32 %v1445, 7
      %v1447 = vsub.s32 0, %v1446
      %v1448 = vrot.slane %v1443, %v1447
      %v1642 = vunpack.c.l.b16 %v1251
      %v1643 = vunpack.c.l.b16 %v1252
      %v1644 = vunpack.c.l.b16 %v1253
      %v1645 = vunpack.c.l.b16 %v1254
      %v1646 = vunpack.c.l.b16 %v1255
      %v1647 = vunpack.c.l.b16 %v1256
      %v1648 = vunpack.c.l.b16 %v1257
      %v1649 = vunpack.c.l.b16 %v1258
      %v1650 = vunpack.c.l.b16 %v1259
      %v1651 = vunpack.c.l.b16 %v1260
      %v1652 = vunpack.c.l.b16 %v1261
      %v1653 = vunpack.c.l.b16 %v1262
      %v1654 = vunpack.c.l.b16 %v1263
      %v1655 = vunpack.c.l.b16 %v1264
      %v1656 = vunpack.c.l.b16 %v1265
      %v1657 = vunpack.c.l.b16 %v1266
      %v1658 = vunpack.c.l.b16 %v1267
      %v1659 = vunpack.c.l.b16 %v1268
      %v1660 = vunpack.c.l.b16 %v1269
      %v1661 = vunpack.c.l.b16 %v1270
      %v1662 = vunpack.c.l.b16 %v1271
      %v1663 = vunpack.c.l.b16 %v1272
      %v1664 = vunpack.c.l.b16 %v1273
      %v1665 = vunpack.c.l.b16 %v1274
      %v1666 = vunpack.c.l.b16 %v1275
      %v1667 = vunpack.c.l.b16 %v1276
      %v1668 = vunpack.c.l.b16 %v1277
      %v1669 = vunpack.c.l.b16 %v1278
      %v1670 = vunpack.c.l.b16 %v1279
      %v1671 = vunpack.c.l.b16 %v1280
      %v1672 = vunpack.c.l.b16 %v1281
      %v1673 = vunpack.c.l.b16 %v1282
      %v1674 = vunpack.c.l.b16 %v1283
      %v1675 = vunpack.c.l.b16 %v1284
      %v1676 = vunpack.c.l.b16 %v1285
      %v1677 = vunpack.c.l.b16 %v1286
      %v1678 = vunpack.c.l.b16 %v1287
      %v1679 = vunpack.c.l.b16 %v1288
      %v1680 = vunpack.c.l.b16 %v1289
      %v1681 = vunpack.c.l.b16 %v1290
      %v1682 = vunpack.c.l.b16 %v1291
      %v1683 = vunpack.c.l.b16 %v1292
      %v1684 = vunpack.c.l.b16 %v1293
      %v1685 = vunpack.c.l.b16 %v1294
      %v1686 = vunpack.c.l.b16 %v1295
      %v1687 = vunpack.c.l.b16 %v1296
      %v1688 = vunpack.c.l.b16 %v1297
      %v1689 = vunpack.c.l.b16 %v1298
      %v1690 = vunpack.c.l.b16 %v1299
      %v1691 = vunpack.c.l.b16 %v1300
      %v1692 = vunpack.c.l.b16 %v1301
      %v1693 = vunpack.c.l.b16 %v1302
      %v1694 = vunpack.c.l.b16 %v1303
      %v1695 = vunpack.c.l.b16 %v1304
      %v1696 = vunpack.c.l.b16 %v1305
      %v1697 = vunpack.c.l.b16 %v1306
      %v1698 = vunpack.c.l.b16 %v1307
      %v1699 = vunpack.c.l.b16 %v1308
      %v1700 = vunpack.c.l.b16 %v1309
      %v1701 = vunpack.c.l.b16 %v1310
      %v1702 = vunpack.c.l.b16 %v1311
      %v1703 = vunpack.c.l.b16 %v1312
      %v1704 = vunpack.c.l.b16 %v1313
      %v1705 = vunpack.c.l.b16 %v1314
      %v1706 = vunpack.c.l.b16 %v1315
      %v1707 = vunpack.c.l.b16 %v1316
      %v1708 = vunpack.c.l.b16 %v1317
      %v1709 = vunpack.c.l.b16 %v1318
      %v1710 = vunpack.c.l.b16 %v1319
      %v1711 = vunpack.c.l.b16 %v1320
      %v1712 = vunpack.c.l.b16 %v1321
      %v1713 = vunpack.c.l.b16 %v1322
      %v1714 = vunpack.c.l.b16 %v1323
      %v1715 = vunpack.c.l.b16 %v1324
      %v1716 = vunpack.c.l.b16 %v1325
      %v1717 = vunpack.c.l.b16 %v1326
      %v1718 = vunpack.c.l.b16 %v1327
      %v1719 = vunpack.c.l.b16 %v1328
      %v1720 = vunpack.c.l.b16 %v1329
      %v1721 = vunpack.c.l.b16 %v1330
      %v1722 = vunpack.c.l.b16 %v1331
      %v1723 = vunpack.c.l.b16 %v1332
      %v1724 = vunpack.c.l.b16 %v1333
      %v1725 = vunpack.c.l.b16 %v1334
      %v1726 = vunpack.c.l.b16 %v1335
      %v1727 = vunpack.c.l.b16 %v1336
      %v1728 = vunpack.c.l.b16 %v1337
      %v1729 = vunpack.c.l.b16 %v1338
      %v1730 = vunpack.c.l.b16 %v1339
      %v1731 = vunpack.c.l.b16 %v1340
      %v1732 = vunpack.c.l.b16 %v1341
      %v1733 = vunpack.c.l.b16 %v1342
      %v1734 = vunpack.c.l.b16 %v1343
      %v1735 = vunpack.c.l.b16 %v1344
      %v1736 = vunpack.c.l.b16 %v1345
      %v1737 = vunpack.c.l.b16 %v1346
      %v1738 = vunpack.c.l.b16 %v1347
      %v1739 = vunpack.c.l.b16 %v1348
      %v1740 = vunpack.c.l.b16 %v1349
      %v1741 = vunpack.c.l.b16 %v1350
      %v1742 = vunpack.c.l.b16 %v1351
      %v1743 = vunpack.c.l.b16 %v1352
      %v1744 = vunpack.c.l.b16 %v1353
      %v1745 = vunpack.c.l.b16 %v1354
      %v1746 = vunpack.c.l.b16 %v1355
      %v1747 = vunpack.c.l.b16 %v1356
      %v1748 = vunpack.c.l.b16 %v1357
      %v1749 = vunpack.c.l.b16 %v1358
      %v1750 = vunpack.c.l.b16 %v1359
      %v1751 = vunpack.c.l.b16 %v1360
      %v1752 = vunpack.c.l.b16 %v1361
      %v1753 = vunpack.c.l.b16 %v1362
      %v1754 = vunpack.c.l.b16 %v1363
      %v1755 = vunpack.c.l.b16 %v1364
      %v1756 = vunpack.c.l.b16 %v1365
      %v1757 = vunpack.c.l.b16 %v1366
      %v1758 = vunpack.c.l.b16 %v1367
      %v1759 = vunpack.c.l.b16 %v1368
      %v1760 = vunpack.c.l.b16 %v1369
      %v1761 = vunpack.c.l.b16 %v1370
      %v1762 = vunpack.c.l.b16 %v1371
      %v1763 = vunpack.c.l.b16 %v1372
      %v1764 = vunpack.c.l.b16 %v1373
      %v1765 = vunpack.c.l.b16 %v1374
      %v1766 = vunpack.c.l.b16 %v1375
      %v1767 = vunpack.c.l.b16 %v1376
      %v1768 = vunpack.c.l.b16 %v1377
      %v1769 = vunpack.c.l.b16 %v1378
      %v1770 = vunpack.c.l.b16 %v1379
      %v1771 = vunpack.c.l.b16 %v1380
      %v1772 = vunpack.c.l.b16 %v1381
      %v1773 = vunpack.c.l.b16 %v1382
      %v1774 = vunpack.c.l.b16 %v1383
      %v1775 = vunpack.c.l.b16 %v1384
      %v1776 = vunpack.c.l.b16 %v1385
      %v1777 = vunpack.c.l.b16 %v1386
      %v1778 = vunpack.c.l.b16 %v1387
      %v1779 = vunpack.c.l.b16 %v1388
      %v1780 = vunpack.c.l.b16 %v1389
      %v1781 = vunpack.c.l.b16 %v1390
      %v1782 = vunpack.c.l.b16 %v1391
      %v1783 = vunpack.c.l.b16 %v1392
      %v1784 = vunpack.c.l.b16 %v1393
      %v1785 = vunpack.c.l.b16 %v1394
      %v1786 = vunpack.c.l.b16 %v1395
      %v1787 = vunpack.c.l.b16 %v1396
      %v1788 = vunpack.c.l.b16 %v1397
      %v1789 = vunpack.c.l.b16 %v1398
      %v1790 = vunpack.c.l.b16 %v1399
      %v1791 = vunpack.c.l.b16 %v1400
      %v1792 = vunpack.c.l.b16 %v1401
      %v1793 = vunpack.c.l.b16 %v1402
      %v1794 = vunpack.c.l.b16 %v1403
      %v1795 = vunpack.c.l.b16 %v1404
      %v1796 = vunpack.c.l.b16 %v1405
      %v1797 = vunpack.c.l.b16 %v1406
      %v1798 = vunpack.c.l.b16 %v1407
      %v1799 = vunpack.c.l.b16 %v1408
      %v1800 = vunpack.c.l.b16 %v1409
      %v1801 = vunpack.c.l.b16 %v1410
      %v1802 = vunpack.c.l.b16 %v1411
      %v1803 = vunpack.c.l.b16 %v1412
      %v1804 = vunpack.c.l.b16 %v1413
      %v1805 = vunpack.c.l.b16 %v1414
      %v1806 = vunpack.c.l.b16 %v1415
      %v1807 = vunpack.c.l.b16 %v1416
      %v1808 = vunpack.c.l.b16 %v1417
      %v1809 = vunpack.c.l.b16 %v1418
      %v1810 = vunpack.c.l.b16 %v1419
      %v1811 = vunpack.c.l.b16 %v1420
      %v1812 = vunpack.c.l.b16 %v1421
      %v1813 = vunpack.c.l.b16 %v1422
      %v1814 = vunpack.c.l.b16 %v1423
      %v1815 = vunpack.c.l.b16 %v1424
      %v1816 = vunpack.c.l.b16 %v1425
      %v1817 = vunpack.c.l.b16 %v1426
      %v1818 = vunpack.c.l.b16 %v1427
      %v1819 = vunpack.c.l.b16 %v1428
      %v1820 = vunpack.c.l.b16 %v1429
      %v1821 = vunpack.c.l.b16 %v1430
      %v1822 = vunpack.c.l.b16 %v1431
      %v1823 = vunpack.c.l.b16 %v1432
      %v1824 = vunpack.c.l.b16 %v1433
      %v1825 = vunpack.c.l.b16 %v1434
      %v1826 = vunpack.c.l.b16 %v1435
      %v1827 = vunpack.c.l.b16 %v1436
      %v1828 = vunpack.c.l.b16 %v1437
      %v1829 = vunpack.c.l.b16 %v1438
      %v1830 = vunpack.c.l.b16 %v1439
      %v1831 = vunpack.c.l.b16 %v1440
      %v1832 = vunpack.c.l.b16 %v1441
      %v1833 = vunpack.c.l.b16 %v1442
      %v1834 = vpack.c.b16 %v1643, %v1642
      %v1835 = vpack.c.b16 %v1645, %v1644
      %v1836 = vpack.c.b16 %v1647, %v1646
      %v1837 = vpack.c.b16 %v1649, %v1648
      %v1838 = vpack.c.b16 %v1651, %v1650
      %v1839 = vpack.c.b16 %v1653, %v1652
      %v1840 = vpack.c.b16 %v1655, %v1654
      %v1841 = vpack.c.b16 %v1657, %v1656
      %v1842 = vpack.c.b16 %v1659, %v1658
      %v1843 = vpack.c.b16 %v1661, %v1660
      %v1844 = vpack.c.b16 %v1663, %v1662
      %v1845 = vpack.c.b16 %v1665, %v1664
      %v1846 = vpack.c.b16 %v1667, %v1666
      %v1847 = vpack.c.b16 %v1669, %v1668
      %v1848 = vpack.c.b16 %v1671, %v1670
      %v1849 = vpack.c.b16 %v1673, %v1672
      %v1850 = vpack.c.b16 %v1675, %v1674
      %v1851 = vpack.c.b16 %v1677, %v1676
      %v1852 = vpack.c.b16 %v1679, %v1678
      %v1853 = vpack.c.b16 %v1681, %v1680
      %v1854 = vpack.c.b16 %v1683, %v1682
      %v1855 = vpack.c.b16 %v1685, %v1684
      %v1856 = vpack.c.b16 %v1687, %v1686
      %v1857 = vpack.c.b16 %v1689, %v1688
      %v1858 = vpack.c.b16 %v1691, %v1690
      %v1859 = vpack.c.b16 %v1693, %v1692
      %v1860 = vpack.c.b16 %v1695, %v1694
      %v1861 = vpack.c.b16 %v1697, %v1696
      %v1862 = vpack.c.b16 %v1699, %v1698
      %v1863 = vpack.c.b16 %v1701, %v1700
      %v1864 = vpack.c.b16 %v1703, %v1702
      %v1865 = vpack.c.b16 %v1705, %v1704
      %v1866 = vpack.c.b16 %v1707, %v1706
      %v1867 = vpack.c.b16 %v1709, %v1708
      %v1868 = vpack.c.b16 %v1711, %v1710
      %v1869 = vpack.c.b16 %v1713, %v1712
      %v1870 = vpack.c.b16 %v1715, %v1714
      %v1871 = vpack.c.b16 %v1717, %v1716
      %v1872 = vpack.c.b16 %v1719, %v1718
      %v1873 = vpack.c.b16 %v1721, %v1720
      %v1874 = vpack.c.b16 %v1723, %v1722
      %v1875 = vpack.c.b16 %v1725, %v1724
      %v1876 = vpack.c.b16 %v1727, %v1726
      %v1877 = vpack.c.b16 %v1729, %v1728
      %v1878 = vpack.c.b16 %v1731, %v1730
      %v1879 = vpack.c.b16 %v1733, %v1732
      %v1880 = vpack.c.b16 %v1735, %v1734
      %v1881 = vpack.c.b16 %v1737, %v1736
      %v1882 = vpack.c.b16 %v1739, %v1738
      %v1883 = vpack.c.b16 %v1741, %v1740
      %v1884 = vpack.c.b16 %v1743, %v1742
      %v1885 = vpack.c.b16 %v1745, %v1744
      %v1886 = vpack.c.b16 %v1747, %v1746
      %v1887 = vpack.c.b16 %v1749, %v1748
      %v1888 = vpack.c.b16 %v1751, %v1750
      %v1889 = vpack.c.b16 %v1753, %v1752
      %v1890 = vpack.c.b16 %v1755, %v1754
      %v1891 = vpack.c.b16 %v1757, %v1756
      %v1892 = vpack.c.b16 %v1759, %v1758
      %v1893 = vpack.c.b16 %v1761, %v1760
      %v1894 = vpack.c.b16 %v1763, %v1762
      %v1895 = vpack.c.b16 %v1765, %v1764
      %v1896 = vpack.c.b16 %v1767, %v1766
      %v1897 = vpack.c.b16 %v1769, %v1768
      %v1898 = vpack.c.b16 %v1771, %v1770
      %v1899 = vpack.c.b16 %v1773, %v1772
      %v1900 = vpack.c.b16 %v1775, %v1774
      %v1901 = vpack.c.b16 %v1777, %v1776
      %v1902 = vpack.c.b16 %v1779, %v1778
      %v1903 = vpack.c.b16 %v1781, %v1780
      %v1904 = vpack.c.b16 %v1783, %v1782
      %v1905 = vpack.c.b16 %v1785, %v1784
      %v1906 = vpack.c.b16 %v1787, %v1786
      %v1907 = vpack.c.b16 %v1789, %v1788
      %v1908 = vpack.c.b16 %v1791, %v1790
      %v1909 = vpack.c.b16 %v1793, %v1792
      %v1910 = vpack.c.b16 %v1795, %v1794
      %v1911 = vpack.c.b16 %v1797, %v1796
      %v1912 = vpack.c.b16 %v1799, %v1798
      %v1913 = vpack.c.b16 %v1801, %v1800
      %v1914 = vpack.c.b16 %v1803, %v1802
      %v1915 = vpack.c.b16 %v1805, %v1804
      %v1916 = vpack.c.b16 %v1807, %v1806
      %v1917 = vpack.c.b16 %v1809, %v1808
      %v1918 = vpack.c.b16 %v1811, %v1810
      %v1919 = vpack.c.b16 %v1813, %v1812
      %v1920 = vpack.c.b16 %v1815, %v1814
      %v1921 = vpack.c.b16 %v1817, %v1816
      %v1922 = vpack.c.b16 %v1819, %v1818
      %v1923 = vpack.c.b16 %v1821, %v1820
      %v1924 = vpack.c.b16 %v1823, %v1822
      %v1925 = vpack.c.b16 %v1825, %v1824
      %v1926 = vpack.c.b16 %v1827, %v1826
      %v1927 = vpack.c.b16 %v1829, %v1828
      %v1928 = vpack.c.b16 %v1831, %v1830
      %v1929 = vpack.c.b16 %v1833, %v1832
      %2026 = vmatprep.subr.bf16.mxu0 0
      %2027 = vmatpush1.bf16.msra.mxu0 %v1841
      %2028 = vmatprep.subr.bf16.mxu0 0
      %2029 = vmatpush1.bf16.msra.mxu0 %v1840
      %2030 = vmatprep.subr.bf16.mxu0 0
      %2031 = vmatpush1.bf16.msra.mxu0 %v1839
      %2032 = vmatprep.subr.bf16.mxu0 0
      %2033 = vmatpush1.bf16.msra.mxu0 %v1838
      %2034 = vmatprep.subr.bf16.mxu0 0
      %2035 = vmatpush1.bf16.msra.mxu0 %v1837
      %2036 = vmatprep.subr.bf16.mxu0 0
      %2037 = vmatpush1.bf16.msra.mxu0 %v1836
      %2038 = vmatprep.subr.bf16.mxu0 0
      %2039 = vmatpush1.bf16.msra.mxu0 %v1835
      %2040 = vmatprep.subr.bf16.mxu0 0
      %2041 = vmatpush1.bf16.msra.mxu0 %v1834
      %2042 = vmatprep.subr.bf16.mxu0 0
      %2043 = vmatpush2.bf16.msra.mxu0 %v1849
      %2044 = vmatprep.subr.bf16.mxu0 0
      %2045 = vmatpush2.bf16.msra.mxu0 %v1848
      %2046 = vmatprep.subr.bf16.mxu0 0
      %2047 = vmatpush2.bf16.msra.mxu0 %v1847
      %2048 = vmatprep.subr.bf16.mxu0 0
      %2049 = vmatpush2.bf16.msra.mxu0 %v1846
      %2050 = vmatprep.subr.bf16.mxu0 0
      %2051 = vmatpush2.bf16.msra.mxu0 %v1845
      %2052 = vmatprep.subr.bf16.mxu0 0
      %2053 = vmatpush2.bf16.msra.mxu0 %v1844
      %2054 = vmatprep.subr.bf16.mxu0 0
      %2055 = vmatpush2.bf16.msra.mxu0 %v1843
      %2056 = vmatprep.subr.bf16.mxu0 0
      %2057 = vmatpush2.bf16.msra.mxu0 %v1842
      %2058 = vmatprep.mubr.bf16.mxu0 %v1240
      %2059 = vmatmul.mubr.bf16.gmra.mxu0 %v1239
      %v2060 = vpop.f32.mrf.mxu0
      %v2061 = vadd.f32 %v1448, %v2060
      %v2062 = vpop.f32.mrf.mxu0
      %v2063 = vpop.f32.mrf.mxu0
      %v2064 = vpop.f32.mrf.mxu0
      %2065 = vdwg.mxu0
      %2066 = vmatprep.subr.bf16.mxu0 0
      %2067 = vmatpush1.bf16.msra.mxu0 %v1857
      %2068 = vmatprep.subr.bf16.mxu0 0
      %2069 = vmatpush1.bf16.msra.mxu0 %v1856
      %2070 = vmatprep.subr.bf16.mxu0 0
      %2071 = vmatpush1.bf16.msra.mxu0 %v1855
      %2072 = vmatprep.subr.bf16.mxu0 0
      %2073 = vmatpush1.bf16.msra.mxu0 %v1854
      %2074 = vmatprep.subr.bf16.mxu0 0
      %2075 = vmatpush1.bf16.msra.mxu0 %v1853
      %2076 = vmatprep.subr.bf16.mxu0 0
      %2077 = vmatpush1.bf16.msra.mxu0 %v1852
      %2078 = vmatprep.subr.bf16.mxu0 0
      %2079 = vmatpush1.bf16.msra.mxu0 %v1851
      %2080 = vmatprep.subr.bf16.mxu0 0
      %2081 = vmatpush1.bf16.msra.mxu0 %v1850
      %2082 = vmatprep.subr.bf16.mxu0 0
      %2083 = vmatpush2.bf16.msra.mxu0 %v1865
      %2084 = vmatprep.subr.bf16.mxu0 0
      %2085 = vmatpush2.bf16.msra.mxu0 %v1864
      %2086 = vmatprep.subr.bf16.mxu0 0
      %2087 = vmatpush2.bf16.msra.mxu0 %v1863
      %2088 = vmatprep.subr.bf16.mxu0 0
      %2089 = vmatpush2.bf16.msra.mxu0 %v1862
      %2090 = vmatprep.subr.bf16.mxu0 0
      %2091 = vmatpush2.bf16.msra.mxu0 %v1861
      %2092 = vmatprep.subr.bf16.mxu0 0
      %2093 = vmatpush2.bf16.msra.mxu0 %v1860
      %2094 = vmatprep.subr.bf16.mxu0 0
      %2095 = vmatpush2.bf16.msra.mxu0 %v1859
      %2096 = vmatprep.subr.bf16.mxu0 0
      %2097 = vmatpush2.bf16.msra.mxu0 %v1858
      %2098 = vmatprep.mubr.bf16.mxu0 %v1242
      %2099 = vmatmul.mubr.bf16.gmra.mxu0 %v1241
      %v2100 = vpop.f32.mrf.mxu0
      %v2101 = vadd.f32 %v2061, %v2100
      %v2102 = vpop.f32.mrf.mxu0
      %v2103 = vpop.f32.mrf.mxu0
      %v2104 = vpop.f32.mrf.mxu0
      %2105 = vdwg.mxu0
      %2106 = vmatprep.subr.bf16.mxu0 0
      %2107 = vmatpush1.bf16.msra.mxu0 %v1873
      %2108 = vmatprep.subr.bf16.mxu0 0
      %2109 = vmatpush1.bf16.msra.mxu0 %v1872
      %2110 = vmatprep.subr.bf16.mxu0 0
      %2111 = vmatpush1.bf16.msra.mxu0 %v1871
      %2112 = vmatprep.subr.bf16.mxu0 0
      %2113 = vmatpush1.bf16.msra.mxu0 %v1870
      %2114 = vmatprep.subr.bf16.mxu0 0
      %2115 = vmatpush1.bf16.msra.mxu0 %v1869
      %2116 = vmatprep.subr.bf16.mxu0 0
      %2117 = vmatpush1.bf16.msra.mxu0 %v1868
      %2118 = vmatprep.subr.bf16.mxu0 0
      %2119 = vmatpush1.bf16.msra.mxu0 %v1867
      %2120 = vmatprep.subr.bf16.mxu0 0
      %2121 = vmatpush1.bf16.msra.mxu0 %v1866
      %2122 = vmatprep.subr.bf16.mxu0 0
      %2123 = vmatpush2.bf16.msra.mxu0 %v1881
      %2124 = vmatprep.subr.bf16.mxu0 0
      %2125 = vmatpush2.bf16.msra.mxu0 %v1880
      %2126 = vmatprep.subr.bf16.mxu0 0
      %2127 = vmatpush2.bf16.msra.mxu0 %v1879
      %2128 = vmatprep.subr.bf16.mxu0 0
      %2129 = vmatpush2.bf16.msra.mxu0 %v1878
      %2130 = vmatprep.subr.bf16.mxu0 0
      %2131 = vmatpush2.bf16.msra.mxu0 %v1877
      %2132 = vmatprep.subr.bf16.mxu0 0
      %2133 = vmatpush2.bf16.msra.mxu0 %v1876
      %2134 = vmatprep.subr.bf16.mxu0 0
      %2135 = vmatpush2.bf16.msra.mxu0 %v1875
      %2136 = vmatprep.subr.bf16.mxu0 0
      %2137 = vmatpush2.bf16.msra.mxu0 %v1874
      %2138 = vmatprep.mubr.bf16.mxu0 %v1244
      %2139 = vmatmul.mubr.bf16.gmra.mxu0 %v1243
      %v2140 = vpop.f32.mrf.mxu0
      %v2141 = vadd.f32 %v2101, %v2140
      %v2142 = vpop.f32.mrf.mxu0
      %v2143 = vpop.f32.mrf.mxu0
      %v2144 = vpop.f32.mrf.mxu0
      %2145 = vdwg.mxu0
      %2146 = vmatprep.subr.bf16.mxu0 0
      %2147 = vmatpush1.bf16.msra.mxu0 %v1889
      %2148 = vmatprep.subr.bf16.mxu0 0
      %2149 = vmatpush1.bf16.msra.mxu0 %v1888
      %2150 = vmatprep.subr.bf16.mxu0 0
      %2151 = vmatpush1.bf16.msra.mxu0 %v1887
      %2152 = vmatprep.subr.bf16.mxu0 0
      %2153 = vmatpush1.bf16.msra.mxu0 %v1886
      %2154 = vmatprep.subr.bf16.mxu0 0
      %2155 = vmatpush1.bf16.msra.mxu0 %v1885
      %2156 = vmatprep.subr.bf16.mxu0 0
      %2157 = vmatpush1.bf16.msra.mxu0 %v1884
      %2158 = vmatprep.subr.bf16.mxu0 0
      %2159 = vmatpush1.bf16.msra.mxu0 %v1883
      %2160 = vmatprep.subr.bf16.mxu0 0
      %2161 = vmatpush1.bf16.msra.mxu0 %v1882
      %2162 = vmatprep.subr.bf16.mxu0 0
      %2163 = vmatpush2.bf16.msra.mxu0 %v1897
      %2164 = vmatprep.subr.bf16.mxu0 0
      %2165 = vmatpush2.bf16.msra.mxu0 %v1896
      %2166 = vmatprep.subr.bf16.mxu0 0
      %2167 = vmatpush2.bf16.msra.mxu0 %v1895
      %2168 = vmatprep.subr.bf16.mxu0 0
      %2169 = vmatpush2.bf16.msra.mxu0 %v1894
      %2170 = vmatprep.subr.bf16.mxu0 0
      %2171 = vmatpush2.bf16.msra.mxu0 %v1893
      %2172 = vmatprep.subr.bf16.mxu0 0
      %2173 = vmatpush2.bf16.msra.mxu0 %v1892
      %2174 = vmatprep.subr.bf16.mxu0 0
      %2175 = vmatpush2.bf16.msra.mxu0 %v1891
      %2176 = vmatprep.subr.bf16.mxu0 0
      %2177 = vmatpush2.bf16.msra.mxu0 %v1890
      %2178 = vmatprep.mubr.bf16.mxu0 %v1246
      %2179 = vmatmul.mubr.bf16.gmra.mxu0 %v1245
      %v2180 = vpop.f32.mrf.mxu0
      %v2181 = vadd.f32 %v2141, %v2180
      %v2182 = vpop.f32.mrf.mxu0
      %v2183 = vpop.f32.mrf.mxu0
      %v2184 = vpop.f32.mrf.mxu0
      %2185 = vdwg.mxu0
      %2186 = vmatprep.subr.bf16.mxu0 0
      %2187 = vmatpush1.bf16.msra.mxu0 %v1905
      %2188 = vmatprep.subr.bf16.mxu0 0
      %2189 = vmatpush1.bf16.msra.mxu0 %v1904
      %2190 = vmatprep.subr.bf16.mxu0 0
      %2191 = vmatpush1.bf16.msra.mxu0 %v1903
      %2192 = vmatprep.subr.bf16.mxu0 0
      %2193 = vmatpush1.bf16.msra.mxu0 %v1902
      %2194 = vmatprep.subr.bf16.mxu0 0
      %2195 = vmatpush1.bf16.msra.mxu0 %v1901
      %2196 = vmatprep.subr.bf16.mxu0 0
      %2197 = vmatpush1.bf16.msra.mxu0 %v1900
      %2198 = vmatprep.subr.bf16.mxu0 0
      %2199 = vmatpush1.bf16.msra.mxu0 %v1899
      %2200 = vmatprep.subr.bf16.mxu0 0
      %2201 = vmatpush1.bf16.msra.mxu0 %v1898
      %2202 = vmatprep.subr.bf16.mxu0 0
      %2203 = vmatpush2.bf16.msra.mxu0 %v1913
      %2204 = vmatprep.subr.bf16.mxu0 0
      %2205 = vmatpush2.bf16.msra.mxu0 %v1912
      %2206 = vmatprep.subr.bf16.mxu0 0
      %2207 = vmatpush2.bf16.msra.mxu0 %v1911
      %2208 = vmatprep.subr.bf16.mxu0 0
      %2209 = vmatpush2.bf16.msra.mxu0 %v1910
      %2210 = vmatprep.subr.bf16.mxu0 0
      %2211 = vmatpush2.bf16.msra.mxu0 %v1909
      %2212 = vmatprep.subr.bf16.mxu0 0
      %2213 = vmatpush2.bf16.msra.mxu0 %v1908
      %2214 = vmatprep.subr.bf16.mxu0 0
      %2215 = vmatpush2.bf16.msra.mxu0 %v1907
      %2216 = vmatprep.subr.bf16.mxu0 0
      %2217 = vmatpush2.bf16.msra.mxu0 %v1906
      %2218 = vmatprep.mubr.bf16.mxu0 %v1248
      %2219 = vmatmul.mubr.bf16.gmra.mxu0 %v1247
      %v2220 = vpop.f32.mrf.mxu0
      %v2221 = vadd.f32 %v2181, %v2220
      %v2222 = vpop.f32.mrf.mxu0
      %v2223 = vpop.f32.mrf.mxu0
      %v2224 = vpop.f32.mrf.mxu0
      %2225 = vdwg.mxu0
      %2226 = vmatprep.subr.bf16.mxu0 0
      %2227 = vmatpush1.bf16.msra.mxu0 %v1921
      %2228 = vmatprep.subr.bf16.mxu0 0
      %2229 = vmatpush1.bf16.msra.mxu0 %v1920
      %2230 = vmatprep.subr.bf16.mxu0 0
      %2231 = vmatpush1.bf16.msra.mxu0 %v1919
      %2232 = vmatprep.subr.bf16.mxu0 0
      %2233 = vmatpush1.bf16.msra.mxu0 %v1918
      %2234 = vmatprep.subr.bf16.mxu0 0
      %2235 = vmatpush1.bf16.msra.mxu0 %v1917
      %2236 = vmatprep.subr.bf16.mxu0 0
      %2237 = vmatpush1.bf16.msra.mxu0 %v1916
      %2238 = vmatprep.subr.bf16.mxu0 0
      %2239 = vmatpush1.bf16.msra.mxu0 %v1915
      %2240 = vmatprep.subr.bf16.mxu0 0
      %2241 = vmatpush1.bf16.msra.mxu0 %v1914
      %2242 = vmatprep.subr.bf16.mxu0 0
      %2243 = vmatpush2.bf16.msra.mxu0 %v1929
      %2244 = vmatprep.subr.bf16.mxu0 0
      %2245 = vmatpush2.bf16.msra.mxu0 %v1928
      %2246 = vmatprep.subr.bf16.mxu0 0
      %2247 = vmatpush2.bf16.msra.mxu0 %v1927
      %2248 = vmatprep.subr.bf16.mxu0 0
      %2249 = vmatpush2.bf16.msra.mxu0 %v1926
      %2250 = vmatprep.subr.bf16.mxu0 0
      %2251 = vmatpush2.bf16.msra.mxu0 %v1925
      %2252 = vmatprep.subr.bf16.mxu0 0
      %2253 = vmatpush2.bf16.msra.mxu0 %v1924
      %2254 = vmatprep.subr.bf16.mxu0 0
      %2255 = vmatpush2.bf16.msra.mxu0 %v1923
      %2256 = vmatprep.subr.bf16.mxu0 0
      %2257 = vmatpush2.bf16.msra.mxu0 %v1922
      %2258 = vmatprep.mubr.bf16.mxu0 %v1250
      %2259 = vmatmul.mubr.bf16.gmra.mxu0 %v1249
      %v2260 = vpop.f32.mrf.mxu0
      %v2261 = vadd.f32 %v2221, %v2260
      %v2262 = vpop.f32.mrf.mxu0
      %v2263 = vpop.f32.mrf.mxu0
      %v2264 = vpop.f32.mrf.mxu0
      %2265 = vdwg.mxu0
      %vm2266 = vcmask 50176
      %2267 = vst.msk [vmem:[#allocation3] sm:$0x3] %vm2266, %v2261
    $region25: #{multi_classification_forward.31} parent=1 // pred_fallthru
      _
    // Predicated region
    $region26: #{multi_classification_forward.31} parent=1 // pred_check
      _
    $region27: #{multi_classification_forward.31} parent=1 // pred_check_branch
      %2269 = sbr.rel (0) target = $region29
    $region28: #{multi_classification_forward.31} parent=1 // pred_region
      %s2271 = ssub.s32 32, 32
      %2272 = vsyncadd [#allocation4], %s2271
      %s2274 = sshll.u32 [#allocation3], 4
      %s2275 = int_to_ptr.vmem [resolvable:$true] %s2274
      %2277 = dma.vmem_to_hbm [thread:$0]  %s2275, 32, %s4, [#allocation4]
    $region29: #{multi_classification_forward.31} parent=1 // pred_fallthru
      _
    // Predicated region
    $region30: #{multi_classification_forward.31} parent=1 // pred_check
      _
    $region31: #{multi_classification_forward.31} parent=1 // pred_check_branch
      %2279 = sbr.rel (0) target = $region33
    $region32: #{multi_classification_forward.31} parent=1 // pred_region
      %2280 = dma.done [#allocation4], 32
    $region33: #{multi_classification_forward.31} parent=1 // pred_fallthru
      _
    %2281 = vsyncpa [#allocation4], 1

</llo_original>
